<compile_context>
chip_gen: v6e
topology: v6e:2x2x1
jax: 0.10.0
libtpu: 0.0.40
codegen_flags: <defaults>
</compile_context>

<pallas_src>
import math
import jax
import jax.numpy as jnp
from jax.experimental import pallas as pl
from jax.experimental.pallas import tpu as pltpu


CFG = dict(
    vocab=100, max_pos=16, hidden=32, heads=2, intermediate=64,
    img_in_ch=4, img_mid_ch=16, img_feat=64, fused=256,
    num_classes=10, num_classes_pad=128,
)


# --------------------------------------------------------------------------- in-kernel helpers
def _ln(x, g, b, eps=1e-12):
    mean = jnp.mean(x, axis=-1, keepdims=True)
    xc = x - mean
    var = jnp.mean(xc * xc, axis=-1, keepdims=True)
    return xc * jax.lax.rsqrt(var + eps) * g + b


def _gelu(x):
    # tanh-approx GELU (stand-in for BERT's erf GELU)
    return 0.5 * x * (1.0 + jnp.tanh(0.7978845608028654 * (x + 0.044715 * x * x * x)))


def _mm(x, w):
    # bf16 MXU matmul with f32 accumulation
    return jnp.dot(x.astype(jnp.bfloat16), w, preferred_element_type=jnp.float32)


def _vmem_call(kernel, out_shape, n_in, scratch_shapes=()):
    return pl.pallas_call(
        kernel,
        out_shape=out_shape,
        in_specs=[pl.BlockSpec(memory_space=pltpu.MemorySpace.VMEM)] * n_in,
        out_specs=pl.BlockSpec(memory_space=pltpu.MemorySpace.VMEM),
        scratch_shapes=list(scratch_shapes),
    )


# --------------------------------------------------------------------------- fused BERT branch
def _make_bert_kernel(B, S, H, heads):
    dh = H // heads
    scale = 1.0 / math.sqrt(dh)

    def kernel(emb_ref, mask_ref,
               ln0g_ref, ln0b_ref,
               wqkv_ref, bqkv_ref,
               wo_ref, bo_ref,
               ln1g_ref, ln1b_ref,
               wff1_ref, bff1_ref,
               wff2_ref, bff2_ref,
               ln2g_ref, ln2b_ref,
               wpool_ref, bpool_ref,
               wfc_ref, bfc_ref,
               o_ref,
               ctx_ref):
        # embeddings layernorm
        x = _ln(emb_ref[...], ln0g_ref[...], ln0b_ref[...])             # (B*S, H) f32

        # fused QKV projection: one (H, 3H) matmul instead of three
        qkv = _mm(x, wqkv_ref[...]) + bqkv_ref[...]                     # (B*S, 3H)
        mask_bias = (1.0 - mask_ref[...]) * (-10000.0)                  # (B, S)

        # per-head attention; context blocks written into VMEM scratch (no host transposes)
        for h in range(heads):
            q = qkv[:, h * dh:(h + 1) * dh].reshape(B, S, dh)
            k = qkv[:, H + h * dh:H + (h + 1) * dh].reshape(B, S, dh)
            v = qkv[:, 2 * H + h * dh:2 * H + (h + 1) * dh].reshape(B, S, dh)
            s = jnp.einsum("bqd,bkd->bqk",
                           q.astype(jnp.bfloat16), k.astype(jnp.bfloat16),
                           preferred_element_type=jnp.float32) * scale
            s = s + mask_bias[:, None, :]
            s_max = jnp.max(s, axis=-1, keepdims=True)
            p = jnp.exp(s - s_max)
            p = p * pl.reciprocal(jnp.sum(p, axis=-1, keepdims=True), approx=True)
            ctx_h = jnp.einsum("bqk,bkd->bqd",
                               p.astype(jnp.bfloat16), v.astype(jnp.bfloat16),
                               preferred_element_type=jnp.float32)      # (B, S, dh)
            ctx_ref[:, h * dh:(h + 1) * dh] = ctx_h.reshape(B * S, dh)

        attn_out = _mm(ctx_ref[...], wo_ref[...]) + bo_ref[...]
        x = _ln(x + attn_out, ln1g_ref[...], ln1b_ref[...])

        # FFN
        h1 = _gelu(_mm(x, wff1_ref[...]) + bff1_ref[...])
        ff = _mm(h1, wff2_ref[...]) + bff2_ref[...]
        x = _ln(x + ff, ln2g_ref[...], ln2b_ref[...])

        # pooler (tanh over [CLS]) + bert_fc, still inside the same kernel
        cls = x.reshape(B, S, H)[:, 0, :]                               # (B, H)
        pooled = jnp.tanh(_mm(cls, wpool_ref[...]) + bpool_ref[...])
        o_ref[...] = (_mm(pooled, wfc_ref[...]) + bfc_ref[...]).astype(o_ref.dtype)

    return kernel


def bert_branch(params, input_ids, attention_mask):
    B, S = input_ids.shape
    H, F = CFG["hidden"], CFG["fused"]

    # embedding-table gathers stay as JAX glue
    emb = (params["word_emb"][input_ids]
           + params["pos_emb"][None, :S, :]
           + params["type_emb"][0][None, None, :]).reshape(B * S, H)

    kernel = _make_bert_kernel(B, S, H, CFG["heads"])
    inputs = (emb, attention_mask.astype(jnp.float32),
              params["emb_ln_g"], params["emb_ln_b"],
              params["wqkv"], params["bqkv"],
              params["wo"], params["bo"],
              params["attn_ln_g"], params["attn_ln_b"],
              params["w_ff1"], params["b_ff1"],
              params["w_ff2"], params["b_ff2"],
              params["ffn_ln_g"], params["ffn_ln_b"],
              params["pooler_w"], params["pooler_b"],
              params["bert_fc_w"], params["bert_fc_b"])
    return _vmem_call(
        kernel,
        jax.ShapeDtypeStruct((B, F), jnp.float32),
        len(inputs),
        scratch_shapes=[pltpu.VMEM((B * S, H), jnp.float32)],           # attention context
    )(*inputs)


# --------------------------------------------------------------------------- fused image branch
def _make_resnet_kernel(B, Hi, Wi, Cin, Cmid, Cfeat):
    taps = [(di, dj) for di in range(3) for dj in range(3)]

    def kernel(xp_ref, w1_ref, b1_ref, w2_ref, b2_ref, wfc_ref, bfc_ref,
               o_ref, p1_ref, a1p_ref, p2_ref):
        x = xp_ref[...]                                                 # (B, Hi+2, Wi+2, Cin)

        # conv1 as ONE im2col matmul (K = 9*Cin); patch buffer in VMEM scratch
        for t, (di, dj) in enumerate(taps):
            p1_ref[:, t * Cin:(t + 1) * Cin] = (
                x[:, di:di + Hi, dj:dj + Wi, :].reshape(B * Hi * Wi, Cin))
        a1 = jnp.maximum(_mm(p1_ref[...], w1_ref[...]) + b1_ref[...], 0.0)   # (B*Hi*Wi, Cmid)

        # zero-padded conv1 activation kept in VMEM scratch (no HBM round trip)
        a1p_ref[...] = jnp.zeros_like(a1p_ref)
        a1p_ref[:, 1:1 + Hi, 1:1 + Wi, :] = a1.reshape(B, Hi, Wi, Cmid)
        a1p = a1p_ref[...]

        # conv2 as ONE im2col matmul (K = 9*Cmid)
        for t, (di, dj) in enumerate(taps):
            p2_ref[:, t * Cmid:(t + 1) * Cmid] = (
                a1p[:, di:di + Hi, dj:dj + Wi, :].reshape(B * Hi * Wi, Cmid))
        a2 = jnp.maximum(_mm(p2_ref[...], w2_ref[...]) + b2_ref[...], 0.0)   # (B*Hi*Wi, Cfeat)

        # global average pool + resnet_fc, fused in the same kernel
        feat = jnp.mean(a2.reshape(B, Hi * Wi, Cfeat), axis=1)          # (B, Cfeat)
        o_ref[...] = (_mm(feat, wfc_ref[...]) + bfc_ref[...]).astype(o_ref.dtype)

    return kernel


def resnet_branch(params, images_nchw):
    B, _, Hi, Wi = images_nchw.shape
    Cin, Cmid, Cfeat, F = CFG["img_in_ch"], CFG["img_mid_ch"], CFG["img_feat"], CFG["fused"]

    # NCHW -> NHWC + "same" zero-pad (layout glue stays in JAX)
    x = jnp.transpose(images_nchw, (0, 2, 3, 1)).astype(jnp.float32)
    xp = jnp.pad(x, ((0, 0), (1, 1), (1, 1), (0, 0)))

    kernel = _make_resnet_kernel(B, Hi, Wi, Cin, Cmid, Cfeat)
    inputs = (xp, params["conv1_w"], params["conv1_b"],
              params["conv2_w"], params["conv2_b"],
              params["resnet_fc_w"], params["resnet_fc_b"])
    return _vmem_call(
        kernel,
        jax.ShapeDtypeStruct((B, F), jnp.float32),
        len(inputs),
        scratch_shapes=[
            pltpu.VMEM((B * Hi * Wi, 9 * Cin), jnp.float32),            # im2col buf conv1
            pltpu.VMEM((B, Hi + 2, Wi + 2, Cmid), jnp.float32),         # padded conv1 act.
            pltpu.VMEM((B * Hi * Wi, 9 * Cmid), jnp.float32),           # im2col buf conv2
        ],
    )(*inputs)


# --------------------------------------------------------------------------- fusion head
def _head_kernel(t_ref, i_ref, wt_ref, wi_ref, b_ref, o_ref):
    # logits = text @ W_text + image @ W_img + b  (no concat; lane-dense padded output)
    acc = _mm(t_ref[...], wt_ref[...]) + _mm(i_ref[...], wi_ref[...])
    o_ref[...] = (acc + b_ref[...]).astype(o_ref.dtype)


def multimodal_forward(params, input_ids, attention_mask, images):
    text_features = bert_branch(params, input_ids, attention_mask)      # (B, 256)
    image_features = resnet_branch(params, images)                      # (B, 256)
    B = text_features.shape[0]
    logits_pad = _vmem_call(
        _head_kernel,
        jax.ShapeDtypeStruct((B, CFG["num_classes_pad"]), jnp.float32),
        5,
    )(text_features, image_features,
      params["fc_w_text"], params["fc_w_img"], params["fc_b"])
    return logits_pad[:, :CFG["num_classes"]]                           # (B, num_classes)


# --------------------------------------------------------------------------- parameters
def init_params(key):
    H, I, F = CFG["hidden"], CFG["intermediate"], CFG["fused"]
    Cin, Cmid, Cfeat = CFG["img_in_ch"], CFG["img_mid_ch"], CFG["img_feat"]
    NC, NCP = CFG["num_classes"], CFG["num_classes_pad"]
    p = {}
    ks = iter(jax.random.split(key, 40))

    def nrm(shape):
        return jax.random.normal(next(ks), shape, jnp.float32) * 0.02

    bf = lambda a: a.astype(jnp.bfloat16)

    # BERT stand-in
    p["word_emb"] = nrm((CFG["vocab"], H))
    p["pos_emb"] = nrm((CFG["max_pos"], H))
    p["type_emb"] = nrm((2, H))
    p["emb_ln_g"], p["emb_ln_b"] = jnp.ones((1, H)), jnp.zeros((1, H))
    p["wqkv"], p["bqkv"] = bf(nrm((H, 3 * H))), jnp.zeros((1, 3 * H))    # fused q|k|v
    p["wo"], p["bo"] = bf(nrm((H, H))), jnp.zeros((1, H))
    p["attn_ln_g"], p["attn_ln_b"] = jnp.ones((1, H)), jnp.zeros((1, H))
    p["w_ff1"], p["b_ff1"] = bf(nrm((H, I))), jnp.zeros((1, I))
    p["w_ff2"], p["b_ff2"] = bf(nrm((I, H))), jnp.zeros((1, H))
    p["ffn_ln_g"], p["ffn_ln_b"] = jnp.ones((1, H)), jnp.zeros((1, H))
    p["pooler_w"], p["pooler_b"] = bf(nrm((H, H))), jnp.zeros((1, H))
    p["bert_fc_w"], p["bert_fc_b"] = bf(nrm((H, F))), jnp.zeros((1, F))

    # ResNet stand-in: conv weights pre-reshaped for im2col ((3,3,Ci,Co) -> (9*Ci, Co))
    p["conv1_w"] = bf(nrm((3, 3, Cin, Cmid)).reshape(9 * Cin, Cmid))
    p["conv1_b"] = jnp.zeros((1, Cmid))
    p["conv2_w"] = bf(nrm((3, 3, Cmid, Cfeat)).reshape(9 * Cmid, Cfeat))
    p["conv2_b"] = jnp.zeros((1, Cfeat))
    p["resnet_fc_w"] = bf(nrm((Cfeat, F)))
    p["resnet_fc_b"] = jnp.zeros((1, F))

    # Fusion head fc(512 -> NC): split into text/image halves, lane-padded to 128
    fc_w = nrm((2 * F, NC))
    fc_w_pad = jnp.zeros((2 * F, NCP), jnp.float32).at[:, :NC].set(fc_w)
    p["fc_w_text"] = bf(fc_w_pad[:F])
    p["fc_w_img"] = bf(fc_w_pad[F:])
    p["fc_b"] = jnp.zeros((1, NCP))
    return p


# --------------------------------------------------------------------------- main
if __name__ == "__main__":
    key = jax.random.PRNGKey(0)
    k_param, k_ids, k_img = jax.random.split(key, 3)

    B, S = 2, 8
    params = init_params(k_param)

    input_ids = jax.random.randint(k_ids, (B, S), 0, CFG["vocab"], dtype=jnp.int32)
    attention_mask = jnp.ones((B, S), jnp.float32).at[1, S - 2:].set(0.0)
    images = jax.random.normal(k_img, (B, CFG["img_in_ch"], 16, 16), jnp.float32)  # NCHW

    fwd = jax.jit(multimodal_forward)
    logits = jax.block_until_ready(fwd(params, input_ids, attention_mask, images))
    assert logits.shape == (B, CFG["num_classes"])
    print("KERNEL_OK")
</pallas_src>

<mosaic_0001>
module attributes {stable_mosaic.version = 11 : i64} {
  func.func @kernel(%arg0: memref<2x18x18x4xf32, #tpu.memory_space<vmem>>, %arg1: memref<36x16xbf16, #tpu.memory_space<vmem>>, %arg2: memref<1x16xf32, #tpu.memory_space<vmem>>, %arg3: memref<144x64xbf16, #tpu.memory_space<vmem>>, %arg4: memref<1x64xf32, #tpu.memory_space<vmem>>, %arg5: memref<64x256xbf16, #tpu.memory_space<vmem>>, %arg6: memref<1x256xf32, #tpu.memory_space<vmem>>, %arg7: memref<2x256xf32, #tpu.memory_space<vmem>>, %arg8: memref<512x36xf32, #tpu.memory_space<vmem>>, %arg9: memref<2x18x18x16xf32, #tpu.memory_space<vmem>>, %arg10: memref<512x144xf32, #tpu.memory_space<vmem>>) attributes {dimension_semantics = [], scalar_prefetch = 0 : i64, scratch_operands = 3 : i64, tpu.core_type = #tpu.core_type<tc>} {
    %c0 = arith.constant 0 : index
    %c0_0 = arith.constant 0 : index
    %c0_1 = arith.constant 0 : index
    %c0_2 = arith.constant 0 : index
    %0 = vector.load %arg0[%c0, %c0_0, %c0_1, %c0_2] : memref<2x18x18x4xf32, #tpu.memory_space<vmem>>, vector<2x18x18x4xf32>
    %1 = vector.extract_strided_slice %0 {offsets = [0, 0, 0, 0], sizes = [2, 16, 16, 4], strides = [1, 1, 1, 1]} : vector<2x18x18x4xf32> to vector<2x16x16x4xf32>
    %2 = vector.shape_cast %1 : vector<2x16x16x4xf32> to vector<512x4xf32>
    %c0_3 = arith.constant 0 : index
    %c0_4 = arith.constant 0 : index
    %3 = vector.load %arg8[%c0_3, %c0_4] : memref<512x36xf32, #tpu.memory_space<vmem>>, vector<512x4xf32>
    tpu.vector_store %arg8[%c0_3, %c0_4], %2 {strides = array<i32>} : memref<512x36xf32, #tpu.memory_space<vmem>>, vector<512x4xf32>,
    %4 = vector.extract_strided_slice %0 {offsets = [0, 0, 1, 0], sizes = [2, 16, 16, 4], strides = [1, 1, 1, 1]} : vector<2x18x18x4xf32> to vector<2x16x16x4xf32>
    %5 = vector.shape_cast %4 : vector<2x16x16x4xf32> to vector<512x4xf32>
    %c0_5 = arith.constant 0 : index
    %c4 = arith.constant 4 : index
    %6 = vector.load %arg8[%c0_5, %c4] : memref<512x36xf32, #tpu.memory_space<vmem>>, vector<512x4xf32>
    tpu.vector_store %arg8[%c0_5, %c4], %5 {strides = array<i32>} : memref<512x36xf32, #tpu.memory_space<vmem>>, vector<512x4xf32>,
    %7 = vector.extract_strided_slice %0 {offsets = [0, 0, 2, 0], sizes = [2, 16, 16, 4], strides = [1, 1, 1, 1]} : vector<2x18x18x4xf32> to vector<2x16x16x4xf32>
    %8 = vector.shape_cast %7 : vector<2x16x16x4xf32> to vector<512x4xf32>
    %c0_6 = arith.constant 0 : index
    %c8 = arith.constant 8 : index
    %9 = vector.load %arg8[%c0_6, %c8] : memref<512x36xf32, #tpu.memory_space<vmem>>, vector<512x4xf32>
    tpu.vector_store %arg8[%c0_6, %c8], %8 {strides = array<i32>} : memref<512x36xf32, #tpu.memory_space<vmem>>, vector<512x4xf32>,
    %10 = vector.extract_strided_slice %0 {offsets = [0, 1, 0, 0], sizes = [2, 16, 16, 4], strides = [1, 1, 1, 1]} : vector<2x18x18x4xf32> to vector<2x16x16x4xf32>
    %11 = vector.shape_cast %10 : vector<2x16x16x4xf32> to vector<512x4xf32>
    %c0_7 = arith.constant 0 : index
    %c12 = arith.constant 12 : index
    %12 = vector.load %arg8[%c0_7, %c12] : memref<512x36xf32, #tpu.memory_space<vmem>>, vector<512x4xf32>
    tpu.vector_store %arg8[%c0_7, %c12], %11 {strides = array<i32>} : memref<512x36xf32, #tpu.memory_space<vmem>>, vector<512x4xf32>,
    %13 = vector.extract_strided_slice %0 {offsets = [0, 1, 1, 0], sizes = [2, 16, 16, 4], strides = [1, 1, 1, 1]} : vector<2x18x18x4xf32> to vector<2x16x16x4xf32>
    %14 = vector.shape_cast %13 : vector<2x16x16x4xf32> to vector<512x4xf32>
    %c0_8 = arith.constant 0 : index
    %c16 = arith.constant 16 : index
    %15 = vector.load %arg8[%c0_8, %c16] : memref<512x36xf32, #tpu.memory_space<vmem>>, vector<512x4xf32>
    tpu.vector_store %arg8[%c0_8, %c16], %14 {strides = array<i32>} : memref<512x36xf32, #tpu.memory_space<vmem>>, vector<512x4xf32>,
    %16 = vector.extract_strided_slice %0 {offsets = [0, 1, 2, 0], sizes = [2, 16, 16, 4], strides = [1, 1, 1, 1]} : vector<2x18x18x4xf32> to vector<2x16x16x4xf32>
    %17 = vector.shape_cast %16 : vector<2x16x16x4xf32> to vector<512x4xf32>
    %c0_9 = arith.constant 0 : index
    %c20 = arith.constant 20 : index
    %18 = vector.load %arg8[%c0_9, %c20] : memref<512x36xf32, #tpu.memory_space<vmem>>, vector<512x4xf32>
    tpu.vector_store %arg8[%c0_9, %c20], %17 {strides = array<i32>} : memref<512x36xf32, #tpu.memory_space<vmem>>, vector<512x4xf32>,
    %19 = vector.extract_strided_slice %0 {offsets = [0, 2, 0, 0], sizes = [2, 16, 16, 4], strides = [1, 1, 1, 1]} : vector<2x18x18x4xf32> to vector<2x16x16x4xf32>
    %20 = vector.shape_cast %19 : vector<2x16x16x4xf32> to vector<512x4xf32>
    %c0_10 = arith.constant 0 : index
    %c24 = arith.constant 24 : index
    %21 = vector.load %arg8[%c0_10, %c24] : memref<512x36xf32, #tpu.memory_space<vmem>>, vector<512x4xf32>
    tpu.vector_store %arg8[%c0_10, %c24], %20 {strides = array<i32>} : memref<512x36xf32, #tpu.memory_space<vmem>>, vector<512x4xf32>,
    %22 = vector.extract_strided_slice %0 {offsets = [0, 2, 1, 0], sizes = [2, 16, 16, 4], strides = [1, 1, 1, 1]} : vector<2x18x18x4xf32> to vector<2x16x16x4xf32>
    %23 = vector.shape_cast %22 : vector<2x16x16x4xf32> to vector<512x4xf32>
    %c0_11 = arith.constant 0 : index
    %c28 = arith.constant 28 : index
    %24 = vector.load %arg8[%c0_11, %c28] : memref<512x36xf32, #tpu.memory_space<vmem>>, vector<512x4xf32>
    tpu.vector_store %arg8[%c0_11, %c28], %23 {strides = array<i32>} : memref<512x36xf32, #tpu.memory_space<vmem>>, vector<512x4xf32>,
    %25 = vector.extract_strided_slice %0 {offsets = [0, 2, 2, 0], sizes = [2, 16, 16, 4], strides = [1, 1, 1, 1]} : vector<2x18x18x4xf32> to vector<2x16x16x4xf32>
    %26 = vector.shape_cast %25 : vector<2x16x16x4xf32> to vector<512x4xf32>
    %c0_12 = arith.constant 0 : index
    %c32 = arith.constant 32 : index
    %27 = vector.load %arg8[%c0_12, %c32] : memref<512x36xf32, #tpu.memory_space<vmem>>, vector<512x4xf32>
    tpu.vector_store %arg8[%c0_12, %c32], %26 {strides = array<i32>} : memref<512x36xf32, #tpu.memory_space<vmem>>, vector<512x4xf32>,
    %c0_13 = arith.constant 0 : index
    %c0_14 = arith.constant 0 : index
    %28 = vector.load %arg8[%c0_13, %c0_14] : memref<512x36xf32, #tpu.memory_space<vmem>>, vector<512x36xf32>
    %c0_15 = arith.constant 0 : index
    %c0_16 = arith.constant 0 : index
    %29 = vector.load %arg1[%c0_15, %c0_16] : memref<36x16xbf16, #tpu.memory_space<vmem>>, vector<36x16xbf16>
    %30 = arith.truncf %28 : vector<512x36xf32> to vector<512x36xbf16>
    %cst = arith.constant dense<0.000000e+00> : vector<512x16xf32>
    %31 = tpu.matmul %30, %29, %cst {dimension_numbers = #tpu.dot_dimension_numbers<[1], [0], [0], [1], [0, 0, 1, 1], [], []>} : vector<512x36xbf16>, vector<36x16xbf16>, vector<512x16xf32> -> vector<512x16xf32>
    %c0_17 = arith.constant 0 : index
    %c0_18 = arith.constant 0 : index
    %32 = vector.load %arg2[%c0_17, %c0_18] : memref<1x16xf32, #tpu.memory_space<vmem>>, vector<1x16xf32>
    %33 = vector.broadcast %32 : vector<1x16xf32> to vector<512x16xf32>
    %34 = arith.addf %31, %33 : vector<512x16xf32>
    %cst_19 = arith.constant 0.000000e+00 : f32
    %35 = vector.broadcast %cst_19 : f32 to vector<512x16xf32>
    %36 = arith.maximumf %34, %35 : vector<512x16xf32>
    %cst_20 = arith.constant 0.000000e+00 : f32
    %37 = vector.broadcast %cst_20 : f32 to vector<2x18x18x16xf32>
    %c0_21 = arith.constant 0 : index
    %c0_22 = arith.constant 0 : index
    %c0_23 = arith.constant 0 : index
    %c0_24 = arith.constant 0 : index
    %38 = vector.load %arg9[%c0_21, %c0_22, %c0_23, %c0_24] : memref<2x18x18x16xf32, #tpu.memory_space<vmem>>, vector<2x18x18x16xf32>
    tpu.vector_store %arg9[%c0_21, %c0_22, %c0_23, %c0_24], %37 {strides = array<i32>} : memref<2x18x18x16xf32, #tpu.memory_space<vmem>>, vector<2x18x18x16xf32>,
    %39 = vector.shape_cast %36 : vector<512x16xf32> to vector<2x16x16x16xf32>
    %c0_25 = arith.constant 0 : index
    %c1 = arith.constant 1 : index
    %c1_26 = arith.constant 1 : index
    %c0_27 = arith.constant 0 : index
    %40 = vector.load %arg9[%c0_25, %c1, %c1_26, %c0_27] : memref<2x18x18x16xf32, #tpu.memory_space<vmem>>, vector<2x16x16x16xf32>
    tpu.vector_store %arg9[%c0_25, %c1, %c1_26, %c0_27], %39 {strides = array<i32>} : memref<2x18x18x16xf32, #tpu.memory_space<vmem>>, vector<2x16x16x16xf32>,
    %c0_28 = arith.constant 0 : index
    %c0_29 = arith.constant 0 : index
    %c0_30 = arith.constant 0 : index
    %c0_31 = arith.constant 0 : index
    %41 = vector.load %arg9[%c0_28, %c0_29, %c0_30, %c0_31] : memref<2x18x18x16xf32, #tpu.memory_space<vmem>>, vector<2x18x18x16xf32>
    %42 = vector.extract_strided_slice %41 {offsets = [0, 0, 0, 0], sizes = [2, 16, 16, 16], strides = [1, 1, 1, 1]} : vector<2x18x18x16xf32> to vector<2x16x16x16xf32>
    %43 = vector.shape_cast %42 : vector<2x16x16x16xf32> to vector<512x16xf32>
    %c0_32 = arith.constant 0 : index
    %c0_33 = arith.constant 0 : index
    %44 = vector.load %arg10[%c0_32, %c0_33] : memref<512x144xf32, #tpu.memory_space<vmem>>, vector<512x16xf32>
    tpu.vector_store %arg10[%c0_32, %c0_33], %43 {strides = array<i32>} : memref<512x144xf32, #tpu.memory_space<vmem>>, vector<512x16xf32>,
    %45 = vector.extract_strided_slice %41 {offsets = [0, 0, 1, 0], sizes = [2, 16, 16, 16], strides = [1, 1, 1, 1]} : vector<2x18x18x16xf32> to vector<2x16x16x16xf32>
    %46 = vector.shape_cast %45 : vector<2x16x16x16xf32> to vector<512x16xf32>
    %c0_34 = arith.constant 0 : index
    %c16_35 = arith.constant 16 : index
    %47 = vector.load %arg10[%c0_34, %c16_35] : memref<512x144xf32, #tpu.memory_space<vmem>>, vector<512x16xf32>
    tpu.vector_store %arg10[%c0_34, %c16_35], %46 {strides = array<i32>} : memref<512x144xf32, #tpu.memory_space<vmem>>, vector<512x16xf32>,
    %48 = vector.extract_strided_slice %41 {offsets = [0, 0, 2, 0], sizes = [2, 16, 16, 16], strides = [1, 1, 1, 1]} : vector<2x18x18x16xf32> to vector<2x16x16x16xf32>
    %49 = vector.shape_cast %48 : vector<2x16x16x16xf32> to vector<512x16xf32>
    %c0_36 = arith.constant 0 : index
    %c32_37 = arith.constant 32 : index
    %50 = vector.load %arg10[%c0_36, %c32_37] : memref<512x144xf32, #tpu.memory_space<vmem>>, vector<512x16xf32>
    tpu.vector_store %arg10[%c0_36, %c32_37], %49 {strides = array<i32>} : memref<512x144xf32, #tpu.memory_space<vmem>>, vector<512x16xf32>,
    %51 = vector.extract_strided_slice %41 {offsets = [0, 1, 0, 0], sizes = [2, 16, 16, 16], strides = [1, 1, 1, 1]} : vector<2x18x18x16xf32> to vector<2x16x16x16xf32>
    %52 = vector.shape_cast %51 : vector<2x16x16x16xf32> to vector<512x16xf32>
    %c0_38 = arith.constant 0 : index
    %c48 = arith.constant 48 : index
    %53 = vector.load %arg10[%c0_38, %c48] : memref<512x144xf32, #tpu.memory_space<vmem>>, vector<512x16xf32>
    tpu.vector_store %arg10[%c0_38, %c48], %52 {strides = array<i32>} : memref<512x144xf32, #tpu.memory_space<vmem>>, vector<512x16xf32>,
    %54 = vector.extract_strided_slice %41 {offsets = [0, 1, 1, 0], sizes = [2, 16, 16, 16], strides = [1, 1, 1, 1]} : vector<2x18x18x16xf32> to vector<2x16x16x16xf32>
    %55 = vector.shape_cast %54 : vector<2x16x16x16xf32> to vector<512x16xf32>
    %c0_39 = arith.constant 0 : index
    %c64 = arith.constant 64 : index
    %56 = vector.load %arg10[%c0_39, %c64] : memref<512x144xf32, #tpu.memory_space<vmem>>, vector<512x16xf32>
    tpu.vector_store %arg10[%c0_39, %c64], %55 {strides = array<i32>} : memref<512x144xf32, #tpu.memory_space<vmem>>, vector<512x16xf32>,
    %57 = vector.extract_strided_slice %41 {offsets = [0, 1, 2, 0], sizes = [2, 16, 16, 16], strides = [1, 1, 1, 1]} : vector<2x18x18x16xf32> to vector<2x16x16x16xf32>
    %58 = vector.shape_cast %57 : vector<2x16x16x16xf32> to vector<512x16xf32>
    %c0_40 = arith.constant 0 : index
    %c80 = arith.constant 80 : index
    %59 = vector.load %arg10[%c0_40, %c80] : memref<512x144xf32, #tpu.memory_space<vmem>>, vector<512x16xf32>
    tpu.vector_store %arg10[%c0_40, %c80], %58 {strides = array<i32>} : memref<512x144xf32, #tpu.memory_space<vmem>>, vector<512x16xf32>,
    %60 = vector.extract_strided_slice %41 {offsets = [0, 2, 0, 0], sizes = [2, 16, 16, 16], strides = [1, 1, 1, 1]} : vector<2x18x18x16xf32> to vector<2x16x16x16xf32>
    %61 = vector.shape_cast %60 : vector<2x16x16x16xf32> to vector<512x16xf32>
    %c0_41 = arith.constant 0 : index
    %c96 = arith.constant 96 : index
    %62 = vector.load %arg10[%c0_41, %c96] : memref<512x144xf32, #tpu.memory_space<vmem>>, vector<512x16xf32>
    tpu.vector_store %arg10[%c0_41, %c96], %61 {strides = array<i32>} : memref<512x144xf32, #tpu.memory_space<vmem>>, vector<512x16xf32>,
    %63 = vector.extract_strided_slice %41 {offsets = [0, 2, 1, 0], sizes = [2, 16, 16, 16], strides = [1, 1, 1, 1]} : vector<2x18x18x16xf32> to vector<2x16x16x16xf32>
    %64 = vector.shape_cast %63 : vector<2x16x16x16xf32> to vector<512x16xf32>
    %c0_42 = arith.constant 0 : index
    %c112 = arith.constant 112 : index
    %65 = vector.load %arg10[%c0_42, %c112] : memref<512x144xf32, #tpu.memory_space<vmem>>, vector<512x16xf32>
    tpu.vector_store %arg10[%c0_42, %c112], %64 {strides = array<i32>} : memref<512x144xf32, #tpu.memory_space<vmem>>, vector<512x16xf32>,
    %66 = vector.extract_strided_slice %41 {offsets = [0, 2, 2, 0], sizes = [2, 16, 16, 16], strides = [1, 1, 1, 1]} : vector<2x18x18x16xf32> to vector<2x16x16x16xf32>
    %67 = vector.shape_cast %66 : vector<2x16x16x16xf32> to vector<512x16xf32>
    %c0_43 = arith.constant 0 : index
    %c128 = arith.constant 128 : index
    %68 = vector.load %arg10[%c0_43, %c128] : memref<512x144xf32, #tpu.memory_space<vmem>>, vector<512x16xf32>
    tpu.vector_store %arg10[%c0_43, %c128], %67 {strides = array<i32>} : memref<512x144xf32, #tpu.memory_space<vmem>>, vector<512x16xf32>,
    %c0_44 = arith.constant 0 : index
    %c0_45 = arith.constant 0 : index
    %69 = vector.load %arg10[%c0_44, %c0_45] : memref<512x144xf32, #tpu.memory_space<vmem>>, vector<512x144xf32>
    %c0_46 = arith.constant 0 : index
    %c0_47 = arith.constant 0 : index
    %70 = vector.load %arg3[%c0_46, %c0_47] : memref<144x64xbf16, #tpu.memory_space<vmem>>, vector<144x64xbf16>
    %71 = arith.truncf %69 : vector<512x144xf32> to vector<512x144xbf16>
    %cst_48 = arith.constant dense<0.000000e+00> : vector<512x64xf32>
    %72 = tpu.matmul %71, %70, %cst_48 {dimension_numbers = #tpu.dot_dimension_numbers<[1], [0], [0], [1], [0, 0, 1, 1], [], []>} : vector<512x144xbf16>, vector<144x64xbf16>, vector<512x64xf32> -> vector<512x64xf32>
    %c0_49 = arith.constant 0 : index
    %c0_50 = arith.constant 0 : index
    %73 = vector.load %arg4[%c0_49, %c0_50] : memref<1x64xf32, #tpu.memory_space<vmem>>, vector<1x64xf32>
    %74 = vector.broadcast %73 : vector<1x64xf32> to vector<512x64xf32>
    %75 = arith.addf %72, %74 : vector<512x64xf32>
    %cst_51 = arith.constant 0.000000e+00 : f32
    %76 = vector.broadcast %cst_51 : f32 to vector<512x64xf32>
    %77 = arith.maximumf %75, %76 : vector<512x64xf32>
    %78 = vector.shape_cast %77 : vector<512x64xf32> to vector<2x256x64xf32>
    %cst_52 = arith.constant dense<0.000000e+00> : vector<2x64xf32>
    %79 = vector.multi_reduction <add>, %78, %cst_52 [1] : vector<2x256x64xf32> to vector<2x64xf32>
    %cst_53 = arith.constant 2.560000e+02 : f32
    %80 = vector.broadcast %cst_53 : f32 to vector<2x64xf32>
    %81 = arith.divf %79, %80 : vector<2x64xf32>
    %c0_54 = arith.constant 0 : index
    %c0_55 = arith.constant 0 : index
    %82 = vector.load %arg5[%c0_54, %c0_55] : memref<64x256xbf16, #tpu.memory_space<vmem>>, vector<64x256xbf16>
    %83 = arith.truncf %81 : vector<2x64xf32> to vector<2x64xbf16>
    %cst_56 = arith.constant dense<0.000000e+00> : vector<2x256xf32>
    %84 = tpu.matmul %83, %82, %cst_56 {dimension_numbers = #tpu.dot_dimension_numbers<[1], [0], [0], [1], [0, 0, 1, 1], [], []>} : vector<2x64xbf16>, vector<64x256xbf16>, vector<2x256xf32> -> vector<2x256xf32>
    %c0_57 = arith.constant 0 : index
    %c0_58 = arith.constant 0 : index
    %85 = vector.load %arg6[%c0_57, %c0_58] : memref<1x256xf32, #tpu.memory_space<vmem>>, vector<1x256xf32>
    %86 = vector.broadcast %85 : vector<1x256xf32> to vector<2x256xf32>
    %87 = arith.addf %84, %86 : vector<2x256xf32>
    %c0_59 = arith.constant 0 : index
    %c0_60 = arith.constant 0 : index
    %88 = vector.load %arg7[%c0_59, %c0_60] : memref<2x256xf32, #tpu.memory_space<vmem>>, vector<2x256xf32>
    tpu.vector_store %arg7[%c0_59, %c0_60], %87 {strides = array<i32>} : memref<2x256xf32, #tpu.memory_space<vmem>>, vector<2x256xf32>,
    return
  }
}

module attributes {stable_mosaic.version = 11 : i64} {
  func.func @_head_kernel(%arg0: memref<2x256xf32, #tpu.memory_space<vmem>>, %arg1: memref<2x256xf32, #tpu.memory_space<vmem>>, %arg2: memref<256x128xbf16, #tpu.memory_space<vmem>>, %arg3: memref<256x128xbf16, #tpu.memory_space<vmem>>, %arg4: memref<1x128xf32, #tpu.memory_space<vmem>>, %arg5: memref<2x128xf32, #tpu.memory_space<vmem>>) attributes {dimension_semantics = [], scalar_prefetch = 0 : i64, scratch_operands = 0 : i64, tpu.core_type = #tpu.core_type<tc>} {
    %c0 = arith.constant 0 : index
    %c0_0 = arith.constant 0 : index
    %0 = vector.load %arg0[%c0, %c0_0] : memref<2x256xf32, #tpu.memory_space<vmem>>, vector<2x256xf32>
    %c0_1 = arith.constant 0 : index
    %c0_2 = arith.constant 0 : index
    %1 = vector.load %arg2[%c0_1, %c0_2] : memref<256x128xbf16, #tpu.memory_space<vmem>>, vector<256x128xbf16>
    %2 = arith.truncf %0 : vector<2x256xf32> to vector<2x256xbf16>
    %cst = arith.constant dense<0.000000e+00> : vector<2x128xf32>
    %3 = tpu.matmul %2, %1, %cst {dimension_numbers = #tpu.dot_dimension_numbers<[1], [0], [0], [1], [0, 0, 1, 1], [], []>} : vector<2x256xbf16>, vector<256x128xbf16>, vector<2x128xf32> -> vector<2x128xf32>
    %c0_3 = arith.constant 0 : index
    %c0_4 = arith.constant 0 : index
    %4 = vector.load %arg1[%c0_3, %c0_4] : memref<2x256xf32, #tpu.memory_space<vmem>>, vector<2x256xf32>
    %c0_5 = arith.constant 0 : index
    %c0_6 = arith.constant 0 : index
    %5 = vector.load %arg3[%c0_5, %c0_6] : memref<256x128xbf16, #tpu.memory_space<vmem>>, vector<256x128xbf16>
    %6 = arith.truncf %4 : vector<2x256xf32> to vector<2x256xbf16>
    %cst_7 = arith.constant dense<0.000000e+00> : vector<2x128xf32>
    %7 = tpu.matmul %6, %5, %cst_7 {dimension_numbers = #tpu.dot_dimension_numbers<[1], [0], [0], [1], [0, 0, 1, 1], [], []>} : vector<2x256xbf16>, vector<256x128xbf16>, vector<2x128xf32> -> vector<2x128xf32>
    %8 = arith.addf %3, %7 : vector<2x128xf32>
    %c0_8 = arith.constant 0 : index
    %c0_9 = arith.constant 0 : index
    %9 = vector.load %arg4[%c0_8, %c0_9] : memref<1x128xf32, #tpu.memory_space<vmem>>, vector<1x128xf32>
    %10 = vector.broadcast %9 : vector<1x128xf32> to vector<2x128xf32>
    %11 = arith.addf %8, %10 : vector<2x128xf32>
    %c0_10 = arith.constant 0 : index
    %c0_11 = arith.constant 0 : index
    %12 = vector.load %arg5[%c0_10, %c0_11] : memref<2x128xf32, #tpu.memory_space<vmem>>, vector<2x128xf32>
    tpu.vector_store %arg5[%c0_10, %c0_11], %11 {strides = array<i32>} : memref<2x128xf32, #tpu.memory_space<vmem>>, vector<2x128xf32>,
    return
  }
}

module attributes {stable_mosaic.version = 11 : i64} {
  func.func @kernel(%arg0: memref<16x32xf32, #tpu.memory_space<vmem>>, %arg1: memref<2x8xf32, #tpu.memory_space<vmem>>, %arg2: memref<1x32xf32, #tpu.memory_space<vmem>>, %arg3: memref<1x32xf32, #tpu.memory_space<vmem>>, %arg4: memref<32x96xbf16, #tpu.memory_space<vmem>>, %arg5: memref<1x96xf32, #tpu.memory_space<vmem>>, %arg6: memref<32x32xbf16, #tpu.memory_space<vmem>>, %arg7: memref<1x32xf32, #tpu.memory_space<vmem>>, %arg8: memref<1x32xf32, #tpu.memory_space<vmem>>, %arg9: memref<1x32xf32, #tpu.memory_space<vmem>>, %arg10: memref<32x64xbf16, #tpu.memory_space<vmem>>, %arg11: memref<1x64xf32, #tpu.memory_space<vmem>>, %arg12: memref<64x32xbf16, #tpu.memory_space<vmem>>, %arg13: memref<1x32xf32, #tpu.memory_space<vmem>>, %arg14: memref<1x32xf32, #tpu.memory_space<vmem>>, %arg15: memref<1x32xf32, #tpu.memory_space<vmem>>, %arg16: memref<32x32xbf16, #tpu.memory_space<vmem>>, %arg17: memref<1x32xf32, #tpu.memory_space<vmem>>, %arg18: memref<32x256xbf16, #tpu.memory_space<vmem>>, %arg19: memref<1x256xf32, #tpu.memory_space<vmem>>, %arg20: memref<2x256xf32, #tpu.memory_space<vmem>>, %arg21: memref<16x32xf32, #tpu.memory_space<vmem>>) attributes {dimension_semantics = [], scalar_prefetch = 0 : i64, scratch_operands = 1 : i64, tpu.core_type = #tpu.core_type<tc>} {
    %c0 = arith.constant 0 : index
    %c0_0 = arith.constant 0 : index
    %0 = vector.load %arg0[%c0, %c0_0] : memref<16x32xf32, #tpu.memory_space<vmem>>, vector<16x32xf32>
    %c0_1 = arith.constant 0 : index
    %c0_2 = arith.constant 0 : index
    %1 = vector.load %arg2[%c0_1, %c0_2] : memref<1x32xf32, #tpu.memory_space<vmem>>, vector<1x32xf32>
    %c0_3 = arith.constant 0 : index
    %c0_4 = arith.constant 0 : index
    %2 = vector.load %arg3[%c0_3, %c0_4] : memref<1x32xf32, #tpu.memory_space<vmem>>, vector<1x32xf32>
    %cst = arith.constant dense<0.000000e+00> : vector<16xf32>
    %3 = vector.multi_reduction <add>, %0, %cst [1] : vector<16x32xf32> to vector<16xf32>
    %4 = vector.shape_cast %3 : vector<16xf32> to vector<16x1xf32>
    %cst_5 = arith.constant 3.200000e+01 : f32
    %5 = vector.broadcast %cst_5 : f32 to vector<16x1xf32>
    %6 = arith.divf %4, %5 : vector<16x1xf32>
    %7 = vector.broadcast %6 : vector<16x1xf32> to vector<16x32xf32>
    %8 = arith.subf %0, %7 : vector<16x32xf32>
    %9 = arith.mulf %8, %8 : vector<16x32xf32>
    %cst_6 = arith.constant dense<0.000000e+00> : vector<16xf32>
    %10 = vector.multi_reduction <add>, %9, %cst_6 [1] : vector<16x32xf32> to vector<16xf32>
    %11 = vector.shape_cast %10 : vector<16xf32> to vector<16x1xf32>
    %cst_7 = arith.constant 3.200000e+01 : f32
    %12 = vector.broadcast %cst_7 : f32 to vector<16x1xf32>
    %13 = arith.divf %11, %12 : vector<16x1xf32>
    %cst_8 = arith.constant 9.99999996E-13 : f32
    %14 = vector.broadcast %cst_8 : f32 to vector<16x1xf32>
    %15 = arith.addf %13, %14 : vector<16x1xf32>
    %16 = math.rsqrt %15 : vector<16x1xf32>
    %17 = vector.broadcast %16 : vector<16x1xf32> to vector<16x32xf32>
    %18 = arith.mulf %8, %17 : vector<16x32xf32>
    %19 = vector.broadcast %1 : vector<1x32xf32> to vector<16x32xf32>
    %20 = arith.mulf %18, %19 : vector<16x32xf32>
    %21 = vector.broadcast %2 : vector<1x32xf32> to vector<16x32xf32>
    %22 = arith.addf %20, %21 : vector<16x32xf32>
    %c0_9 = arith.constant 0 : index
    %c0_10 = arith.constant 0 : index
    %23 = vector.load %arg4[%c0_9, %c0_10] : memref<32x96xbf16, #tpu.memory_space<vmem>>, vector<32x96xbf16>
    %24 = arith.truncf %22 : vector<16x32xf32> to vector<16x32xbf16>
    %cst_11 = arith.constant dense<0.000000e+00> : vector<16x96xf32>
    %25 = tpu.matmul %24, %23, %cst_11 {dimension_numbers = #tpu.dot_dimension_numbers<[1], [0], [0], [1], [0, 0, 1, 1], [], []>} : vector<16x32xbf16>, vector<32x96xbf16>, vector<16x96xf32> -> vector<16x96xf32>
    %c0_12 = arith.constant 0 : index
    %c0_13 = arith.constant 0 : index
    %26 = vector.load %arg5[%c0_12, %c0_13] : memref<1x96xf32, #tpu.memory_space<vmem>>, vector<1x96xf32>
    %27 = vector.broadcast %26 : vector<1x96xf32> to vector<16x96xf32>
    %28 = arith.addf %25, %27 : vector<16x96xf32>
    %c0_14 = arith.constant 0 : index
    %c0_15 = arith.constant 0 : index
    %29 = vector.load %arg1[%c0_14, %c0_15] : memref<2x8xf32, #tpu.memory_space<vmem>>, vector<2x8xf32>
    %cst_16 = arith.constant 1.000000e+00 : f32
    %30 = vector.broadcast %cst_16 : f32 to vector<2x8xf32>
    %31 = arith.subf %30, %29 : vector<2x8xf32>
    %cst_17 = arith.constant -1.000000e+04 : f32
    %32 = vector.broadcast %cst_17 : f32 to vector<2x8xf32>
    %33 = arith.mulf %31, %32 : vector<2x8xf32>
    %34 = vector.extract_strided_slice %28 {offsets = [0, 0], sizes = [16, 16], strides = [1, 1]} : vector<16x96xf32> to vector<16x16xf32>
    %35 = vector.shape_cast %34 : vector<16x16xf32> to vector<2x8x16xf32>
    %36 = vector.extract_strided_slice %28 {offsets = [0, 32], sizes = [16, 16], strides = [1, 1]} : vector<16x96xf32> to vector<16x16xf32>
    %37 = vector.shape_cast %36 : vector<16x16xf32> to vector<2x8x16xf32>
    %38 = vector.extract_strided_slice %28 {offsets = [0, 64], sizes = [16, 16], strides = [1, 1]} : vector<16x96xf32> to vector<16x16xf32>
    %39 = vector.shape_cast %38 : vector<16x16xf32> to vector<2x8x16xf32>
    %40 = arith.truncf %35 : vector<2x8x16xf32> to vector<2x8x16xbf16>
    %41 = arith.truncf %37 : vector<2x8x16xf32> to vector<2x8x16xbf16>
    "tpu.trace_start"() <{level = 10 : i32, message = "bqd,bkd->bqk"}> : () -> ()
    %cst_18 = arith.constant dense<0.000000e+00> : vector<2x8x8xf32>
    %42 = tpu.matmul %40, %41, %cst_18 {dimension_numbers = #tpu.dot_dimension_numbers<[2], [2], [1], [1], [0, 0, 0, 1, 1, 1], [0], [0]>} : vector<2x8x16xbf16>, vector<2x8x16xbf16>, vector<2x8x8xf32> -> vector<2x8x8xf32>
    "tpu.trace_stop"() : () -> ()
    %cst_19 = arith.constant 2.500000e-01 : f32
    %43 = vector.broadcast %cst_19 : f32 to vector<2x8x8xf32>
    %44 = arith.mulf %42, %43 : vector<2x8x8xf32>
    %45 = vector.shape_cast %33 : vector<2x8xf32> to vector<2x1x8xf32>
    %46 = vector.broadcast %45 : vector<2x1x8xf32> to vector<2x8x8xf32>
    %47 = arith.addf %44, %46 : vector<2x8x8xf32>
    %cst_20 = arith.constant dense<0xFF800000> : vector<2x8xf32>
    %48 = vector.multi_reduction <maximumf>, %47, %cst_20 [2] : vector<2x8x8xf32> to vector<2x8xf32>
    %49 = vector.shape_cast %48 : vector<2x8xf32> to vector<2x8x1xf32>
    %50 = vector.broadcast %49 : vector<2x8x1xf32> to vector<2x8x8xf32>
    %51 = arith.subf %47, %50 : vector<2x8x8xf32>
    %52 = math.exp %51 : vector<2x8x8xf32>
    %cst_21 = arith.constant dense<0.000000e+00> : vector<2x8xf32>
    %53 = vector.multi_reduction <add>, %52, %cst_21 [2] : vector<2x8x8xf32> to vector<2x8xf32>
    %54 = vector.shape_cast %53 : vector<2x8xf32> to vector<2x8x1xf32>
    %55 = tpu.reciprocal %54 {approx = true} : vector<2x8x1xf32> -> vector<2x8x1xf32>
    %56 = vector.broadcast %55 : vector<2x8x1xf32> to vector<2x8x8xf32>
    %57 = arith.mulf %52, %56 : vector<2x8x8xf32>
    %58 = arith.truncf %57 : vector<2x8x8xf32> to vector<2x8x8xbf16>
    %59 = arith.truncf %39 : vector<2x8x16xf32> to vector<2x8x16xbf16>
    "tpu.trace_start"() <{level = 10 : i32, message = "bqk,bkd->bqd"}> : () -> ()
    %cst_22 = arith.constant dense<0.000000e+00> : vector<2x8x16xf32>
    %60 = tpu.matmul %58, %59, %cst_22 {dimension_numbers = #tpu.dot_dimension_numbers<[2], [1], [1], [2], [0, 0, 0, 1, 1, 2], [0], [0]>} : vector<2x8x8xbf16>, vector<2x8x16xbf16>, vector<2x8x16xf32> -> vector<2x8x16xf32>
    "tpu.trace_stop"() : () -> ()
    %61 = vector.shape_cast %60 : vector<2x8x16xf32> to vector<16x16xf32>
    %c0_23 = arith.constant 0 : index
    %c0_24 = arith.constant 0 : index
    %62 = vector.load %arg21[%c0_23, %c0_24] : memref<16x32xf32, #tpu.memory_space<vmem>>, vector<16x16xf32>
    tpu.vector_store %arg21[%c0_23, %c0_24], %61 {strides = array<i32>} : memref<16x32xf32, #tpu.memory_space<vmem>>, vector<16x16xf32>,
    %63 = vector.extract_strided_slice %28 {offsets = [0, 16], sizes = [16, 16], strides = [1, 1]} : vector<16x96xf32> to vector<16x16xf32>
    %64 = vector.shape_cast %63 : vector<16x16xf32> to vector<2x8x16xf32>
    %65 = vector.extract_strided_slice %28 {offsets = [0, 48], sizes = [16, 16], strides = [1, 1]} : vector<16x96xf32> to vector<16x16xf32>
    %66 = vector.shape_cast %65 : vector<16x16xf32> to vector<2x8x16xf32>
    %67 = vector.extract_strided_slice %28 {offsets = [0, 80], sizes = [16, 16], strides = [1, 1]} : vector<16x96xf32> to vector<16x16xf32>
    %68 = vector.shape_cast %67 : vector<16x16xf32> to vector<2x8x16xf32>
    %69 = arith.truncf %64 : vector<2x8x16xf32> to vector<2x8x16xbf16>
    %70 = arith.truncf %66 : vector<2x8x16xf32> to vector<2x8x16xbf16>
    "tpu.trace_start"() <{level = 10 : i32, message = "bqd,bkd->bqk"}> : () -> ()
    %cst_25 = arith.constant dense<0.000000e+00> : vector<2x8x8xf32>
    %71 = tpu.matmul %69, %70, %cst_25 {dimension_numbers = #tpu.dot_dimension_numbers<[2], [2], [1], [1], [0, 0, 0, 1, 1, 1], [0], [0]>} : vector<2x8x16xbf16>, vector<2x8x16xbf16>, vector<2x8x8xf32> -> vector<2x8x8xf32>
    "tpu.trace_stop"() : () -> ()
    %cst_26 = arith.constant 2.500000e-01 : f32
    %72 = vector.broadcast %cst_26 : f32 to vector<2x8x8xf32>
    %73 = arith.mulf %71, %72 : vector<2x8x8xf32>
    %74 = vector.shape_cast %33 : vector<2x8xf32> to vector<2x1x8xf32>
    %75 = vector.broadcast %74 : vector<2x1x8xf32> to vector<2x8x8xf32>
    %76 = arith.addf %73, %75 : vector<2x8x8xf32>
    %cst_27 = arith.constant dense<0xFF800000> : vector<2x8xf32>
    %77 = vector.multi_reduction <maximumf>, %76, %cst_27 [2] : vector<2x8x8xf32> to vector<2x8xf32>
    %78 = vector.shape_cast %77 : vector<2x8xf32> to vector<2x8x1xf32>
    %79 = vector.broadcast %78 : vector<2x8x1xf32> to vector<2x8x8xf32>
    %80 = arith.subf %76, %79 : vector<2x8x8xf32>
    %81 = math.exp %80 : vector<2x8x8xf32>
    %cst_28 = arith.constant dense<0.000000e+00> : vector<2x8xf32>
    %82 = vector.multi_reduction <add>, %81, %cst_28 [2] : vector<2x8x8xf32> to vector<2x8xf32>
    %83 = vector.shape_cast %82 : vector<2x8xf32> to vector<2x8x1xf32>
    %84 = tpu.reciprocal %83 {approx = true} : vector<2x8x1xf32> -> vector<2x8x1xf32>
    %85 = vector.broadcast %84 : vector<2x8x1xf32> to vector<2x8x8xf32>
    %86 = arith.mulf %81, %85 : vector<2x8x8xf32>
    %87 = arith.truncf %86 : vector<2x8x8xf32> to vector<2x8x8xbf16>
    %88 = arith.truncf %68 : vector<2x8x16xf32> to vector<2x8x16xbf16>
    "tpu.trace_start"() <{level = 10 : i32, message = "bqk,bkd->bqd"}> : () -> ()
    %cst_29 = arith.constant dense<0.000000e+00> : vector<2x8x16xf32>
    %89 = tpu.matmul %87, %88, %cst_29 {dimension_numbers = #tpu.dot_dimension_numbers<[2], [1], [1], [2], [0, 0, 0, 1, 1, 2], [0], [0]>} : vector<2x8x8xbf16>, vector<2x8x16xbf16>, vector<2x8x16xf32> -> vector<2x8x16xf32>
    "tpu.trace_stop"() : () -> ()
    %90 = vector.shape_cast %89 : vector<2x8x16xf32> to vector<16x16xf32>
    %c0_30 = arith.constant 0 : index
    %c16 = arith.constant 16 : index
    %91 = vector.load %arg21[%c0_30, %c16] : memref<16x32xf32, #tpu.memory_space<vmem>>, vector<16x16xf32>
    tpu.vector_store %arg21[%c0_30, %c16], %90 {strides = array<i32>} : memref<16x32xf32, #tpu.memory_space<vmem>>, vector<16x16xf32>,
    %c0_31 = arith.constant 0 : index
    %c0_32 = arith.constant 0 : index
    %92 = vector.load %arg21[%c0_31, %c0_32] : memref<16x32xf32, #tpu.memory_space<vmem>>, vector<16x32xf32>
    %c0_33 = arith.constant 0 : index
    %c0_34 = arith.constant 0 : index
    %93 = vector.load %arg6[%c0_33, %c0_34] : memref<32x32xbf16, #tpu.memory_space<vmem>>, vector<32x32xbf16>
    %94 = arith.truncf %92 : vector<16x32xf32> to vector<16x32xbf16>
    %cst_35 = arith.constant dense<0.000000e+00> : vector<16x32xf32>
    %95 = tpu.matmul %94, %93, %cst_35 {dimension_numbers = #tpu.dot_dimension_numbers<[1], [0], [0], [1], [0, 0, 1, 1], [], []>} : vector<16x32xbf16>, vector<32x32xbf16>, vector<16x32xf32> -> vector<16x32xf32>
    %c0_36 = arith.constant 0 : index
    %c0_37 = arith.constant 0 : index
    %96 = vector.load %arg7[%c0_36, %c0_37] : memref<1x32xf32, #tpu.memory_space<vmem>>, vector<1x32xf32>
    %97 = vector.broadcast %96 : vector<1x32xf32> to vector<16x32xf32>
    %98 = arith.addf %95, %97 : vector<16x32xf32>
    %99 = arith.addf %22, %98 : vector<16x32xf32>
    %c0_38 = arith.constant 0 : index
    %c0_39 = arith.constant 0 : index
    %100 = vector.load %arg8[%c0_38, %c0_39] : memref<1x32xf32, #tpu.memory_space<vmem>>, vector<1x32xf32>
    %c0_40 = arith.constant 0 : index
    %c0_41 = arith.constant 0 : index
    %101 = vector.load %arg9[%c0_40, %c0_41] : memref<1x32xf32, #tpu.memory_space<vmem>>, vector<1x32xf32>
    %cst_42 = arith.constant dense<0.000000e+00> : vector<16xf32>
    %102 = vector.multi_reduction <add>, %99, %cst_42 [1] : vector<16x32xf32> to vector<16xf32>
    %103 = vector.shape_cast %102 : vector<16xf32> to vector<16x1xf32>
    %cst_43 = arith.constant 3.200000e+01 : f32
    %104 = vector.broadcast %cst_43 : f32 to vector<16x1xf32>
    %105 = arith.divf %103, %104 : vector<16x1xf32>
    %106 = vector.broadcast %105 : vector<16x1xf32> to vector<16x32xf32>
    %107 = arith.subf %99, %106 : vector<16x32xf32>
    %108 = arith.mulf %107, %107 : vector<16x32xf32>
    %cst_44 = arith.constant dense<0.000000e+00> : vector<16xf32>
    %109 = vector.multi_reduction <add>, %108, %cst_44 [1] : vector<16x32xf32> to vector<16xf32>
    %110 = vector.shape_cast %109 : vector<16xf32> to vector<16x1xf32>
    %cst_45 = arith.constant 3.200000e+01 : f32
    %111 = vector.broadcast %cst_45 : f32 to vector<16x1xf32>
    %112 = arith.divf %110, %111 : vector<16x1xf32>
    %cst_46 = arith.constant 9.99999996E-13 : f32
    %113 = vector.broadcast %cst_46 : f32 to vector<16x1xf32>
    %114 = arith.addf %112, %113 : vector<16x1xf32>
    %115 = math.rsqrt %114 : vector<16x1xf32>
    %116 = vector.broadcast %115 : vector<16x1xf32> to vector<16x32xf32>
    %117 = arith.mulf %107, %116 : vector<16x32xf32>
    %118 = vector.broadcast %100 : vector<1x32xf32> to vector<16x32xf32>
    %119 = arith.mulf %117, %118 : vector<16x32xf32>
    %120 = vector.broadcast %101 : vector<1x32xf32> to vector<16x32xf32>
    %121 = arith.addf %119, %120 : vector<16x32xf32>
    %c0_47 = arith.constant 0 : index
    %c0_48 = arith.constant 0 : index
    %122 = vector.load %arg10[%c0_47, %c0_48] : memref<32x64xbf16, #tpu.memory_space<vmem>>, vector<32x64xbf16>
    %123 = arith.truncf %121 : vector<16x32xf32> to vector<16x32xbf16>
    %cst_49 = arith.constant dense<0.000000e+00> : vector<16x64xf32>
    %124 = tpu.matmul %123, %122, %cst_49 {dimension_numbers = #tpu.dot_dimension_numbers<[1], [0], [0], [1], [0, 0, 1, 1], [], []>} : vector<16x32xbf16>, vector<32x64xbf16>, vector<16x64xf32> -> vector<16x64xf32>
    %c0_50 = arith.constant 0 : index
    %c0_51 = arith.constant 0 : index
    %125 = vector.load %arg11[%c0_50, %c0_51] : memref<1x64xf32, #tpu.memory_space<vmem>>, vector<1x64xf32>
    %126 = vector.broadcast %125 : vector<1x64xf32> to vector<16x64xf32>
    %127 = arith.addf %124, %126 : vector<16x64xf32>
    %cst_52 = arith.constant 5.000000e-01 : f32
    %128 = vector.broadcast %cst_52 : f32 to vector<16x64xf32>
    %129 = arith.mulf %128, %127 : vector<16x64xf32>
    %cst_53 = arith.constant 4.471500e-02 : f32
    %130 = vector.broadcast %cst_53 : f32 to vector<16x64xf32>
    %131 = arith.mulf %130, %127 : vector<16x64xf32>
    %132 = arith.mulf %131, %127 : vector<16x64xf32>
    %133 = arith.mulf %132, %127 : vector<16x64xf32>
    %134 = arith.addf %127, %133 : vector<16x64xf32>
    %cst_54 = arith.constant 0.797884583 : f32
    %135 = vector.broadcast %cst_54 : f32 to vector<16x64xf32>
    %136 = arith.mulf %135, %134 : vector<16x64xf32>
    %137 = math.tanh %136 : vector<16x64xf32>
    %cst_55 = arith.constant 1.000000e+00 : f32
    %138 = vector.broadcast %cst_55 : f32 to vector<16x64xf32>
    %139 = arith.addf %138, %137 : vector<16x64xf32>
    %140 = arith.mulf %129, %139 : vector<16x64xf32>
    %c0_56 = arith.constant 0 : index
    %c0_57 = arith.constant 0 : index
    %141 = vector.load %arg12[%c0_56, %c0_57] : memref<64x32xbf16, #tpu.memory_space<vmem>>, vector<64x32xbf16>
    %142 = arith.truncf %140 : vector<16x64xf32> to vector<16x64xbf16>
    %cst_58 = arith.constant dense<0.000000e+00> : vector<16x32xf32>
    %143 = tpu.matmul %142, %141, %cst_58 {dimension_numbers = #tpu.dot_dimension_numbers<[1], [0], [0], [1], [0, 0, 1, 1], [], []>} : vector<16x64xbf16>, vector<64x32xbf16>, vector<16x32xf32> -> vector<16x32xf32>
    %c0_59 = arith.constant 0 : index
    %c0_60 = arith.constant 0 : index
    %144 = vector.load %arg13[%c0_59, %c0_60] : memref<1x32xf32, #tpu.memory_space<vmem>>, vector<1x32xf32>
    %145 = vector.broadcast %144 : vector<1x32xf32> to vector<16x32xf32>
    %146 = arith.addf %143, %145 : vector<16x32xf32>
    %147 = arith.addf %121, %146 : vector<16x32xf32>
    %c0_61 = arith.constant 0 : index
    %c0_62 = arith.constant 0 : index
    %148 = vector.load %arg14[%c0_61, %c0_62] : memref<1x32xf32, #tpu.memory_space<vmem>>, vector<1x32xf32>
    %c0_63 = arith.constant 0 : index
    %c0_64 = arith.constant 0 : index
    %149 = vector.load %arg15[%c0_63, %c0_64] : memref<1x32xf32, #tpu.memory_space<vmem>>, vector<1x32xf32>
    %cst_65 = arith.constant dense<0.000000e+00> : vector<16xf32>
    %150 = vector.multi_reduction <add>, %147, %cst_65 [1] : vector<16x32xf32> to vector<16xf32>
    %151 = vector.shape_cast %150 : vector<16xf32> to vector<16x1xf32>
    %cst_66 = arith.constant 3.200000e+01 : f32
    %152 = vector.broadcast %cst_66 : f32 to vector<16x1xf32>
    %153 = arith.divf %151, %152 : vector<16x1xf32>
    %154 = vector.broadcast %153 : vector<16x1xf32> to vector<16x32xf32>
    %155 = arith.subf %147, %154 : vector<16x32xf32>
    %156 = arith.mulf %155, %155 : vector<16x32xf32>
    %cst_67 = arith.constant dense<0.000000e+00> : vector<16xf32>
    %157 = vector.multi_reduction <add>, %156, %cst_67 [1] : vector<16x32xf32> to vector<16xf32>
    %158 = vector.shape_cast %157 : vector<16xf32> to vector<16x1xf32>
    %cst_68 = arith.constant 3.200000e+01 : f32
    %159 = vector.broadcast %cst_68 : f32 to vector<16x1xf32>
    %160 = arith.divf %158, %159 : vector<16x1xf32>
    %cst_69 = arith.constant 9.99999996E-13 : f32
    %161 = vector.broadcast %cst_69 : f32 to vector<16x1xf32>
    %162 = arith.addf %160, %161 : vector<16x1xf32>
    %163 = math.rsqrt %162 : vector<16x1xf32>
    %164 = vector.broadcast %163 : vector<16x1xf32> to vector<16x32xf32>
    %165 = arith.mulf %155, %164 : vector<16x32xf32>
    %166 = vector.broadcast %148 : vector<1x32xf32> to vector<16x32xf32>
    %167 = arith.mulf %165, %166 : vector<16x32xf32>
    %168 = vector.broadcast %149 : vector<1x32xf32> to vector<16x32xf32>
    %169 = arith.addf %167, %168 : vector<16x32xf32>
    %170 = vector.shape_cast %169 : vector<16x32xf32> to vector<2x8x32xf32>
    %171 = vector.extract_strided_slice %170 {offsets = [0, 0, 0], sizes = [2, 1, 32], strides = [1, 1, 1]} : vector<2x8x32xf32> to vector<2x1x32xf32>
    %172 = vector.shape_cast %171 : vector<2x1x32xf32> to vector<2x32xf32>
    %c0_70 = arith.constant 0 : index
    %c0_71 = arith.constant 0 : index
    %173 = vector.load %arg16[%c0_70, %c0_71] : memref<32x32xbf16, #tpu.memory_space<vmem>>, vector<32x32xbf16>
    %174 = arith.truncf %172 : vector<2x32xf32> to vector<2x32xbf16>
    %cst_72 = arith.constant dense<0.000000e+00> : vector<2x32xf32>
    %175 = tpu.matmul %174, %173, %cst_72 {dimension_numbers = #tpu.dot_dimension_numbers<[1], [0], [0], [1], [0, 0, 1, 1], [], []>} : vector<2x32xbf16>, vector<32x32xbf16>, vector<2x32xf32> -> vector<2x32xf32>
    %c0_73 = arith.constant 0 : index
    %c0_74 = arith.constant 0 : index
    %176 = vector.load %arg17[%c0_73, %c0_74] : memref<1x32xf32, #tpu.memory_space<vmem>>, vector<1x32xf32>
    %177 = vector.broadcast %176 : vector<1x32xf32> to vector<2x32xf32>
    %178 = arith.addf %175, %177 : vector<2x32xf32>
    %179 = math.tanh %178 : vector<2x32xf32>
    %c0_75 = arith.constant 0 : index
    %c0_76 = arith.constant 0 : index
    %180 = vector.load %arg18[%c0_75, %c0_76] : memref<32x256xbf16, #tpu.memory_space<vmem>>, vector<32x256xbf16>
    %181 = arith.truncf %179 : vector<2x32xf32> to vector<2x32xbf16>
    %cst_77 = arith.constant dense<0.000000e+00> : vector<2x256xf32>
    %182 = tpu.matmul %181, %180, %cst_77 {dimension_numbers = #tpu.dot_dimension_numbers<[1], [0], [0], [1], [0, 0, 1, 1], [], []>} : vector<2x32xbf16>, vector<32x256xbf16>, vector<2x256xf32> -> vector<2x256xf32>
    %c0_78 = arith.constant 0 : index
    %c0_79 = arith.constant 0 : index
    %183 = vector.load %arg19[%c0_78, %c0_79] : memref<1x256xf32, #tpu.memory_space<vmem>>, vector<1x256xf32>
    %184 = vector.broadcast %183 : vector<1x256xf32> to vector<2x256xf32>
    %185 = arith.addf %182, %184 : vector<2x256xf32>
    %c0_80 = arith.constant 0 : index
    %c0_81 = arith.constant 0 : index
    %186 = vector.load %arg20[%c0_80, %c0_81] : memref<2x256xf32, #tpu.memory_space<vmem>>, vector<2x256xf32>
    tpu.vector_store %arg20[%c0_80, %c0_81], %185 {strides = array<i32>} : memref<2x256xf32, #tpu.memory_space<vmem>>, vector<2x256xf32>,
    return
  }
}

</mosaic_0001>

<llo_original>
// kernel: multimodal_forward.5
$region0: #{multimodal_forward.5}
  #allocation0 [shape = 'u32[]', space=smem, size = 0x4, offset = 0x4, fixed_abs, tag = 'smem constant byte address 0x4 - core index']
  #allocation1 [shape = 'u32[144,128]{1,0:T(1,128)}', space=vmem, size = 0x12000, scoped, tag = 'internal scratch']
  %s0 = inlined_call_operand.vmem [shape: f32[2,256], index: 0, kind: input, shape index: {}]
  %s1 = inlined_call_operand.vmem [shape: f32[2,256], index: 1, kind: input, shape index: {}]
  %s2 = inlined_call_operand.vmem [shape: bf16[256,128], index: 2, kind: input, shape index: {}]
  %s3 = inlined_call_operand.vmem [shape: bf16[256,128], index: 3, kind: input, shape index: {}]
  %s4 = inlined_call_operand.vmem [shape: f32[1,128], index: 4, kind: input, shape index: {}]
  %s5 = inlined_call_operand.hbm [shape: f32[2,128], index: 5, kind: output, shape index: {}]
  %s6 = sld [smem:[#allocation0]]
  $region30: #{multimodal_forward.5} parent=0
    _
  %s8 = ssub.s32 1, %s6
  %s9 = scalar_select 0, %s8, %s6
  $region1: #{multimodal_forward.5} parent=0
    #allocation2 [shape = 'u8[1024]{0}', space=vmem, size = 0x400, scoped, tag = 'output window, operand 0, single buffered']
    #allocation3 [shape = 's32[1]{0}', space=sflag, size = 0x4, scoped, tag = 'scoped memory for multimodal_forward.5']
    %10 = vsyncpa [#allocation3], 0
    // Predicated region
    $region2: #{multimodal_forward.5} parent=1 // pred_check
      _
    $region3: #{multimodal_forward.5} parent=1 // pred_check_branch
      %12 = sbr.rel (0) target = $region5
    $region4: #{multimodal_forward.5} parent=1 // pred_region
      _
    $region5: #{multimodal_forward.5} parent=1 // pred_fallthru
      _
    // Predicated region
    $region6: #{multimodal_forward.5} parent=1 // pred_check
      _
    $region7: #{multimodal_forward.5} parent=1 // pred_check_branch
      %14 = sbr.rel (0) target = $region9
    $region8: #{multimodal_forward.5} parent=1 // pred_region
      _
    $region9: #{multimodal_forward.5} parent=1 // pred_fallthru
      _
    // Predicated region
    $region10: #{multimodal_forward.5} parent=1 // pred_check
      _
    $region11: #{multimodal_forward.5} parent=1 // pred_check_branch
      %16 = sbr.rel (0) target = $region13
    $region12: #{multimodal_forward.5} parent=1 // pred_region
      _
    $region13: #{multimodal_forward.5} parent=1 // pred_fallthru
      _
    // Predicated region
    $region14: #{multimodal_forward.5} parent=1 // pred_check
      _
    $region15: #{multimodal_forward.5} parent=1 // pred_check_branch
      %18 = sbr.rel (0) target = $region17
    $region16: #{multimodal_forward.5} parent=1 // pred_region
      _
    $region17: #{multimodal_forward.5} parent=1 // pred_fallthru
      _
    // Predicated region
    $region18: #{multimodal_forward.5} parent=1 // pred_check
      _
    $region19: #{multimodal_forward.5} parent=1 // pred_check_branch
      %20 = sbr.rel (0) target = $region21
    $region20: #{multimodal_forward.5} parent=1 // pred_region
      _
    $region21: #{multimodal_forward.5} parent=1 // pred_fallthru
      _
    %v22 = vld [vmem:[%s0] sm:$0xf]
    %v23 = vld [vmem:[%s2] sm:$0xf]
    %v24 = vld [vmem:[%s2 + $0x4] sm:$0xf]
    %v25 = vld [vmem:[%s2 + $0x8] sm:$0xf]
    %v26 = vld [vmem:[%s2 + $0xc] sm:$0xf]
    %v27 = vld [vmem:[%s2 + $0x10] sm:$0xf]
    %v28 = vld [vmem:[%s2 + $0x14] sm:$0xf]
    %v29 = vld [vmem:[%s2 + $0x18] sm:$0xf]
    %v30 = vld [vmem:[%s2 + $0x1c] sm:$0xf]
    %v31 = vld [vmem:[%s2 + $0x20] sm:$0xf]
    %v32 = vld [vmem:[%s2 + $0x24] sm:$0xf]
    %v33 = vld [vmem:[%s2 + $0x28] sm:$0xf]
    %v34 = vld [vmem:[%s2 + $0x2c] sm:$0xf]
    %v35 = vld [vmem:[%s2 + $0x30] sm:$0xf]
    %v36 = vld [vmem:[%s2 + $0x34] sm:$0xf]
    %v37 = vld [vmem:[%s2 + $0x38] sm:$0xf]
    %v38 = vld [vmem:[%s2 + $0x3c] sm:$0xf]
    %v39 = vld [vmem:[%s2 + $0x40] sm:$0xf]
    %v40 = vld [vmem:[%s2 + $0x44] sm:$0xf]
    %v41 = vld [vmem:[%s2 + $0x48] sm:$0xf]
    %v42 = vld [vmem:[%s2 + $0x4c] sm:$0xf]
    %v43 = vld [vmem:[%s2 + $0x50] sm:$0xf]
    %v44 = vld [vmem:[%s2 + $0x54] sm:$0xf]
    %v45 = vld [vmem:[%s2 + $0x58] sm:$0xf]
    %v46 = vld [vmem:[%s2 + $0x5c] sm:$0xf]
    %v47 = vld [vmem:[%s2 + $0x60] sm:$0xf]
    %v48 = vld [vmem:[%s2 + $0x64] sm:$0xf]
    %v49 = vld [vmem:[%s2 + $0x68] sm:$0xf]
    %v50 = vld [vmem:[%s2 + $0x6c] sm:$0xf]
    %v51 = vld [vmem:[%s2 + $0x70] sm:$0xf]
    %v52 = vld [vmem:[%s2 + $0x74] sm:$0xf]
    %v53 = vld [vmem:[%s2 + $0x78] sm:$0xf]
    %v54 = vld [vmem:[%s2 + $0x7c] sm:$0xf]
    %v57 = vunpack.c.l.s4 1983009808
    %v58 = vunpack.c.0.s8 %v57
    %v59 = vlaneseq
    %v60 = vshrl.u32 %v59, 7
    %v61 = vsub.s32 %v58, %v60
    %v62 = vrot.slane %v22, %v61
    %v63 = vcombine.high %v62, %v62
    %v66 = vpack.c.bf16 %v62, %v62
    %v67 = vpack.c.bf16 %v63, %v63
    %v68 = vld [vmem:[%s1] sm:$0xf]
    %v69 = vld [vmem:[%s3] sm:$0xf]
    %v70 = vld [vmem:[%s3 + $0x4] sm:$0xf]
    %v71 = vld [vmem:[%s3 + $0x8] sm:$0xf]
    %v72 = vld [vmem:[%s3 + $0xc] sm:$0xf]
    %v73 = vld [vmem:[%s3 + $0x10] sm:$0xf]
    %v74 = vld [vmem:[%s3 + $0x14] sm:$0xf]
    %v75 = vld [vmem:[%s3 + $0x18] sm:$0xf]
    %v76 = vld [vmem:[%s3 + $0x1c] sm:$0xf]
    %v77 = vld [vmem:[%s3 + $0x20] sm:$0xf]
    %v78 = vld [vmem:[%s3 + $0x24] sm:$0xf]
    %v79 = vld [vmem:[%s3 + $0x28] sm:$0xf]
    %v80 = vld [vmem:[%s3 + $0x2c] sm:$0xf]
    %v81 = vld [vmem:[%s3 + $0x30] sm:$0xf]
    %v82 = vld [vmem:[%s3 + $0x34] sm:$0xf]
    %v83 = vld [vmem:[%s3 + $0x38] sm:$0xf]
    %v84 = vld [vmem:[%s3 + $0x3c] sm:$0xf]
    %v85 = vld [vmem:[%s3 + $0x40] sm:$0xf]
    %v86 = vld [vmem:[%s3 + $0x44] sm:$0xf]
    %v87 = vld [vmem:[%s3 + $0x48] sm:$0xf]
    %v88 = vld [vmem:[%s3 + $0x4c] sm:$0xf]
    %v89 = vld [vmem:[%s3 + $0x50] sm:$0xf]
    %v90 = vld [vmem:[%s3 + $0x54] sm:$0xf]
    %v91 = vld [vmem:[%s3 + $0x58] sm:$0xf]
    %v92 = vld [vmem:[%s3 + $0x5c] sm:$0xf]
    %v93 = vld [vmem:[%s3 + $0x60] sm:$0xf]
    %v94 = vld [vmem:[%s3 + $0x64] sm:$0xf]
    %v95 = vld [vmem:[%s3 + $0x68] sm:$0xf]
    %v96 = vld [vmem:[%s3 + $0x6c] sm:$0xf]
    %v97 = vld [vmem:[%s3 + $0x70] sm:$0xf]
    %v98 = vld [vmem:[%s3 + $0x74] sm:$0xf]
    %v99 = vld [vmem:[%s3 + $0x78] sm:$0xf]
    %v100 = vld [vmem:[%s3 + $0x7c] sm:$0xf]
    %v103 = vunpack.c.l.s4 1983009808
    %v104 = vunpack.c.0.s8 %v103
    %v105 = vlaneseq
    %v106 = vshrl.u32 %v105, 7
    %v107 = vsub.s32 %v104, %v106
    %v108 = vrot.slane %v68, %v107
    %v109 = vcombine.high %v108, %v108
    %v112 = vpack.c.bf16 %v108, %v108
    %v113 = vpack.c.bf16 %v109, %v109
    %v146 = vunpack.c.l.b16 %v69
    %v147 = vunpack.c.l.b16 %v70
    %v148 = vunpack.c.l.b16 %v71
    %v149 = vunpack.c.l.b16 %v72
    %v150 = vunpack.c.l.b16 %v73
    %v151 = vunpack.c.l.b16 %v74
    %v152 = vunpack.c.l.b16 %v75
    %v153 = vunpack.c.l.b16 %v76
    %v154 = vunpack.c.l.b16 %v77
    %v155 = vunpack.c.l.b16 %v78
    %v156 = vunpack.c.l.b16 %v79
    %v157 = vunpack.c.l.b16 %v80
    %v158 = vunpack.c.l.b16 %v81
    %v159 = vunpack.c.l.b16 %v82
    %v160 = vunpack.c.l.b16 %v83
    %v161 = vunpack.c.l.b16 %v84
    %v162 = vunpack.c.l.b16 %v85
    %v163 = vunpack.c.l.b16 %v86
    %v164 = vunpack.c.l.b16 %v87
    %v165 = vunpack.c.l.b16 %v88
    %v166 = vunpack.c.l.b16 %v89
    %v167 = vunpack.c.l.b16 %v90
    %v168 = vunpack.c.l.b16 %v91
    %v169 = vunpack.c.l.b16 %v92
    %v170 = vunpack.c.l.b16 %v93
    %v171 = vunpack.c.l.b16 %v94
    %v172 = vunpack.c.l.b16 %v95
    %v173 = vunpack.c.l.b16 %v96
    %v174 = vunpack.c.l.b16 %v97
    %v175 = vunpack.c.l.b16 %v98
    %v176 = vunpack.c.l.b16 %v99
    %v177 = vunpack.c.l.b16 %v100
    %v178 = vpack.c.b16 %v147, %v146
    %v179 = vpack.c.b16 %v149, %v148
    %v180 = vpack.c.b16 %v151, %v150
    %v181 = vpack.c.b16 %v153, %v152
    %v182 = vpack.c.b16 %v155, %v154
    %v183 = vpack.c.b16 %v157, %v156
    %v184 = vpack.c.b16 %v159, %v158
    %v185 = vpack.c.b16 %v161, %v160
    %v186 = vpack.c.b16 %v163, %v162
    %v187 = vpack.c.b16 %v165, %v164
    %v188 = vpack.c.b16 %v167, %v166
    %v189 = vpack.c.b16 %v169, %v168
    %v190 = vpack.c.b16 %v171, %v170
    %v191 = vpack.c.b16 %v173, %v172
    %v192 = vpack.c.b16 %v175, %v174
    %v193 = vpack.c.b16 %v177, %v176
    %210 = vmatprep.subr.bf16.mxu0 0
    %211 = vmatpush1.bf16.msra.mxu0 %v185
    %212 = vmatprep.subr.bf16.mxu0 0
    %213 = vmatpush1.bf16.msra.mxu0 %v184
    %214 = vmatprep.subr.bf16.mxu0 0
    %215 = vmatpush1.bf16.msra.mxu0 %v183
    %216 = vmatprep.subr.bf16.mxu0 0
    %217 = vmatpush1.bf16.msra.mxu0 %v182
    %218 = vmatprep.subr.bf16.mxu0 0
    %219 = vmatpush1.bf16.msra.mxu0 %v181
    %220 = vmatprep.subr.bf16.mxu0 0
    %221 = vmatpush1.bf16.msra.mxu0 %v180
    %222 = vmatprep.subr.bf16.mxu0 0
    %223 = vmatpush1.bf16.msra.mxu0 %v179
    %224 = vmatprep.subr.bf16.mxu0 0
    %225 = vmatpush1.bf16.msra.mxu0 %v178
    %226 = vmatprep.subr.bf16.mxu0 0
    %227 = vmatpush2.bf16.msra.mxu0 %v193
    %228 = vmatprep.subr.bf16.mxu0 0
    %229 = vmatpush2.bf16.msra.mxu0 %v192
    %230 = vmatprep.subr.bf16.mxu0 0
    %231 = vmatpush2.bf16.msra.mxu0 %v191
    %232 = vmatprep.subr.bf16.mxu0 0
    %233 = vmatpush2.bf16.msra.mxu0 %v190
    %234 = vmatprep.subr.bf16.mxu0 0
    %235 = vmatpush2.bf16.msra.mxu0 %v189
    %236 = vmatprep.subr.bf16.mxu0 0
    %237 = vmatpush2.bf16.msra.mxu0 %v188
    %238 = vmatprep.subr.bf16.mxu0 0
    %239 = vmatpush2.bf16.msra.mxu0 %v187
    %240 = vmatprep.subr.bf16.mxu0 0
    %241 = vmatpush2.bf16.msra.mxu0 %v186
    %242 = vmatprep.mubr.bf16.mxu0 %v113
    %243 = vmatmul.mubr.bf16.gmra.mxu0 %v112
    %v244 = vpop.f32.mrf.mxu0
    %v245 = vadd.f32 0.0, %v244
    %v246 = vpop.f32.mrf.mxu0
    %v247 = vpop.f32.mrf.mxu0
    %v248 = vpop.f32.mrf.mxu0
    %249 = vdwg.mxu0
    %v282 = vunpack.c.l.b16 %v23
    %v283 = vunpack.c.l.b16 %v24
    %v284 = vunpack.c.l.b16 %v25
    %v285 = vunpack.c.l.b16 %v26
    %v286 = vunpack.c.l.b16 %v27
    %v287 = vunpack.c.l.b16 %v28
    %v288 = vunpack.c.l.b16 %v29
    %v289 = vunpack.c.l.b16 %v30
    %v290 = vunpack.c.l.b16 %v31
    %v291 = vunpack.c.l.b16 %v32
    %v292 = vunpack.c.l.b16 %v33
    %v293 = vunpack.c.l.b16 %v34
    %v294 = vunpack.c.l.b16 %v35
    %v295 = vunpack.c.l.b16 %v36
    %v296 = vunpack.c.l.b16 %v37
    %v297 = vunpack.c.l.b16 %v38
    %v298 = vunpack.c.l.b16 %v39
    %v299 = vunpack.c.l.b16 %v40
    %v300 = vunpack.c.l.b16 %v41
    %v301 = vunpack.c.l.b16 %v42
    %v302 = vunpack.c.l.b16 %v43
    %v303 = vunpack.c.l.b16 %v44
    %v304 = vunpack.c.l.b16 %v45
    %v305 = vunpack.c.l.b16 %v46
    %v306 = vunpack.c.l.b16 %v47
    %v307 = vunpack.c.l.b16 %v48
    %v308 = vunpack.c.l.b16 %v49
    %v309 = vunpack.c.l.b16 %v50
    %v310 = vunpack.c.l.b16 %v51
    %v311 = vunpack.c.l.b16 %v52
    %v312 = vunpack.c.l.b16 %v53
    %v313 = vunpack.c.l.b16 %v54
    %v314 = vpack.c.b16 %v283, %v282
    %v315 = vpack.c.b16 %v285, %v284
    %v316 = vpack.c.b16 %v287, %v286
    %v317 = vpack.c.b16 %v289, %v288
    %v318 = vpack.c.b16 %v291, %v290
    %v319 = vpack.c.b16 %v293, %v292
    %v320 = vpack.c.b16 %v295, %v294
    %v321 = vpack.c.b16 %v297, %v296
    %v322 = vpack.c.b16 %v299, %v298
    %v323 = vpack.c.b16 %v301, %v300
    %v324 = vpack.c.b16 %v303, %v302
    %v325 = vpack.c.b16 %v305, %v304
    %v326 = vpack.c.b16 %v307, %v306
    %v327 = vpack.c.b16 %v309, %v308
    %v328 = vpack.c.b16 %v311, %v310
    %v329 = vpack.c.b16 %v313, %v312
    %346 = vmatprep.subr.bf16.mxu0 0
    %347 = vmatpush1.bf16.msra.mxu0 %v321
    %348 = vmatprep.subr.bf16.mxu0 0
    %349 = vmatpush1.bf16.msra.mxu0 %v320
    %350 = vmatprep.subr.bf16.mxu0 0
    %351 = vmatpush1.bf16.msra.mxu0 %v319
    %352 = vmatprep.subr.bf16.mxu0 0
    %353 = vmatpush1.bf16.msra.mxu0 %v318
    %354 = vmatprep.subr.bf16.mxu0 0
    %355 = vmatpush1.bf16.msra.mxu0 %v317
    %356 = vmatprep.subr.bf16.mxu0 0
    %357 = vmatpush1.bf16.msra.mxu0 %v316
    %358 = vmatprep.subr.bf16.mxu0 0
    %359 = vmatpush1.bf16.msra.mxu0 %v315
    %360 = vmatprep.subr.bf16.mxu0 0
    %361 = vmatpush1.bf16.msra.mxu0 %v314
    %362 = vmatprep.subr.bf16.mxu0 0
    %363 = vmatpush2.bf16.msra.mxu0 %v329
    %364 = vmatprep.subr.bf16.mxu0 0
    %365 = vmatpush2.bf16.msra.mxu0 %v328
    %366 = vmatprep.subr.bf16.mxu0 0
    %367 = vmatpush2.bf16.msra.mxu0 %v327
    %368 = vmatprep.subr.bf16.mxu0 0
    %369 = vmatpush2.bf16.msra.mxu0 %v326
    %370 = vmatprep.subr.bf16.mxu0 0
    %371 = vmatpush2.bf16.msra.mxu0 %v325
    %372 = vmatprep.subr.bf16.mxu0 0
    %373 = vmatpush2.bf16.msra.mxu0 %v324
    %374 = vmatprep.subr.bf16.mxu0 0
    %375 = vmatpush2.bf16.msra.mxu0 %v323
    %376 = vmatprep.subr.bf16.mxu0 0
    %377 = vmatpush2.bf16.msra.mxu0 %v322
    %378 = vmatprep.mubr.bf16.mxu0 %v67
    %379 = vmatmul.mubr.bf16.gmra.mxu0 %v66
    %v380 = vpop.f32.mrf.mxu0
    %v381 = vadd.f32 %v245, %v380
    %v382 = vpop.f32.mrf.mxu0
    %v383 = vpop.f32.mrf.mxu0
    %v384 = vpop.f32.mrf.mxu0
    %385 = vdwg.mxu0
    %v386 = vld [vmem:[%s4] sm:$0x1]
    %v388 = vlaneseq
    %v389 = vshrl.u32 %v388, 7
    %v390 = vsub.s32 0, %v389
    %v391 = vrot.slane %v386, %v390
    %v393 = vadd.f32 %v381, %v391
    %394 = vst [vmem:[#allocation2] sm:$0x3] %v393
    // Predicated region
    $region22: #{multimodal_forward.5} parent=1 // pred_check
      _
    $region23: #{multimodal_forward.5} parent=1 // pred_check_branch
      %396 = sbr.rel (0) target = $region25
    $region24: #{multimodal_forward.5} parent=1 // pred_region
      %s398 = ssub.s32 32, 32
      %399 = vsyncadd [#allocation3], %s398
      %s401 = sshll.u32 [#allocation2], 4
      %s402 = int_to_ptr.vmem [resolvable:$true] %s401
      %404 = dma.vmem_to_hbm [thread:$0]  %s402, 32, %s5, [#allocation3]
    $region25: #{multimodal_forward.5} parent=1 // pred_fallthru
      _
    // Predicated region
    $region26: #{multimodal_forward.5} parent=1 // pred_check
      _
    $region27: #{multimodal_forward.5} parent=1 // pred_check_branch
      %406 = sbr.rel (0) target = $region29
    $region28: #{multimodal_forward.5} parent=1 // pred_region
      %407 = dma.done [#allocation3], 32
    $region29: #{multimodal_forward.5} parent=1 // pred_fallthru
      _
    %408 = vsyncpa [#allocation3], 1

// kernel: multimodal_forward.3
$region0: #{multimodal_forward.3}
  #allocation0 [shape = 'u32[]', space=smem, size = 0x4, offset = 0x4, fixed_abs, tag = 'smem constant byte address 0x4 - core index']
  #allocation1 [shape = 'u32[144,128]{1,0:T(1,128)}', space=vmem, size = 0x12000, scoped, tag = 'internal scratch']
  #allocation2 [shape = 'f32[16,32]{1,0:T(8,128)}', space=vmem, size = 0x2000, scoped, tag = 'scratch operand']
  %s0 = inlined_call_operand.vmem [shape: f32[16,32], index: 0, kind: input, shape index: {}]
  %s1 = inlined_call_operand.vmem [shape: f32[2,8], index: 1, kind: input, shape index: {}]
  %s2 = inlined_call_operand.vmem [shape: f32[1,32], index: 2, kind: input, shape index: {}]
  %s3 = inlined_call_operand.vmem [shape: f32[1,32], index: 3, kind: input, shape index: {}]
  %s4 = inlined_call_operand.vmem [shape: bf16[32,96], index: 4, kind: input, shape index: {}]
  %s5 = inlined_call_operand.vmem [shape: f32[1,96], index: 5, kind: input, shape index: {}]
  %s6 = inlined_call_operand.vmem [shape: bf16[32,32], index: 6, kind: input, shape index: {}]
  %s7 = inlined_call_operand.vmem [shape: f32[1,32], index: 7, kind: input, shape index: {}]
  %s8 = inlined_call_operand.vmem [shape: f32[1,32], index: 8, kind: input, shape index: {}]
  %s9 = inlined_call_operand.vmem [shape: f32[1,32], index: 9, kind: input, shape index: {}]
  %s10 = inlined_call_operand.vmem [shape: bf16[32,64], index: 10, kind: input, shape index: {}]
  %s11 = inlined_call_operand.vmem [shape: f32[1,64], index: 11, kind: input, shape index: {}]
  %s12 = inlined_call_operand.vmem [shape: bf16[64,32], index: 12, kind: input, shape index: {}]
  %s13 = inlined_call_operand.vmem [shape: f32[1,32], index: 13, kind: input, shape index: {}]
  %s14 = inlined_call_operand.vmem [shape: f32[1,32], index: 14, kind: input, shape index: {}]
  %s15 = inlined_call_operand.vmem [shape: f32[1,32], index: 15, kind: input, shape index: {}]
  %s16 = inlined_call_operand.vmem [shape: bf16[32,32], index: 16, kind: input, shape index: {}]
  %s17 = inlined_call_operand.vmem [shape: f32[1,32], index: 17, kind: input, shape index: {}]
  %s18 = inlined_call_operand.vmem [shape: bf16[32,256], index: 18, kind: input, shape index: {}]
  %s19 = inlined_call_operand.vmem [shape: f32[1,256], index: 19, kind: input, shape index: {}]
  %s20 = inlined_call_operand.vmem [shape: f32[2,256], index: 20, kind: output, shape index: {}]
  %s21 = sld [smem:[#allocation0]]
  $region90: #{multimodal_forward.3} parent=0
    _
  %s23 = ssub.s32 1, %s21
  %s24 = scalar_select 0, %s23, %s21
  // Predicated region
  $region2: #{multimodal_forward.3} parent=0 // pred_check
    _
  $region3: #{multimodal_forward.3} parent=0 // pred_check_branch
    %26 = sbr.rel (0) target = $region5
  $region4: #{multimodal_forward.3} parent=0 // pred_region
    _
  $region5: #{multimodal_forward.3} parent=0 // pred_fallthru
    _
  // Predicated region
  $region6: #{multimodal_forward.3} parent=0 // pred_check
    _
  $region7: #{multimodal_forward.3} parent=0 // pred_check_branch
    %28 = sbr.rel (0) target = $region9
  $region8: #{multimodal_forward.3} parent=0 // pred_region
    _
  $region9: #{multimodal_forward.3} parent=0 // pred_fallthru
    _
  // Predicated region
  $region10: #{multimodal_forward.3} parent=0 // pred_check
    _
  $region11: #{multimodal_forward.3} parent=0 // pred_check_branch
    %30 = sbr.rel (0) target = $region13
  $region12: #{multimodal_forward.3} parent=0 // pred_region
    _
  $region13: #{multimodal_forward.3} parent=0 // pred_fallthru
    _
  // Predicated region
  $region14: #{multimodal_forward.3} parent=0 // pred_check
    _
  $region15: #{multimodal_forward.3} parent=0 // pred_check_branch
    %32 = sbr.rel (0) target = $region17
  $region16: #{multimodal_forward.3} parent=0 // pred_region
    _
  $region17: #{multimodal_forward.3} parent=0 // pred_fallthru
    _
  // Predicated region
  $region18: #{multimodal_forward.3} parent=0 // pred_check
    _
  $region19: #{multimodal_forward.3} parent=0 // pred_check_branch
    %34 = sbr.rel (0) target = $region21
  $region20: #{multimodal_forward.3} parent=0 // pred_region
    _
  $region21: #{multimodal_forward.3} parent=0 // pred_fallthru
    _
  // Predicated region
  $region22: #{multimodal_forward.3} parent=0 // pred_check
    _
  $region23: #{multimodal_forward.3} parent=0 // pred_check_branch
    %36 = sbr.rel (0) target = $region25
  $region24: #{multimodal_forward.3} parent=0 // pred_region
    _
  $region25: #{multimodal_forward.3} parent=0 // pred_fallthru
    _
  // Predicated region
  $region26: #{multimodal_forward.3} parent=0 // pred_check
    _
  $region27: #{multimodal_forward.3} parent=0 // pred_check_branch
    %38 = sbr.rel (0) target = $region29
  $region28: #{multimodal_forward.3} parent=0 // pred_region
    _
  $region29: #{multimodal_forward.3} parent=0 // pred_fallthru
    _
  // Predicated region
  $region30: #{multimodal_forward.3} parent=0 // pred_check
    _
  $region31: #{multimodal_forward.3} parent=0 // pred_check_branch
    %40 = sbr.rel (0) target = $region33
  $region32: #{multimodal_forward.3} parent=0 // pred_region
    _
  $region33: #{multimodal_forward.3} parent=0 // pred_fallthru
    _
  // Predicated region
  $region34: #{multimodal_forward.3} parent=0 // pred_check
    _
  $region35: #{multimodal_forward.3} parent=0 // pred_check_branch
    %42 = sbr.rel (0) target = $region37
  $region36: #{multimodal_forward.3} parent=0 // pred_region
    _
  $region37: #{multimodal_forward.3} parent=0 // pred_fallthru
    _
  // Predicated region
  $region38: #{multimodal_forward.3} parent=0 // pred_check
    _
  $region39: #{multimodal_forward.3} parent=0 // pred_check_branch
    %44 = sbr.rel (0) target = $region41
  $region40: #{multimodal_forward.3} parent=0 // pred_region
    _
  $region41: #{multimodal_forward.3} parent=0 // pred_fallthru
    _
  // Predicated region
  $region42: #{multimodal_forward.3} parent=0 // pred_check
    _
  $region43: #{multimodal_forward.3} parent=0 // pred_check_branch
    %46 = sbr.rel (0) target = $region45
  $region44: #{multimodal_forward.3} parent=0 // pred_region
    _
  $region45: #{multimodal_forward.3} parent=0 // pred_fallthru
    _
  // Predicated region
  $region46: #{multimodal_forward.3} parent=0 // pred_check
    _
  $region47: #{multimodal_forward.3} parent=0 // pred_check_branch
    %48 = sbr.rel (0) target = $region49
  $region48: #{multimodal_forward.3} parent=0 // pred_region
    _
  $region49: #{multimodal_forward.3} parent=0 // pred_fallthru
    _
  // Predicated region
  $region50: #{multimodal_forward.3} parent=0 // pred_check
    _
  $region51: #{multimodal_forward.3} parent=0 // pred_check_branch
    %50 = sbr.rel (0) target = $region53
  $region52: #{multimodal_forward.3} parent=0 // pred_region
    _
  $region53: #{multimodal_forward.3} parent=0 // pred_fallthru
    _
  // Predicated region
  $region54: #{multimodal_forward.3} parent=0 // pred_check
    _
  $region55: #{multimodal_forward.3} parent=0 // pred_check_branch
    %52 = sbr.rel (0) target = $region57
  $region56: #{multimodal_forward.3} parent=0 // pred_region
    _
  $region57: #{multimodal_forward.3} parent=0 // pred_fallthru
    _
  // Predicated region
  $region58: #{multimodal_forward.3} parent=0 // pred_check
    _
  $region59: #{multimodal_forward.3} parent=0 // pred_check_branch
    %54 = sbr.rel (0) target = $region61
  $region60: #{multimodal_forward.3} parent=0 // pred_region
    _
  $region61: #{multimodal_forward.3} parent=0 // pred_fallthru
    _
  // Predicated region
  $region62: #{multimodal_forward.3} parent=0 // pred_check
    _
  $region63: #{multimodal_forward.3} parent=0 // pred_check_branch
    %56 = sbr.rel (0) target = $region65
  $region64: #{multimodal_forward.3} parent=0 // pred_region
    _
  $region65: #{multimodal_forward.3} parent=0 // pred_fallthru
    _
  // Predicated region
  $region66: #{multimodal_forward.3} parent=0 // pred_check
    _
  $region67: #{multimodal_forward.3} parent=0 // pred_check_branch
    %58 = sbr.rel (0) target = $region69
  $region68: #{multimodal_forward.3} parent=0 // pred_region
    _
  $region69: #{multimodal_forward.3} parent=0 // pred_fallthru
    _
  // Predicated region
  $region70: #{multimodal_forward.3} parent=0 // pred_check
    _
  $region71: #{multimodal_forward.3} parent=0 // pred_check_branch
    %60 = sbr.rel (0) target = $region73
  $region72: #{multimodal_forward.3} parent=0 // pred_region
    _
  $region73: #{multimodal_forward.3} parent=0 // pred_fallthru
    _
  // Predicated region
  $region74: #{multimodal_forward.3} parent=0 // pred_check
    _
  $region75: #{multimodal_forward.3} parent=0 // pred_check_branch
    %62 = sbr.rel (0) target = $region77
  $region76: #{multimodal_forward.3} parent=0 // pred_region
    _
  $region77: #{multimodal_forward.3} parent=0 // pred_fallthru
    _
  // Predicated region
  $region78: #{multimodal_forward.3} parent=0 // pred_check
    _
  $region79: #{multimodal_forward.3} parent=0 // pred_check_branch
    %64 = sbr.rel (0) target = $region81
  $region80: #{multimodal_forward.3} parent=0 // pred_region
    _
  $region81: #{multimodal_forward.3} parent=0 // pred_fallthru
    _
  %v66 = vld [vmem:[%s0] sm:$0xff]
  %v67 = vld [vmem:[%s0 + $0x8] sm:$0xff]
  %v68 = vld [vmem:[%s2] sm:$0x1]
  %v69 = vld [vmem:[%s3] sm:$0x1]
  %vm70 = vcmask 261120
  %v71 = vsel %vm70, %v66, 0.0
  %72 = vadd.xlane.f32.xlu0 %v71
  %v73 = vpop.xlane.xlu0 %72
  %v74 = vsel %vm70, %v67, 0.0
  %75 = vadd.xlane.f32.xlu0 %v74
  %v76 = vpop.xlane.xlu0 %75
  %v77 = vrcp.pop 32.0
  %v78 = vmul.f32 %v73, %v77
  %v79 = vmul.f32 %v76, %v77
  %v80 = vsub.f32 %v66, %v78
  %v81 = vsub.f32 %v67, %v79
  %v82 = vmul.f32 %v80, %v80
  %v83 = vmul.f32 %v81, %v81
  %v84 = vsel %vm70, %v82, 0.0
  %85 = vadd.xlane.f32.xlu0 %v84
  %v86 = vpop.xlane.xlu0 %85
  %v87 = vsel %vm70, %v83, 0.0
  %88 = vadd.xlane.f32.xlu0 %v87
  %v89 = vpop.xlane.xlu0 %88
  %v90 = vmul.f32 %v86, %v77
  %v91 = vmul.f32 %v89, %v77
  %v92 = vadd.f32 %v90, 1e-12
  %v93 = vadd.f32 %v91, 1e-12
  %v94 = vrsqrt.pop %v92
  %v95 = vrsqrt.pop %v93
  %v96 = vmul.f32 %v80, %v94
  %v97 = vmul.f32 %v81, %v95
  %v99 = vlaneseq
  %v100 = vshrl.u32 %v99, 7
  %v101 = vsub.s32 0, %v100
  %v102 = vrot.slane %v68, %v101
  %v104 = vmul.f32 %v96, %v102
  %v105 = vmul.f32 %v97, %v102
  %v107 = vlaneseq
  %v108 = vshrl.u32 %v107, 7
  %v109 = vsub.s32 0, %v108
  %v110 = vrot.slane %v69, %v109
  %v112 = vadd.f32 %v104, %v110
  %v113 = vadd.f32 %v105, %v110
  %v114 = vld [vmem:[%s4] sm:$0xf]
  %v115 = vld [vmem:[%s4 + $0x4] sm:$0xf]
  %v116 = vld [vmem:[%s4 + $0x8] sm:$0xf]
  %v117 = vld [vmem:[%s4 + $0xc] sm:$0xf]
  %v118 = vpack.c.bf16 %v113, %v112
  %v119 = vld [vmem:[%s5] sm:$0x1]
  %v121 = vlaneseq
  %v122 = vshrl.u32 %v121, 7
  %v123 = vsub.s32 0, %v122
  %v124 = vrot.slane %v119, %v123
  %v130 = vunpack.c.l.b16 %v114
  %v131 = vunpack.c.l.b16 %v115
  %v132 = vunpack.c.l.b16 %v116
  %v133 = vunpack.c.l.b16 %v117
  %v134 = vpack.c.b16 %v131, %v130
  %v135 = vpack.c.b16 %v133, %v132
  %v139 = vsel %vm70, %v118, 0
  %141 = vmatprep.subr.bf16.mxu0 0
  %142 = vmatpush1.bf16.msra.mxu0 0
  %143 = vmatprep.subr.bf16.mxu0 0
  %144 = vmatpush1.bf16.msra.mxu0 0
  %145 = vmatprep.subr.bf16.mxu0 0
  %146 = vmatpush1.bf16.msra.mxu0 0
  %147 = vmatprep.subr.bf16.mxu0 0
  %148 = vmatpush1.bf16.msra.mxu0 0
  %149 = vmatprep.subr.bf16.mxu0 0
  %150 = vmatpush1.bf16.msra.mxu0 0
  %151 = vmatprep.subr.bf16.mxu0 0
  %152 = vmatpush1.bf16.msra.mxu0 0
  %153 = vmatprep.subr.bf16.mxu0 0
  %154 = vmatpush1.bf16.msra.mxu0 %v135
  %155 = vmatprep.subr.bf16.mxu0 0
  %156 = vmatpush1.bf16.msra.mxu0 %v134
  %157 = vmatprep.subr.bf16.mxu0 0
  %158 = vmatpush2.bf16.msra.mxu0 0
  %159 = vmatprep.subr.bf16.mxu0 0
  %160 = vmatpush2.bf16.msra.mxu0 0
  %161 = vmatprep.subr.bf16.mxu0 0
  %162 = vmatpush2.bf16.msra.mxu0 0
  %163 = vmatprep.subr.bf16.mxu0 0
  %164 = vmatpush2.bf16.msra.mxu0 0
  %165 = vmatprep.subr.bf16.mxu0 0
  %166 = vmatpush2.bf16.msra.mxu0 0
  %167 = vmatprep.subr.bf16.mxu0 0
  %168 = vmatpush2.bf16.msra.mxu0 0
  %169 = vmatprep.subr.bf16.mxu0 0
  %170 = vmatpush2.bf16.msra.mxu0 0
  %171 = vmatprep.subr.bf16.mxu0 0
  %172 = vmatpush2.bf16.msra.mxu0 0
  %173 = vmatprep.mubr.bf16.mxu0 0
  %174 = vmatmul.mubr.bf16.gmra.mxu0 %v139
  %v175 = vpop.f32.mrf.mxu0
  %v176 = vadd.f32 %v124, %v175
  %v177 = vpop.f32.mrf.mxu0
  %v178 = vpop.f32.mrf.mxu0
  %v179 = vadd.f32 %v124, %v178
  %v180 = vpop.f32.mrf.mxu0
  %181 = vdwg.mxu0
  %v182 = vld [vmem:[%s1] sm:$0x3]
  %v183 = vsub.f32 1.0, %v182
  %v184 = vmul.f32 %v183, -10000.0
  %v185 = vpack.c.bf16 %v176, %v176
  %v186 = vpack.c.bf16 %v179, %v179
  %188 = vrot.lane.b32.xlu0 %v185, 96
  %v189 = vpop.permute.xlu0 %188
  %vm190 = vcmask 130048
  %v192 = vsel %vm190, %v185, 0
  %v195 = vsel %vm190, %v189, 0
  %197 = vmatprep.subr.bf16.mxu0 0
  %198 = vmatpush1.bf16.xpose.msra.mxu0 0
  %199 = vmatprep.subr.bf16.mxu0 0
  %200 = vmatpush1.bf16.xpose.msra.mxu0 0
  %201 = vmatprep.subr.bf16.mxu0 0
  %202 = vmatpush1.bf16.xpose.msra.mxu0 0
  %203 = vmatprep.subr.bf16.mxu0 0
  %204 = vmatpush1.bf16.xpose.msra.mxu0 0
  %205 = vmatprep.subr.bf16.mxu0 0
  %206 = vmatpush1.bf16.xpose.msra.mxu0 0
  %207 = vmatprep.subr.bf16.mxu0 0
  %208 = vmatpush1.bf16.xpose.msra.mxu0 0
  %209 = vmatprep.subr.bf16.mxu0 0
  %210 = vmatpush1.bf16.xpose.msra.mxu0 0
  %211 = vmatprep.subr.bf16.mxu0 0
  %212 = vmatpush1.bf16.xpose.msra.mxu0 %v195
  %213 = vmatprep.subr.bf16.mxu0 0
  %214 = vmatpush2.bf16.xpose.msra.mxu0 0
  %215 = vmatprep.subr.bf16.mxu0 0
  %216 = vmatpush2.bf16.xpose.msra.mxu0 0
  %217 = vmatprep.subr.bf16.mxu0 0
  %218 = vmatpush2.bf16.xpose.msra.mxu0 0
  %219 = vmatprep.subr.bf16.mxu0 0
  %220 = vmatpush2.bf16.xpose.msra.mxu0 0
  %221 = vmatprep.subr.bf16.mxu0 0
  %222 = vmatpush2.bf16.xpose.msra.mxu0 0
  %223 = vmatprep.subr.bf16.mxu0 0
  %224 = vmatpush2.bf16.xpose.msra.mxu0 0
  %225 = vmatprep.subr.bf16.mxu0 0
  %226 = vmatpush2.bf16.xpose.msra.mxu0 0
  %227 = vmatprep.subr.bf16.mxu0 0
  %228 = vmatpush2.bf16.xpose.msra.mxu0 0
  %229 = vmatprep.mubr.bf16.mxu0 0
  %230 = vmatmul.mubr.bf16.gmra.mxu0 %v192
  %v231 = vpop.f32.mrf.mxu0
  %v232 = vadd.f32 0.0, %v231
  %v233 = vpop.f32.mrf.mxu0
  %v234 = vpop.f32.mrf.mxu0
  %v235 = vpop.f32.mrf.mxu0
  %236 = vdwg.mxu0
  %238 = vrot.lane.b32.xlu0 %v186, 96
  %v239 = vpop.permute.xlu0 %238
  %v241 = vsel %vm190, %v186, 0
  %v244 = vsel %vm190, %v239, 0
  %246 = vmatprep.subr.bf16.mxu0 0
  %247 = vmatpush1.bf16.xpose.msra.mxu0 0
  %248 = vmatprep.subr.bf16.mxu0 0
  %249 = vmatpush1.bf16.xpose.msra.mxu0 0
  %250 = vmatprep.subr.bf16.mxu0 0
  %251 = vmatpush1.bf16.xpose.msra.mxu0 0
  %252 = vmatprep.subr.bf16.mxu0 0
  %253 = vmatpush1.bf16.xpose.msra.mxu0 0
  %254 = vmatprep.subr.bf16.mxu0 0
  %255 = vmatpush1.bf16.xpose.msra.mxu0 0
  %256 = vmatprep.subr.bf16.mxu0 0
  %257 = vmatpush1.bf16.xpose.msra.mxu0 0
  %258 = vmatprep.subr.bf16.mxu0 0
  %259 = vmatpush1.bf16.xpose.msra.mxu0 0
  %260 = vmatprep.subr.bf16.mxu0 0
  %261 = vmatpush1.bf16.xpose.msra.mxu0 %v244
  %262 = vmatprep.subr.bf16.mxu0 0
  %263 = vmatpush2.bf16.xpose.msra.mxu0 0
  %264 = vmatprep.subr.bf16.mxu0 0
  %265 = vmatpush2.bf16.xpose.msra.mxu0 0
  %266 = vmatprep.subr.bf16.mxu0 0
  %267 = vmatpush2.bf16.xpose.msra.mxu0 0
  %268 = vmatprep.subr.bf16.mxu0 0
  %269 = vmatpush2.bf16.xpose.msra.mxu0 0
  %270 = vmatprep.subr.bf16.mxu0 0
  %271 = vmatpush2.bf16.xpose.msra.mxu0 0
  %272 = vmatprep.subr.bf16.mxu0 0
  %273 = vmatpush2.bf16.xpose.msra.mxu0 0
  %274 = vmatprep.subr.bf16.mxu0 0
  %275 = vmatpush2.bf16.xpose.msra.mxu0 0
  %276 = vmatprep.subr.bf16.mxu0 0
  %277 = vmatpush2.bf16.xpose.msra.mxu0 0
  %278 = vmatprep.mubr.bf16.mxu0 0
  %279 = vmatmul.mubr.bf16.gmra.mxu0 %v241
  %v280 = vpop.f32.mrf.mxu0
  %v281 = vadd.f32 0.0, %v280
  %v282 = vpop.f32.mrf.mxu0
  %v283 = vpop.f32.mrf.mxu0
  %v284 = vpop.f32.mrf.mxu0
  %285 = vdwg.mxu0
  %v286 = vmul.f32 %v232, 0.25
  %v287 = vmul.f32 %v281, 0.25
  %v290 = vunpack.c.l.s4 1966171168
  %v291 = vunpack.c.0.s8 %v290
  %v292 = vlaneseq
  %v293 = vshrl.u32 %v292, 7
  %v294 = vsub.s32 %v291, %v293
  %v295 = vrot.slane %v184, %v294
  %v296 = vcombine.high %v295, %v295
  %v298 = vunpack.c.l.s4 1966171168
  %v299 = vunpack.c.0.s8 %v298
  %v300 = vlaneseq
  %v301 = vshrl.u32 %v300, 7
  %v302 = vsub.s32 %v299, %v301
  %v303 = vrot.slane %v295, %v302
  %v305 = vunpack.c.l.s4 1966171168
  %v306 = vunpack.c.0.s8 %v305
  %v307 = vlaneseq
  %v308 = vshrl.u32 %v307, 7
  %v309 = vsub.s32 %v306, %v308
  %v310 = vrot.slane %v296, %v309
  %v311 = vlaneseq
  %v312 = vshrl.u32 %v311, 7
  %v313 = vsub.s32 0, %v312
  %v314 = vrot.slane %v303, %v313
  %v315 = vlaneseq
  %v316 = vshrl.u32 %v315, 7
  %v317 = vsub.s32 0, %v316
  %v318 = vrot.slane %v310, %v317
  %v321 = vadd.f32 %v286, %v314
  %v322 = vadd.f32 %v287, %v318
  %vm323 = vcmask 64512
  %v324 = vsel %vm323, %v321, -inf
  %325 = vmax.xlane.f32.xlu0 %v324
  %v326 = vpop.xlane.xlu0 %325
  %v327 = vsel %vm323, %v322, -inf
  %328 = vmax.xlane.f32.xlu0 %v327
  %v329 = vpop.xlane.xlu0 %328
  %v330 = vsub.f32 %v321, %v326
  %v331 = vsub.f32 %v322, %v329
  %v332 = vmul.f32 %v330, 1.442695
  %v333 = vpow.pop %v332
  %v334 = vmul.f32 %v331, 1.442695
  %v335 = vpow.pop %v334
  %v336 = vsel %vm323, %v333, 0.0
  %337 = vadd.xlane.f32.xlu0 %v336
  %v338 = vpop.xlane.xlu0 %337
  %v339 = vsel %vm323, %v335, 0.0
  %340 = vadd.xlane.f32.xlu0 %v339
  %v341 = vpop.xlane.xlu0 %340
  %v342 = vrcp.pop %v338
  %v343 = vrcp.pop %v341
  %v344 = vmul.f32 %v333, %v342
  %v345 = vmul.f32 %v335, %v343
  %v346 = vpack.c.bf16 %v344, %v344
  %v347 = vpack.c.bf16 %v345, %v345
  %348 = vrot.lane.b32.xlu0 %v185, 64
  %v349 = vpop.permute.xlu0 %348
  %v351 = vsel %vm323, %v346, 0
  %vm353 = vcmask 1043456
  %v355 = vsel %vm353, %v349, 0
  %357 = vmatprep.subr.bf16.mxu0 0
  %358 = vmatpush1.bf16.msra.mxu0 0
  %359 = vmatprep.subr.bf16.mxu0 0
  %360 = vmatpush1.bf16.msra.mxu0 0
  %361 = vmatprep.subr.bf16.mxu0 0
  %362 = vmatpush1.bf16.msra.mxu0 0
  %363 = vmatprep.subr.bf16.mxu0 0
  %364 = vmatpush1.bf16.msra.mxu0 0
  %365 = vmatprep.subr.bf16.mxu0 0
  %366 = vmatpush1.bf16.msra.mxu0 0
  %367 = vmatprep.subr.bf16.mxu0 0
  %368 = vmatpush1.bf16.msra.mxu0 0
  %369 = vmatprep.subr.bf16.mxu0 0
  %370 = vmatpush1.bf16.msra.mxu0 0
  %371 = vmatprep.subr.bf16.mxu0 0
  %372 = vmatpush1.bf16.msra.mxu0 %v355
  %373 = vmatprep.subr.bf16.mxu0 0
  %374 = vmatpush2.bf16.msra.mxu0 0
  %375 = vmatprep.subr.bf16.mxu0 0
  %376 = vmatpush2.bf16.msra.mxu0 0
  %377 = vmatprep.subr.bf16.mxu0 0
  %378 = vmatpush2.bf16.msra.mxu0 0
  %379 = vmatprep.subr.bf16.mxu0 0
  %380 = vmatpush2.bf16.msra.mxu0 0
  %381 = vmatprep.subr.bf16.mxu0 0
  %382 = vmatpush2.bf16.msra.mxu0 0
  %383 = vmatprep.subr.bf16.mxu0 0
  %384 = vmatpush2.bf16.msra.mxu0 0
  %385 = vmatprep.subr.bf16.mxu0 0
  %386 = vmatpush2.bf16.msra.mxu0 0
  %387 = vmatprep.subr.bf16.mxu0 0
  %388 = vmatpush2.bf16.msra.mxu0 0
  %389 = vmatprep.mubr.bf16.mxu0 0
  %390 = vmatmul.mubr.bf16.gmra.mxu0 %v351
  %v391 = vpop.f32.mrf.mxu0
  %v392 = vadd.f32 0.0, %v391
  %v393 = vpop.f32.mrf.mxu0
  %v394 = vpop.f32.mrf.mxu0
  %v395 = vpop.f32.mrf.mxu0
  %396 = vdwg.mxu0
  %397 = vrot.lane.b32.xlu0 %v186, 64
  %v398 = vpop.permute.xlu0 %397
  %v400 = vsel %vm323, %v347, 0
  %v403 = vsel %vm353, %v398, 0
  %405 = vmatprep.subr.bf16.mxu0 0
  %406 = vmatpush1.bf16.msra.mxu0 0
  %407 = vmatprep.subr.bf16.mxu0 0
  %408 = vmatpush1.bf16.msra.mxu0 0
  %409 = vmatprep.subr.bf16.mxu0 0
  %410 = vmatpush1.bf16.msra.mxu0 0
  %411 = vmatprep.subr.bf16.mxu0 0
  %412 = vmatpush1.bf16.msra.mxu0 0
  %413 = vmatprep.subr.bf16.mxu0 0
  %414 = vmatpush1.bf16.msra.mxu0 0
  %415 = vmatprep.subr.bf16.mxu0 0
  %416 = vmatpush1.bf16.msra.mxu0 0
  %417 = vmatprep.subr.bf16.mxu0 0
  %418 = vmatpush1.bf16.msra.mxu0 0
  %419 = vmatprep.subr.bf16.mxu0 0
  %420 = vmatpush1.bf16.msra.mxu0 %v403
  %421 = vmatprep.subr.bf16.mxu0 0
  %422 = vmatpush2.bf16.msra.mxu0 0
  %423 = vmatprep.subr.bf16.mxu0 0
  %424 = vmatpush2.bf16.msra.mxu0 0
  %425 = vmatprep.subr.bf16.mxu0 0
  %426 = vmatpush2.bf16.msra.mxu0 0
  %427 = vmatprep.subr.bf16.mxu0 0
  %428 = vmatpush2.bf16.msra.mxu0 0
  %429 = vmatprep.subr.bf16.mxu0 0
  %430 = vmatpush2.bf16.msra.mxu0 0
  %431 = vmatprep.subr.bf16.mxu0 0
  %432 = vmatpush2.bf16.msra.mxu0 0
  %433 = vmatprep.subr.bf16.mxu0 0
  %434 = vmatpush2.bf16.msra.mxu0 0
  %435 = vmatprep.subr.bf16.mxu0 0
  %436 = vmatpush2.bf16.msra.mxu0 0
  %437 = vmatprep.mubr.bf16.mxu0 0
  %438 = vmatmul.mubr.bf16.gmra.mxu0 %v400
  %v439 = vpop.f32.mrf.mxu0
  %v440 = vadd.f32 0.0, %v439
  %v441 = vpop.f32.mrf.mxu0
  %v442 = vpop.f32.mrf.mxu0
  %v443 = vpop.f32.mrf.mxu0
  %444 = vdwg.mxu0
  %445 = vst.msk [vmem:[#allocation2] sm:$0xff] %vm190, %v392
  %446 = vst.msk [vmem:[#allocation2 + $0x8] sm:$0xff] %vm190, %v440
  %447 = vrot.lane.b32.xlu0 %v185, 112
  %v448 = vpop.permute.xlu0 %447
  %449 = vrot.lane.b32.xlu0 %v185, 80
  %v450 = vpop.permute.xlu0 %449
  %v452 = vsel %vm190, %v448, 0
  %v455 = vsel %vm190, %v450, 0
  %457 = vmatprep.subr.bf16.mxu0 0
  %458 = vmatpush1.bf16.xpose.msra.mxu0 0
  %459 = vmatprep.subr.bf16.mxu0 0
  %460 = vmatpush1.bf16.xpose.msra.mxu0 0
  %461 = vmatprep.subr.bf16.mxu0 0
  %462 = vmatpush1.bf16.xpose.msra.mxu0 0
  %463 = vmatprep.subr.bf16.mxu0 0
  %464 = vmatpush1.bf16.xpose.msra.mxu0 0
  %465 = vmatprep.subr.bf16.mxu0 0
  %466 = vmatpush1.bf16.xpose.msra.mxu0 0
  %467 = vmatprep.subr.bf16.mxu0 0
  %468 = vmatpush1.bf16.xpose.msra.mxu0 0
  %469 = vmatprep.subr.bf16.mxu0 0
  %470 = vmatpush1.bf16.xpose.msra.mxu0 0
  %471 = vmatprep.subr.bf16.mxu0 0
  %472 = vmatpush1.bf16.xpose.msra.mxu0 %v455
  %473 = vmatprep.subr.bf16.mxu0 0
  %474 = vmatpush2.bf16.xpose.msra.mxu0 0
  %475 = vmatprep.subr.bf16.mxu0 0
  %476 = vmatpush2.bf16.xpose.msra.mxu0 0
  %477 = vmatprep.subr.bf16.mxu0 0
  %478 = vmatpush2.bf16.xpose.msra.mxu0 0
  %479 = vmatprep.subr.bf16.mxu0 0
  %480 = vmatpush2.bf16.xpose.msra.mxu0 0
  %481 = vmatprep.subr.bf16.mxu0 0
  %482 = vmatpush2.bf16.xpose.msra.mxu0 0
  %483 = vmatprep.subr.bf16.mxu0 0
  %484 = vmatpush2.bf16.xpose.msra.mxu0 0
  %485 = vmatprep.subr.bf16.mxu0 0
  %486 = vmatpush2.bf16.xpose.msra.mxu0 0
  %487 = vmatprep.subr.bf16.mxu0 0
  %488 = vmatpush2.bf16.xpose.msra.mxu0 0
  %489 = vmatprep.mubr.bf16.mxu0 0
  %490 = vmatmul.mubr.bf16.gmra.mxu0 %v452
  %v491 = vpop.f32.mrf.mxu0
  %v492 = vadd.f32 0.0, %v491
  %v493 = vpop.f32.mrf.mxu0
  %v494 = vpop.f32.mrf.mxu0
  %v495 = vpop.f32.mrf.mxu0
  %496 = vdwg.mxu0
  %497 = vrot.lane.b32.xlu0 %v186, 112
  %v498 = vpop.permute.xlu0 %497
  %499 = vrot.lane.b32.xlu0 %v186, 80
  %v500 = vpop.permute.xlu0 %499
  %v502 = vsel %vm190, %v498, 0
  %v505 = vsel %vm190, %v500, 0
  %507 = vmatprep.subr.bf16.mxu0 0
  %508 = vmatpush1.bf16.xpose.msra.mxu0 0
  %509 = vmatprep.subr.bf16.mxu0 0
  %510 = vmatpush1.bf16.xpose.msra.mxu0 0
  %511 = vmatprep.subr.bf16.mxu0 0
  %512 = vmatpush1.bf16.xpose.msra.mxu0 0
  %513 = vmatprep.subr.bf16.mxu0 0
  %514 = vmatpush1.bf16.xpose.msra.mxu0 0
  %515 = vmatprep.subr.bf16.mxu0 0
  %516 = vmatpush1.bf16.xpose.msra.mxu0 0
  %517 = vmatprep.subr.bf16.mxu0 0
  %518 = vmatpush1.bf16.xpose.msra.mxu0 0
  %519 = vmatprep.subr.bf16.mxu0 0
  %520 = vmatpush1.bf16.xpose.msra.mxu0 0
  %521 = vmatprep.subr.bf16.mxu0 0
  %522 = vmatpush1.bf16.xpose.msra.mxu0 %v505
  %523 = vmatprep.subr.bf16.mxu0 0
  %524 = vmatpush2.bf16.xpose.msra.mxu0 0
  %525 = vmatprep.subr.bf16.mxu0 0
  %526 = vmatpush2.bf16.xpose.msra.mxu0 0
  %527 = vmatprep.subr.bf16.mxu0 0
  %528 = vmatpush2.bf16.xpose.msra.mxu0 0
  %529 = vmatprep.subr.bf16.mxu0 0
  %530 = vmatpush2.bf16.xpose.msra.mxu0 0
  %531 = vmatprep.subr.bf16.mxu0 0
  %532 = vmatpush2.bf16.xpose.msra.mxu0 0
  %533 = vmatprep.subr.bf16.mxu0 0
  %534 = vmatpush2.bf16.xpose.msra.mxu0 0
  %535 = vmatprep.subr.bf16.mxu0 0
  %536 = vmatpush2.bf16.xpose.msra.mxu0 0
  %537 = vmatprep.subr.bf16.mxu0 0
  %538 = vmatpush2.bf16.xpose.msra.mxu0 0
  %539 = vmatprep.mubr.bf16.mxu0 0
  %540 = vmatmul.mubr.bf16.gmra.mxu0 %v502
  %v541 = vpop.f32.mrf.mxu0
  %v542 = vadd.f32 0.0, %v541
  %v543 = vpop.f32.mrf.mxu0
  %v544 = vpop.f32.mrf.mxu0
  %v545 = vpop.f32.mrf.mxu0
  %546 = vdwg.mxu0
  %v547 = vmul.f32 %v492, 0.25
  %v548 = vmul.f32 %v542, 0.25
  %v549 = vadd.f32 %v547, %v314
  %v550 = vadd.f32 %v548, %v318
  %v551 = vsel %vm323, %v549, -inf
  %552 = vmax.xlane.f32.xlu0 %v551
  %v553 = vpop.xlane.xlu0 %552
  %v554 = vsel %vm323, %v550, -inf
  %555 = vmax.xlane.f32.xlu0 %v554
  %v556 = vpop.xlane.xlu0 %555
  %v557 = vsub.f32 %v549, %v553
  %v558 = vsub.f32 %v550, %v556
  %v559 = vmul.f32 %v557, 1.442695
  %v560 = vpow.pop %v559
  %v561 = vmul.f32 %v558, 1.442695
  %v562 = vpow.pop %v561
  %v563 = vsel %vm323, %v560, 0.0
  %564 = vadd.xlane.f32.xlu0 %v563
  %v565 = vpop.xlane.xlu0 %564
  %v566 = vsel %vm323, %v562, 0.0
  %567 = vadd.xlane.f32.xlu0 %v566
  %v568 = vpop.xlane.xlu0 %567
  %v569 = vrcp.pop %v565
  %v570 = vrcp.pop %v568
  %v571 = vmul.f32 %v560, %v569
  %v572 = vmul.f32 %v562, %v570
  %v573 = vpack.c.bf16 %v571, %v571
  %v574 = vpack.c.bf16 %v572, %v572
  %575 = vrot.lane.b32.xlu0 %v185, 48
  %v576 = vpop.permute.xlu0 %575
  %v578 = vsel %vm323, %v573, 0
  %v581 = vsel %vm353, %v576, 0
  %583 = vmatprep.subr.bf16.mxu0 0
  %584 = vmatpush1.bf16.msra.mxu0 0
  %585 = vmatprep.subr.bf16.mxu0 0
  %586 = vmatpush1.bf16.msra.mxu0 0
  %587 = vmatprep.subr.bf16.mxu0 0
  %588 = vmatpush1.bf16.msra.mxu0 0
  %589 = vmatprep.subr.bf16.mxu0 0
  %590 = vmatpush1.bf16.msra.mxu0 0
  %591 = vmatprep.subr.bf16.mxu0 0
  %592 = vmatpush1.bf16.msra.mxu0 0
  %593 = vmatprep.subr.bf16.mxu0 0
  %594 = vmatpush1.bf16.msra.mxu0 0
  %595 = vmatprep.subr.bf16.mxu0 0
  %596 = vmatpush1.bf16.msra.mxu0 0
  %597 = vmatprep.subr.bf16.mxu0 0
  %598 = vmatpush1.bf16.msra.mxu0 %v581
  %599 = vmatprep.subr.bf16.mxu0 0
  %600 = vmatpush2.bf16.msra.mxu0 0
  %601 = vmatprep.subr.bf16.mxu0 0
  %602 = vmatpush2.bf16.msra.mxu0 0
  %603 = vmatprep.subr.bf16.mxu0 0
  %604 = vmatpush2.bf16.msra.mxu0 0
  %605 = vmatprep.subr.bf16.mxu0 0
  %606 = vmatpush2.bf16.msra.mxu0 0
  %607 = vmatprep.subr.bf16.mxu0 0
  %608 = vmatpush2.bf16.msra.mxu0 0
  %609 = vmatprep.subr.bf16.mxu0 0
  %610 = vmatpush2.bf16.msra.mxu0 0
  %611 = vmatprep.subr.bf16.mxu0 0
  %612 = vmatpush2.bf16.msra.mxu0 0
  %613 = vmatprep.subr.bf16.mxu0 0
  %614 = vmatpush2.bf16.msra.mxu0 0
  %615 = vmatprep.mubr.bf16.mxu0 0
  %616 = vmatmul.mubr.bf16.gmra.mxu0 %v578
  %v617 = vpop.f32.mrf.mxu0
  %v618 = vadd.f32 0.0, %v617
  %v619 = vpop.f32.mrf.mxu0
  %v620 = vpop.f32.mrf.mxu0
  %v621 = vpop.f32.mrf.mxu0
  %622 = vdwg.mxu0
  %623 = vrot.lane.b32.xlu0 %v186, 48
  %v624 = vpop.permute.xlu0 %623
  %v626 = vsel %vm323, %v574, 0
  %v629 = vsel %vm353, %v624, 0
  %631 = vmatprep.subr.bf16.mxu0 0
  %632 = vmatpush1.bf16.msra.mxu0 0
  %633 = vmatprep.subr.bf16.mxu0 0
  %634 = vmatpush1.bf16.msra.mxu0 0
  %635 = vmatprep.subr.bf16.mxu0 0
  %636 = vmatpush1.bf16.msra.mxu0 0
  %637 = vmatprep.subr.bf16.mxu0 0
  %638 = vmatpush1.bf16.msra.mxu0 0
  %639 = vmatprep.subr.bf16.mxu0 0
  %640 = vmatpush1.bf16.msra.mxu0 0
  %641 = vmatprep.subr.bf16.mxu0 0
  %642 = vmatpush1.bf16.msra.mxu0 0
  %643 = vmatprep.subr.bf16.mxu0 0
  %644 = vmatpush1.bf16.msra.mxu0 0
  %645 = vmatprep.subr.bf16.mxu0 0
  %646 = vmatpush1.bf16.msra.mxu0 %v629
  %647 = vmatprep.subr.bf16.mxu0 0
  %648 = vmatpush2.bf16.msra.mxu0 0
  %649 = vmatprep.subr.bf16.mxu0 0
  %650 = vmatpush2.bf16.msra.mxu0 0
  %651 = vmatprep.subr.bf16.mxu0 0
  %652 = vmatpush2.bf16.msra.mxu0 0
  %653 = vmatprep.subr.bf16.mxu0 0
  %654 = vmatpush2.bf16.msra.mxu0 0
  %655 = vmatprep.subr.bf16.mxu0 0
  %656 = vmatpush2.bf16.msra.mxu0 0
  %657 = vmatprep.subr.bf16.mxu0 0
  %658 = vmatpush2.bf16.msra.mxu0 0
  %659 = vmatprep.subr.bf16.mxu0 0
  %660 = vmatpush2.bf16.msra.mxu0 0
  %661 = vmatprep.subr.bf16.mxu0 0
  %662 = vmatpush2.bf16.msra.mxu0 0
  %663 = vmatprep.mubr.bf16.mxu0 0
  %664 = vmatmul.mubr.bf16.gmra.mxu0 %v626
  %v665 = vpop.f32.mrf.mxu0
  %v666 = vadd.f32 0.0, %v665
  %v667 = vpop.f32.mrf.mxu0
  %v668 = vpop.f32.mrf.mxu0
  %v669 = vpop.f32.mrf.mxu0
  %670 = vdwg.mxu0
  %673 = vrot.lane.b32.xlu0 %v618, 16
  %v674 = vpop.permute.xlu0 %673
  %675 = vrot.lane.b32.xlu0 %v666, 16
  %v676 = vpop.permute.xlu0 %675
  %vm679 = vcmask 261248
  %680 = vst.msk [vmem:[#allocation2] sm:$0xff] %vm679, %v674
  %681 = vst.msk [vmem:[#allocation2 + $0x8] sm:$0xff] %vm679, %v676
  %v682 = vld [vmem:[#allocation2] sm:$0xff]
  %v683 = vld [vmem:[#allocation2 + $0x8] sm:$0xff]
  %v684 = vld [vmem:[%s6] sm:$0xf]
  %v685 = vld [vmem:[%s6 + $0x4] sm:$0xf]
  %v686 = vld [vmem:[%s6 + $0x8] sm:$0xf]
  %v687 = vld [vmem:[%s6 + $0xc] sm:$0xf]
  %v688 = vpack.c.bf16 %v683, %v682
  %v689 = vld [vmem:[%s7] sm:$0x1]
  %v691 = vlaneseq
  %v692 = vshrl.u32 %v691, 7
  %v693 = vsub.s32 0, %v692
  %v694 = vrot.slane %v689, %v693
  %v700 = vunpack.c.l.b16 %v684
  %v701 = vunpack.c.l.b16 %v685
  %v702 = vunpack.c.l.b16 %v686
  %v703 = vunpack.c.l.b16 %v687
  %v704 = vpack.c.b16 %v701, %v700
  %v705 = vpack.c.b16 %v703, %v702
  %v709 = vsel %vm70, %v688, 0
  %711 = vmatprep.subr.bf16.mxu0 0
  %712 = vmatpush1.bf16.msra.mxu0 0
  %713 = vmatprep.subr.bf16.mxu0 0
  %714 = vmatpush1.bf16.msra.mxu0 0
  %715 = vmatprep.subr.bf16.mxu0 0
  %716 = vmatpush1.bf16.msra.mxu0 0
  %717 = vmatprep.subr.bf16.mxu0 0
  %718 = vmatpush1.bf16.msra.mxu0 0
  %719 = vmatprep.subr.bf16.mxu0 0
  %720 = vmatpush1.bf16.msra.mxu0 0
  %721 = vmatprep.subr.bf16.mxu0 0
  %722 = vmatpush1.bf16.msra.mxu0 0
  %723 = vmatprep.subr.bf16.mxu0 0
  %724 = vmatpush1.bf16.msra.mxu0 %v705
  %725 = vmatprep.subr.bf16.mxu0 0
  %726 = vmatpush1.bf16.msra.mxu0 %v704
  %727 = vmatprep.subr.bf16.mxu0 0
  %728 = vmatpush2.bf16.msra.mxu0 0
  %729 = vmatprep.subr.bf16.mxu0 0
  %730 = vmatpush2.bf16.msra.mxu0 0
  %731 = vmatprep.subr.bf16.mxu0 0
  %732 = vmatpush2.bf16.msra.mxu0 0
  %733 = vmatprep.subr.bf16.mxu0 0
  %734 = vmatpush2.bf16.msra.mxu0 0
  %735 = vmatprep.subr.bf16.mxu0 0
  %736 = vmatpush2.bf16.msra.mxu0 0
  %737 = vmatprep.subr.bf16.mxu0 0
  %738 = vmatpush2.bf16.msra.mxu0 0
  %739 = vmatprep.subr.bf16.mxu0 0
  %740 = vmatpush2.bf16.msra.mxu0 0
  %741 = vmatprep.subr.bf16.mxu0 0
  %742 = vmatpush2.bf16.msra.mxu0 0
  %743 = vmatprep.mubr.bf16.mxu0 0
  %744 = vmatmul.mubr.bf16.gmra.mxu0 %v709
  %v745 = vpop.f32.mrf.mxu0
  %v746 = vadd.f32 %v694, %v745
  %v747 = vpop.f32.mrf.mxu0
  %v748 = vpop.f32.mrf.mxu0
  %v749 = vadd.f32 %v694, %v748
  %v750 = vpop.f32.mrf.mxu0
  %751 = vdwg.mxu0
  %v752 = vadd.f32 %v112, %v746
  %v753 = vadd.f32 %v113, %v749
  %v754 = vld [vmem:[%s8] sm:$0x1]
  %v755 = vld [vmem:[%s9] sm:$0x1]
  %v756 = vsel %vm70, %v752, 0.0
  %757 = vadd.xlane.f32.xlu0 %v756
  %v758 = vpop.xlane.xlu0 %757
  %v759 = vsel %vm70, %v753, 0.0
  %760 = vadd.xlane.f32.xlu0 %v759
  %v761 = vpop.xlane.xlu0 %760
  %v762 = vmul.f32 %v758, %v77
  %v763 = vmul.f32 %v761, %v77
  %v764 = vsub.f32 %v752, %v762
  %v765 = vsub.f32 %v753, %v763
  %v766 = vmul.f32 %v764, %v764
  %v767 = vmul.f32 %v765, %v765
  %v768 = vsel %vm70, %v766, 0.0
  %769 = vadd.xlane.f32.xlu0 %v768
  %v770 = vpop.xlane.xlu0 %769
  %v771 = vsel %vm70, %v767, 0.0
  %772 = vadd.xlane.f32.xlu0 %v771
  %v773 = vpop.xlane.xlu0 %772
  %v774 = vmul.f32 %v770, %v77
  %v775 = vmul.f32 %v773, %v77
  %v776 = vadd.f32 %v774, 1e-12
  %v777 = vadd.f32 %v775, 1e-12
  %v778 = vrsqrt.pop %v776
  %v779 = vrsqrt.pop %v777
  %v780 = vmul.f32 %v764, %v778
  %v781 = vmul.f32 %v765, %v779
  %v783 = vlaneseq
  %v784 = vshrl.u32 %v783, 7
  %v785 = vsub.s32 0, %v784
  %v786 = vrot.slane %v754, %v785
  %v788 = vmul.f32 %v780, %v786
  %v789 = vmul.f32 %v781, %v786
  %v791 = vlaneseq
  %v792 = vshrl.u32 %v791, 7
  %v793 = vsub.s32 0, %v792
  %v794 = vrot.slane %v755, %v793
  %v796 = vadd.f32 %v788, %v794
  %v797 = vadd.f32 %v789, %v794
  %v798 = vld [vmem:[%s10] sm:$0xf]
  %v799 = vld [vmem:[%s10 + $0x4] sm:$0xf]
  %v800 = vld [vmem:[%s10 + $0x8] sm:$0xf]
  %v801 = vld [vmem:[%s10 + $0xc] sm:$0xf]
  %v802 = vpack.c.bf16 %v797, %v796
  %v803 = vld [vmem:[%s11] sm:$0x1]
  %v805 = vlaneseq
  %v806 = vshrl.u32 %v805, 7
  %v807 = vsub.s32 0, %v806
  %v808 = vrot.slane %v803, %v807
  %v814 = vunpack.c.l.b16 %v798
  %v815 = vunpack.c.l.b16 %v799
  %v816 = vunpack.c.l.b16 %v800
  %v817 = vunpack.c.l.b16 %v801
  %v818 = vpack.c.b16 %v815, %v814
  %v819 = vpack.c.b16 %v817, %v816
  %v823 = vsel %vm70, %v802, 0
  %825 = vmatprep.subr.bf16.mxu0 0
  %826 = vmatpush1.bf16.msra.mxu0 0
  %827 = vmatprep.subr.bf16.mxu0 0
  %828 = vmatpush1.bf16.msra.mxu0 0
  %829 = vmatprep.subr.bf16.mxu0 0
  %830 = vmatpush1.bf16.msra.mxu0 0
  %831 = vmatprep.subr.bf16.mxu0 0
  %832 = vmatpush1.bf16.msra.mxu0 0
  %833 = vmatprep.subr.bf16.mxu0 0
  %834 = vmatpush1.bf16.msra.mxu0 0
  %835 = vmatprep.subr.bf16.mxu0 0
  %836 = vmatpush1.bf16.msra.mxu0 0
  %837 = vmatprep.subr.bf16.mxu0 0
  %838 = vmatpush1.bf16.msra.mxu0 %v819
  %839 = vmatprep.subr.bf16.mxu0 0
  %840 = vmatpush1.bf16.msra.mxu0 %v818
  %841 = vmatprep.subr.bf16.mxu0 0
  %842 = vmatpush2.bf16.msra.mxu0 0
  %843 = vmatprep.subr.bf16.mxu0 0
  %844 = vmatpush2.bf16.msra.mxu0 0
  %845 = vmatprep.subr.bf16.mxu0 0
  %846 = vmatpush2.bf16.msra.mxu0 0
  %847 = vmatprep.subr.bf16.mxu0 0
  %848 = vmatpush2.bf16.msra.mxu0 0
  %849 = vmatprep.subr.bf16.mxu0 0
  %850 = vmatpush2.bf16.msra.mxu0 0
  %851 = vmatprep.subr.bf16.mxu0 0
  %852 = vmatpush2.bf16.msra.mxu0 0
  %853 = vmatprep.subr.bf16.mxu0 0
  %854 = vmatpush2.bf16.msra.mxu0 0
  %855 = vmatprep.subr.bf16.mxu0 0
  %856 = vmatpush2.bf16.msra.mxu0 0
  %857 = vmatprep.mubr.bf16.mxu0 0
  %858 = vmatmul.mubr.bf16.gmra.mxu0 %v823
  %v859 = vpop.f32.mrf.mxu0
  %v860 = vadd.f32 %v808, %v859
  %v861 = vpop.f32.mrf.mxu0
  %v862 = vpop.f32.mrf.mxu0
  %v863 = vadd.f32 %v808, %v862
  %v864 = vpop.f32.mrf.mxu0
  %865 = vdwg.mxu0
  %v866 = vmul.f32 %v860, 0.5
  %v867 = vmul.f32 %v863, 0.5
  %v868 = vmul.f32 %v860, 0.044715
  %v869 = vmul.f32 %v863, 0.044715
  %v870 = vmul.f32 %v868, %v860
  %v871 = vmul.f32 %v869, %v863
  %v872 = vmul.f32 %v870, %v860
  %v873 = vmul.f32 %v871, %v863
  %v874 = vadd.f32 %v860, %v872
  %v875 = vadd.f32 %v863, %v873
  %v876 = vmul.f32 %v874, 0.7978846
  %v877 = vmul.f32 %v875, 0.7978846
  %v878 = vtanh.pop %v876
  %v879 = vtanh.pop %v877
  %v880 = vadd.f32 %v878, 1.0
  %v881 = vadd.f32 %v879, 1.0
  %v882 = vmul.f32 %v866, %v880
  %v883 = vmul.f32 %v867, %v881
  %v884 = vld [vmem:[%s12] sm:$0xf]
  %v885 = vld [vmem:[%s12 + $0x4] sm:$0xf]
  %v886 = vld [vmem:[%s12 + $0x8] sm:$0xf]
  %v887 = vld [vmem:[%s12 + $0xc] sm:$0xf]
  %v888 = vld [vmem:[%s12 + $0x10] sm:$0xf]
  %v889 = vld [vmem:[%s12 + $0x14] sm:$0xf]
  %v890 = vld [vmem:[%s12 + $0x18] sm:$0xf]
  %v891 = vld [vmem:[%s12 + $0x1c] sm:$0xf]
  %v892 = vpack.c.bf16 %v883, %v882
  %v893 = vld [vmem:[%s13] sm:$0x1]
  %v895 = vlaneseq
  %v896 = vshrl.u32 %v895, 7
  %v897 = vsub.s32 0, %v896
  %v898 = vrot.slane %v893, %v897
  %v908 = vunpack.c.l.b16 %v884
  %v909 = vunpack.c.l.b16 %v885
  %v910 = vunpack.c.l.b16 %v886
  %v911 = vunpack.c.l.b16 %v887
  %v912 = vunpack.c.l.b16 %v888
  %v913 = vunpack.c.l.b16 %v889
  %v914 = vunpack.c.l.b16 %v890
  %v915 = vunpack.c.l.b16 %v891
  %v916 = vpack.c.b16 %v909, %v908
  %v917 = vpack.c.b16 %v911, %v910
  %v918 = vpack.c.b16 %v913, %v912
  %v919 = vpack.c.b16 %v915, %v914
  %vm924 = vcmask 523264
  %v926 = vsel %vm924, %v892, 0
  %928 = vmatprep.subr.bf16.mxu0 0
  %929 = vmatpush1.bf16.msra.mxu0 0
  %930 = vmatprep.subr.bf16.mxu0 0
  %931 = vmatpush1.bf16.msra.mxu0 0
  %932 = vmatprep.subr.bf16.mxu0 0
  %933 = vmatpush1.bf16.msra.mxu0 0
  %934 = vmatprep.subr.bf16.mxu0 0
  %935 = vmatpush1.bf16.msra.mxu0 0
  %936 = vmatprep.subr.bf16.mxu0 0
  %937 = vmatpush1.bf16.msra.mxu0 %v919
  %938 = vmatprep.subr.bf16.mxu0 0
  %939 = vmatpush1.bf16.msra.mxu0 %v918
  %940 = vmatprep.subr.bf16.mxu0 0
  %941 = vmatpush1.bf16.msra.mxu0 %v917
  %942 = vmatprep.subr.bf16.mxu0 0
  %943 = vmatpush1.bf16.msra.mxu0 %v916
  %944 = vmatprep.subr.bf16.mxu0 0
  %945 = vmatpush2.bf16.msra.mxu0 0
  %946 = vmatprep.subr.bf16.mxu0 0
  %947 = vmatpush2.bf16.msra.mxu0 0
  %948 = vmatprep.subr.bf16.mxu0 0
  %949 = vmatpush2.bf16.msra.mxu0 0
  %950 = vmatprep.subr.bf16.mxu0 0
  %951 = vmatpush2.bf16.msra.mxu0 0
  %952 = vmatprep.subr.bf16.mxu0 0
  %953 = vmatpush2.bf16.msra.mxu0 0
  %954 = vmatprep.subr.bf16.mxu0 0
  %955 = vmatpush2.bf16.msra.mxu0 0
  %956 = vmatprep.subr.bf16.mxu0 0
  %957 = vmatpush2.bf16.msra.mxu0 0
  %958 = vmatprep.subr.bf16.mxu0 0
  %959 = vmatpush2.bf16.msra.mxu0 0
  %960 = vmatprep.mubr.bf16.mxu0 0
  %961 = vmatmul.mubr.bf16.gmra.mxu0 %v926
  %v962 = vpop.f32.mrf.mxu0
  %v963 = vadd.f32 %v898, %v962
  %v964 = vpop.f32.mrf.mxu0
  %v965 = vpop.f32.mrf.mxu0
  %v966 = vadd.f32 %v898, %v965
  %v967 = vpop.f32.mrf.mxu0
  %968 = vdwg.mxu0
  %v969 = vadd.f32 %v796, %v963
  %v970 = vadd.f32 %v797, %v966
  %v971 = vld [vmem:[%s14] sm:$0x1]
  %v972 = vld [vmem:[%s15] sm:$0x1]
  %v973 = vsel %vm70, %v969, 0.0
  %974 = vadd.xlane.f32.xlu0 %v973
  %v975 = vpop.xlane.xlu0 %974
  %v976 = vsel %vm70, %v970, 0.0
  %977 = vadd.xlane.f32.xlu0 %v976
  %v978 = vpop.xlane.xlu0 %977
  %v979 = vmul.f32 %v975, %v77
  %v980 = vmul.f32 %v978, %v77
  %v981 = vsub.f32 %v969, %v979
  %v982 = vsub.f32 %v970, %v980
  %v983 = vmul.f32 %v981, %v981
  %v984 = vmul.f32 %v982, %v982
  %v985 = vsel %vm70, %v983, 0.0
  %986 = vadd.xlane.f32.xlu0 %v985
  %v987 = vpop.xlane.xlu0 %986
  %v988 = vsel %vm70, %v984, 0.0
  %989 = vadd.xlane.f32.xlu0 %v988
  %v990 = vpop.xlane.xlu0 %989
  %v991 = vmul.f32 %v987, %v77
  %v992 = vmul.f32 %v990, %v77
  %v993 = vadd.f32 %v991, 1e-12
  %v994 = vadd.f32 %v992, 1e-12
  %v995 = vrsqrt.pop %v993
  %v996 = vrsqrt.pop %v994
  %v997 = vmul.f32 %v981, %v995
  %v998 = vmul.f32 %v982, %v996
  %v1000 = vlaneseq
  %v1001 = vshrl.u32 %v1000, 7
  %v1002 = vsub.s32 0, %v1001
  %v1003 = vrot.slane %v971, %v1002
  %v1005 = vmul.f32 %v997, %v1003
  %v1006 = vmul.f32 %v998, %v1003
  %v1008 = vlaneseq
  %v1009 = vshrl.u32 %v1008, 7
  %v1010 = vsub.s32 0, %v1009
  %v1011 = vrot.slane %v972, %v1010
  %v1013 = vadd.f32 %v1005, %v1011
  %v1014 = vadd.f32 %v1006, %v1011
  %v1015 = vld [vmem:[%s16] sm:$0xf]
  %v1016 = vld [vmem:[%s16 + $0x4] sm:$0xf]
  %v1017 = vld [vmem:[%s16 + $0x8] sm:$0xf]
  %v1018 = vld [vmem:[%s16 + $0xc] sm:$0xf]
  %v1019 = vpack.c.bf16 %v1013, %v1013
  %v1020 = vpack.c.bf16 %v1014, %v1014
  %v1021 = vld [vmem:[%s17] sm:$0x1]
  %v1023 = vlaneseq
  %v1024 = vshrl.u32 %v1023, 7
  %v1025 = vsub.s32 0, %v1024
  %v1026 = vrot.slane %v1021, %v1025
  %v1030 = vunpack.c.l.b16 %v1019
  %v1031 = vunpack.c.l.b16 %v1020
  %v1032 = vrot.slane %v1031, 7
  %vm1033 = vcmask 1041409
  %v1034 = vsel %vm1033, %v1032, %v1030
  %v1035 = vpack.c.b16 %v1034, %v1034
  %v1040 = vunpack.c.l.b16 %v1015
  %v1041 = vunpack.c.l.b16 %v1016
  %v1042 = vunpack.c.l.b16 %v1017
  %v1043 = vunpack.c.l.b16 %v1018
  %v1044 = vpack.c.b16 %v1041, %v1040
  %v1045 = vpack.c.b16 %v1043, %v1042
  %v1049 = vsel %vm70, %v1035, 0
  %1051 = vmatprep.subr.bf16.mxu0 0
  %1052 = vmatpush1.bf16.msra.mxu0 0
  %1053 = vmatprep.subr.bf16.mxu0 0
  %1054 = vmatpush1.bf16.msra.mxu0 0
  %1055 = vmatprep.subr.bf16.mxu0 0
  %1056 = vmatpush1.bf16.msra.mxu0 0
  %1057 = vmatprep.subr.bf16.mxu0 0
  %1058 = vmatpush1.bf16.msra.mxu0 0
  %1059 = vmatprep.subr.bf16.mxu0 0
  %1060 = vmatpush1.bf16.msra.mxu0 0
  %1061 = vmatprep.subr.bf16.mxu0 0
  %1062 = vmatpush1.bf16.msra.mxu0 0
  %1063 = vmatprep.subr.bf16.mxu0 0
  %1064 = vmatpush1.bf16.msra.mxu0 %v1045
  %1065 = vmatprep.subr.bf16.mxu0 0
  %1066 = vmatpush1.bf16.msra.mxu0 %v1044
  %1067 = vmatprep.subr.bf16.mxu0 0
  %1068 = vmatpush2.bf16.msra.mxu0 0
  %1069 = vmatprep.subr.bf16.mxu0 0
  %1070 = vmatpush2.bf16.msra.mxu0 0
  %1071 = vmatprep.subr.bf16.mxu0 0
  %1072 = vmatpush2.bf16.msra.mxu0 0
  %1073 = vmatprep.subr.bf16.mxu0 0
  %1074 = vmatpush2.bf16.msra.mxu0 0
  %1075 = vmatprep.subr.bf16.mxu0 0
  %1076 = vmatpush2.bf16.msra.mxu0 0
  %1077 = vmatprep.subr.bf16.mxu0 0
  %1078 = vmatpush2.bf16.msra.mxu0 0
  %1079 = vmatprep.subr.bf16.mxu0 0
  %1080 = vmatpush2.bf16.msra.mxu0 0
  %1081 = vmatprep.subr.bf16.mxu0 0
  %1082 = vmatpush2.bf16.msra.mxu0 0
  %1083 = vmatprep.mubr.bf16.mxu0 0
  %1084 = vmatmul.mubr.bf16.gmra.mxu0 %v1049
  %v1085 = vpop.f32.mrf.mxu0
  %v1086 = vadd.f32 %v1026, %v1085
  %v1087 = vpop.f32.mrf.mxu0
  %v1088 = vpop.f32.mrf.mxu0
  %v1089 = vpop.f32.mrf.mxu0
  %1090 = vdwg.mxu0
  %v1091 = vtanh.pop %v1086
  %v1092 = vld [vmem:[%s18] sm:$0xff]
  %v1093 = vld [vmem:[%s18 + $0x8] sm:$0xff]
  %v1094 = vld [vmem:[%s18 + $0x10] sm:$0xff]
  %v1095 = vld [vmem:[%s18 + $0x18] sm:$0xff]
  %v1096 = vpack.c.bf16 %v1091, %v1091
  %v1097 = vld [vmem:[%s19] sm:$0x3]
  %v1099 = vlaneseq
  %v1100 = vshrl.u32 %v1099, 7
  %v1101 = vsub.s32 0, %v1100
  %v1102 = vrot.slane %v1097, %v1101
  %v1103 = vlaneseq
  %v1104 = vshrl.u32 %v1103, 7
  %v1105 = vsub.s32 1, %v1104
  %v1106 = vrot.slane %v1097, %v1105
  %v1113 = vunpack.c.l.b16 %v1092
  %v1114 = vunpack.c.h.b16 %v1092
  %v1115 = vunpack.c.l.b16 %v1093
  %v1116 = vunpack.c.h.b16 %v1093
  %v1117 = vunpack.c.l.b16 %v1094
  %v1118 = vunpack.c.h.b16 %v1094
  %v1119 = vunpack.c.l.b16 %v1095
  %v1120 = vunpack.c.h.b16 %v1095
  %v1121 = vpack.c.b16 %v1115, %v1113
  %v1122 = vpack.c.b16 %v1116, %v1114
  %v1123 = vpack.c.b16 %v1119, %v1117
  %v1124 = vpack.c.b16 %v1120, %v1118
  %v1130 = vsel %vm70, %v1096, 0
  %1132 = vmatprep.subr.bf16.mxu0 0
  %1133 = vmatpush1.bf16.msra.mxu0 0
  %1134 = vmatprep.subr.bf16.mxu0 0
  %1135 = vmatpush1.bf16.msra.mxu0 0
  %1136 = vmatprep.subr.bf16.mxu0 0
  %1137 = vmatpush1.bf16.msra.mxu0 0
  %1138 = vmatprep.subr.bf16.mxu0 0
  %1139 = vmatpush1.bf16.msra.mxu0 0
  %1140 = vmatprep.subr.bf16.mxu0 0
  %1141 = vmatpush1.bf16.msra.mxu0 0
  %1142 = vmatprep.subr.bf16.mxu0 0
  %1143 = vmatpush1.bf16.msra.mxu0 0
  %1144 = vmatprep.subr.bf16.mxu0 %v1124
  %1145 = vmatpush1.bf16.msra.mxu0 %v1123
  %1146 = vmatprep.subr.bf16.mxu0 %v1122
  %1147 = vmatpush1.bf16.msra.mxu0 %v1121
  %1148 = vmatprep.subr.bf16.mxu0 0
  %1149 = vmatpush2.bf16.msra.mxu0 0
  %1150 = vmatprep.subr.bf16.mxu0 0
  %1151 = vmatpush2.bf16.msra.mxu0 0
  %1152 = vmatprep.subr.bf16.mxu0 0
  %1153 = vmatpush2.bf16.msra.mxu0 0
  %1154 = vmatprep.subr.bf16.mxu0 0
  %1155 = vmatpush2.bf16.msra.mxu0 0
  %1156 = vmatprep.subr.bf16.mxu0 0
  %1157 = vmatpush2.bf16.msra.mxu0 0
  %1158 = vmatprep.subr.bf16.mxu0 0
  %1159 = vmatpush2.bf16.msra.mxu0 0
  %1160 = vmatprep.subr.bf16.mxu0 0
  %1161 = vmatpush2.bf16.msra.mxu0 0
  %1162 = vmatprep.subr.bf16.mxu0 0
  %1163 = vmatpush2.bf16.msra.mxu0 0
  %1164 = vmatprep.mubr.bf16.mxu0 0
  %1165 = vmatmul.mubr.bf16.gmra.mxu0 %v1130
  %v1166 = vpop.f32.mrf.mxu0
  %v1167 = vadd.f32 %v1102, %v1166
  %v1168 = vpop.f32.mrf.mxu0
  %v1169 = vadd.f32 %v1106, %v1168
  %v1170 = vpop.f32.mrf.mxu0
  %v1171 = vpop.f32.mrf.mxu0
  %1172 = vdwg.mxu0
  %v1175 = vcombine.low %v1167, %v1169
  %v1177 = vunpack.c.l.s4 1983009808
  %v1178 = vunpack.c.0.s8 %v1177
  %v1179 = vlaneseq
  %v1180 = vshrl.u32 %v1179, 7
  %v1181 = vsub.s32 %v1178, %v1180
  %v1182 = vrot.slane %v1175, %v1181
  %1184 = vst [vmem:[%s20] sm:$0xf] %v1182
  // Predicated region
  $region82: #{multimodal_forward.3} parent=0 // pred_check
    _
  $region83: #{multimodal_forward.3} parent=0 // pred_check_branch
    %1186 = sbr.rel (0) target = $region85
  $region84: #{multimodal_forward.3} parent=0 // pred_region
    _
  $region85: #{multimodal_forward.3} parent=0 // pred_fallthru
    _
  // Predicated region
  $region86: #{multimodal_forward.3} parent=0 // pred_check
    _
  $region87: #{multimodal_forward.3} parent=0 // pred_check_branch
    %1188 = sbr.rel (0) target = $region89
  $region88: #{multimodal_forward.3} parent=0 // pred_region
    _
  $region89: #{multimodal_forward.3} parent=0 // pred_fallthru
    _

// kernel: multimodal_forward.4
$region0: #{multimodal_forward.4}
  #allocation0 [shape = 'u32[]', space=smem, size = 0x4, offset = 0x4, fixed_abs, tag = 'smem constant byte address 0x4 - core index']
  #allocation1 [shape = 'u32[144,128]{1,0:T(1,128)}', space=vmem, size = 0x12000, scoped, tag = 'internal scratch']
  #allocation2 [shape = 'f32[512,36]{1,0:T(8,128)}', space=vmem, size = 0x40000, scoped, tag = 'scratch operand']
  #allocation3 [shape = 'f32[2,18,18,16]{3,2,1,0:T(8,128)}', space=vmem, size = 0x6c000, scoped, tag = 'scratch operand']
  #allocation4 [shape = 'f32[512,144]{1,0:T(8,128)}', space=vmem, size = 0x80000, scoped, tag = 'scratch operand']
  %s0 = inlined_call_operand.vmem [shape: f32[2,18,18,4], index: 0, kind: input, shape index: {}]
  %s1 = inlined_call_operand.vmem [shape: bf16[36,16], index: 1, kind: input, shape index: {}]
  %s2 = inlined_call_operand.vmem [shape: f32[1,16], index: 2, kind: input, shape index: {}]
  %s3 = inlined_call_operand.vmem [shape: bf16[144,64], index: 3, kind: input, shape index: {}]
  %s4 = inlined_call_operand.vmem [shape: f32[1,64], index: 4, kind: input, shape index: {}]
  %s5 = inlined_call_operand.vmem [shape: bf16[64,256], index: 5, kind: input, shape index: {}]
  %s6 = inlined_call_operand.vmem [shape: f32[1,256], index: 6, kind: input, shape index: {}]
  %s7 = inlined_call_operand.vmem [shape: f32[2,256], index: 7, kind: output, shape index: {}]
  %s8 = sld [smem:[#allocation0]]
  $region38: #{multimodal_forward.4} parent=0
    _
  %s10 = ssub.s32 1, %s8
  %s11 = scalar_select 0, %s10, %s8
  // Predicated region
  $region2: #{multimodal_forward.4} parent=0 // pred_check
    _
  $region3: #{multimodal_forward.4} parent=0 // pred_check_branch
    %13 = sbr.rel (0) target = $region5
  $region4: #{multimodal_forward.4} parent=0 // pred_region
    _
  $region5: #{multimodal_forward.4} parent=0 // pred_fallthru
    _
  // Predicated region
  $region6: #{multimodal_forward.4} parent=0 // pred_check
    _
  $region7: #{multimodal_forward.4} parent=0 // pred_check_branch
    %15 = sbr.rel (0) target = $region9
  $region8: #{multimodal_forward.4} parent=0 // pred_region
    _
  $region9: #{multimodal_forward.4} parent=0 // pred_fallthru
    _
  // Predicated region
  $region10: #{multimodal_forward.4} parent=0 // pred_check
    _
  $region11: #{multimodal_forward.4} parent=0 // pred_check_branch
    %17 = sbr.rel (0) target = $region13
  $region12: #{multimodal_forward.4} parent=0 // pred_region
    _
  $region13: #{multimodal_forward.4} parent=0 // pred_fallthru
    _
  // Predicated region
  $region14: #{multimodal_forward.4} parent=0 // pred_check
    _
  $region15: #{multimodal_forward.4} parent=0 // pred_check_branch
    %19 = sbr.rel (0) target = $region17
  $region16: #{multimodal_forward.4} parent=0 // pred_region
    _
  $region17: #{multimodal_forward.4} parent=0 // pred_fallthru
    _
  // Predicated region
  $region18: #{multimodal_forward.4} parent=0 // pred_check
    _
  $region19: #{multimodal_forward.4} parent=0 // pred_check_branch
    %21 = sbr.rel (0) target = $region21
  $region20: #{multimodal_forward.4} parent=0 // pred_region
    _
  $region21: #{multimodal_forward.4} parent=0 // pred_fallthru
    _
  // Predicated region
  $region22: #{multimodal_forward.4} parent=0 // pred_check
    _
  $region23: #{multimodal_forward.4} parent=0 // pred_check_branch
    %23 = sbr.rel (0) target = $region25
  $region24: #{multimodal_forward.4} parent=0 // pred_region
    _
  $region25: #{multimodal_forward.4} parent=0 // pred_fallthru
    _
  // Predicated region
  $region26: #{multimodal_forward.4} parent=0 // pred_check
    _
  $region27: #{multimodal_forward.4} parent=0 // pred_check_branch
    %25 = sbr.rel (0) target = $region29
  $region28: #{multimodal_forward.4} parent=0 // pred_region
    _
  $region29: #{multimodal_forward.4} parent=0 // pred_fallthru
    _
  %v27 = vld [vmem:[%s0] sm:$0xff]
  %v28 = vld [vmem:[%s0 + $0x8] sm:$0xff]
  %v29 = vld [vmem:[%s0 + $0x10] sm:$0x3]
  %v30 = vld [vmem:[%s0 + $0x18] sm:$0xff]
  %v31 = vld [vmem:[%s0 + $0x20] sm:$0xff]
  %v32 = vld [vmem:[%s0 + $0x28] sm:$0x3]
  %v33 = vld [vmem:[%s0 + $0x30] sm:$0xff]
  %v34 = vld [vmem:[%s0 + $0x38] sm:$0xff]
  %v35 = vld [vmem:[%s0 + $0x40] sm:$0x3]
  %v36 = vld [vmem:[%s0 + $0x48] sm:$0xff]
  %v37 = vld [vmem:[%s0 + $0x50] sm:$0xff]
  %v38 = vld [vmem:[%s0 + $0x58] sm:$0x3]
  %v39 = vld [vmem:[%s0 + $0x60] sm:$0xff]
  %v40 = vld [vmem:[%s0 + $0x68] sm:$0xff]
  %v41 = vld [vmem:[%s0 + $0x70] sm:$0x3]
  %v42 = vld [vmem:[%s0 + $0x78] sm:$0xff]
  %v43 = vld [vmem:[%s0 + $0x80] sm:$0xff]
  %v44 = vld [vmem:[%s0 + $0x88] sm:$0x3]
  %v45 = vld [vmem:[%s0 + $0x90] sm:$0xff]
  %v46 = vld [vmem:[%s0 + $0x98] sm:$0xff]
  %v47 = vld [vmem:[%s0 + $0xa0] sm:$0x3]
  %v48 = vld [vmem:[%s0 + $0xa8] sm:$0xff]
  %v49 = vld [vmem:[%s0 + $0xb0] sm:$0xff]
  %v50 = vld [vmem:[%s0 + $0xb8] sm:$0x3]
  %v51 = vld [vmem:[%s0 + $0xc0] sm:$0xff]
  %v52 = vld [vmem:[%s0 + $0xc8] sm:$0xff]
  %v53 = vld [vmem:[%s0 + $0xd0] sm:$0x3]
  %v54 = vld [vmem:[%s0 + $0xd8] sm:$0xff]
  %v55 = vld [vmem:[%s0 + $0xe0] sm:$0xff]
  %v56 = vld [vmem:[%s0 + $0xe8] sm:$0x3]
  %v57 = vld [vmem:[%s0 + $0xf0] sm:$0xff]
  %v58 = vld [vmem:[%s0 + $0xf8] sm:$0xff]
  %v59 = vld [vmem:[%s0 + $0x100] sm:$0x3]
  %v60 = vld [vmem:[%s0 + $0x108] sm:$0xff]
  %v61 = vld [vmem:[%s0 + $0x110] sm:$0xff]
  %v62 = vld [vmem:[%s0 + $0x118] sm:$0x3]
  %v63 = vld [vmem:[%s0 + $0x120] sm:$0xff]
  %v64 = vld [vmem:[%s0 + $0x128] sm:$0xff]
  %v65 = vld [vmem:[%s0 + $0x130] sm:$0x3]
  %v66 = vld [vmem:[%s0 + $0x138] sm:$0xff]
  %v67 = vld [vmem:[%s0 + $0x140] sm:$0xff]
  %v68 = vld [vmem:[%s0 + $0x148] sm:$0x3]
  %v69 = vld [vmem:[%s0 + $0x150] sm:$0xff]
  %v70 = vld [vmem:[%s0 + $0x158] sm:$0xff]
  %v71 = vld [vmem:[%s0 + $0x160] sm:$0x3]
  %v72 = vld [vmem:[%s0 + $0x168] sm:$0xff]
  %v73 = vld [vmem:[%s0 + $0x170] sm:$0xff]
  %v74 = vld [vmem:[%s0 + $0x178] sm:$0x3]
  %v75 = vld [vmem:[%s0 + $0x180] sm:$0xff]
  %v76 = vld [vmem:[%s0 + $0x188] sm:$0xff]
  %v77 = vld [vmem:[%s0 + $0x190] sm:$0x3]
  %v78 = vld [vmem:[%s0 + $0x198] sm:$0xff]
  %v79 = vld [vmem:[%s0 + $0x1a0] sm:$0xff]
  %v80 = vld [vmem:[%s0 + $0x1a8] sm:$0x3]
  %v81 = vld [vmem:[%s0 + $0x1b0] sm:$0xff]
  %v82 = vld [vmem:[%s0 + $0x1b8] sm:$0xff]
  %v83 = vld [vmem:[%s0 + $0x1c0] sm:$0x3]
  %v84 = vld [vmem:[%s0 + $0x1c8] sm:$0xff]
  %v85 = vld [vmem:[%s0 + $0x1d0] sm:$0xff]
  %v86 = vld [vmem:[%s0 + $0x1d8] sm:$0x3]
  %v87 = vld [vmem:[%s0 + $0x1e0] sm:$0xff]
  %v88 = vld [vmem:[%s0 + $0x1e8] sm:$0xff]
  %v89 = vld [vmem:[%s0 + $0x1f0] sm:$0x3]
  %v90 = vld [vmem:[%s0 + $0x1f8] sm:$0xff]
  %v91 = vld [vmem:[%s0 + $0x200] sm:$0xff]
  %v92 = vld [vmem:[%s0 + $0x208] sm:$0x3]
  %v93 = vld [vmem:[%s0 + $0x210] sm:$0xff]
  %v94 = vld [vmem:[%s0 + $0x218] sm:$0xff]
  %v95 = vld [vmem:[%s0 + $0x220] sm:$0x3]
  %v96 = vld [vmem:[%s0 + $0x228] sm:$0xff]
  %v97 = vld [vmem:[%s0 + $0x230] sm:$0xff]
  %v98 = vld [vmem:[%s0 + $0x238] sm:$0x3]
  %v99 = vld [vmem:[%s0 + $0x240] sm:$0xff]
  %v100 = vld [vmem:[%s0 + $0x248] sm:$0xff]
  %v101 = vld [vmem:[%s0 + $0x250] sm:$0x3]
  %v102 = vld [vmem:[%s0 + $0x258] sm:$0xff]
  %v103 = vld [vmem:[%s0 + $0x260] sm:$0xff]
  %v104 = vld [vmem:[%s0 + $0x268] sm:$0x3]
  %v105 = vld [vmem:[%s0 + $0x270] sm:$0xff]
  %v106 = vld [vmem:[%s0 + $0x278] sm:$0xff]
  %v107 = vld [vmem:[%s0 + $0x280] sm:$0x3]
  %v108 = vld [vmem:[%s0 + $0x288] sm:$0xff]
  %v109 = vld [vmem:[%s0 + $0x290] sm:$0xff]
  %v110 = vld [vmem:[%s0 + $0x298] sm:$0x3]
  %v111 = vld [vmem:[%s0 + $0x2a0] sm:$0xff]
  %v112 = vld [vmem:[%s0 + $0x2a8] sm:$0xff]
  %v113 = vld [vmem:[%s0 + $0x2b0] sm:$0x3]
  %v114 = vld [vmem:[%s0 + $0x2b8] sm:$0xff]
  %v115 = vld [vmem:[%s0 + $0x2c0] sm:$0xff]
  %v116 = vld [vmem:[%s0 + $0x2c8] sm:$0x3]
  %v117 = vld [vmem:[%s0 + $0x2d0] sm:$0xff]
  %v118 = vld [vmem:[%s0 + $0x2d8] sm:$0xff]
  %v119 = vld [vmem:[%s0 + $0x2e0] sm:$0x3]
  %v120 = vld [vmem:[%s0 + $0x2e8] sm:$0xff]
  %v121 = vld [vmem:[%s0 + $0x2f0] sm:$0xff]
  %v122 = vld [vmem:[%s0 + $0x2f8] sm:$0x3]
  %v123 = vld [vmem:[%s0 + $0x300] sm:$0xff]
  %v124 = vld [vmem:[%s0 + $0x308] sm:$0xff]
  %v125 = vld [vmem:[%s0 + $0x310] sm:$0x3]
  %v126 = vld [vmem:[%s0 + $0x318] sm:$0xff]
  %v127 = vld [vmem:[%s0 + $0x320] sm:$0xff]
  %v128 = vld [vmem:[%s0 + $0x328] sm:$0x3]
  %v129 = vld [vmem:[%s0 + $0x330] sm:$0xff]
  %v130 = vld [vmem:[%s0 + $0x338] sm:$0xff]
  %v131 = vld [vmem:[%s0 + $0x340] sm:$0x3]
  %v132 = vld [vmem:[%s0 + $0x348] sm:$0xff]
  %v133 = vld [vmem:[%s0 + $0x350] sm:$0xff]
  %v134 = vld [vmem:[%s0 + $0x358] sm:$0x3]
  %vm135 = vcmask 31744
  %136 = vst.msk [vmem:[#allocation2] sm:$0xff] %vm135, %v27
  %137 = vst.msk [vmem:[#allocation2 + $0x8] sm:$0xff] %vm135, %v28
  %138 = vst.msk [vmem:[#allocation2 + $0x10] sm:$0xff] %vm135, %v30
  %139 = vst.msk [vmem:[#allocation2 + $0x18] sm:$0xff] %vm135, %v31
  %140 = vst.msk [vmem:[#allocation2 + $0x20] sm:$0xff] %vm135, %v33
  %141 = vst.msk [vmem:[#allocation2 + $0x28] sm:$0xff] %vm135, %v34
  %142 = vst.msk [vmem:[#allocation2 + $0x30] sm:$0xff] %vm135, %v36
  %143 = vst.msk [vmem:[#allocation2 + $0x38] sm:$0xff] %vm135, %v37
  %144 = vst.msk [vmem:[#allocation2 + $0x40] sm:$0xff] %vm135, %v39
  %145 = vst.msk [vmem:[#allocation2 + $0x48] sm:$0xff] %vm135, %v40
  %146 = vst.msk [vmem:[#allocation2 + $0x50] sm:$0xff] %vm135, %v42
  %147 = vst.msk [vmem:[#allocation2 + $0x58] sm:$0xff] %vm135, %v43
  %148 = vst.msk [vmem:[#allocation2 + $0x60] sm:$0xff] %vm135, %v45
  %149 = vst.msk [vmem:[#allocation2 + $0x68] sm:$0xff] %vm135, %v46
  %150 = vst.msk [vmem:[#allocation2 + $0x70] sm:$0xff] %vm135, %v48
  %151 = vst.msk [vmem:[#allocation2 + $0x78] sm:$0xff] %vm135, %v49
  %152 = vst.msk [vmem:[#allocation2 + $0x80] sm:$0xff] %vm135, %v51
  %153 = vst.msk [vmem:[#allocation2 + $0x88] sm:$0xff] %vm135, %v52
  %154 = vst.msk [vmem:[#allocation2 + $0x90] sm:$0xff] %vm135, %v54
  %155 = vst.msk [vmem:[#allocation2 + $0x98] sm:$0xff] %vm135, %v55
  %156 = vst.msk [vmem:[#allocation2 + $0xa0] sm:$0xff] %vm135, %v57
  %157 = vst.msk [vmem:[#allocation2 + $0xa8] sm:$0xff] %vm135, %v58
  %158 = vst.msk [vmem:[#allocation2 + $0xb0] sm:$0xff] %vm135, %v60
  %159 = vst.msk [vmem:[#allocation2 + $0xb8] sm:$0xff] %vm135, %v61
  %160 = vst.msk [vmem:[#allocation2 + $0xc0] sm:$0xff] %vm135, %v63
  %161 = vst.msk [vmem:[#allocation2 + $0xc8] sm:$0xff] %vm135, %v64
  %162 = vst.msk [vmem:[#allocation2 + $0xd0] sm:$0xff] %vm135, %v66
  %163 = vst.msk [vmem:[#allocation2 + $0xd8] sm:$0xff] %vm135, %v67
  %164 = vst.msk [vmem:[#allocation2 + $0xe0] sm:$0xff] %vm135, %v69
  %165 = vst.msk [vmem:[#allocation2 + $0xe8] sm:$0xff] %vm135, %v70
  %166 = vst.msk [vmem:[#allocation2 + $0xf0] sm:$0xff] %vm135, %v72
  %167 = vst.msk [vmem:[#allocation2 + $0xf8] sm:$0xff] %vm135, %v73
  %168 = vst.msk [vmem:[#allocation2 + $0x100] sm:$0xff] %vm135, %v81
  %169 = vst.msk [vmem:[#allocation2 + $0x108] sm:$0xff] %vm135, %v82
  %170 = vst.msk [vmem:[#allocation2 + $0x110] sm:$0xff] %vm135, %v84
  %171 = vst.msk [vmem:[#allocation2 + $0x118] sm:$0xff] %vm135, %v85
  %172 = vst.msk [vmem:[#allocation2 + $0x120] sm:$0xff] %vm135, %v87
  %173 = vst.msk [vmem:[#allocation2 + $0x128] sm:$0xff] %vm135, %v88
  %174 = vst.msk [vmem:[#allocation2 + $0x130] sm:$0xff] %vm135, %v90
  %175 = vst.msk [vmem:[#allocation2 + $0x138] sm:$0xff] %vm135, %v91
  %176 = vst.msk [vmem:[#allocation2 + $0x140] sm:$0xff] %vm135, %v93
  %177 = vst.msk [vmem:[#allocation2 + $0x148] sm:$0xff] %vm135, %v94
  %178 = vst.msk [vmem:[#allocation2 + $0x150] sm:$0xff] %vm135, %v96
  %179 = vst.msk [vmem:[#allocation2 + $0x158] sm:$0xff] %vm135, %v97
  %180 = vst.msk [vmem:[#allocation2 + $0x160] sm:$0xff] %vm135, %v99
  %181 = vst.msk [vmem:[#allocation2 + $0x168] sm:$0xff] %vm135, %v100
  %182 = vst.msk [vmem:[#allocation2 + $0x170] sm:$0xff] %vm135, %v102
  %183 = vst.msk [vmem:[#allocation2 + $0x178] sm:$0xff] %vm135, %v103
  %184 = vst.msk [vmem:[#allocation2 + $0x180] sm:$0xff] %vm135, %v105
  %185 = vst.msk [vmem:[#allocation2 + $0x188] sm:$0xff] %vm135, %v106
  %186 = vst.msk [vmem:[#allocation2 + $0x190] sm:$0xff] %vm135, %v108
  %187 = vst.msk [vmem:[#allocation2 + $0x198] sm:$0xff] %vm135, %v109
  %188 = vst.msk [vmem:[#allocation2 + $0x1a0] sm:$0xff] %vm135, %v111
  %189 = vst.msk [vmem:[#allocation2 + $0x1a8] sm:$0xff] %vm135, %v112
  %190 = vst.msk [vmem:[#allocation2 + $0x1b0] sm:$0xff] %vm135, %v114
  %191 = vst.msk [vmem:[#allocation2 + $0x1b8] sm:$0xff] %vm135, %v115
  %192 = vst.msk [vmem:[#allocation2 + $0x1c0] sm:$0xff] %vm135, %v117
  %193 = vst.msk [vmem:[#allocation2 + $0x1c8] sm:$0xff] %vm135, %v118
  %194 = vst.msk [vmem:[#allocation2 + $0x1d0] sm:$0xff] %vm135, %v120
  %195 = vst.msk [vmem:[#allocation2 + $0x1d8] sm:$0xff] %vm135, %v121
  %196 = vst.msk [vmem:[#allocation2 + $0x1e0] sm:$0xff] %vm135, %v123
  %197 = vst.msk [vmem:[#allocation2 + $0x1e8] sm:$0xff] %vm135, %v124
  %198 = vst.msk [vmem:[#allocation2 + $0x1f0] sm:$0xff] %vm135, %v126
  %199 = vst.msk [vmem:[#allocation2 + $0x1f8] sm:$0xff] %vm135, %v127
  %vm296 = vcmask 1046528
  %v297 = vrot.slane %v27, 1
  %v298 = vrot.slane %v28, 1
  %v299 = vsel %vm296, %v297, %v298
  %v300 = vrot.slane %v29, 1
  %v301 = vsel %vm296, %v298, %v300
  %v302 = vrot.slane %v30, 1
  %v303 = vrot.slane %v31, 1
  %v304 = vsel %vm296, %v302, %v303
  %v305 = vrot.slane %v32, 1
  %v306 = vsel %vm296, %v303, %v305
  %v307 = vrot.slane %v33, 1
  %v308 = vrot.slane %v34, 1
  %v309 = vsel %vm296, %v307, %v308
  %v310 = vrot.slane %v35, 1
  %v311 = vsel %vm296, %v308, %v310
  %v312 = vrot.slane %v36, 1
  %v313 = vrot.slane %v37, 1
  %v314 = vsel %vm296, %v312, %v313
  %v315 = vrot.slane %v38, 1
  %v316 = vsel %vm296, %v313, %v315
  %v317 = vrot.slane %v39, 1
  %v318 = vrot.slane %v40, 1
  %v319 = vsel %vm296, %v317, %v318
  %v320 = vrot.slane %v41, 1
  %v321 = vsel %vm296, %v318, %v320
  %v322 = vrot.slane %v42, 1
  %v323 = vrot.slane %v43, 1
  %v324 = vsel %vm296, %v322, %v323
  %v325 = vrot.slane %v44, 1
  %v326 = vsel %vm296, %v323, %v325
  %v327 = vrot.slane %v45, 1
  %v328 = vrot.slane %v46, 1
  %v329 = vsel %vm296, %v327, %v328
  %v330 = vrot.slane %v47, 1
  %v331 = vsel %vm296, %v328, %v330
  %v332 = vrot.slane %v48, 1
  %v333 = vrot.slane %v49, 1
  %v334 = vsel %vm296, %v332, %v333
  %v335 = vrot.slane %v50, 1
  %v336 = vsel %vm296, %v333, %v335
  %v337 = vrot.slane %v51, 1
  %v338 = vrot.slane %v52, 1
  %v339 = vsel %vm296, %v337, %v338
  %v340 = vrot.slane %v53, 1
  %v341 = vsel %vm296, %v338, %v340
  %v342 = vrot.slane %v54, 1
  %v343 = vrot.slane %v55, 1
  %v344 = vsel %vm296, %v342, %v343
  %v345 = vrot.slane %v56, 1
  %v346 = vsel %vm296, %v343, %v345
  %v347 = vrot.slane %v57, 1
  %v348 = vrot.slane %v58, 1
  %v349 = vsel %vm296, %v347, %v348
  %v350 = vrot.slane %v59, 1
  %v351 = vsel %vm296, %v348, %v350
  %v352 = vrot.slane %v60, 1
  %v353 = vrot.slane %v61, 1
  %v354 = vsel %vm296, %v352, %v353
  %v355 = vrot.slane %v62, 1
  %v356 = vsel %vm296, %v353, %v355
  %v357 = vrot.slane %v63, 1
  %v358 = vrot.slane %v64, 1
  %v359 = vsel %vm296, %v357, %v358
  %v360 = vrot.slane %v65, 1
  %v361 = vsel %vm296, %v358, %v360
  %v362 = vrot.slane %v66, 1
  %v363 = vrot.slane %v67, 1
  %v364 = vsel %vm296, %v362, %v363
  %v365 = vrot.slane %v68, 1
  %v366 = vsel %vm296, %v363, %v365
  %v367 = vrot.slane %v69, 1
  %v368 = vrot.slane %v70, 1
  %v369 = vsel %vm296, %v367, %v368
  %v370 = vrot.slane %v71, 1
  %v371 = vsel %vm296, %v368, %v370
  %v372 = vrot.slane %v72, 1
  %v373 = vrot.slane %v73, 1
  %v374 = vsel %vm296, %v372, %v373
  %v375 = vrot.slane %v74, 1
  %v376 = vsel %vm296, %v373, %v375
  %v377 = vrot.slane %v81, 1
  %v378 = vrot.slane %v82, 1
  %v379 = vsel %vm296, %v377, %v378
  %v380 = vrot.slane %v83, 1
  %v381 = vsel %vm296, %v378, %v380
  %v382 = vrot.slane %v84, 1
  %v383 = vrot.slane %v85, 1
  %v384 = vsel %vm296, %v382, %v383
  %v385 = vrot.slane %v86, 1
  %v386 = vsel %vm296, %v383, %v385
  %v387 = vrot.slane %v87, 1
  %v388 = vrot.slane %v88, 1
  %v389 = vsel %vm296, %v387, %v388
  %v390 = vrot.slane %v89, 1
  %v391 = vsel %vm296, %v388, %v390
  %v392 = vrot.slane %v90, 1
  %v393 = vrot.slane %v91, 1
  %v394 = vsel %vm296, %v392, %v393
  %v395 = vrot.slane %v92, 1
  %v396 = vsel %vm296, %v393, %v395
  %v397 = vrot.slane %v93, 1
  %v398 = vrot.slane %v94, 1
  %v399 = vsel %vm296, %v397, %v398
  %v400 = vrot.slane %v95, 1
  %v401 = vsel %vm296, %v398, %v400
  %v402 = vrot.slane %v96, 1
  %v403 = vrot.slane %v97, 1
  %v404 = vsel %vm296, %v402, %v403
  %v405 = vrot.slane %v98, 1
  %v406 = vsel %vm296, %v403, %v405
  %v407 = vrot.slane %v99, 1
  %v408 = vrot.slane %v100, 1
  %v409 = vsel %vm296, %v407, %v408
  %v410 = vrot.slane %v101, 1
  %v411 = vsel %vm296, %v408, %v410
  %v412 = vrot.slane %v102, 1
  %v413 = vrot.slane %v103, 1
  %v414 = vsel %vm296, %v412, %v413
  %v415 = vrot.slane %v104, 1
  %v416 = vsel %vm296, %v413, %v415
  %v417 = vrot.slane %v105, 1
  %v418 = vrot.slane %v106, 1
  %v419 = vsel %vm296, %v417, %v418
  %v420 = vrot.slane %v107, 1
  %v421 = vsel %vm296, %v418, %v420
  %v422 = vrot.slane %v108, 1
  %v423 = vrot.slane %v109, 1
  %v424 = vsel %vm296, %v422, %v423
  %v425 = vrot.slane %v110, 1
  %v426 = vsel %vm296, %v423, %v425
  %v427 = vrot.slane %v111, 1
  %v428 = vrot.slane %v112, 1
  %v429 = vsel %vm296, %v427, %v428
  %v430 = vrot.slane %v113, 1
  %v431 = vsel %vm296, %v428, %v430
  %v432 = vrot.slane %v114, 1
  %v433 = vrot.slane %v115, 1
  %v434 = vsel %vm296, %v432, %v433
  %v435 = vrot.slane %v116, 1
  %v436 = vsel %vm296, %v433, %v435
  %v437 = vrot.slane %v117, 1
  %v438 = vrot.slane %v118, 1
  %v439 = vsel %vm296, %v437, %v438
  %v440 = vrot.slane %v119, 1
  %v441 = vsel %vm296, %v438, %v440
  %v442 = vrot.slane %v120, 1
  %v443 = vrot.slane %v121, 1
  %v444 = vsel %vm296, %v442, %v443
  %v445 = vrot.slane %v122, 1
  %v446 = vsel %vm296, %v443, %v445
  %v447 = vrot.slane %v123, 1
  %v448 = vrot.slane %v124, 1
  %v449 = vsel %vm296, %v447, %v448
  %v450 = vrot.slane %v125, 1
  %v451 = vsel %vm296, %v448, %v450
  %v452 = vrot.slane %v126, 1
  %v453 = vrot.slane %v127, 1
  %v454 = vsel %vm296, %v452, %v453
  %v455 = vrot.slane %v128, 1
  %v456 = vsel %vm296, %v453, %v455
  %457 = vrot.lane.b32.xlu0 %v299, 4
  %v458 = vpop.permute.xlu0 %457
  %459 = vrot.lane.b32.xlu0 %v301, 4
  %v460 = vpop.permute.xlu0 %459
  %461 = vrot.lane.b32.xlu0 %v304, 4
  %v462 = vpop.permute.xlu0 %461
  %463 = vrot.lane.b32.xlu0 %v306, 4
  %v464 = vpop.permute.xlu0 %463
  %465 = vrot.lane.b32.xlu0 %v309, 4
  %v466 = vpop.permute.xlu0 %465
  %467 = vrot.lane.b32.xlu0 %v311, 4
  %v468 = vpop.permute.xlu0 %467
  %469 = vrot.lane.b32.xlu0 %v314, 4
  %v470 = vpop.permute.xlu0 %469
  %471 = vrot.lane.b32.xlu0 %v316, 4
  %v472 = vpop.permute.xlu0 %471
  %473 = vrot.lane.b32.xlu0 %v319, 4
  %v474 = vpop.permute.xlu0 %473
  %475 = vrot.lane.b32.xlu0 %v321, 4
  %v476 = vpop.permute.xlu0 %475
  %477 = vrot.lane.b32.xlu0 %v324, 4
  %v478 = vpop.permute.xlu0 %477
  %479 = vrot.lane.b32.xlu0 %v326, 4
  %v480 = vpop.permute.xlu0 %479
  %481 = vrot.lane.b32.xlu0 %v329, 4
  %v482 = vpop.permute.xlu0 %481
  %483 = vrot.lane.b32.xlu0 %v331, 4
  %v484 = vpop.permute.xlu0 %483
  %485 = vrot.lane.b32.xlu0 %v334, 4
  %v486 = vpop.permute.xlu0 %485
  %487 = vrot.lane.b32.xlu0 %v336, 4
  %v488 = vpop.permute.xlu0 %487
  %489 = vrot.lane.b32.xlu0 %v339, 4
  %v490 = vpop.permute.xlu0 %489
  %491 = vrot.lane.b32.xlu0 %v341, 4
  %v492 = vpop.permute.xlu0 %491
  %493 = vrot.lane.b32.xlu0 %v344, 4
  %v494 = vpop.permute.xlu0 %493
  %495 = vrot.lane.b32.xlu0 %v346, 4
  %v496 = vpop.permute.xlu0 %495
  %497 = vrot.lane.b32.xlu0 %v349, 4
  %v498 = vpop.permute.xlu0 %497
  %499 = vrot.lane.b32.xlu0 %v351, 4
  %v500 = vpop.permute.xlu0 %499
  %501 = vrot.lane.b32.xlu0 %v354, 4
  %v502 = vpop.permute.xlu0 %501
  %503 = vrot.lane.b32.xlu0 %v356, 4
  %v504 = vpop.permute.xlu0 %503
  %505 = vrot.lane.b32.xlu0 %v359, 4
  %v506 = vpop.permute.xlu0 %505
  %507 = vrot.lane.b32.xlu0 %v361, 4
  %v508 = vpop.permute.xlu0 %507
  %509 = vrot.lane.b32.xlu0 %v364, 4
  %v510 = vpop.permute.xlu0 %509
  %511 = vrot.lane.b32.xlu0 %v366, 4
  %v512 = vpop.permute.xlu0 %511
  %513 = vrot.lane.b32.xlu0 %v369, 4
  %v514 = vpop.permute.xlu0 %513
  %515 = vrot.lane.b32.xlu0 %v371, 4
  %v516 = vpop.permute.xlu0 %515
  %517 = vrot.lane.b32.xlu0 %v374, 4
  %v518 = vpop.permute.xlu0 %517
  %519 = vrot.lane.b32.xlu0 %v376, 4
  %v520 = vpop.permute.xlu0 %519
  %521 = vrot.lane.b32.xlu0 %v379, 4
  %v522 = vpop.permute.xlu0 %521
  %523 = vrot.lane.b32.xlu0 %v381, 4
  %v524 = vpop.permute.xlu0 %523
  %525 = vrot.lane.b32.xlu0 %v384, 4
  %v526 = vpop.permute.xlu0 %525
  %527 = vrot.lane.b32.xlu0 %v386, 4
  %v528 = vpop.permute.xlu0 %527
  %529 = vrot.lane.b32.xlu0 %v389, 4
  %v530 = vpop.permute.xlu0 %529
  %531 = vrot.lane.b32.xlu0 %v391, 4
  %v532 = vpop.permute.xlu0 %531
  %533 = vrot.lane.b32.xlu0 %v394, 4
  %v534 = vpop.permute.xlu0 %533
  %535 = vrot.lane.b32.xlu0 %v396, 4
  %v536 = vpop.permute.xlu0 %535
  %537 = vrot.lane.b32.xlu0 %v399, 4
  %v538 = vpop.permute.xlu0 %537
  %539 = vrot.lane.b32.xlu0 %v401, 4
  %v540 = vpop.permute.xlu0 %539
  %541 = vrot.lane.b32.xlu0 %v404, 4
  %v542 = vpop.permute.xlu0 %541
  %543 = vrot.lane.b32.xlu0 %v406, 4
  %v544 = vpop.permute.xlu0 %543
  %545 = vrot.lane.b32.xlu0 %v409, 4
  %v546 = vpop.permute.xlu0 %545
  %547 = vrot.lane.b32.xlu0 %v411, 4
  %v548 = vpop.permute.xlu0 %547
  %549 = vrot.lane.b32.xlu0 %v414, 4
  %v550 = vpop.permute.xlu0 %549
  %551 = vrot.lane.b32.xlu0 %v416, 4
  %v552 = vpop.permute.xlu0 %551
  %553 = vrot.lane.b32.xlu0 %v419, 4
  %v554 = vpop.permute.xlu0 %553
  %555 = vrot.lane.b32.xlu0 %v421, 4
  %v556 = vpop.permute.xlu0 %555
  %557 = vrot.lane.b32.xlu0 %v424, 4
  %v558 = vpop.permute.xlu0 %557
  %559 = vrot.lane.b32.xlu0 %v426, 4
  %v560 = vpop.permute.xlu0 %559
  %561 = vrot.lane.b32.xlu0 %v429, 4
  %v562 = vpop.permute.xlu0 %561
  %563 = vrot.lane.b32.xlu0 %v431, 4
  %v564 = vpop.permute.xlu0 %563
  %565 = vrot.lane.b32.xlu0 %v434, 4
  %v566 = vpop.permute.xlu0 %565
  %567 = vrot.lane.b32.xlu0 %v436, 4
  %v568 = vpop.permute.xlu0 %567
  %569 = vrot.lane.b32.xlu0 %v439, 4
  %v570 = vpop.permute.xlu0 %569
  %571 = vrot.lane.b32.xlu0 %v441, 4
  %v572 = vpop.permute.xlu0 %571
  %573 = vrot.lane.b32.xlu0 %v444, 4
  %v574 = vpop.permute.xlu0 %573
  %575 = vrot.lane.b32.xlu0 %v446, 4
  %v576 = vpop.permute.xlu0 %575
  %577 = vrot.lane.b32.xlu0 %v449, 4
  %v578 = vpop.permute.xlu0 %577
  %579 = vrot.lane.b32.xlu0 %v451, 4
  %v580 = vpop.permute.xlu0 %579
  %581 = vrot.lane.b32.xlu0 %v454, 4
  %v582 = vpop.permute.xlu0 %581
  %583 = vrot.lane.b32.xlu0 %v456, 4
  %v584 = vpop.permute.xlu0 %583
  %vm649 = vcmask 64544
  %650 = vst.msk [vmem:[#allocation2] sm:$0xff] %vm649, %v458
  %651 = vst.msk [vmem:[#allocation2 + $0x8] sm:$0xff] %vm649, %v460
  %652 = vst.msk [vmem:[#allocation2 + $0x10] sm:$0xff] %vm649, %v462
  %653 = vst.msk [vmem:[#allocation2 + $0x18] sm:$0xff] %vm649, %v464
  %654 = vst.msk [vmem:[#allocation2 + $0x20] sm:$0xff] %vm649, %v466
  %655 = vst.msk [vmem:[#allocation2 + $0x28] sm:$0xff] %vm649, %v468
  %656 = vst.msk [vmem:[#allocation2 + $0x30] sm:$0xff] %vm649, %v470
  %657 = vst.msk [vmem:[#allocation2 + $0x38] sm:$0xff] %vm649, %v472
  %658 = vst.msk [vmem:[#allocation2 + $0x40] sm:$0xff] %vm649, %v474
  %659 = vst.msk [vmem:[#allocation2 + $0x48] sm:$0xff] %vm649, %v476
  %660 = vst.msk [vmem:[#allocation2 + $0x50] sm:$0xff] %vm649, %v478
  %661 = vst.msk [vmem:[#allocation2 + $0x58] sm:$0xff] %vm649, %v480
  %662 = vst.msk [vmem:[#allocation2 + $0x60] sm:$0xff] %vm649, %v482
  %663 = vst.msk [vmem:[#allocation2 + $0x68] sm:$0xff] %vm649, %v484
  %664 = vst.msk [vmem:[#allocation2 + $0x70] sm:$0xff] %vm649, %v486
  %665 = vst.msk [vmem:[#allocation2 + $0x78] sm:$0xff] %vm649, %v488
  %666 = vst.msk [vmem:[#allocation2 + $0x80] sm:$0xff] %vm649, %v490
  %667 = vst.msk [vmem:[#allocation2 + $0x88] sm:$0xff] %vm649, %v492
  %668 = vst.msk [vmem:[#allocation2 + $0x90] sm:$0xff] %vm649, %v494
  %669 = vst.msk [vmem:[#allocation2 + $0x98] sm:$0xff] %vm649, %v496
  %670 = vst.msk [vmem:[#allocation2 + $0xa0] sm:$0xff] %vm649, %v498
  %671 = vst.msk [vmem:[#allocation2 + $0xa8] sm:$0xff] %vm649, %v500
  %672 = vst.msk [vmem:[#allocation2 + $0xb0] sm:$0xff] %vm649, %v502
  %673 = vst.msk [vmem:[#allocation2 + $0xb8] sm:$0xff] %vm649, %v504
  %674 = vst.msk [vmem:[#allocation2 + $0xc0] sm:$0xff] %vm649, %v506
  %675 = vst.msk [vmem:[#allocation2 + $0xc8] sm:$0xff] %vm649, %v508
  %676 = vst.msk [vmem:[#allocation2 + $0xd0] sm:$0xff] %vm649, %v510
  %677 = vst.msk [vmem:[#allocation2 + $0xd8] sm:$0xff] %vm649, %v512
  %678 = vst.msk [vmem:[#allocation2 + $0xe0] sm:$0xff] %vm649, %v514
  %679 = vst.msk [vmem:[#allocation2 + $0xe8] sm:$0xff] %vm649, %v516
  %680 = vst.msk [vmem:[#allocation2 + $0xf0] sm:$0xff] %vm649, %v518
  %681 = vst.msk [vmem:[#allocation2 + $0xf8] sm:$0xff] %vm649, %v520
  %682 = vst.msk [vmem:[#allocation2 + $0x100] sm:$0xff] %vm649, %v522
  %683 = vst.msk [vmem:[#allocation2 + $0x108] sm:$0xff] %vm649, %v524
  %684 = vst.msk [vmem:[#allocation2 + $0x110] sm:$0xff] %vm649, %v526
  %685 = vst.msk [vmem:[#allocation2 + $0x118] sm:$0xff] %vm649, %v528
  %686 = vst.msk [vmem:[#allocation2 + $0x120] sm:$0xff] %vm649, %v530
  %687 = vst.msk [vmem:[#allocation2 + $0x128] sm:$0xff] %vm649, %v532
  %688 = vst.msk [vmem:[#allocation2 + $0x130] sm:$0xff] %vm649, %v534
  %689 = vst.msk [vmem:[#allocation2 + $0x138] sm:$0xff] %vm649, %v536
  %690 = vst.msk [vmem:[#allocation2 + $0x140] sm:$0xff] %vm649, %v538
  %691 = vst.msk [vmem:[#allocation2 + $0x148] sm:$0xff] %vm649, %v540
  %692 = vst.msk [vmem:[#allocation2 + $0x150] sm:$0xff] %vm649, %v542
  %693 = vst.msk [vmem:[#allocation2 + $0x158] sm:$0xff] %vm649, %v544
  %694 = vst.msk [vmem:[#allocation2 + $0x160] sm:$0xff] %vm649, %v546
  %695 = vst.msk [vmem:[#allocation2 + $0x168] sm:$0xff] %vm649, %v548
  %696 = vst.msk [vmem:[#allocation2 + $0x170] sm:$0xff] %vm649, %v550
  %697 = vst.msk [vmem:[#allocation2 + $0x178] sm:$0xff] %vm649, %v552
  %698 = vst.msk [vmem:[#allocation2 + $0x180] sm:$0xff] %vm649, %v554
  %699 = vst.msk [vmem:[#allocation2 + $0x188] sm:$0xff] %vm649, %v556
  %700 = vst.msk [vmem:[#allocation2 + $0x190] sm:$0xff] %vm649, %v558
  %701 = vst.msk [vmem:[#allocation2 + $0x198] sm:$0xff] %vm649, %v560
  %702 = vst.msk [vmem:[#allocation2 + $0x1a0] sm:$0xff] %vm649, %v562
  %703 = vst.msk [vmem:[#allocation2 + $0x1a8] sm:$0xff] %vm649, %v564
  %704 = vst.msk [vmem:[#allocation2 + $0x1b0] sm:$0xff] %vm649, %v566
  %705 = vst.msk [vmem:[#allocation2 + $0x1b8] sm:$0xff] %vm649, %v568
  %706 = vst.msk [vmem:[#allocation2 + $0x1c0] sm:$0xff] %vm649, %v570
  %707 = vst.msk [vmem:[#allocation2 + $0x1c8] sm:$0xff] %vm649, %v572
  %708 = vst.msk [vmem:[#allocation2 + $0x1d0] sm:$0xff] %vm649, %v574
  %709 = vst.msk [vmem:[#allocation2 + $0x1d8] sm:$0xff] %vm649, %v576
  %710 = vst.msk [vmem:[#allocation2 + $0x1e0] sm:$0xff] %vm649, %v578
  %711 = vst.msk [vmem:[#allocation2 + $0x1e8] sm:$0xff] %vm649, %v580
  %712 = vst.msk [vmem:[#allocation2 + $0x1f0] sm:$0xff] %vm649, %v582
  %713 = vst.msk [vmem:[#allocation2 + $0x1f8] sm:$0xff] %vm649, %v584
  %vm714 = vcmask 1045504
  %v715 = vrot.slane %v27, 2
  %v716 = vrot.slane %v28, 2
  %v717 = vsel %vm714, %v715, %v716
  %v718 = vrot.slane %v29, 2
  %v719 = vsel %vm714, %v716, %v718
  %v720 = vrot.slane %v30, 2
  %v721 = vrot.slane %v31, 2
  %v722 = vsel %vm714, %v720, %v721
  %v723 = vrot.slane %v32, 2
  %v724 = vsel %vm714, %v721, %v723
  %v725 = vrot.slane %v33, 2
  %v726 = vrot.slane %v34, 2
  %v727 = vsel %vm714, %v725, %v726
  %v728 = vrot.slane %v35, 2
  %v729 = vsel %vm714, %v726, %v728
  %v730 = vrot.slane %v36, 2
  %v731 = vrot.slane %v37, 2
  %v732 = vsel %vm714, %v730, %v731
  %v733 = vrot.slane %v38, 2
  %v734 = vsel %vm714, %v731, %v733
  %v735 = vrot.slane %v39, 2
  %v736 = vrot.slane %v40, 2
  %v737 = vsel %vm714, %v735, %v736
  %v738 = vrot.slane %v41, 2
  %v739 = vsel %vm714, %v736, %v738
  %v740 = vrot.slane %v42, 2
  %v741 = vrot.slane %v43, 2
  %v742 = vsel %vm714, %v740, %v741
  %v743 = vrot.slane %v44, 2
  %v744 = vsel %vm714, %v741, %v743
  %v745 = vrot.slane %v45, 2
  %v746 = vrot.slane %v46, 2
  %v747 = vsel %vm714, %v745, %v746
  %v748 = vrot.slane %v47, 2
  %v749 = vsel %vm714, %v746, %v748
  %v750 = vrot.slane %v48, 2
  %v751 = vrot.slane %v49, 2
  %v752 = vsel %vm714, %v750, %v751
  %v753 = vrot.slane %v50, 2
  %v754 = vsel %vm714, %v751, %v753
  %v755 = vrot.slane %v51, 2
  %v756 = vrot.slane %v52, 2
  %v757 = vsel %vm714, %v755, %v756
  %v758 = vrot.slane %v53, 2
  %v759 = vsel %vm714, %v756, %v758
  %v760 = vrot.slane %v54, 2
  %v761 = vrot.slane %v55, 2
  %v762 = vsel %vm714, %v760, %v761
  %v763 = vrot.slane %v56, 2
  %v764 = vsel %vm714, %v761, %v763
  %v765 = vrot.slane %v57, 2
  %v766 = vrot.slane %v58, 2
  %v767 = vsel %vm714, %v765, %v766
  %v768 = vrot.slane %v59, 2
  %v769 = vsel %vm714, %v766, %v768
  %v770 = vrot.slane %v60, 2
  %v771 = vrot.slane %v61, 2
  %v772 = vsel %vm714, %v770, %v771
  %v773 = vrot.slane %v62, 2
  %v774 = vsel %vm714, %v771, %v773
  %v775 = vrot.slane %v63, 2
  %v776 = vrot.slane %v64, 2
  %v777 = vsel %vm714, %v775, %v776
  %v778 = vrot.slane %v65, 2
  %v779 = vsel %vm714, %v776, %v778
  %v780 = vrot.slane %v66, 2
  %v781 = vrot.slane %v67, 2
  %v782 = vsel %vm714, %v780, %v781
  %v783 = vrot.slane %v68, 2
  %v784 = vsel %vm714, %v781, %v783
  %v785 = vrot.slane %v69, 2
  %v786 = vrot.slane %v70, 2
  %v787 = vsel %vm714, %v785, %v786
  %v788 = vrot.slane %v71, 2
  %v789 = vsel %vm714, %v786, %v788
  %v790 = vrot.slane %v72, 2
  %v791 = vrot.slane %v73, 2
  %v792 = vsel %vm714, %v790, %v791
  %v793 = vrot.slane %v74, 2
  %v794 = vsel %vm714, %v791, %v793
  %v795 = vrot.slane %v81, 2
  %v796 = vrot.slane %v82, 2
  %v797 = vsel %vm714, %v795, %v796
  %v798 = vrot.slane %v83, 2
  %v799 = vsel %vm714, %v796, %v798
  %v800 = vrot.slane %v84, 2
  %v801 = vrot.slane %v85, 2
  %v802 = vsel %vm714, %v800, %v801
  %v803 = vrot.slane %v86, 2
  %v804 = vsel %vm714, %v801, %v803
  %v805 = vrot.slane %v87, 2
  %v806 = vrot.slane %v88, 2
  %v807 = vsel %vm714, %v805, %v806
  %v808 = vrot.slane %v89, 2
  %v809 = vsel %vm714, %v806, %v808
  %v810 = vrot.slane %v90, 2
  %v811 = vrot.slane %v91, 2
  %v812 = vsel %vm714, %v810, %v811
  %v813 = vrot.slane %v92, 2
  %v814 = vsel %vm714, %v811, %v813
  %v815 = vrot.slane %v93, 2
  %v816 = vrot.slane %v94, 2
  %v817 = vsel %vm714, %v815, %v816
  %v818 = vrot.slane %v95, 2
  %v819 = vsel %vm714, %v816, %v818
  %v820 = vrot.slane %v96, 2
  %v821 = vrot.slane %v97, 2
  %v822 = vsel %vm714, %v820, %v821
  %v823 = vrot.slane %v98, 2
  %v824 = vsel %vm714, %v821, %v823
  %v825 = vrot.slane %v99, 2
  %v826 = vrot.slane %v100, 2
  %v827 = vsel %vm714, %v825, %v826
  %v828 = vrot.slane %v101, 2
  %v829 = vsel %vm714, %v826, %v828
  %v830 = vrot.slane %v102, 2
  %v831 = vrot.slane %v103, 2
  %v832 = vsel %vm714, %v830, %v831
  %v833 = vrot.slane %v104, 2
  %v834 = vsel %vm714, %v831, %v833
  %v835 = vrot.slane %v105, 2
  %v836 = vrot.slane %v106, 2
  %v837 = vsel %vm714, %v835, %v836
  %v838 = vrot.slane %v107, 2
  %v839 = vsel %vm714, %v836, %v838
  %v840 = vrot.slane %v108, 2
  %v841 = vrot.slane %v109, 2
  %v842 = vsel %vm714, %v840, %v841
  %v843 = vrot.slane %v110, 2
  %v844 = vsel %vm714, %v841, %v843
  %v845 = vrot.slane %v111, 2
  %v846 = vrot.slane %v112, 2
  %v847 = vsel %vm714, %v845, %v846
  %v848 = vrot.slane %v113, 2
  %v849 = vsel %vm714, %v846, %v848
  %v850 = vrot.slane %v114, 2
  %v851 = vrot.slane %v115, 2
  %v852 = vsel %vm714, %v850, %v851
  %v853 = vrot.slane %v116, 2
  %v854 = vsel %vm714, %v851, %v853
  %v855 = vrot.slane %v117, 2
  %v856 = vrot.slane %v118, 2
  %v857 = vsel %vm714, %v855, %v856
  %v858 = vrot.slane %v119, 2
  %v859 = vsel %vm714, %v856, %v858
  %v860 = vrot.slane %v120, 2
  %v861 = vrot.slane %v121, 2
  %v862 = vsel %vm714, %v860, %v861
  %v863 = vrot.slane %v122, 2
  %v864 = vsel %vm714, %v861, %v863
  %v865 = vrot.slane %v123, 2
  %v866 = vrot.slane %v124, 2
  %v867 = vsel %vm714, %v865, %v866
  %v868 = vrot.slane %v125, 2
  %v869 = vsel %vm714, %v866, %v868
  %v870 = vrot.slane %v126, 2
  %v871 = vrot.slane %v127, 2
  %v872 = vsel %vm714, %v870, %v871
  %v873 = vrot.slane %v128, 2
  %v874 = vsel %vm714, %v871, %v873
  %875 = vrot.lane.b32.xlu0 %v717, 8
  %v876 = vpop.permute.xlu0 %875
  %877 = vrot.lane.b32.xlu0 %v719, 8
  %v878 = vpop.permute.xlu0 %877
  %879 = vrot.lane.b32.xlu0 %v722, 8
  %v880 = vpop.permute.xlu0 %879
  %881 = vrot.lane.b32.xlu0 %v724, 8
  %v882 = vpop.permute.xlu0 %881
  %883 = vrot.lane.b32.xlu0 %v727, 8
  %v884 = vpop.permute.xlu0 %883
  %885 = vrot.lane.b32.xlu0 %v729, 8
  %v886 = vpop.permute.xlu0 %885
  %887 = vrot.lane.b32.xlu0 %v732, 8
  %v888 = vpop.permute.xlu0 %887
  %889 = vrot.lane.b32.xlu0 %v734, 8
  %v890 = vpop.permute.xlu0 %889
  %891 = vrot.lane.b32.xlu0 %v737, 8
  %v892 = vpop.permute.xlu0 %891
  %893 = vrot.lane.b32.xlu0 %v739, 8
  %v894 = vpop.permute.xlu0 %893
  %895 = vrot.lane.b32.xlu0 %v742, 8
  %v896 = vpop.permute.xlu0 %895
  %897 = vrot.lane.b32.xlu0 %v744, 8
  %v898 = vpop.permute.xlu0 %897
  %899 = vrot.lane.b32.xlu0 %v747, 8
  %v900 = vpop.permute.xlu0 %899
  %901 = vrot.lane.b32.xlu0 %v749, 8
  %v902 = vpop.permute.xlu0 %901
  %903 = vrot.lane.b32.xlu0 %v752, 8
  %v904 = vpop.permute.xlu0 %903
  %905 = vrot.lane.b32.xlu0 %v754, 8
  %v906 = vpop.permute.xlu0 %905
  %907 = vrot.lane.b32.xlu0 %v757, 8
  %v908 = vpop.permute.xlu0 %907
  %909 = vrot.lane.b32.xlu0 %v759, 8
  %v910 = vpop.permute.xlu0 %909
  %911 = vrot.lane.b32.xlu0 %v762, 8
  %v912 = vpop.permute.xlu0 %911
  %913 = vrot.lane.b32.xlu0 %v764, 8
  %v914 = vpop.permute.xlu0 %913
  %915 = vrot.lane.b32.xlu0 %v767, 8
  %v916 = vpop.permute.xlu0 %915
  %917 = vrot.lane.b32.xlu0 %v769, 8
  %v918 = vpop.permute.xlu0 %917
  %919 = vrot.lane.b32.xlu0 %v772, 8
  %v920 = vpop.permute.xlu0 %919
  %921 = vrot.lane.b32.xlu0 %v774, 8
  %v922 = vpop.permute.xlu0 %921
  %923 = vrot.lane.b32.xlu0 %v777, 8
  %v924 = vpop.permute.xlu0 %923
  %925 = vrot.lane.b32.xlu0 %v779, 8
  %v926 = vpop.permute.xlu0 %925
  %927 = vrot.lane.b32.xlu0 %v782, 8
  %v928 = vpop.permute.xlu0 %927
  %929 = vrot.lane.b32.xlu0 %v784, 8
  %v930 = vpop.permute.xlu0 %929
  %931 = vrot.lane.b32.xlu0 %v787, 8
  %v932 = vpop.permute.xlu0 %931
  %933 = vrot.lane.b32.xlu0 %v789, 8
  %v934 = vpop.permute.xlu0 %933
  %935 = vrot.lane.b32.xlu0 %v792, 8
  %v936 = vpop.permute.xlu0 %935
  %937 = vrot.lane.b32.xlu0 %v794, 8
  %v938 = vpop.permute.xlu0 %937
  %939 = vrot.lane.b32.xlu0 %v797, 8
  %v940 = vpop.permute.xlu0 %939
  %941 = vrot.lane.b32.xlu0 %v799, 8
  %v942 = vpop.permute.xlu0 %941
  %943 = vrot.lane.b32.xlu0 %v802, 8
  %v944 = vpop.permute.xlu0 %943
  %945 = vrot.lane.b32.xlu0 %v804, 8
  %v946 = vpop.permute.xlu0 %945
  %947 = vrot.lane.b32.xlu0 %v807, 8
  %v948 = vpop.permute.xlu0 %947
  %949 = vrot.lane.b32.xlu0 %v809, 8
  %v950 = vpop.permute.xlu0 %949
  %951 = vrot.lane.b32.xlu0 %v812, 8
  %v952 = vpop.permute.xlu0 %951
  %953 = vrot.lane.b32.xlu0 %v814, 8
  %v954 = vpop.permute.xlu0 %953
  %955 = vrot.lane.b32.xlu0 %v817, 8
  %v956 = vpop.permute.xlu0 %955
  %957 = vrot.lane.b32.xlu0 %v819, 8
  %v958 = vpop.permute.xlu0 %957
  %959 = vrot.lane.b32.xlu0 %v822, 8
  %v960 = vpop.permute.xlu0 %959
  %961 = vrot.lane.b32.xlu0 %v824, 8
  %v962 = vpop.permute.xlu0 %961
  %963 = vrot.lane.b32.xlu0 %v827, 8
  %v964 = vpop.permute.xlu0 %963
  %965 = vrot.lane.b32.xlu0 %v829, 8
  %v966 = vpop.permute.xlu0 %965
  %967 = vrot.lane.b32.xlu0 %v832, 8
  %v968 = vpop.permute.xlu0 %967
  %969 = vrot.lane.b32.xlu0 %v834, 8
  %v970 = vpop.permute.xlu0 %969
  %971 = vrot.lane.b32.xlu0 %v837, 8
  %v972 = vpop.permute.xlu0 %971
  %973 = vrot.lane.b32.xlu0 %v839, 8
  %v974 = vpop.permute.xlu0 %973
  %975 = vrot.lane.b32.xlu0 %v842, 8
  %v976 = vpop.permute.xlu0 %975
  %977 = vrot.lane.b32.xlu0 %v844, 8
  %v978 = vpop.permute.xlu0 %977
  %979 = vrot.lane.b32.xlu0 %v847, 8
  %v980 = vpop.permute.xlu0 %979
  %981 = vrot.lane.b32.xlu0 %v849, 8
  %v982 = vpop.permute.xlu0 %981
  %983 = vrot.lane.b32.xlu0 %v852, 8
  %v984 = vpop.permute.xlu0 %983
  %985 = vrot.lane.b32.xlu0 %v854, 8
  %v986 = vpop.permute.xlu0 %985
  %987 = vrot.lane.b32.xlu0 %v857, 8
  %v988 = vpop.permute.xlu0 %987
  %989 = vrot.lane.b32.xlu0 %v859, 8
  %v990 = vpop.permute.xlu0 %989
  %991 = vrot.lane.b32.xlu0 %v862, 8
  %v992 = vpop.permute.xlu0 %991
  %993 = vrot.lane.b32.xlu0 %v864, 8
  %v994 = vpop.permute.xlu0 %993
  %995 = vrot.lane.b32.xlu0 %v867, 8
  %v996 = vpop.permute.xlu0 %995
  %997 = vrot.lane.b32.xlu0 %v869, 8
  %v998 = vpop.permute.xlu0 %997
  %999 = vrot.lane.b32.xlu0 %v872, 8
  %v1000 = vpop.permute.xlu0 %999
  %1001 = vrot.lane.b32.xlu0 %v874, 8
  %v1002 = vpop.permute.xlu0 %1001
  %vm1067 = vcmask 97344
  %1068 = vst.msk [vmem:[#allocation2] sm:$0xff] %vm1067, %v876
  %1069 = vst.msk [vmem:[#allocation2 + $0x8] sm:$0xff] %vm1067, %v878
  %1070 = vst.msk [vmem:[#allocation2 + $0x10] sm:$0xff] %vm1067, %v880
  %1071 = vst.msk [vmem:[#allocation2 + $0x18] sm:$0xff] %vm1067, %v882
  %1072 = vst.msk [vmem:[#allocation2 + $0x20] sm:$0xff] %vm1067, %v884
  %1073 = vst.msk [vmem:[#allocation2 + $0x28] sm:$0xff] %vm1067, %v886
  %1074 = vst.msk [vmem:[#allocation2 + $0x30] sm:$0xff] %vm1067, %v888
  %1075 = vst.msk [vmem:[#allocation2 + $0x38] sm:$0xff] %vm1067, %v890
  %1076 = vst.msk [vmem:[#allocation2 + $0x40] sm:$0xff] %vm1067, %v892
  %1077 = vst.msk [vmem:[#allocation2 + $0x48] sm:$0xff] %vm1067, %v894
  %1078 = vst.msk [vmem:[#allocation2 + $0x50] sm:$0xff] %vm1067, %v896
  %1079 = vst.msk [vmem:[#allocation2 + $0x58] sm:$0xff] %vm1067, %v898
  %1080 = vst.msk [vmem:[#allocation2 + $0x60] sm:$0xff] %vm1067, %v900
  %1081 = vst.msk [vmem:[#allocation2 + $0x68] sm:$0xff] %vm1067, %v902
  %1082 = vst.msk [vmem:[#allocation2 + $0x70] sm:$0xff] %vm1067, %v904
  %1083 = vst.msk [vmem:[#allocation2 + $0x78] sm:$0xff] %vm1067, %v906
  %1084 = vst.msk [vmem:[#allocation2 + $0x80] sm:$0xff] %vm1067, %v908
  %1085 = vst.msk [vmem:[#allocation2 + $0x88] sm:$0xff] %vm1067, %v910
  %1086 = vst.msk [vmem:[#allocation2 + $0x90] sm:$0xff] %vm1067, %v912
  %1087 = vst.msk [vmem:[#allocation2 + $0x98] sm:$0xff] %vm1067, %v914
  %1088 = vst.msk [vmem:[#allocation2 + $0xa0] sm:$0xff] %vm1067, %v916
  %1089 = vst.msk [vmem:[#allocation2 + $0xa8] sm:$0xff] %vm1067, %v918
  %1090 = vst.msk [vmem:[#allocation2 + $0xb0] sm:$0xff] %vm1067, %v920
  %1091 = vst.msk [vmem:[#allocation2 + $0xb8] sm:$0xff] %vm1067, %v922
  %1092 = vst.msk [vmem:[#allocation2 + $0xc0] sm:$0xff] %vm1067, %v924
  %1093 = vst.msk [vmem:[#allocation2 + $0xc8] sm:$0xff] %vm1067, %v926
  %1094 = vst.msk [vmem:[#allocation2 + $0xd0] sm:$0xff] %vm1067, %v928
  %1095 = vst.msk [vmem:[#allocation2 + $0xd8] sm:$0xff] %vm1067, %v930
  %1096 = vst.msk [vmem:[#allocation2 + $0xe0] sm:$0xff] %vm1067, %v932
  %1097 = vst.msk [vmem:[#allocation2 + $0xe8] sm:$0xff] %vm1067, %v934
  %1098 = vst.msk [vmem:[#allocation2 + $0xf0] sm:$0xff] %vm1067, %v936
  %1099 = vst.msk [vmem:[#allocation2 + $0xf8] sm:$0xff] %vm1067, %v938
  %1100 = vst.msk [vmem:[#allocation2 + $0x100] sm:$0xff] %vm1067, %v940
  %1101 = vst.msk [vmem:[#allocation2 + $0x108] sm:$0xff] %vm1067, %v942
  %1102 = vst.msk [vmem:[#allocation2 + $0x110] sm:$0xff] %vm1067, %v944
  %1103 = vst.msk [vmem:[#allocation2 + $0x118] sm:$0xff] %vm1067, %v946
  %1104 = vst.msk [vmem:[#allocation2 + $0x120] sm:$0xff] %vm1067, %v948
  %1105 = vst.msk [vmem:[#allocation2 + $0x128] sm:$0xff] %vm1067, %v950
  %1106 = vst.msk [vmem:[#allocation2 + $0x130] sm:$0xff] %vm1067, %v952
  %1107 = vst.msk [vmem:[#allocation2 + $0x138] sm:$0xff] %vm1067, %v954
  %1108 = vst.msk [vmem:[#allocation2 + $0x140] sm:$0xff] %vm1067, %v956
  %1109 = vst.msk [vmem:[#allocation2 + $0x148] sm:$0xff] %vm1067, %v958
  %1110 = vst.msk [vmem:[#allocation2 + $0x150] sm:$0xff] %vm1067, %v960
  %1111 = vst.msk [vmem:[#allocation2 + $0x158] sm:$0xff] %vm1067, %v962
  %1112 = vst.msk [vmem:[#allocation2 + $0x160] sm:$0xff] %vm1067, %v964
  %1113 = vst.msk [vmem:[#allocation2 + $0x168] sm:$0xff] %vm1067, %v966
  %1114 = vst.msk [vmem:[#allocation2 + $0x170] sm:$0xff] %vm1067, %v968
  %1115 = vst.msk [vmem:[#allocation2 + $0x178] sm:$0xff] %vm1067, %v970
  %1116 = vst.msk [vmem:[#allocation2 + $0x180] sm:$0xff] %vm1067, %v972
  %1117 = vst.msk [vmem:[#allocation2 + $0x188] sm:$0xff] %vm1067, %v974
  %1118 = vst.msk [vmem:[#allocation2 + $0x190] sm:$0xff] %vm1067, %v976
  %1119 = vst.msk [vmem:[#allocation2 + $0x198] sm:$0xff] %vm1067, %v978
  %1120 = vst.msk [vmem:[#allocation2 + $0x1a0] sm:$0xff] %vm1067, %v980
  %1121 = vst.msk [vmem:[#allocation2 + $0x1a8] sm:$0xff] %vm1067, %v982
  %1122 = vst.msk [vmem:[#allocation2 + $0x1b0] sm:$0xff] %vm1067, %v984
  %1123 = vst.msk [vmem:[#allocation2 + $0x1b8] sm:$0xff] %vm1067, %v986
  %1124 = vst.msk [vmem:[#allocation2 + $0x1c0] sm:$0xff] %vm1067, %v988
  %1125 = vst.msk [vmem:[#allocation2 + $0x1c8] sm:$0xff] %vm1067, %v990
  %1126 = vst.msk [vmem:[#allocation2 + $0x1d0] sm:$0xff] %vm1067, %v992
  %1127 = vst.msk [vmem:[#allocation2 + $0x1d8] sm:$0xff] %vm1067, %v994
  %1128 = vst.msk [vmem:[#allocation2 + $0x1e0] sm:$0xff] %vm1067, %v996
  %1129 = vst.msk [vmem:[#allocation2 + $0x1e8] sm:$0xff] %vm1067, %v998
  %1130 = vst.msk [vmem:[#allocation2 + $0x1f0] sm:$0xff] %vm1067, %v1000
  %1131 = vst.msk [vmem:[#allocation2 + $0x1f8] sm:$0xff] %vm1067, %v1002
  %1136 = vrot.lane.b32.xlu0 %v30, 12
  %v1137 = vpop.permute.xlu0 %1136
  %1138 = vrot.lane.b32.xlu0 %v31, 12
  %v1139 = vpop.permute.xlu0 %1138
  %1140 = vrot.lane.b32.xlu0 %v33, 12
  %v1141 = vpop.permute.xlu0 %1140
  %1142 = vrot.lane.b32.xlu0 %v34, 12
  %v1143 = vpop.permute.xlu0 %1142
  %1144 = vrot.lane.b32.xlu0 %v36, 12
  %v1145 = vpop.permute.xlu0 %1144
  %1146 = vrot.lane.b32.xlu0 %v37, 12
  %v1147 = vpop.permute.xlu0 %1146
  %1148 = vrot.lane.b32.xlu0 %v39, 12
  %v1149 = vpop.permute.xlu0 %1148
  %1150 = vrot.lane.b32.xlu0 %v40, 12
  %v1151 = vpop.permute.xlu0 %1150
  %1152 = vrot.lane.b32.xlu0 %v42, 12
  %v1153 = vpop.permute.xlu0 %1152
  %1154 = vrot.lane.b32.xlu0 %v43, 12
  %v1155 = vpop.permute.xlu0 %1154
  %1156 = vrot.lane.b32.xlu0 %v45, 12
  %v1157 = vpop.permute.xlu0 %1156
  %1158 = vrot.lane.b32.xlu0 %v46, 12
  %v1159 = vpop.permute.xlu0 %1158
  %1160 = vrot.lane.b32.xlu0 %v48, 12
  %v1161 = vpop.permute.xlu0 %1160
  %1162 = vrot.lane.b32.xlu0 %v49, 12
  %v1163 = vpop.permute.xlu0 %1162
  %1164 = vrot.lane.b32.xlu0 %v51, 12
  %v1165 = vpop.permute.xlu0 %1164
  %1166 = vrot.lane.b32.xlu0 %v52, 12
  %v1167 = vpop.permute.xlu0 %1166
  %1168 = vrot.lane.b32.xlu0 %v54, 12
  %v1169 = vpop.permute.xlu0 %1168
  %1170 = vrot.lane.b32.xlu0 %v55, 12
  %v1171 = vpop.permute.xlu0 %1170
  %1172 = vrot.lane.b32.xlu0 %v57, 12
  %v1173 = vpop.permute.xlu0 %1172
  %1174 = vrot.lane.b32.xlu0 %v58, 12
  %v1175 = vpop.permute.xlu0 %1174
  %1176 = vrot.lane.b32.xlu0 %v60, 12
  %v1177 = vpop.permute.xlu0 %1176
  %1178 = vrot.lane.b32.xlu0 %v61, 12
  %v1179 = vpop.permute.xlu0 %1178
  %1180 = vrot.lane.b32.xlu0 %v63, 12
  %v1181 = vpop.permute.xlu0 %1180
  %1182 = vrot.lane.b32.xlu0 %v64, 12
  %v1183 = vpop.permute.xlu0 %1182
  %1184 = vrot.lane.b32.xlu0 %v66, 12
  %v1185 = vpop.permute.xlu0 %1184
  %1186 = vrot.lane.b32.xlu0 %v67, 12
  %v1187 = vpop.permute.xlu0 %1186
  %1188 = vrot.lane.b32.xlu0 %v69, 12
  %v1189 = vpop.permute.xlu0 %1188
  %1190 = vrot.lane.b32.xlu0 %v70, 12
  %v1191 = vpop.permute.xlu0 %1190
  %1192 = vrot.lane.b32.xlu0 %v72, 12
  %v1193 = vpop.permute.xlu0 %1192
  %1194 = vrot.lane.b32.xlu0 %v73, 12
  %v1195 = vpop.permute.xlu0 %1194
  %1196 = vrot.lane.b32.xlu0 %v75, 12
  %v1197 = vpop.permute.xlu0 %1196
  %1198 = vrot.lane.b32.xlu0 %v76, 12
  %v1199 = vpop.permute.xlu0 %1198
  %1200 = vrot.lane.b32.xlu0 %v84, 12
  %v1201 = vpop.permute.xlu0 %1200
  %1202 = vrot.lane.b32.xlu0 %v85, 12
  %v1203 = vpop.permute.xlu0 %1202
  %1204 = vrot.lane.b32.xlu0 %v87, 12
  %v1205 = vpop.permute.xlu0 %1204
  %1206 = vrot.lane.b32.xlu0 %v88, 12
  %v1207 = vpop.permute.xlu0 %1206
  %1208 = vrot.lane.b32.xlu0 %v90, 12
  %v1209 = vpop.permute.xlu0 %1208
  %1210 = vrot.lane.b32.xlu0 %v91, 12
  %v1211 = vpop.permute.xlu0 %1210
  %1212 = vrot.lane.b32.xlu0 %v93, 12
  %v1213 = vpop.permute.xlu0 %1212
  %1214 = vrot.lane.b32.xlu0 %v94, 12
  %v1215 = vpop.permute.xlu0 %1214
  %1216 = vrot.lane.b32.xlu0 %v96, 12
  %v1217 = vpop.permute.xlu0 %1216
  %1218 = vrot.lane.b32.xlu0 %v97, 12
  %v1219 = vpop.permute.xlu0 %1218
  %1220 = vrot.lane.b32.xlu0 %v99, 12
  %v1221 = vpop.permute.xlu0 %1220
  %1222 = vrot.lane.b32.xlu0 %v100, 12
  %v1223 = vpop.permute.xlu0 %1222
  %1224 = vrot.lane.b32.xlu0 %v102, 12
  %v1225 = vpop.permute.xlu0 %1224
  %1226 = vrot.lane.b32.xlu0 %v103, 12
  %v1227 = vpop.permute.xlu0 %1226
  %1228 = vrot.lane.b32.xlu0 %v105, 12
  %v1229 = vpop.permute.xlu0 %1228
  %1230 = vrot.lane.b32.xlu0 %v106, 12
  %v1231 = vpop.permute.xlu0 %1230
  %1232 = vrot.lane.b32.xlu0 %v108, 12
  %v1233 = vpop.permute.xlu0 %1232
  %1234 = vrot.lane.b32.xlu0 %v109, 12
  %v1235 = vpop.permute.xlu0 %1234
  %1236 = vrot.lane.b32.xlu0 %v111, 12
  %v1237 = vpop.permute.xlu0 %1236
  %1238 = vrot.lane.b32.xlu0 %v112, 12
  %v1239 = vpop.permute.xlu0 %1238
  %1240 = vrot.lane.b32.xlu0 %v114, 12
  %v1241 = vpop.permute.xlu0 %1240
  %1242 = vrot.lane.b32.xlu0 %v115, 12
  %v1243 = vpop.permute.xlu0 %1242
  %1244 = vrot.lane.b32.xlu0 %v117, 12
  %v1245 = vpop.permute.xlu0 %1244
  %1246 = vrot.lane.b32.xlu0 %v118, 12
  %v1247 = vpop.permute.xlu0 %1246
  %1248 = vrot.lane.b32.xlu0 %v120, 12
  %v1249 = vpop.permute.xlu0 %1248
  %1250 = vrot.lane.b32.xlu0 %v121, 12
  %v1251 = vpop.permute.xlu0 %1250
  %1252 = vrot.lane.b32.xlu0 %v123, 12
  %v1253 = vpop.permute.xlu0 %1252
  %1254 = vrot.lane.b32.xlu0 %v124, 12
  %v1255 = vpop.permute.xlu0 %1254
  %1256 = vrot.lane.b32.xlu0 %v126, 12
  %v1257 = vpop.permute.xlu0 %1256
  %1258 = vrot.lane.b32.xlu0 %v127, 12
  %v1259 = vpop.permute.xlu0 %1258
  %1260 = vrot.lane.b32.xlu0 %v129, 12
  %v1261 = vpop.permute.xlu0 %1260
  %1262 = vrot.lane.b32.xlu0 %v130, 12
  %v1263 = vpop.permute.xlu0 %1262
  %vm1328 = vcmask 130144
  %1329 = vst.msk [vmem:[#allocation2] sm:$0xff] %vm1328, %v1137
  %1330 = vst.msk [vmem:[#allocation2 + $0x8] sm:$0xff] %vm1328, %v1139
  %1331 = vst.msk [vmem:[#allocation2 + $0x10] sm:$0xff] %vm1328, %v1141
  %1332 = vst.msk [vmem:[#allocation2 + $0x18] sm:$0xff] %vm1328, %v1143
  %1333 = vst.msk [vmem:[#allocation2 + $0x20] sm:$0xff] %vm1328, %v1145
  %1334 = vst.msk [vmem:[#allocation2 + $0x28] sm:$0xff] %vm1328, %v1147
  %1335 = vst.msk [vmem:[#allocation2 + $0x30] sm:$0xff] %vm1328, %v1149
  %1336 = vst.msk [vmem:[#allocation2 + $0x38] sm:$0xff] %vm1328, %v1151
  %1337 = vst.msk [vmem:[#allocation2 + $0x40] sm:$0xff] %vm1328, %v1153
  %1338 = vst.msk [vmem:[#allocation2 + $0x48] sm:$0xff] %vm1328, %v1155
  %1339 = vst.msk [vmem:[#allocation2 + $0x50] sm:$0xff] %vm1328, %v1157
  %1340 = vst.msk [vmem:[#allocation2 + $0x58] sm:$0xff] %vm1328, %v1159
  %1341 = vst.msk [vmem:[#allocation2 + $0x60] sm:$0xff] %vm1328, %v1161
  %1342 = vst.msk [vmem:[#allocation2 + $0x68] sm:$0xff] %vm1328, %v1163
  %1343 = vst.msk [vmem:[#allocation2 + $0x70] sm:$0xff] %vm1328, %v1165
  %1344 = vst.msk [vmem:[#allocation2 + $0x78] sm:$0xff] %vm1328, %v1167
  %1345 = vst.msk [vmem:[#allocation2 + $0x80] sm:$0xff] %vm1328, %v1169
  %1346 = vst.msk [vmem:[#allocation2 + $0x88] sm:$0xff] %vm1328, %v1171
  %1347 = vst.msk [vmem:[#allocation2 + $0x90] sm:$0xff] %vm1328, %v1173
  %1348 = vst.msk [vmem:[#allocation2 + $0x98] sm:$0xff] %vm1328, %v1175
  %1349 = vst.msk [vmem:[#allocation2 + $0xa0] sm:$0xff] %vm1328, %v1177
  %1350 = vst.msk [vmem:[#allocation2 + $0xa8] sm:$0xff] %vm1328, %v1179
  %1351 = vst.msk [vmem:[#allocation2 + $0xb0] sm:$0xff] %vm1328, %v1181
  %1352 = vst.msk [vmem:[#allocation2 + $0xb8] sm:$0xff] %vm1328, %v1183
  %1353 = vst.msk [vmem:[#allocation2 + $0xc0] sm:$0xff] %vm1328, %v1185
  %1354 = vst.msk [vmem:[#allocation2 + $0xc8] sm:$0xff] %vm1328, %v1187
  %1355 = vst.msk [vmem:[#allocation2 + $0xd0] sm:$0xff] %vm1328, %v1189
  %1356 = vst.msk [vmem:[#allocation2 + $0xd8] sm:$0xff] %vm1328, %v1191
  %1357 = vst.msk [vmem:[#allocation2 + $0xe0] sm:$0xff] %vm1328, %v1193
  %1358 = vst.msk [vmem:[#allocation2 + $0xe8] sm:$0xff] %vm1328, %v1195
  %1359 = vst.msk [vmem:[#allocation2 + $0xf0] sm:$0xff] %vm1328, %v1197
  %1360 = vst.msk [vmem:[#allocation2 + $0xf8] sm:$0xff] %vm1328, %v1199
  %1361 = vst.msk [vmem:[#allocation2 + $0x100] sm:$0xff] %vm1328, %v1201
  %1362 = vst.msk [vmem:[#allocation2 + $0x108] sm:$0xff] %vm1328, %v1203
  %1363 = vst.msk [vmem:[#allocation2 + $0x110] sm:$0xff] %vm1328, %v1205
  %1364 = vst.msk [vmem:[#allocation2 + $0x118] sm:$0xff] %vm1328, %v1207
  %1365 = vst.msk [vmem:[#allocation2 + $0x120] sm:$0xff] %vm1328, %v1209
  %1366 = vst.msk [vmem:[#allocation2 + $0x128] sm:$0xff] %vm1328, %v1211
  %1367 = vst.msk [vmem:[#allocation2 + $0x130] sm:$0xff] %vm1328, %v1213
  %1368 = vst.msk [vmem:[#allocation2 + $0x138] sm:$0xff] %vm1328, %v1215
  %1369 = vst.msk [vmem:[#allocation2 + $0x140] sm:$0xff] %vm1328, %v1217
  %1370 = vst.msk [vmem:[#allocation2 + $0x148] sm:$0xff] %vm1328, %v1219
  %1371 = vst.msk [vmem:[#allocation2 + $0x150] sm:$0xff] %vm1328, %v1221
  %1372 = vst.msk [vmem:[#allocation2 + $0x158] sm:$0xff] %vm1328, %v1223
  %1373 = vst.msk [vmem:[#allocation2 + $0x160] sm:$0xff] %vm1328, %v1225
  %1374 = vst.msk [vmem:[#allocation2 + $0x168] sm:$0xff] %vm1328, %v1227
  %1375 = vst.msk [vmem:[#allocation2 + $0x170] sm:$0xff] %vm1328, %v1229
  %1376 = vst.msk [vmem:[#allocation2 + $0x178] sm:$0xff] %vm1328, %v1231
  %1377 = vst.msk [vmem:[#allocation2 + $0x180] sm:$0xff] %vm1328, %v1233
  %1378 = vst.msk [vmem:[#allocation2 + $0x188] sm:$0xff] %vm1328, %v1235
  %1379 = vst.msk [vmem:[#allocation2 + $0x190] sm:$0xff] %vm1328, %v1237
  %1380 = vst.msk [vmem:[#allocation2 + $0x198] sm:$0xff] %vm1328, %v1239
  %1381 = vst.msk [vmem:[#allocation2 + $0x1a0] sm:$0xff] %vm1328, %v1241
  %1382 = vst.msk [vmem:[#allocation2 + $0x1a8] sm:$0xff] %vm1328, %v1243
  %1383 = vst.msk [vmem:[#allocation2 + $0x1b0] sm:$0xff] %vm1328, %v1245
  %1384 = vst.msk [vmem:[#allocation2 + $0x1b8] sm:$0xff] %vm1328, %v1247
  %1385 = vst.msk [vmem:[#allocation2 + $0x1c0] sm:$0xff] %vm1328, %v1249
  %1386 = vst.msk [vmem:[#allocation2 + $0x1c8] sm:$0xff] %vm1328, %v1251
  %1387 = vst.msk [vmem:[#allocation2 + $0x1d0] sm:$0xff] %vm1328, %v1253
  %1388 = vst.msk [vmem:[#allocation2 + $0x1d8] sm:$0xff] %vm1328, %v1255
  %1389 = vst.msk [vmem:[#allocation2 + $0x1e0] sm:$0xff] %vm1328, %v1257
  %1390 = vst.msk [vmem:[#allocation2 + $0x1e8] sm:$0xff] %vm1328, %v1259
  %1391 = vst.msk [vmem:[#allocation2 + $0x1f0] sm:$0xff] %vm1328, %v1261
  %1392 = vst.msk [vmem:[#allocation2 + $0x1f8] sm:$0xff] %vm1328, %v1263
  %v1395 = vrot.slane %v75, 1
  %v1396 = vrot.slane %v76, 1
  %v1397 = vsel %vm296, %v1395, %v1396
  %v1398 = vrot.slane %v77, 1
  %v1399 = vsel %vm296, %v1396, %v1398
  %v1400 = vrot.slane %v129, 1
  %v1401 = vrot.slane %v130, 1
  %v1402 = vsel %vm296, %v1400, %v1401
  %v1403 = vrot.slane %v131, 1
  %v1404 = vsel %vm296, %v1401, %v1403
  %1405 = vrot.lane.b32.xlu0 %v304, 16
  %v1406 = vpop.permute.xlu0 %1405
  %1407 = vrot.lane.b32.xlu0 %v306, 16
  %v1408 = vpop.permute.xlu0 %1407
  %1409 = vrot.lane.b32.xlu0 %v309, 16
  %v1410 = vpop.permute.xlu0 %1409
  %1411 = vrot.lane.b32.xlu0 %v311, 16
  %v1412 = vpop.permute.xlu0 %1411
  %1413 = vrot.lane.b32.xlu0 %v314, 16
  %v1414 = vpop.permute.xlu0 %1413
  %1415 = vrot.lane.b32.xlu0 %v316, 16
  %v1416 = vpop.permute.xlu0 %1415
  %1417 = vrot.lane.b32.xlu0 %v319, 16
  %v1418 = vpop.permute.xlu0 %1417
  %1419 = vrot.lane.b32.xlu0 %v321, 16
  %v1420 = vpop.permute.xlu0 %1419
  %1421 = vrot.lane.b32.xlu0 %v324, 16
  %v1422 = vpop.permute.xlu0 %1421
  %1423 = vrot.lane.b32.xlu0 %v326, 16
  %v1424 = vpop.permute.xlu0 %1423
  %1425 = vrot.lane.b32.xlu0 %v329, 16
  %v1426 = vpop.permute.xlu0 %1425
  %1427 = vrot.lane.b32.xlu0 %v331, 16
  %v1428 = vpop.permute.xlu0 %1427
  %1429 = vrot.lane.b32.xlu0 %v334, 16
  %v1430 = vpop.permute.xlu0 %1429
  %1431 = vrot.lane.b32.xlu0 %v336, 16
  %v1432 = vpop.permute.xlu0 %1431
  %1433 = vrot.lane.b32.xlu0 %v339, 16
  %v1434 = vpop.permute.xlu0 %1433
  %1435 = vrot.lane.b32.xlu0 %v341, 16
  %v1436 = vpop.permute.xlu0 %1435
  %1437 = vrot.lane.b32.xlu0 %v344, 16
  %v1438 = vpop.permute.xlu0 %1437
  %1439 = vrot.lane.b32.xlu0 %v346, 16
  %v1440 = vpop.permute.xlu0 %1439
  %1441 = vrot.lane.b32.xlu0 %v349, 16
  %v1442 = vpop.permute.xlu0 %1441
  %1443 = vrot.lane.b32.xlu0 %v351, 16
  %v1444 = vpop.permute.xlu0 %1443
  %1445 = vrot.lane.b32.xlu0 %v354, 16
  %v1446 = vpop.permute.xlu0 %1445
  %1447 = vrot.lane.b32.xlu0 %v356, 16
  %v1448 = vpop.permute.xlu0 %1447
  %1449 = vrot.lane.b32.xlu0 %v359, 16
  %v1450 = vpop.permute.xlu0 %1449
  %1451 = vrot.lane.b32.xlu0 %v361, 16
  %v1452 = vpop.permute.xlu0 %1451
  %1453 = vrot.lane.b32.xlu0 %v364, 16
  %v1454 = vpop.permute.xlu0 %1453
  %1455 = vrot.lane.b32.xlu0 %v366, 16
  %v1456 = vpop.permute.xlu0 %1455
  %1457 = vrot.lane.b32.xlu0 %v369, 16
  %v1458 = vpop.permute.xlu0 %1457
  %1459 = vrot.lane.b32.xlu0 %v371, 16
  %v1460 = vpop.permute.xlu0 %1459
  %1461 = vrot.lane.b32.xlu0 %v374, 16
  %v1462 = vpop.permute.xlu0 %1461
  %1463 = vrot.lane.b32.xlu0 %v376, 16
  %v1464 = vpop.permute.xlu0 %1463
  %1465 = vrot.lane.b32.xlu0 %v1397, 16
  %v1466 = vpop.permute.xlu0 %1465
  %1467 = vrot.lane.b32.xlu0 %v1399, 16
  %v1468 = vpop.permute.xlu0 %1467
  %1469 = vrot.lane.b32.xlu0 %v384, 16
  %v1470 = vpop.permute.xlu0 %1469
  %1471 = vrot.lane.b32.xlu0 %v386, 16
  %v1472 = vpop.permute.xlu0 %1471
  %1473 = vrot.lane.b32.xlu0 %v389, 16
  %v1474 = vpop.permute.xlu0 %1473
  %1475 = vrot.lane.b32.xlu0 %v391, 16
  %v1476 = vpop.permute.xlu0 %1475
  %1477 = vrot.lane.b32.xlu0 %v394, 16
  %v1478 = vpop.permute.xlu0 %1477
  %1479 = vrot.lane.b32.xlu0 %v396, 16
  %v1480 = vpop.permute.xlu0 %1479
  %1481 = vrot.lane.b32.xlu0 %v399, 16
  %v1482 = vpop.permute.xlu0 %1481
  %1483 = vrot.lane.b32.xlu0 %v401, 16
  %v1484 = vpop.permute.xlu0 %1483
  %1485 = vrot.lane.b32.xlu0 %v404, 16
  %v1486 = vpop.permute.xlu0 %1485
  %1487 = vrot.lane.b32.xlu0 %v406, 16
  %v1488 = vpop.permute.xlu0 %1487
  %1489 = vrot.lane.b32.xlu0 %v409, 16
  %v1490 = vpop.permute.xlu0 %1489
  %1491 = vrot.lane.b32.xlu0 %v411, 16
  %v1492 = vpop.permute.xlu0 %1491
  %1493 = vrot.lane.b32.xlu0 %v414, 16
  %v1494 = vpop.permute.xlu0 %1493
  %1495 = vrot.lane.b32.xlu0 %v416, 16
  %v1496 = vpop.permute.xlu0 %1495
  %1497 = vrot.lane.b32.xlu0 %v419, 16
  %v1498 = vpop.permute.xlu0 %1497
  %1499 = vrot.lane.b32.xlu0 %v421, 16
  %v1500 = vpop.permute.xlu0 %1499
  %1501 = vrot.lane.b32.xlu0 %v424, 16
  %v1502 = vpop.permute.xlu0 %1501
  %1503 = vrot.lane.b32.xlu0 %v426, 16
  %v1504 = vpop.permute.xlu0 %1503
  %1505 = vrot.lane.b32.xlu0 %v429, 16
  %v1506 = vpop.permute.xlu0 %1505
  %1507 = vrot.lane.b32.xlu0 %v431, 16
  %v1508 = vpop.permute.xlu0 %1507
  %1509 = vrot.lane.b32.xlu0 %v434, 16
  %v1510 = vpop.permute.xlu0 %1509
  %1511 = vrot.lane.b32.xlu0 %v436, 16
  %v1512 = vpop.permute.xlu0 %1511
  %1513 = vrot.lane.b32.xlu0 %v439, 16
  %v1514 = vpop.permute.xlu0 %1513
  %1515 = vrot.lane.b32.xlu0 %v441, 16
  %v1516 = vpop.permute.xlu0 %1515
  %1517 = vrot.lane.b32.xlu0 %v444, 16
  %v1518 = vpop.permute.xlu0 %1517
  %1519 = vrot.lane.b32.xlu0 %v446, 16
  %v1520 = vpop.permute.xlu0 %1519
  %1521 = vrot.lane.b32.xlu0 %v449, 16
  %v1522 = vpop.permute.xlu0 %1521
  %1523 = vrot.lane.b32.xlu0 %v451, 16
  %v1524 = vpop.permute.xlu0 %1523
  %1525 = vrot.lane.b32.xlu0 %v454, 16
  %v1526 = vpop.permute.xlu0 %1525
  %1527 = vrot.lane.b32.xlu0 %v456, 16
  %v1528 = vpop.permute.xlu0 %1527
  %1529 = vrot.lane.b32.xlu0 %v1402, 16
  %v1530 = vpop.permute.xlu0 %1529
  %1531 = vrot.lane.b32.xlu0 %v1404, 16
  %v1532 = vpop.permute.xlu0 %1531
  %vm1597 = vcmask 162944
  %1598 = vst.msk [vmem:[#allocation2] sm:$0xff] %vm1597, %v1406
  %1599 = vst.msk [vmem:[#allocation2 + $0x8] sm:$0xff] %vm1597, %v1408
  %1600 = vst.msk [vmem:[#allocation2 + $0x10] sm:$0xff] %vm1597, %v1410
  %1601 = vst.msk [vmem:[#allocation2 + $0x18] sm:$0xff] %vm1597, %v1412
  %1602 = vst.msk [vmem:[#allocation2 + $0x20] sm:$0xff] %vm1597, %v1414
  %1603 = vst.msk [vmem:[#allocation2 + $0x28] sm:$0xff] %vm1597, %v1416
  %1604 = vst.msk [vmem:[#allocation2 + $0x30] sm:$0xff] %vm1597, %v1418
  %1605 = vst.msk [vmem:[#allocation2 + $0x38] sm:$0xff] %vm1597, %v1420
  %1606 = vst.msk [vmem:[#allocation2 + $0x40] sm:$0xff] %vm1597, %v1422
  %1607 = vst.msk [vmem:[#allocation2 + $0x48] sm:$0xff] %vm1597, %v1424
  %1608 = vst.msk [vmem:[#allocation2 + $0x50] sm:$0xff] %vm1597, %v1426
  %1609 = vst.msk [vmem:[#allocation2 + $0x58] sm:$0xff] %vm1597, %v1428
  %1610 = vst.msk [vmem:[#allocation2 + $0x60] sm:$0xff] %vm1597, %v1430
  %1611 = vst.msk [vmem:[#allocation2 + $0x68] sm:$0xff] %vm1597, %v1432
  %1612 = vst.msk [vmem:[#allocation2 + $0x70] sm:$0xff] %vm1597, %v1434
  %1613 = vst.msk [vmem:[#allocation2 + $0x78] sm:$0xff] %vm1597, %v1436
  %1614 = vst.msk [vmem:[#allocation2 + $0x80] sm:$0xff] %vm1597, %v1438
  %1615 = vst.msk [vmem:[#allocation2 + $0x88] sm:$0xff] %vm1597, %v1440
  %1616 = vst.msk [vmem:[#allocation2 + $0x90] sm:$0xff] %vm1597, %v1442
  %1617 = vst.msk [vmem:[#allocation2 + $0x98] sm:$0xff] %vm1597, %v1444
  %1618 = vst.msk [vmem:[#allocation2 + $0xa0] sm:$0xff] %vm1597, %v1446
  %1619 = vst.msk [vmem:[#allocation2 + $0xa8] sm:$0xff] %vm1597, %v1448
  %1620 = vst.msk [vmem:[#allocation2 + $0xb0] sm:$0xff] %vm1597, %v1450
  %1621 = vst.msk [vmem:[#allocation2 + $0xb8] sm:$0xff] %vm1597, %v1452
  %1622 = vst.msk [vmem:[#allocation2 + $0xc0] sm:$0xff] %vm1597, %v1454
  %1623 = vst.msk [vmem:[#allocation2 + $0xc8] sm:$0xff] %vm1597, %v1456
  %1624 = vst.msk [vmem:[#allocation2 + $0xd0] sm:$0xff] %vm1597, %v1458
  %1625 = vst.msk [vmem:[#allocation2 + $0xd8] sm:$0xff] %vm1597, %v1460
  %1626 = vst.msk [vmem:[#allocation2 + $0xe0] sm:$0xff] %vm1597, %v1462
  %1627 = vst.msk [vmem:[#allocation2 + $0xe8] sm:$0xff] %vm1597, %v1464
  %1628 = vst.msk [vmem:[#allocation2 + $0xf0] sm:$0xff] %vm1597, %v1466
  %1629 = vst.msk [vmem:[#allocation2 + $0xf8] sm:$0xff] %vm1597, %v1468
  %1630 = vst.msk [vmem:[#allocation2 + $0x100] sm:$0xff] %vm1597, %v1470
  %1631 = vst.msk [vmem:[#allocation2 + $0x108] sm:$0xff] %vm1597, %v1472
  %1632 = vst.msk [vmem:[#allocation2 + $0x110] sm:$0xff] %vm1597, %v1474
  %1633 = vst.msk [vmem:[#allocation2 + $0x118] sm:$0xff] %vm1597, %v1476
  %1634 = vst.msk [vmem:[#allocation2 + $0x120] sm:$0xff] %vm1597, %v1478
  %1635 = vst.msk [vmem:[#allocation2 + $0x128] sm:$0xff] %vm1597, %v1480
  %1636 = vst.msk [vmem:[#allocation2 + $0x130] sm:$0xff] %vm1597, %v1482
  %1637 = vst.msk [vmem:[#allocation2 + $0x138] sm:$0xff] %vm1597, %v1484
  %1638 = vst.msk [vmem:[#allocation2 + $0x140] sm:$0xff] %vm1597, %v1486
  %1639 = vst.msk [vmem:[#allocation2 + $0x148] sm:$0xff] %vm1597, %v1488
  %1640 = vst.msk [vmem:[#allocation2 + $0x150] sm:$0xff] %vm1597, %v1490
  %1641 = vst.msk [vmem:[#allocation2 + $0x158] sm:$0xff] %vm1597, %v1492
  %1642 = vst.msk [vmem:[#allocation2 + $0x160] sm:$0xff] %vm1597, %v1494
  %1643 = vst.msk [vmem:[#allocation2 + $0x168] sm:$0xff] %vm1597, %v1496
  %1644 = vst.msk [vmem:[#allocation2 + $0x170] sm:$0xff] %vm1597, %v1498
  %1645 = vst.msk [vmem:[#allocation2 + $0x178] sm:$0xff] %vm1597, %v1500
  %1646 = vst.msk [vmem:[#allocation2 + $0x180] sm:$0xff] %vm1597, %v1502
  %1647 = vst.msk [vmem:[#allocation2 + $0x188] sm:$0xff] %vm1597, %v1504
  %1648 = vst.msk [vmem:[#allocation2 + $0x190] sm:$0xff] %vm1597, %v1506
  %1649 = vst.msk [vmem:[#allocation2 + $0x198] sm:$0xff] %vm1597, %v1508
  %1650 = vst.msk [vmem:[#allocation2 + $0x1a0] sm:$0xff] %vm1597, %v1510
  %1651 = vst.msk [vmem:[#allocation2 + $0x1a8] sm:$0xff] %vm1597, %v1512
  %1652 = vst.msk [vmem:[#allocation2 + $0x1b0] sm:$0xff] %vm1597, %v1514
  %1653 = vst.msk [vmem:[#allocation2 + $0x1b8] sm:$0xff] %vm1597, %v1516
  %1654 = vst.msk [vmem:[#allocation2 + $0x1c0] sm:$0xff] %vm1597, %v1518
  %1655 = vst.msk [vmem:[#allocation2 + $0x1c8] sm:$0xff] %vm1597, %v1520
  %1656 = vst.msk [vmem:[#allocation2 + $0x1d0] sm:$0xff] %vm1597, %v1522
  %1657 = vst.msk [vmem:[#allocation2 + $0x1d8] sm:$0xff] %vm1597, %v1524
  %1658 = vst.msk [vmem:[#allocation2 + $0x1e0] sm:$0xff] %vm1597, %v1526
  %1659 = vst.msk [vmem:[#allocation2 + $0x1e8] sm:$0xff] %vm1597, %v1528
  %1660 = vst.msk [vmem:[#allocation2 + $0x1f0] sm:$0xff] %vm1597, %v1530
  %1661 = vst.msk [vmem:[#allocation2 + $0x1f8] sm:$0xff] %vm1597, %v1532
  %v1662 = vrot.slane %v75, 2
  %v1663 = vrot.slane %v76, 2
  %v1664 = vsel %vm714, %v1662, %v1663
  %v1665 = vrot.slane %v77, 2
  %v1666 = vsel %vm714, %v1663, %v1665
  %v1667 = vrot.slane %v129, 2
  %v1668 = vrot.slane %v130, 2
  %v1669 = vsel %vm714, %v1667, %v1668
  %v1670 = vrot.slane %v131, 2
  %v1671 = vsel %vm714, %v1668, %v1670
  %1672 = vrot.lane.b32.xlu0 %v722, 20
  %v1673 = vpop.permute.xlu0 %1672
  %1674 = vrot.lane.b32.xlu0 %v724, 20
  %v1675 = vpop.permute.xlu0 %1674
  %1676 = vrot.lane.b32.xlu0 %v727, 20
  %v1677 = vpop.permute.xlu0 %1676
  %1678 = vrot.lane.b32.xlu0 %v729, 20
  %v1679 = vpop.permute.xlu0 %1678
  %1680 = vrot.lane.b32.xlu0 %v732, 20
  %v1681 = vpop.permute.xlu0 %1680
  %1682 = vrot.lane.b32.xlu0 %v734, 20
  %v1683 = vpop.permute.xlu0 %1682
  %1684 = vrot.lane.b32.xlu0 %v737, 20
  %v1685 = vpop.permute.xlu0 %1684
  %1686 = vrot.lane.b32.xlu0 %v739, 20
  %v1687 = vpop.permute.xlu0 %1686
  %1688 = vrot.lane.b32.xlu0 %v742, 20
  %v1689 = vpop.permute.xlu0 %1688
  %1690 = vrot.lane.b32.xlu0 %v744, 20
  %v1691 = vpop.permute.xlu0 %1690
  %1692 = vrot.lane.b32.xlu0 %v747, 20
  %v1693 = vpop.permute.xlu0 %1692
  %1694 = vrot.lane.b32.xlu0 %v749, 20
  %v1695 = vpop.permute.xlu0 %1694
  %1696 = vrot.lane.b32.xlu0 %v752, 20
  %v1697 = vpop.permute.xlu0 %1696
  %1698 = vrot.lane.b32.xlu0 %v754, 20
  %v1699 = vpop.permute.xlu0 %1698
  %1700 = vrot.lane.b32.xlu0 %v757, 20
  %v1701 = vpop.permute.xlu0 %1700
  %1702 = vrot.lane.b32.xlu0 %v759, 20
  %v1703 = vpop.permute.xlu0 %1702
  %1704 = vrot.lane.b32.xlu0 %v762, 20
  %v1705 = vpop.permute.xlu0 %1704
  %1706 = vrot.lane.b32.xlu0 %v764, 20
  %v1707 = vpop.permute.xlu0 %1706
  %1708 = vrot.lane.b32.xlu0 %v767, 20
  %v1709 = vpop.permute.xlu0 %1708
  %1710 = vrot.lane.b32.xlu0 %v769, 20
  %v1711 = vpop.permute.xlu0 %1710
  %1712 = vrot.lane.b32.xlu0 %v772, 20
  %v1713 = vpop.permute.xlu0 %1712
  %1714 = vrot.lane.b32.xlu0 %v774, 20
  %v1715 = vpop.permute.xlu0 %1714
  %1716 = vrot.lane.b32.xlu0 %v777, 20
  %v1717 = vpop.permute.xlu0 %1716
  %1718 = vrot.lane.b32.xlu0 %v779, 20
  %v1719 = vpop.permute.xlu0 %1718
  %1720 = vrot.lane.b32.xlu0 %v782, 20
  %v1721 = vpop.permute.xlu0 %1720
  %1722 = vrot.lane.b32.xlu0 %v784, 20
  %v1723 = vpop.permute.xlu0 %1722
  %1724 = vrot.lane.b32.xlu0 %v787, 20
  %v1725 = vpop.permute.xlu0 %1724
  %1726 = vrot.lane.b32.xlu0 %v789, 20
  %v1727 = vpop.permute.xlu0 %1726
  %1728 = vrot.lane.b32.xlu0 %v792, 20
  %v1729 = vpop.permute.xlu0 %1728
  %1730 = vrot.lane.b32.xlu0 %v794, 20
  %v1731 = vpop.permute.xlu0 %1730
  %1732 = vrot.lane.b32.xlu0 %v1664, 20
  %v1733 = vpop.permute.xlu0 %1732
  %1734 = vrot.lane.b32.xlu0 %v1666, 20
  %v1735 = vpop.permute.xlu0 %1734
  %1736 = vrot.lane.b32.xlu0 %v802, 20
  %v1737 = vpop.permute.xlu0 %1736
  %1738 = vrot.lane.b32.xlu0 %v804, 20
  %v1739 = vpop.permute.xlu0 %1738
  %1740 = vrot.lane.b32.xlu0 %v807, 20
  %v1741 = vpop.permute.xlu0 %1740
  %1742 = vrot.lane.b32.xlu0 %v809, 20
  %v1743 = vpop.permute.xlu0 %1742
  %1744 = vrot.lane.b32.xlu0 %v812, 20
  %v1745 = vpop.permute.xlu0 %1744
  %1746 = vrot.lane.b32.xlu0 %v814, 20
  %v1747 = vpop.permute.xlu0 %1746
  %1748 = vrot.lane.b32.xlu0 %v817, 20
  %v1749 = vpop.permute.xlu0 %1748
  %1750 = vrot.lane.b32.xlu0 %v819, 20
  %v1751 = vpop.permute.xlu0 %1750
  %1752 = vrot.lane.b32.xlu0 %v822, 20
  %v1753 = vpop.permute.xlu0 %1752
  %1754 = vrot.lane.b32.xlu0 %v824, 20
  %v1755 = vpop.permute.xlu0 %1754
  %1756 = vrot.lane.b32.xlu0 %v827, 20
  %v1757 = vpop.permute.xlu0 %1756
  %1758 = vrot.lane.b32.xlu0 %v829, 20
  %v1759 = vpop.permute.xlu0 %1758
  %1760 = vrot.lane.b32.xlu0 %v832, 20
  %v1761 = vpop.permute.xlu0 %1760
  %1762 = vrot.lane.b32.xlu0 %v834, 20
  %v1763 = vpop.permute.xlu0 %1762
  %1764 = vrot.lane.b32.xlu0 %v837, 20
  %v1765 = vpop.permute.xlu0 %1764
  %1766 = vrot.lane.b32.xlu0 %v839, 20
  %v1767 = vpop.permute.xlu0 %1766
  %1768 = vrot.lane.b32.xlu0 %v842, 20
  %v1769 = vpop.permute.xlu0 %1768
  %1770 = vrot.lane.b32.xlu0 %v844, 20
  %v1771 = vpop.permute.xlu0 %1770
  %1772 = vrot.lane.b32.xlu0 %v847, 20
  %v1773 = vpop.permute.xlu0 %1772
  %1774 = vrot.lane.b32.xlu0 %v849, 20
  %v1775 = vpop.permute.xlu0 %1774
  %1776 = vrot.lane.b32.xlu0 %v852, 20
  %v1777 = vpop.permute.xlu0 %1776
  %1778 = vrot.lane.b32.xlu0 %v854, 20
  %v1779 = vpop.permute.xlu0 %1778
  %1780 = vrot.lane.b32.xlu0 %v857, 20
  %v1781 = vpop.permute.xlu0 %1780
  %1782 = vrot.lane.b32.xlu0 %v859, 20
  %v1783 = vpop.permute.xlu0 %1782
  %1784 = vrot.lane.b32.xlu0 %v862, 20
  %v1785 = vpop.permute.xlu0 %1784
  %1786 = vrot.lane.b32.xlu0 %v864, 20
  %v1787 = vpop.permute.xlu0 %1786
  %1788 = vrot.lane.b32.xlu0 %v867, 20
  %v1789 = vpop.permute.xlu0 %1788
  %1790 = vrot.lane.b32.xlu0 %v869, 20
  %v1791 = vpop.permute.xlu0 %1790
  %1792 = vrot.lane.b32.xlu0 %v872, 20
  %v1793 = vpop.permute.xlu0 %1792
  %1794 = vrot.lane.b32.xlu0 %v874, 20
  %v1795 = vpop.permute.xlu0 %1794
  %1796 = vrot.lane.b32.xlu0 %v1669, 20
  %v1797 = vpop.permute.xlu0 %1796
  %1798 = vrot.lane.b32.xlu0 %v1671, 20
  %v1799 = vpop.permute.xlu0 %1798
  %vm1864 = vcmask 195744
  %1865 = vst.msk [vmem:[#allocation2] sm:$0xff] %vm1864, %v1673
  %1866 = vst.msk [vmem:[#allocation2 + $0x8] sm:$0xff] %vm1864, %v1675
  %1867 = vst.msk [vmem:[#allocation2 + $0x10] sm:$0xff] %vm1864, %v1677
  %1868 = vst.msk [vmem:[#allocation2 + $0x18] sm:$0xff] %vm1864, %v1679
  %1869 = vst.msk [vmem:[#allocation2 + $0x20] sm:$0xff] %vm1864, %v1681
  %1870 = vst.msk [vmem:[#allocation2 + $0x28] sm:$0xff] %vm1864, %v1683
  %1871 = vst.msk [vmem:[#allocation2 + $0x30] sm:$0xff] %vm1864, %v1685
  %1872 = vst.msk [vmem:[#allocation2 + $0x38] sm:$0xff] %vm1864, %v1687
  %1873 = vst.msk [vmem:[#allocation2 + $0x40] sm:$0xff] %vm1864, %v1689
  %1874 = vst.msk [vmem:[#allocation2 + $0x48] sm:$0xff] %vm1864, %v1691
  %1875 = vst.msk [vmem:[#allocation2 + $0x50] sm:$0xff] %vm1864, %v1693
  %1876 = vst.msk [vmem:[#allocation2 + $0x58] sm:$0xff] %vm1864, %v1695
  %1877 = vst.msk [vmem:[#allocation2 + $0x60] sm:$0xff] %vm1864, %v1697
  %1878 = vst.msk [vmem:[#allocation2 + $0x68] sm:$0xff] %vm1864, %v1699
  %1879 = vst.msk [vmem:[#allocation2 + $0x70] sm:$0xff] %vm1864, %v1701
  %1880 = vst.msk [vmem:[#allocation2 + $0x78] sm:$0xff] %vm1864, %v1703
  %1881 = vst.msk [vmem:[#allocation2 + $0x80] sm:$0xff] %vm1864, %v1705
  %1882 = vst.msk [vmem:[#allocation2 + $0x88] sm:$0xff] %vm1864, %v1707
  %1883 = vst.msk [vmem:[#allocation2 + $0x90] sm:$0xff] %vm1864, %v1709
  %1884 = vst.msk [vmem:[#allocation2 + $0x98] sm:$0xff] %vm1864, %v1711
  %1885 = vst.msk [vmem:[#allocation2 + $0xa0] sm:$0xff] %vm1864, %v1713
  %1886 = vst.msk [vmem:[#allocation2 + $0xa8] sm:$0xff] %vm1864, %v1715
  %1887 = vst.msk [vmem:[#allocation2 + $0xb0] sm:$0xff] %vm1864, %v1717
  %1888 = vst.msk [vmem:[#allocation2 + $0xb8] sm:$0xff] %vm1864, %v1719
  %1889 = vst.msk [vmem:[#allocation2 + $0xc0] sm:$0xff] %vm1864, %v1721
  %1890 = vst.msk [vmem:[#allocation2 + $0xc8] sm:$0xff] %vm1864, %v1723
  %1891 = vst.msk [vmem:[#allocation2 + $0xd0] sm:$0xff] %vm1864, %v1725
  %1892 = vst.msk [vmem:[#allocation2 + $0xd8] sm:$0xff] %vm1864, %v1727
  %1893 = vst.msk [vmem:[#allocation2 + $0xe0] sm:$0xff] %vm1864, %v1729
  %1894 = vst.msk [vmem:[#allocation2 + $0xe8] sm:$0xff] %vm1864, %v1731
  %1895 = vst.msk [vmem:[#allocation2 + $0xf0] sm:$0xff] %vm1864, %v1733
  %1896 = vst.msk [vmem:[#allocation2 + $0xf8] sm:$0xff] %vm1864, %v1735
  %1897 = vst.msk [vmem:[#allocation2 + $0x100] sm:$0xff] %vm1864, %v1737
  %1898 = vst.msk [vmem:[#allocation2 + $0x108] sm:$0xff] %vm1864, %v1739
  %1899 = vst.msk [vmem:[#allocation2 + $0x110] sm:$0xff] %vm1864, %v1741
  %1900 = vst.msk [vmem:[#allocation2 + $0x118] sm:$0xff] %vm1864, %v1743
  %1901 = vst.msk [vmem:[#allocation2 + $0x120] sm:$0xff] %vm1864, %v1745
  %1902 = vst.msk [vmem:[#allocation2 + $0x128] sm:$0xff] %vm1864, %v1747
  %1903 = vst.msk [vmem:[#allocation2 + $0x130] sm:$0xff] %vm1864, %v1749
  %1904 = vst.msk [vmem:[#allocation2 + $0x138] sm:$0xff] %vm1864, %v1751
  %1905 = vst.msk [vmem:[#allocation2 + $0x140] sm:$0xff] %vm1864, %v1753
  %1906 = vst.msk [vmem:[#allocation2 + $0x148] sm:$0xff] %vm1864, %v1755
  %1907 = vst.msk [vmem:[#allocation2 + $0x150] sm:$0xff] %vm1864, %v1757
  %1908 = vst.msk [vmem:[#allocation2 + $0x158] sm:$0xff] %vm1864, %v1759
  %1909 = vst.msk [vmem:[#allocation2 + $0x160] sm:$0xff] %vm1864, %v1761
  %1910 = vst.msk [vmem:[#allocation2 + $0x168] sm:$0xff] %vm1864, %v1763
  %1911 = vst.msk [vmem:[#allocation2 + $0x170] sm:$0xff] %vm1864, %v1765
  %1912 = vst.msk [vmem:[#allocation2 + $0x178] sm:$0xff] %vm1864, %v1767
  %1913 = vst.msk [vmem:[#allocation2 + $0x180] sm:$0xff] %vm1864, %v1769
  %1914 = vst.msk [vmem:[#allocation2 + $0x188] sm:$0xff] %vm1864, %v1771
  %1915 = vst.msk [vmem:[#allocation2 + $0x190] sm:$0xff] %vm1864, %v1773
  %1916 = vst.msk [vmem:[#allocation2 + $0x198] sm:$0xff] %vm1864, %v1775
  %1917 = vst.msk [vmem:[#allocation2 + $0x1a0] sm:$0xff] %vm1864, %v1777
  %1918 = vst.msk [vmem:[#allocation2 + $0x1a8] sm:$0xff] %vm1864, %v1779
  %1919 = vst.msk [vmem:[#allocation2 + $0x1b0] sm:$0xff] %vm1864, %v1781
  %1920 = vst.msk [vmem:[#allocation2 + $0x1b8] sm:$0xff] %vm1864, %v1783
  %1921 = vst.msk [vmem:[#allocation2 + $0x1c0] sm:$0xff] %vm1864, %v1785
  %1922 = vst.msk [vmem:[#allocation2 + $0x1c8] sm:$0xff] %vm1864, %v1787
  %1923 = vst.msk [vmem:[#allocation2 + $0x1d0] sm:$0xff] %vm1864, %v1789
  %1924 = vst.msk [vmem:[#allocation2 + $0x1d8] sm:$0xff] %vm1864, %v1791
  %1925 = vst.msk [vmem:[#allocation2 + $0x1e0] sm:$0xff] %vm1864, %v1793
  %1926 = vst.msk [vmem:[#allocation2 + $0x1e8] sm:$0xff] %vm1864, %v1795
  %1927 = vst.msk [vmem:[#allocation2 + $0x1f0] sm:$0xff] %vm1864, %v1797
  %1928 = vst.msk [vmem:[#allocation2 + $0x1f8] sm:$0xff] %vm1864, %v1799
  %1933 = vrot.lane.b32.xlu0 %v33, 24
  %v1934 = vpop.permute.xlu0 %1933
  %1935 = vrot.lane.b32.xlu0 %v34, 24
  %v1936 = vpop.permute.xlu0 %1935
  %1937 = vrot.lane.b32.xlu0 %v36, 24
  %v1938 = vpop.permute.xlu0 %1937
  %1939 = vrot.lane.b32.xlu0 %v37, 24
  %v1940 = vpop.permute.xlu0 %1939
  %1941 = vrot.lane.b32.xlu0 %v39, 24
  %v1942 = vpop.permute.xlu0 %1941
  %1943 = vrot.lane.b32.xlu0 %v40, 24
  %v1944 = vpop.permute.xlu0 %1943
  %1945 = vrot.lane.b32.xlu0 %v42, 24
  %v1946 = vpop.permute.xlu0 %1945
  %1947 = vrot.lane.b32.xlu0 %v43, 24
  %v1948 = vpop.permute.xlu0 %1947
  %1949 = vrot.lane.b32.xlu0 %v45, 24
  %v1950 = vpop.permute.xlu0 %1949
  %1951 = vrot.lane.b32.xlu0 %v46, 24
  %v1952 = vpop.permute.xlu0 %1951
  %1953 = vrot.lane.b32.xlu0 %v48, 24
  %v1954 = vpop.permute.xlu0 %1953
  %1955 = vrot.lane.b32.xlu0 %v49, 24
  %v1956 = vpop.permute.xlu0 %1955
  %1957 = vrot.lane.b32.xlu0 %v51, 24
  %v1958 = vpop.permute.xlu0 %1957
  %1959 = vrot.lane.b32.xlu0 %v52, 24
  %v1960 = vpop.permute.xlu0 %1959
  %1961 = vrot.lane.b32.xlu0 %v54, 24
  %v1962 = vpop.permute.xlu0 %1961
  %1963 = vrot.lane.b32.xlu0 %v55, 24
  %v1964 = vpop.permute.xlu0 %1963
  %1965 = vrot.lane.b32.xlu0 %v57, 24
  %v1966 = vpop.permute.xlu0 %1965
  %1967 = vrot.lane.b32.xlu0 %v58, 24
  %v1968 = vpop.permute.xlu0 %1967
  %1969 = vrot.lane.b32.xlu0 %v60, 24
  %v1970 = vpop.permute.xlu0 %1969
  %1971 = vrot.lane.b32.xlu0 %v61, 24
  %v1972 = vpop.permute.xlu0 %1971
  %1973 = vrot.lane.b32.xlu0 %v63, 24
  %v1974 = vpop.permute.xlu0 %1973
  %1975 = vrot.lane.b32.xlu0 %v64, 24
  %v1976 = vpop.permute.xlu0 %1975
  %1977 = vrot.lane.b32.xlu0 %v66, 24
  %v1978 = vpop.permute.xlu0 %1977
  %1979 = vrot.lane.b32.xlu0 %v67, 24
  %v1980 = vpop.permute.xlu0 %1979
  %1981 = vrot.lane.b32.xlu0 %v69, 24
  %v1982 = vpop.permute.xlu0 %1981
  %1983 = vrot.lane.b32.xlu0 %v70, 24
  %v1984 = vpop.permute.xlu0 %1983
  %1985 = vrot.lane.b32.xlu0 %v72, 24
  %v1986 = vpop.permute.xlu0 %1985
  %1987 = vrot.lane.b32.xlu0 %v73, 24
  %v1988 = vpop.permute.xlu0 %1987
  %1989 = vrot.lane.b32.xlu0 %v75, 24
  %v1990 = vpop.permute.xlu0 %1989
  %1991 = vrot.lane.b32.xlu0 %v76, 24
  %v1992 = vpop.permute.xlu0 %1991
  %1993 = vrot.lane.b32.xlu0 %v78, 24
  %v1994 = vpop.permute.xlu0 %1993
  %1995 = vrot.lane.b32.xlu0 %v79, 24
  %v1996 = vpop.permute.xlu0 %1995
  %1997 = vrot.lane.b32.xlu0 %v87, 24
  %v1998 = vpop.permute.xlu0 %1997
  %1999 = vrot.lane.b32.xlu0 %v88, 24
  %v2000 = vpop.permute.xlu0 %1999
  %2001 = vrot.lane.b32.xlu0 %v90, 24
  %v2002 = vpop.permute.xlu0 %2001
  %2003 = vrot.lane.b32.xlu0 %v91, 24
  %v2004 = vpop.permute.xlu0 %2003
  %2005 = vrot.lane.b32.xlu0 %v93, 24
  %v2006 = vpop.permute.xlu0 %2005
  %2007 = vrot.lane.b32.xlu0 %v94, 24
  %v2008 = vpop.permute.xlu0 %2007
  %2009 = vrot.lane.b32.xlu0 %v96, 24
  %v2010 = vpop.permute.xlu0 %2009
  %2011 = vrot.lane.b32.xlu0 %v97, 24
  %v2012 = vpop.permute.xlu0 %2011
  %2013 = vrot.lane.b32.xlu0 %v99, 24
  %v2014 = vpop.permute.xlu0 %2013
  %2015 = vrot.lane.b32.xlu0 %v100, 24
  %v2016 = vpop.permute.xlu0 %2015
  %2017 = vrot.lane.b32.xlu0 %v102, 24
  %v2018 = vpop.permute.xlu0 %2017
  %2019 = vrot.lane.b32.xlu0 %v103, 24
  %v2020 = vpop.permute.xlu0 %2019
  %2021 = vrot.lane.b32.xlu0 %v105, 24
  %v2022 = vpop.permute.xlu0 %2021
  %2023 = vrot.lane.b32.xlu0 %v106, 24
  %v2024 = vpop.permute.xlu0 %2023
  %2025 = vrot.lane.b32.xlu0 %v108, 24
  %v2026 = vpop.permute.xlu0 %2025
  %2027 = vrot.lane.b32.xlu0 %v109, 24
  %v2028 = vpop.permute.xlu0 %2027
  %2029 = vrot.lane.b32.xlu0 %v111, 24
  %v2030 = vpop.permute.xlu0 %2029
  %2031 = vrot.lane.b32.xlu0 %v112, 24
  %v2032 = vpop.permute.xlu0 %2031
  %2033 = vrot.lane.b32.xlu0 %v114, 24
  %v2034 = vpop.permute.xlu0 %2033
  %2035 = vrot.lane.b32.xlu0 %v115, 24
  %v2036 = vpop.permute.xlu0 %2035
  %2037 = vrot.lane.b32.xlu0 %v117, 24
  %v2038 = vpop.permute.xlu0 %2037
  %2039 = vrot.lane.b32.xlu0 %v118, 24
  %v2040 = vpop.permute.xlu0 %2039
  %2041 = vrot.lane.b32.xlu0 %v120, 24
  %v2042 = vpop.permute.xlu0 %2041
  %2043 = vrot.lane.b32.xlu0 %v121, 24
  %v2044 = vpop.permute.xlu0 %2043
  %2045 = vrot.lane.b32.xlu0 %v123, 24
  %v2046 = vpop.permute.xlu0 %2045
  %2047 = vrot.lane.b32.xlu0 %v124, 24
  %v2048 = vpop.permute.xlu0 %2047
  %2049 = vrot.lane.b32.xlu0 %v126, 24
  %v2050 = vpop.permute.xlu0 %2049
  %2051 = vrot.lane.b32.xlu0 %v127, 24
  %v2052 = vpop.permute.xlu0 %2051
  %2053 = vrot.lane.b32.xlu0 %v129, 24
  %v2054 = vpop.permute.xlu0 %2053
  %2055 = vrot.lane.b32.xlu0 %v130, 24
  %v2056 = vpop.permute.xlu0 %2055
  %2057 = vrot.lane.b32.xlu0 %v132, 24
  %v2058 = vpop.permute.xlu0 %2057
  %2059 = vrot.lane.b32.xlu0 %v133, 24
  %v2060 = vpop.permute.xlu0 %2059
  %vm2125 = vcmask 228544
  %2126 = vst.msk [vmem:[#allocation2] sm:$0xff] %vm2125, %v1934
  %2127 = vst.msk [vmem:[#allocation2 + $0x8] sm:$0xff] %vm2125, %v1936
  %2128 = vst.msk [vmem:[#allocation2 + $0x10] sm:$0xff] %vm2125, %v1938
  %2129 = vst.msk [vmem:[#allocation2 + $0x18] sm:$0xff] %vm2125, %v1940
  %2130 = vst.msk [vmem:[#allocation2 + $0x20] sm:$0xff] %vm2125, %v1942
  %2131 = vst.msk [vmem:[#allocation2 + $0x28] sm:$0xff] %vm2125, %v1944
  %2132 = vst.msk [vmem:[#allocation2 + $0x30] sm:$0xff] %vm2125, %v1946
  %2133 = vst.msk [vmem:[#allocation2 + $0x38] sm:$0xff] %vm2125, %v1948
  %2134 = vst.msk [vmem:[#allocation2 + $0x40] sm:$0xff] %vm2125, %v1950
  %2135 = vst.msk [vmem:[#allocation2 + $0x48] sm:$0xff] %vm2125, %v1952
  %2136 = vst.msk [vmem:[#allocation2 + $0x50] sm:$0xff] %vm2125, %v1954
  %2137 = vst.msk [vmem:[#allocation2 + $0x58] sm:$0xff] %vm2125, %v1956
  %2138 = vst.msk [vmem:[#allocation2 + $0x60] sm:$0xff] %vm2125, %v1958
  %2139 = vst.msk [vmem:[#allocation2 + $0x68] sm:$0xff] %vm2125, %v1960
  %2140 = vst.msk [vmem:[#allocation2 + $0x70] sm:$0xff] %vm2125, %v1962
  %2141 = vst.msk [vmem:[#allocation2 + $0x78] sm:$0xff] %vm2125, %v1964
  %2142 = vst.msk [vmem:[#allocation2 + $0x80] sm:$0xff] %vm2125, %v1966
  %2143 = vst.msk [vmem:[#allocation2 + $0x88] sm:$0xff] %vm2125, %v1968
  %2144 = vst.msk [vmem:[#allocation2 + $0x90] sm:$0xff] %vm2125, %v1970
  %2145 = vst.msk [vmem:[#allocation2 + $0x98] sm:$0xff] %vm2125, %v1972
  %2146 = vst.msk [vmem:[#allocation2 + $0xa0] sm:$0xff] %vm2125, %v1974
  %2147 = vst.msk [vmem:[#allocation2 + $0xa8] sm:$0xff] %vm2125, %v1976
  %2148 = vst.msk [vmem:[#allocation2 + $0xb0] sm:$0xff] %vm2125, %v1978
  %2149 = vst.msk [vmem:[#allocation2 + $0xb8] sm:$0xff] %vm2125, %v1980
  %2150 = vst.msk [vmem:[#allocation2 + $0xc0] sm:$0xff] %vm2125, %v1982
  %2151 = vst.msk [vmem:[#allocation2 + $0xc8] sm:$0xff] %vm2125, %v1984
  %2152 = vst.msk [vmem:[#allocation2 + $0xd0] sm:$0xff] %vm2125, %v1986
  %2153 = vst.msk [vmem:[#allocation2 + $0xd8] sm:$0xff] %vm2125, %v1988
  %2154 = vst.msk [vmem:[#allocation2 + $0xe0] sm:$0xff] %vm2125, %v1990
  %2155 = vst.msk [vmem:[#allocation2 + $0xe8] sm:$0xff] %vm2125, %v1992
  %2156 = vst.msk [vmem:[#allocation2 + $0xf0] sm:$0xff] %vm2125, %v1994
  %2157 = vst.msk [vmem:[#allocation2 + $0xf8] sm:$0xff] %vm2125, %v1996
  %2158 = vst.msk [vmem:[#allocation2 + $0x100] sm:$0xff] %vm2125, %v1998
  %2159 = vst.msk [vmem:[#allocation2 + $0x108] sm:$0xff] %vm2125, %v2000
  %2160 = vst.msk [vmem:[#allocation2 + $0x110] sm:$0xff] %vm2125, %v2002
  %2161 = vst.msk [vmem:[#allocation2 + $0x118] sm:$0xff] %vm2125, %v2004
  %2162 = vst.msk [vmem:[#allocation2 + $0x120] sm:$0xff] %vm2125, %v2006
  %2163 = vst.msk [vmem:[#allocation2 + $0x128] sm:$0xff] %vm2125, %v2008
  %2164 = vst.msk [vmem:[#allocation2 + $0x130] sm:$0xff] %vm2125, %v2010
  %2165 = vst.msk [vmem:[#allocation2 + $0x138] sm:$0xff] %vm2125, %v2012
  %2166 = vst.msk [vmem:[#allocation2 + $0x140] sm:$0xff] %vm2125, %v2014
  %2167 = vst.msk [vmem:[#allocation2 + $0x148] sm:$0xff] %vm2125, %v2016
  %2168 = vst.msk [vmem:[#allocation2 + $0x150] sm:$0xff] %vm2125, %v2018
  %2169 = vst.msk [vmem:[#allocation2 + $0x158] sm:$0xff] %vm2125, %v2020
  %2170 = vst.msk [vmem:[#allocation2 + $0x160] sm:$0xff] %vm2125, %v2022
  %2171 = vst.msk [vmem:[#allocation2 + $0x168] sm:$0xff] %vm2125, %v2024
  %2172 = vst.msk [vmem:[#allocation2 + $0x170] sm:$0xff] %vm2125, %v2026
  %2173 = vst.msk [vmem:[#allocation2 + $0x178] sm:$0xff] %vm2125, %v2028
  %2174 = vst.msk [vmem:[#allocation2 + $0x180] sm:$0xff] %vm2125, %v2030
  %2175 = vst.msk [vmem:[#allocation2 + $0x188] sm:$0xff] %vm2125, %v2032
  %2176 = vst.msk [vmem:[#allocation2 + $0x190] sm:$0xff] %vm2125, %v2034
  %2177 = vst.msk [vmem:[#allocation2 + $0x198] sm:$0xff] %vm2125, %v2036
  %2178 = vst.msk [vmem:[#allocation2 + $0x1a0] sm:$0xff] %vm2125, %v2038
  %2179 = vst.msk [vmem:[#allocation2 + $0x1a8] sm:$0xff] %vm2125, %v2040
  %2180 = vst.msk [vmem:[#allocation2 + $0x1b0] sm:$0xff] %vm2125, %v2042
  %2181 = vst.msk [vmem:[#allocation2 + $0x1b8] sm:$0xff] %vm2125, %v2044
  %2182 = vst.msk [vmem:[#allocation2 + $0x1c0] sm:$0xff] %vm2125, %v2046
  %2183 = vst.msk [vmem:[#allocation2 + $0x1c8] sm:$0xff] %vm2125, %v2048
  %2184 = vst.msk [vmem:[#allocation2 + $0x1d0] sm:$0xff] %vm2125, %v2050
  %2185 = vst.msk [vmem:[#allocation2 + $0x1d8] sm:$0xff] %vm2125, %v2052
  %2186 = vst.msk [vmem:[#allocation2 + $0x1e0] sm:$0xff] %vm2125, %v2054
  %2187 = vst.msk [vmem:[#allocation2 + $0x1e8] sm:$0xff] %vm2125, %v2056
  %2188 = vst.msk [vmem:[#allocation2 + $0x1f0] sm:$0xff] %vm2125, %v2058
  %2189 = vst.msk [vmem:[#allocation2 + $0x1f8] sm:$0xff] %vm2125, %v2060
  %v2192 = vrot.slane %v78, 1
  %v2193 = vrot.slane %v79, 1
  %v2194 = vsel %vm296, %v2192, %v2193
  %v2195 = vrot.slane %v80, 1
  %v2196 = vsel %vm296, %v2193, %v2195
  %v2197 = vrot.slane %v132, 1
  %v2198 = vrot.slane %v133, 1
  %v2199 = vsel %vm296, %v2197, %v2198
  %v2200 = vrot.slane %v134, 1
  %v2201 = vsel %vm296, %v2198, %v2200
  %2202 = vrot.lane.b32.xlu0 %v309, 28
  %v2203 = vpop.permute.xlu0 %2202
  %2204 = vrot.lane.b32.xlu0 %v311, 28
  %v2205 = vpop.permute.xlu0 %2204
  %2206 = vrot.lane.b32.xlu0 %v314, 28
  %v2207 = vpop.permute.xlu0 %2206
  %2208 = vrot.lane.b32.xlu0 %v316, 28
  %v2209 = vpop.permute.xlu0 %2208
  %2210 = vrot.lane.b32.xlu0 %v319, 28
  %v2211 = vpop.permute.xlu0 %2210
  %2212 = vrot.lane.b32.xlu0 %v321, 28
  %v2213 = vpop.permute.xlu0 %2212
  %2214 = vrot.lane.b32.xlu0 %v324, 28
  %v2215 = vpop.permute.xlu0 %2214
  %2216 = vrot.lane.b32.xlu0 %v326, 28
  %v2217 = vpop.permute.xlu0 %2216
  %2218 = vrot.lane.b32.xlu0 %v329, 28
  %v2219 = vpop.permute.xlu0 %2218
  %2220 = vrot.lane.b32.xlu0 %v331, 28
  %v2221 = vpop.permute.xlu0 %2220
  %2222 = vrot.lane.b32.xlu0 %v334, 28
  %v2223 = vpop.permute.xlu0 %2222
  %2224 = vrot.lane.b32.xlu0 %v336, 28
  %v2225 = vpop.permute.xlu0 %2224
  %2226 = vrot.lane.b32.xlu0 %v339, 28
  %v2227 = vpop.permute.xlu0 %2226
  %2228 = vrot.lane.b32.xlu0 %v341, 28
  %v2229 = vpop.permute.xlu0 %2228
  %2230 = vrot.lane.b32.xlu0 %v344, 28
  %v2231 = vpop.permute.xlu0 %2230
  %2232 = vrot.lane.b32.xlu0 %v346, 28
  %v2233 = vpop.permute.xlu0 %2232
  %2234 = vrot.lane.b32.xlu0 %v349, 28
  %v2235 = vpop.permute.xlu0 %2234
  %2236 = vrot.lane.b32.xlu0 %v351, 28
  %v2237 = vpop.permute.xlu0 %2236
  %2238 = vrot.lane.b32.xlu0 %v354, 28
  %v2239 = vpop.permute.xlu0 %2238
  %2240 = vrot.lane.b32.xlu0 %v356, 28
  %v2241 = vpop.permute.xlu0 %2240
  %2242 = vrot.lane.b32.xlu0 %v359, 28
  %v2243 = vpop.permute.xlu0 %2242
  %2244 = vrot.lane.b32.xlu0 %v361, 28
  %v2245 = vpop.permute.xlu0 %2244
  %2246 = vrot.lane.b32.xlu0 %v364, 28
  %v2247 = vpop.permute.xlu0 %2246
  %2248 = vrot.lane.b32.xlu0 %v366, 28
  %v2249 = vpop.permute.xlu0 %2248
  %2250 = vrot.lane.b32.xlu0 %v369, 28
  %v2251 = vpop.permute.xlu0 %2250
  %2252 = vrot.lane.b32.xlu0 %v371, 28
  %v2253 = vpop.permute.xlu0 %2252
  %2254 = vrot.lane.b32.xlu0 %v374, 28
  %v2255 = vpop.permute.xlu0 %2254
  %2256 = vrot.lane.b32.xlu0 %v376, 28
  %v2257 = vpop.permute.xlu0 %2256
  %2258 = vrot.lane.b32.xlu0 %v1397, 28
  %v2259 = vpop.permute.xlu0 %2258
  %2260 = vrot.lane.b32.xlu0 %v1399, 28
  %v2261 = vpop.permute.xlu0 %2260
  %2262 = vrot.lane.b32.xlu0 %v2194, 28
  %v2263 = vpop.permute.xlu0 %2262
  %2264 = vrot.lane.b32.xlu0 %v2196, 28
  %v2265 = vpop.permute.xlu0 %2264
  %2266 = vrot.lane.b32.xlu0 %v389, 28
  %v2267 = vpop.permute.xlu0 %2266
  %2268 = vrot.lane.b32.xlu0 %v391, 28
  %v2269 = vpop.permute.xlu0 %2268
  %2270 = vrot.lane.b32.xlu0 %v394, 28
  %v2271 = vpop.permute.xlu0 %2270
  %2272 = vrot.lane.b32.xlu0 %v396, 28
  %v2273 = vpop.permute.xlu0 %2272
  %2274 = vrot.lane.b32.xlu0 %v399, 28
  %v2275 = vpop.permute.xlu0 %2274
  %2276 = vrot.lane.b32.xlu0 %v401, 28
  %v2277 = vpop.permute.xlu0 %2276
  %2278 = vrot.lane.b32.xlu0 %v404, 28
  %v2279 = vpop.permute.xlu0 %2278
  %2280 = vrot.lane.b32.xlu0 %v406, 28
  %v2281 = vpop.permute.xlu0 %2280
  %2282 = vrot.lane.b32.xlu0 %v409, 28
  %v2283 = vpop.permute.xlu0 %2282
  %2284 = vrot.lane.b32.xlu0 %v411, 28
  %v2285 = vpop.permute.xlu0 %2284
  %2286 = vrot.lane.b32.xlu0 %v414, 28
  %v2287 = vpop.permute.xlu0 %2286
  %2288 = vrot.lane.b32.xlu0 %v416, 28
  %v2289 = vpop.permute.xlu0 %2288
  %2290 = vrot.lane.b32.xlu0 %v419, 28
  %v2291 = vpop.permute.xlu0 %2290
  %2292 = vrot.lane.b32.xlu0 %v421, 28
  %v2293 = vpop.permute.xlu0 %2292
  %2294 = vrot.lane.b32.xlu0 %v424, 28
  %v2295 = vpop.permute.xlu0 %2294
  %2296 = vrot.lane.b32.xlu0 %v426, 28
  %v2297 = vpop.permute.xlu0 %2296
  %2298 = vrot.lane.b32.xlu0 %v429, 28
  %v2299 = vpop.permute.xlu0 %2298
  %2300 = vrot.lane.b32.xlu0 %v431, 28
  %v2301 = vpop.permute.xlu0 %2300
  %2302 = vrot.lane.b32.xlu0 %v434, 28
  %v2303 = vpop.permute.xlu0 %2302
  %2304 = vrot.lane.b32.xlu0 %v436, 28
  %v2305 = vpop.permute.xlu0 %2304
  %2306 = vrot.lane.b32.xlu0 %v439, 28
  %v2307 = vpop.permute.xlu0 %2306
  %2308 = vrot.lane.b32.xlu0 %v441, 28
  %v2309 = vpop.permute.xlu0 %2308
  %2310 = vrot.lane.b32.xlu0 %v444, 28
  %v2311 = vpop.permute.xlu0 %2310
  %2312 = vrot.lane.b32.xlu0 %v446, 28
  %v2313 = vpop.permute.xlu0 %2312
  %2314 = vrot.lane.b32.xlu0 %v449, 28
  %v2315 = vpop.permute.xlu0 %2314
  %2316 = vrot.lane.b32.xlu0 %v451, 28
  %v2317 = vpop.permute.xlu0 %2316
  %2318 = vrot.lane.b32.xlu0 %v454, 28
  %v2319 = vpop.permute.xlu0 %2318
  %2320 = vrot.lane.b32.xlu0 %v456, 28
  %v2321 = vpop.permute.xlu0 %2320
  %2322 = vrot.lane.b32.xlu0 %v1402, 28
  %v2323 = vpop.permute.xlu0 %2322
  %2324 = vrot.lane.b32.xlu0 %v1404, 28
  %v2325 = vpop.permute.xlu0 %2324
  %2326 = vrot.lane.b32.xlu0 %v2199, 28
  %v2327 = vpop.permute.xlu0 %2326
  %2328 = vrot.lane.b32.xlu0 %v2201, 28
  %v2329 = vpop.permute.xlu0 %2328
  %vm2394 = vcmask 261344
  %2395 = vst.msk [vmem:[#allocation2] sm:$0xff] %vm2394, %v2203
  %2396 = vst.msk [vmem:[#allocation2 + $0x8] sm:$0xff] %vm2394, %v2205
  %2397 = vst.msk [vmem:[#allocation2 + $0x10] sm:$0xff] %vm2394, %v2207
  %2398 = vst.msk [vmem:[#allocation2 + $0x18] sm:$0xff] %vm2394, %v2209
  %2399 = vst.msk [vmem:[#allocation2 + $0x20] sm:$0xff] %vm2394, %v2211
  %2400 = vst.msk [vmem:[#allocation2 + $0x28] sm:$0xff] %vm2394, %v2213
  %2401 = vst.msk [vmem:[#allocation2 + $0x30] sm:$0xff] %vm2394, %v2215
  %2402 = vst.msk [vmem:[#allocation2 + $0x38] sm:$0xff] %vm2394, %v2217
  %2403 = vst.msk [vmem:[#allocation2 + $0x40] sm:$0xff] %vm2394, %v2219
  %2404 = vst.msk [vmem:[#allocation2 + $0x48] sm:$0xff] %vm2394, %v2221
  %2405 = vst.msk [vmem:[#allocation2 + $0x50] sm:$0xff] %vm2394, %v2223
  %2406 = vst.msk [vmem:[#allocation2 + $0x58] sm:$0xff] %vm2394, %v2225
  %2407 = vst.msk [vmem:[#allocation2 + $0x60] sm:$0xff] %vm2394, %v2227
  %2408 = vst.msk [vmem:[#allocation2 + $0x68] sm:$0xff] %vm2394, %v2229
  %2409 = vst.msk [vmem:[#allocation2 + $0x70] sm:$0xff] %vm2394, %v2231
  %2410 = vst.msk [vmem:[#allocation2 + $0x78] sm:$0xff] %vm2394, %v2233
  %2411 = vst.msk [vmem:[#allocation2 + $0x80] sm:$0xff] %vm2394, %v2235
  %2412 = vst.msk [vmem:[#allocation2 + $0x88] sm:$0xff] %vm2394, %v2237
  %2413 = vst.msk [vmem:[#allocation2 + $0x90] sm:$0xff] %vm2394, %v2239
  %2414 = vst.msk [vmem:[#allocation2 + $0x98] sm:$0xff] %vm2394, %v2241
  %2415 = vst.msk [vmem:[#allocation2 + $0xa0] sm:$0xff] %vm2394, %v2243
  %2416 = vst.msk [vmem:[#allocation2 + $0xa8] sm:$0xff] %vm2394, %v2245
  %2417 = vst.msk [vmem:[#allocation2 + $0xb0] sm:$0xff] %vm2394, %v2247
  %2418 = vst.msk [vmem:[#allocation2 + $0xb8] sm:$0xff] %vm2394, %v2249
  %2419 = vst.msk [vmem:[#allocation2 + $0xc0] sm:$0xff] %vm2394, %v2251
  %2420 = vst.msk [vmem:[#allocation2 + $0xc8] sm:$0xff] %vm2394, %v2253
  %2421 = vst.msk [vmem:[#allocation2 + $0xd0] sm:$0xff] %vm2394, %v2255
  %2422 = vst.msk [vmem:[#allocation2 + $0xd8] sm:$0xff] %vm2394, %v2257
  %2423 = vst.msk [vmem:[#allocation2 + $0xe0] sm:$0xff] %vm2394, %v2259
  %2424 = vst.msk [vmem:[#allocation2 + $0xe8] sm:$0xff] %vm2394, %v2261
  %2425 = vst.msk [vmem:[#allocation2 + $0xf0] sm:$0xff] %vm2394, %v2263
  %2426 = vst.msk [vmem:[#allocation2 + $0xf8] sm:$0xff] %vm2394, %v2265
  %2427 = vst.msk [vmem:[#allocation2 + $0x100] sm:$0xff] %vm2394, %v2267
  %2428 = vst.msk [vmem:[#allocation2 + $0x108] sm:$0xff] %vm2394, %v2269
  %2429 = vst.msk [vmem:[#allocation2 + $0x110] sm:$0xff] %vm2394, %v2271
  %2430 = vst.msk [vmem:[#allocation2 + $0x118] sm:$0xff] %vm2394, %v2273
  %2431 = vst.msk [vmem:[#allocation2 + $0x120] sm:$0xff] %vm2394, %v2275
  %2432 = vst.msk [vmem:[#allocation2 + $0x128] sm:$0xff] %vm2394, %v2277
  %2433 = vst.msk [vmem:[#allocation2 + $0x130] sm:$0xff] %vm2394, %v2279
  %2434 = vst.msk [vmem:[#allocation2 + $0x138] sm:$0xff] %vm2394, %v2281
  %2435 = vst.msk [vmem:[#allocation2 + $0x140] sm:$0xff] %vm2394, %v2283
  %2436 = vst.msk [vmem:[#allocation2 + $0x148] sm:$0xff] %vm2394, %v2285
  %2437 = vst.msk [vmem:[#allocation2 + $0x150] sm:$0xff] %vm2394, %v2287
  %2438 = vst.msk [vmem:[#allocation2 + $0x158] sm:$0xff] %vm2394, %v2289
  %2439 = vst.msk [vmem:[#allocation2 + $0x160] sm:$0xff] %vm2394, %v2291
  %2440 = vst.msk [vmem:[#allocation2 + $0x168] sm:$0xff] %vm2394, %v2293
  %2441 = vst.msk [vmem:[#allocation2 + $0x170] sm:$0xff] %vm2394, %v2295
  %2442 = vst.msk [vmem:[#allocation2 + $0x178] sm:$0xff] %vm2394, %v2297
  %2443 = vst.msk [vmem:[#allocation2 + $0x180] sm:$0xff] %vm2394, %v2299
  %2444 = vst.msk [vmem:[#allocation2 + $0x188] sm:$0xff] %vm2394, %v2301
  %2445 = vst.msk [vmem:[#allocation2 + $0x190] sm:$0xff] %vm2394, %v2303
  %2446 = vst.msk [vmem:[#allocation2 + $0x198] sm:$0xff] %vm2394, %v2305
  %2447 = vst.msk [vmem:[#allocation2 + $0x1a0] sm:$0xff] %vm2394, %v2307
  %2448 = vst.msk [vmem:[#allocation2 + $0x1a8] sm:$0xff] %vm2394, %v2309
  %2449 = vst.msk [vmem:[#allocation2 + $0x1b0] sm:$0xff] %vm2394, %v2311
  %2450 = vst.msk [vmem:[#allocation2 + $0x1b8] sm:$0xff] %vm2394, %v2313
  %2451 = vst.msk [vmem:[#allocation2 + $0x1c0] sm:$0xff] %vm2394, %v2315
  %2452 = vst.msk [vmem:[#allocation2 + $0x1c8] sm:$0xff] %vm2394, %v2317
  %2453 = vst.msk [vmem:[#allocation2 + $0x1d0] sm:$0xff] %vm2394, %v2319
  %2454 = vst.msk [vmem:[#allocation2 + $0x1d8] sm:$0xff] %vm2394, %v2321
  %2455 = vst.msk [vmem:[#allocation2 + $0x1e0] sm:$0xff] %vm2394, %v2323
  %2456 = vst.msk [vmem:[#allocation2 + $0x1e8] sm:$0xff] %vm2394, %v2325
  %2457 = vst.msk [vmem:[#allocation2 + $0x1f0] sm:$0xff] %vm2394, %v2327
  %2458 = vst.msk [vmem:[#allocation2 + $0x1f8] sm:$0xff] %vm2394, %v2329
  %v2459 = vrot.slane %v78, 2
  %v2460 = vrot.slane %v79, 2
  %v2461 = vsel %vm714, %v2459, %v2460
  %v2462 = vrot.slane %v80, 2
  %v2463 = vsel %vm714, %v2460, %v2462
  %v2464 = vrot.slane %v132, 2
  %v2465 = vrot.slane %v133, 2
  %v2466 = vsel %vm714, %v2464, %v2465
  %v2467 = vrot.slane %v134, 2
  %v2468 = vsel %vm714, %v2465, %v2467
  %2469 = vrot.lane.b32.xlu0 %v727, 32
  %v2470 = vpop.permute.xlu0 %2469
  %2471 = vrot.lane.b32.xlu0 %v729, 32
  %v2472 = vpop.permute.xlu0 %2471
  %2473 = vrot.lane.b32.xlu0 %v732, 32
  %v2474 = vpop.permute.xlu0 %2473
  %2475 = vrot.lane.b32.xlu0 %v734, 32
  %v2476 = vpop.permute.xlu0 %2475
  %2477 = vrot.lane.b32.xlu0 %v737, 32
  %v2478 = vpop.permute.xlu0 %2477
  %2479 = vrot.lane.b32.xlu0 %v739, 32
  %v2480 = vpop.permute.xlu0 %2479
  %2481 = vrot.lane.b32.xlu0 %v742, 32
  %v2482 = vpop.permute.xlu0 %2481
  %2483 = vrot.lane.b32.xlu0 %v744, 32
  %v2484 = vpop.permute.xlu0 %2483
  %2485 = vrot.lane.b32.xlu0 %v747, 32
  %v2486 = vpop.permute.xlu0 %2485
  %2487 = vrot.lane.b32.xlu0 %v749, 32
  %v2488 = vpop.permute.xlu0 %2487
  %2489 = vrot.lane.b32.xlu0 %v752, 32
  %v2490 = vpop.permute.xlu0 %2489
  %2491 = vrot.lane.b32.xlu0 %v754, 32
  %v2492 = vpop.permute.xlu0 %2491
  %2493 = vrot.lane.b32.xlu0 %v757, 32
  %v2494 = vpop.permute.xlu0 %2493
  %2495 = vrot.lane.b32.xlu0 %v759, 32
  %v2496 = vpop.permute.xlu0 %2495
  %2497 = vrot.lane.b32.xlu0 %v762, 32
  %v2498 = vpop.permute.xlu0 %2497
  %2499 = vrot.lane.b32.xlu0 %v764, 32
  %v2500 = vpop.permute.xlu0 %2499
  %2501 = vrot.lane.b32.xlu0 %v767, 32
  %v2502 = vpop.permute.xlu0 %2501
  %2503 = vrot.lane.b32.xlu0 %v769, 32
  %v2504 = vpop.permute.xlu0 %2503
  %2505 = vrot.lane.b32.xlu0 %v772, 32
  %v2506 = vpop.permute.xlu0 %2505
  %2507 = vrot.lane.b32.xlu0 %v774, 32
  %v2508 = vpop.permute.xlu0 %2507
  %2509 = vrot.lane.b32.xlu0 %v777, 32
  %v2510 = vpop.permute.xlu0 %2509
  %2511 = vrot.lane.b32.xlu0 %v779, 32
  %v2512 = vpop.permute.xlu0 %2511
  %2513 = vrot.lane.b32.xlu0 %v782, 32
  %v2514 = vpop.permute.xlu0 %2513
  %2515 = vrot.lane.b32.xlu0 %v784, 32
  %v2516 = vpop.permute.xlu0 %2515
  %2517 = vrot.lane.b32.xlu0 %v787, 32
  %v2518 = vpop.permute.xlu0 %2517
  %2519 = vrot.lane.b32.xlu0 %v789, 32
  %v2520 = vpop.permute.xlu0 %2519
  %2521 = vrot.lane.b32.xlu0 %v792, 32
  %v2522 = vpop.permute.xlu0 %2521
  %2523 = vrot.lane.b32.xlu0 %v794, 32
  %v2524 = vpop.permute.xlu0 %2523
  %2525 = vrot.lane.b32.xlu0 %v1664, 32
  %v2526 = vpop.permute.xlu0 %2525
  %2527 = vrot.lane.b32.xlu0 %v1666, 32
  %v2528 = vpop.permute.xlu0 %2527
  %2529 = vrot.lane.b32.xlu0 %v2461, 32
  %v2530 = vpop.permute.xlu0 %2529
  %2531 = vrot.lane.b32.xlu0 %v2463, 32
  %v2532 = vpop.permute.xlu0 %2531
  %2533 = vrot.lane.b32.xlu0 %v807, 32
  %v2534 = vpop.permute.xlu0 %2533
  %2535 = vrot.lane.b32.xlu0 %v809, 32
  %v2536 = vpop.permute.xlu0 %2535
  %2537 = vrot.lane.b32.xlu0 %v812, 32
  %v2538 = vpop.permute.xlu0 %2537
  %2539 = vrot.lane.b32.xlu0 %v814, 32
  %v2540 = vpop.permute.xlu0 %2539
  %2541 = vrot.lane.b32.xlu0 %v817, 32
  %v2542 = vpop.permute.xlu0 %2541
  %2543 = vrot.lane.b32.xlu0 %v819, 32
  %v2544 = vpop.permute.xlu0 %2543
  %2545 = vrot.lane.b32.xlu0 %v822, 32
  %v2546 = vpop.permute.xlu0 %2545
  %2547 = vrot.lane.b32.xlu0 %v824, 32
  %v2548 = vpop.permute.xlu0 %2547
  %2549 = vrot.lane.b32.xlu0 %v827, 32
  %v2550 = vpop.permute.xlu0 %2549
  %2551 = vrot.lane.b32.xlu0 %v829, 32
  %v2552 = vpop.permute.xlu0 %2551
  %2553 = vrot.lane.b32.xlu0 %v832, 32
  %v2554 = vpop.permute.xlu0 %2553
  %2555 = vrot.lane.b32.xlu0 %v834, 32
  %v2556 = vpop.permute.xlu0 %2555
  %2557 = vrot.lane.b32.xlu0 %v837, 32
  %v2558 = vpop.permute.xlu0 %2557
  %2559 = vrot.lane.b32.xlu0 %v839, 32
  %v2560 = vpop.permute.xlu0 %2559
  %2561 = vrot.lane.b32.xlu0 %v842, 32
  %v2562 = vpop.permute.xlu0 %2561
  %2563 = vrot.lane.b32.xlu0 %v844, 32
  %v2564 = vpop.permute.xlu0 %2563
  %2565 = vrot.lane.b32.xlu0 %v847, 32
  %v2566 = vpop.permute.xlu0 %2565
  %2567 = vrot.lane.b32.xlu0 %v849, 32
  %v2568 = vpop.permute.xlu0 %2567
  %2569 = vrot.lane.b32.xlu0 %v852, 32
  %v2570 = vpop.permute.xlu0 %2569
  %2571 = vrot.lane.b32.xlu0 %v854, 32
  %v2572 = vpop.permute.xlu0 %2571
  %2573 = vrot.lane.b32.xlu0 %v857, 32
  %v2574 = vpop.permute.xlu0 %2573
  %2575 = vrot.lane.b32.xlu0 %v859, 32
  %v2576 = vpop.permute.xlu0 %2575
  %2577 = vrot.lane.b32.xlu0 %v862, 32
  %v2578 = vpop.permute.xlu0 %2577
  %2579 = vrot.lane.b32.xlu0 %v864, 32
  %v2580 = vpop.permute.xlu0 %2579
  %2581 = vrot.lane.b32.xlu0 %v867, 32
  %v2582 = vpop.permute.xlu0 %2581
  %2583 = vrot.lane.b32.xlu0 %v869, 32
  %v2584 = vpop.permute.xlu0 %2583
  %2585 = vrot.lane.b32.xlu0 %v872, 32
  %v2586 = vpop.permute.xlu0 %2585
  %2587 = vrot.lane.b32.xlu0 %v874, 32
  %v2588 = vpop.permute.xlu0 %2587
  %2589 = vrot.lane.b32.xlu0 %v1669, 32
  %v2590 = vpop.permute.xlu0 %2589
  %2591 = vrot.lane.b32.xlu0 %v1671, 32
  %v2592 = vpop.permute.xlu0 %2591
  %2593 = vrot.lane.b32.xlu0 %v2466, 32
  %v2594 = vpop.permute.xlu0 %2593
  %2595 = vrot.lane.b32.xlu0 %v2468, 32
  %v2596 = vpop.permute.xlu0 %2595
  %vm2661 = vcmask 294144
  %2662 = vst.msk [vmem:[#allocation2] sm:$0xff] %vm2661, %v2470
  %2663 = vst.msk [vmem:[#allocation2 + $0x8] sm:$0xff] %vm2661, %v2472
  %2664 = vst.msk [vmem:[#allocation2 + $0x10] sm:$0xff] %vm2661, %v2474
  %2665 = vst.msk [vmem:[#allocation2 + $0x18] sm:$0xff] %vm2661, %v2476
  %2666 = vst.msk [vmem:[#allocation2 + $0x20] sm:$0xff] %vm2661, %v2478
  %2667 = vst.msk [vmem:[#allocation2 + $0x28] sm:$0xff] %vm2661, %v2480
  %2668 = vst.msk [vmem:[#allocation2 + $0x30] sm:$0xff] %vm2661, %v2482
  %2669 = vst.msk [vmem:[#allocation2 + $0x38] sm:$0xff] %vm2661, %v2484
  %2670 = vst.msk [vmem:[#allocation2 + $0x40] sm:$0xff] %vm2661, %v2486
  %2671 = vst.msk [vmem:[#allocation2 + $0x48] sm:$0xff] %vm2661, %v2488
  %2672 = vst.msk [vmem:[#allocation2 + $0x50] sm:$0xff] %vm2661, %v2490
  %2673 = vst.msk [vmem:[#allocation2 + $0x58] sm:$0xff] %vm2661, %v2492
  %2674 = vst.msk [vmem:[#allocation2 + $0x60] sm:$0xff] %vm2661, %v2494
  %2675 = vst.msk [vmem:[#allocation2 + $0x68] sm:$0xff] %vm2661, %v2496
  %2676 = vst.msk [vmem:[#allocation2 + $0x70] sm:$0xff] %vm2661, %v2498
  %2677 = vst.msk [vmem:[#allocation2 + $0x78] sm:$0xff] %vm2661, %v2500
  %2678 = vst.msk [vmem:[#allocation2 + $0x80] sm:$0xff] %vm2661, %v2502
  %2679 = vst.msk [vmem:[#allocation2 + $0x88] sm:$0xff] %vm2661, %v2504
  %2680 = vst.msk [vmem:[#allocation2 + $0x90] sm:$0xff] %vm2661, %v2506
  %2681 = vst.msk [vmem:[#allocation2 + $0x98] sm:$0xff] %vm2661, %v2508
  %2682 = vst.msk [vmem:[#allocation2 + $0xa0] sm:$0xff] %vm2661, %v2510
  %2683 = vst.msk [vmem:[#allocation2 + $0xa8] sm:$0xff] %vm2661, %v2512
  %2684 = vst.msk [vmem:[#allocation2 + $0xb0] sm:$0xff] %vm2661, %v2514
  %2685 = vst.msk [vmem:[#allocation2 + $0xb8] sm:$0xff] %vm2661, %v2516
  %2686 = vst.msk [vmem:[#allocation2 + $0xc0] sm:$0xff] %vm2661, %v2518
  %2687 = vst.msk [vmem:[#allocation2 + $0xc8] sm:$0xff] %vm2661, %v2520
  %2688 = vst.msk [vmem:[#allocation2 + $0xd0] sm:$0xff] %vm2661, %v2522
  %2689 = vst.msk [vmem:[#allocation2 + $0xd8] sm:$0xff] %vm2661, %v2524
  %2690 = vst.msk [vmem:[#allocation2 + $0xe0] sm:$0xff] %vm2661, %v2526
  %2691 = vst.msk [vmem:[#allocation2 + $0xe8] sm:$0xff] %vm2661, %v2528
  %2692 = vst.msk [vmem:[#allocation2 + $0xf0] sm:$0xff] %vm2661, %v2530
  %2693 = vst.msk [vmem:[#allocation2 + $0xf8] sm:$0xff] %vm2661, %v2532
  %2694 = vst.msk [vmem:[#allocation2 + $0x100] sm:$0xff] %vm2661, %v2534
  %2695 = vst.msk [vmem:[#allocation2 + $0x108] sm:$0xff] %vm2661, %v2536
  %2696 = vst.msk [vmem:[#allocation2 + $0x110] sm:$0xff] %vm2661, %v2538
  %2697 = vst.msk [vmem:[#allocation2 + $0x118] sm:$0xff] %vm2661, %v2540
  %2698 = vst.msk [vmem:[#allocation2 + $0x120] sm:$0xff] %vm2661, %v2542
  %2699 = vst.msk [vmem:[#allocation2 + $0x128] sm:$0xff] %vm2661, %v2544
  %2700 = vst.msk [vmem:[#allocation2 + $0x130] sm:$0xff] %vm2661, %v2546
  %2701 = vst.msk [vmem:[#allocation2 + $0x138] sm:$0xff] %vm2661, %v2548
  %2702 = vst.msk [vmem:[#allocation2 + $0x140] sm:$0xff] %vm2661, %v2550
  %2703 = vst.msk [vmem:[#allocation2 + $0x148] sm:$0xff] %vm2661, %v2552
  %2704 = vst.msk [vmem:[#allocation2 + $0x150] sm:$0xff] %vm2661, %v2554
  %2705 = vst.msk [vmem:[#allocation2 + $0x158] sm:$0xff] %vm2661, %v2556
  %2706 = vst.msk [vmem:[#allocation2 + $0x160] sm:$0xff] %vm2661, %v2558
  %2707 = vst.msk [vmem:[#allocation2 + $0x168] sm:$0xff] %vm2661, %v2560
  %2708 = vst.msk [vmem:[#allocation2 + $0x170] sm:$0xff] %vm2661, %v2562
  %2709 = vst.msk [vmem:[#allocation2 + $0x178] sm:$0xff] %vm2661, %v2564
  %2710 = vst.msk [vmem:[#allocation2 + $0x180] sm:$0xff] %vm2661, %v2566
  %2711 = vst.msk [vmem:[#allocation2 + $0x188] sm:$0xff] %vm2661, %v2568
  %2712 = vst.msk [vmem:[#allocation2 + $0x190] sm:$0xff] %vm2661, %v2570
  %2713 = vst.msk [vmem:[#allocation2 + $0x198] sm:$0xff] %vm2661, %v2572
  %2714 = vst.msk [vmem:[#allocation2 + $0x1a0] sm:$0xff] %vm2661, %v2574
  %2715 = vst.msk [vmem:[#allocation2 + $0x1a8] sm:$0xff] %vm2661, %v2576
  %2716 = vst.msk [vmem:[#allocation2 + $0x1b0] sm:$0xff] %vm2661, %v2578
  %2717 = vst.msk [vmem:[#allocation2 + $0x1b8] sm:$0xff] %vm2661, %v2580
  %2718 = vst.msk [vmem:[#allocation2 + $0x1c0] sm:$0xff] %vm2661, %v2582
  %2719 = vst.msk [vmem:[#allocation2 + $0x1c8] sm:$0xff] %vm2661, %v2584
  %2720 = vst.msk [vmem:[#allocation2 + $0x1d0] sm:$0xff] %vm2661, %v2586
  %2721 = vst.msk [vmem:[#allocation2 + $0x1d8] sm:$0xff] %vm2661, %v2588
  %2722 = vst.msk [vmem:[#allocation2 + $0x1e0] sm:$0xff] %vm2661, %v2590
  %2723 = vst.msk [vmem:[#allocation2 + $0x1e8] sm:$0xff] %vm2661, %v2592
  %2724 = vst.msk [vmem:[#allocation2 + $0x1f0] sm:$0xff] %vm2661, %v2594
  %2725 = vst.msk [vmem:[#allocation2 + $0x1f8] sm:$0xff] %vm2661, %v2596
  %v2726 = vld [vmem:[#allocation2] sm:$0xff]
  %v2727 = vld [vmem:[#allocation2 + $0x8] sm:$0xff]
  %v2728 = vld [vmem:[#allocation2 + $0x10] sm:$0xff]
  %v2729 = vld [vmem:[#allocation2 + $0x18] sm:$0xff]
  %v2730 = vld [vmem:[#allocation2 + $0x20] sm:$0xff]
  %v2731 = vld [vmem:[#allocation2 + $0x28] sm:$0xff]
  %v2732 = vld [vmem:[#allocation2 + $0x30] sm:$0xff]
  %v2733 = vld [vmem:[#allocation2 + $0x38] sm:$0xff]
  %v2734 = vld [vmem:[#allocation2 + $0x40] sm:$0xff]
  %v2735 = vld [vmem:[#allocation2 + $0x48] sm:$0xff]
  %v2736 = vld [vmem:[#allocation2 + $0x50] sm:$0xff]
  %v2737 = vld [vmem:[#allocation2 + $0x58] sm:$0xff]
  %v2738 = vld [vmem:[#allocation2 + $0x60] sm:$0xff]
  %v2739 = vld [vmem:[#allocation2 + $0x68] sm:$0xff]
  %v2740 = vld [vmem:[#allocation2 + $0x70] sm:$0xff]
  %v2741 = vld [vmem:[#allocation2 + $0x78] sm:$0xff]
  %v2742 = vld [vmem:[#allocation2 + $0x80] sm:$0xff]
  %v2743 = vld [vmem:[#allocation2 + $0x88] sm:$0xff]
  %v2744 = vld [vmem:[#allocation2 + $0x90] sm:$0xff]
  %v2745 = vld [vmem:[#allocation2 + $0x98] sm:$0xff]
  %v2746 = vld [vmem:[#allocation2 + $0xa0] sm:$0xff]
  %v2747 = vld [vmem:[#allocation2 + $0xa8] sm:$0xff]
  %v2748 = vld [vmem:[#allocation2 + $0xb0] sm:$0xff]
  %v2749 = vld [vmem:[#allocation2 + $0xb8] sm:$0xff]
  %v2750 = vld [vmem:[#allocation2 + $0xc0] sm:$0xff]
  %v2751 = vld [vmem:[#allocation2 + $0xc8] sm:$0xff]
  %v2752 = vld [vmem:[#allocation2 + $0xd0] sm:$0xff]
  %v2753 = vld [vmem:[#allocation2 + $0xd8] sm:$0xff]
  %v2754 = vld [vmem:[#allocation2 + $0xe0] sm:$0xff]
  %v2755 = vld [vmem:[#allocation2 + $0xe8] sm:$0xff]
  %v2756 = vld [vmem:[#allocation2 + $0xf0] sm:$0xff]
  %v2757 = vld [vmem:[#allocation2 + $0xf8] sm:$0xff]
  %v2758 = vld [vmem:[#allocation2 + $0x100] sm:$0xff]
  %v2759 = vld [vmem:[#allocation2 + $0x108] sm:$0xff]
  %v2760 = vld [vmem:[#allocation2 + $0x110] sm:$0xff]
  %v2761 = vld [vmem:[#allocation2 + $0x118] sm:$0xff]
  %v2762 = vld [vmem:[#allocation2 + $0x120] sm:$0xff]
  %v2763 = vld [vmem:[#allocation2 + $0x128] sm:$0xff]
  %v2764 = vld [vmem:[#allocation2 + $0x130] sm:$0xff]
  %v2765 = vld [vmem:[#allocation2 + $0x138] sm:$0xff]
  %v2766 = vld [vmem:[#allocation2 + $0x140] sm:$0xff]
  %v2767 = vld [vmem:[#allocation2 + $0x148] sm:$0xff]
  %v2768 = vld [vmem:[#allocation2 + $0x150] sm:$0xff]
  %v2769 = vld [vmem:[#allocation2 + $0x158] sm:$0xff]
  %v2770 = vld [vmem:[#allocation2 + $0x160] sm:$0xff]
  %v2771 = vld [vmem:[#allocation2 + $0x168] sm:$0xff]
  %v2772 = vld [vmem:[#allocation2 + $0x170] sm:$0xff]
  %v2773 = vld [vmem:[#allocation2 + $0x178] sm:$0xff]
  %v2774 = vld [vmem:[#allocation2 + $0x180] sm:$0xff]
  %v2775 = vld [vmem:[#allocation2 + $0x188] sm:$0xff]
  %v2776 = vld [vmem:[#allocation2 + $0x190] sm:$0xff]
  %v2777 = vld [vmem:[#allocation2 + $0x198] sm:$0xff]
  %v2778 = vld [vmem:[#allocation2 + $0x1a0] sm:$0xff]
  %v2779 = vld [vmem:[#allocation2 + $0x1a8] sm:$0xff]
  %v2780 = vld [vmem:[#allocation2 + $0x1b0] sm:$0xff]
  %v2781 = vld [vmem:[#allocation2 + $0x1b8] sm:$0xff]
  %v2782 = vld [vmem:[#allocation2 + $0x1c0] sm:$0xff]
  %v2783 = vld [vmem:[#allocation2 + $0x1c8] sm:$0xff]
  %v2784 = vld [vmem:[#allocation2 + $0x1d0] sm:$0xff]
  %v2785 = vld [vmem:[#allocation2 + $0x1d8] sm:$0xff]
  %v2786 = vld [vmem:[#allocation2 + $0x1e0] sm:$0xff]
  %v2787 = vld [vmem:[#allocation2 + $0x1e8] sm:$0xff]
  %v2788 = vld [vmem:[#allocation2 + $0x1f0] sm:$0xff]
  %v2789 = vld [vmem:[#allocation2 + $0x1f8] sm:$0xff]
  %v2790 = vld [vmem:[%s1] sm:$0xf]
  %v2791 = vld [vmem:[%s1 + $0x4] sm:$0xf]
  %v2792 = vld [vmem:[%s1 + $0x8] sm:$0xf]
  %v2793 = vld [vmem:[%s1 + $0xc] sm:$0xf]
  %v2794 = vld [vmem:[%s1 + $0x10] sm:$0x3]
  %v2795 = vpack.c.bf16 %v2727, %v2726
  %v2796 = vpack.c.bf16 %v2729, %v2728
  %v2797 = vpack.c.bf16 %v2731, %v2730
  %v2798 = vpack.c.bf16 %v2733, %v2732
  %v2799 = vpack.c.bf16 %v2735, %v2734
  %v2800 = vpack.c.bf16 %v2737, %v2736
  %v2801 = vpack.c.bf16 %v2739, %v2738
  %v2802 = vpack.c.bf16 %v2741, %v2740
  %v2803 = vpack.c.bf16 %v2743, %v2742
  %v2804 = vpack.c.bf16 %v2745, %v2744
  %v2805 = vpack.c.bf16 %v2747, %v2746
  %v2806 = vpack.c.bf16 %v2749, %v2748
  %v2807 = vpack.c.bf16 %v2751, %v2750
  %v2808 = vpack.c.bf16 %v2753, %v2752
  %v2809 = vpack.c.bf16 %v2755, %v2754
  %v2810 = vpack.c.bf16 %v2757, %v2756
  %v2811 = vpack.c.bf16 %v2759, %v2758
  %v2812 = vpack.c.bf16 %v2761, %v2760
  %v2813 = vpack.c.bf16 %v2763, %v2762
  %v2814 = vpack.c.bf16 %v2765, %v2764
  %v2815 = vpack.c.bf16 %v2767, %v2766
  %v2816 = vpack.c.bf16 %v2769, %v2768
  %v2817 = vpack.c.bf16 %v2771, %v2770
  %v2818 = vpack.c.bf16 %v2773, %v2772
  %v2819 = vpack.c.bf16 %v2775, %v2774
  %v2820 = vpack.c.bf16 %v2777, %v2776
  %v2821 = vpack.c.bf16 %v2779, %v2778
  %v2822 = vpack.c.bf16 %v2781, %v2780
  %v2823 = vpack.c.bf16 %v2783, %v2782
  %v2824 = vpack.c.bf16 %v2785, %v2784
  %v2825 = vpack.c.bf16 %v2787, %v2786
  %v2826 = vpack.c.bf16 %v2789, %v2788
  %v2827 = vld [vmem:[%s2] sm:$0x1]
  %v2829 = vlaneseq
  %v2830 = vshrl.u32 %v2829, 7
  %v2831 = vsub.s32 0, %v2830
  %v2832 = vrot.slane %v2827, %v2831
  %v2839 = vunpack.c.l.b16 %v2790
  %v2840 = vunpack.c.l.b16 %v2791
  %v2841 = vunpack.c.l.b16 %v2792
  %v2842 = vunpack.c.l.b16 %v2793
  %v2843 = vunpack.c.l.b16 %v2794
  %v2844 = vpack.c.b16 %v2840, %v2839
  %v2845 = vpack.c.b16 %v2842, %v2841
  %v2846 = vpack.c.b16 %v2843, %v2843
  %vm2849 = vcmask 293888
  %v2851 = vsel %vm2849, %v2795, 0
  %v2854 = vsel %vm2849, %v2796, 0
  %v2857 = vsel %vm2849, %v2797, 0
  %v2860 = vsel %vm2849, %v2798, 0
  %v2863 = vsel %vm2849, %v2799, 0
  %v2866 = vsel %vm2849, %v2800, 0
  %v2869 = vsel %vm2849, %v2801, 0
  %v2872 = vsel %vm2849, %v2802, 0
  %v2875 = vsel %vm2849, %v2803, 0
  %v2878 = vsel %vm2849, %v2804, 0
  %v2881 = vsel %vm2849, %v2805, 0
  %v2884 = vsel %vm2849, %v2806, 0
  %v2887 = vsel %vm2849, %v2807, 0
  %v2890 = vsel %vm2849, %v2808, 0
  %v2893 = vsel %vm2849, %v2809, 0
  %v2896 = vsel %vm2849, %v2810, 0
  %v2899 = vsel %vm2849, %v2811, 0
  %v2902 = vsel %vm2849, %v2812, 0
  %v2905 = vsel %vm2849, %v2813, 0
  %v2908 = vsel %vm2849, %v2814, 0
  %v2911 = vsel %vm2849, %v2815, 0
  %v2914 = vsel %vm2849, %v2816, 0
  %v2917 = vsel %vm2849, %v2817, 0
  %v2920 = vsel %vm2849, %v2818, 0
  %v2923 = vsel %vm2849, %v2819, 0
  %v2926 = vsel %vm2849, %v2820, 0
  %v2929 = vsel %vm2849, %v2821, 0
  %v2932 = vsel %vm2849, %v2822, 0
  %v2935 = vsel %vm2849, %v2823, 0
  %v2938 = vsel %vm2849, %v2824, 0
  %v2941 = vsel %vm2849, %v2825, 0
  %v2944 = vsel %vm2849, %v2826, 0
  %vm2946 = vcmask 1041408
  %v2948 = vsel %vm2946, %v2846, 0
  %2950 = vmatprep.subr.bf16.mxu0 0
  %2951 = vmatpush1.bf16.msra.mxu0 0
  %2952 = vmatprep.subr.bf16.mxu0 0
  %2953 = vmatpush1.bf16.msra.mxu0 0
  %2954 = vmatprep.subr.bf16.mxu0 0
  %2955 = vmatpush1.bf16.msra.mxu0 0
  %2956 = vmatprep.subr.bf16.mxu0 0
  %2957 = vmatpush1.bf16.msra.mxu0 0
  %2958 = vmatprep.subr.bf16.mxu0 0
  %2959 = vmatpush1.bf16.msra.mxu0 0
  %2960 = vmatprep.subr.bf16.mxu0 0
  %2961 = vmatpush1.bf16.msra.mxu0 %v2948
  %2962 = vmatprep.subr.bf16.mxu0 0
  %2963 = vmatpush1.bf16.msra.mxu0 %v2845
  %2964 = vmatprep.subr.bf16.mxu0 0
  %2965 = vmatpush1.bf16.msra.mxu0 %v2844
  %2966 = vmatprep.subr.bf16.mxu0 0
  %2967 = vmatpush2.bf16.msra.mxu0 0
  %2968 = vmatprep.subr.bf16.mxu0 0
  %2969 = vmatpush2.bf16.msra.mxu0 0
  %2970 = vmatprep.subr.bf16.mxu0 0
  %2971 = vmatpush2.bf16.msra.mxu0 0
  %2972 = vmatprep.subr.bf16.mxu0 0
  %2973 = vmatpush2.bf16.msra.mxu0 0
  %2974 = vmatprep.subr.bf16.mxu0 0
  %2975 = vmatpush2.bf16.msra.mxu0 0
  %2976 = vmatprep.subr.bf16.mxu0 0
  %2977 = vmatpush2.bf16.msra.mxu0 0
  %2978 = vmatprep.subr.bf16.mxu0 0
  %2979 = vmatpush2.bf16.msra.mxu0 0
  %2980 = vmatprep.subr.bf16.mxu0 0
  %2981 = vmatpush2.bf16.msra.mxu0 0
  %2982 = vmatprep.mubr.bf16.mxu0 0
  %2983 = vmatmul.mubr.bf16.gmra.mxu0 %v2851
  %v2984 = vpop.f32.mrf.mxu0
  %v2985 = vadd.f32 %v2832, %v2984
  %v2986 = vpop.f32.mrf.mxu0
  %v2987 = vpop.f32.mrf.mxu0
  %v2988 = vadd.f32 %v2832, %v2987
  %v2989 = vpop.f32.mrf.mxu0
  %2990 = vmatprep.mubr.bf16.mxu0 0
  %2991 = vmatmul.mubr.bf16.gmra.mxu0 %v2854
  %v2992 = vpop.f32.mrf.mxu0
  %v2993 = vadd.f32 %v2832, %v2992
  %v2994 = vpop.f32.mrf.mxu0
  %v2995 = vpop.f32.mrf.mxu0
  %v2996 = vadd.f32 %v2832, %v2995
  %v2997 = vpop.f32.mrf.mxu0
  %2998 = vmatprep.mubr.bf16.mxu0 0
  %2999 = vmatmul.mubr.bf16.gmra.mxu0 %v2857
  %v3000 = vpop.f32.mrf.mxu0
  %v3001 = vadd.f32 %v2832, %v3000
  %v3002 = vpop.f32.mrf.mxu0
  %v3003 = vpop.f32.mrf.mxu0
  %v3004 = vadd.f32 %v2832, %v3003
  %v3005 = vpop.f32.mrf.mxu0
  %3006 = vmatprep.mubr.bf16.mxu0 0
  %3007 = vmatmul.mubr.bf16.gmra.mxu0 %v2860
  %v3008 = vpop.f32.mrf.mxu0
  %v3009 = vadd.f32 %v2832, %v3008
  %v3010 = vpop.f32.mrf.mxu0
  %v3011 = vpop.f32.mrf.mxu0
  %v3012 = vadd.f32 %v2832, %v3011
  %v3013 = vpop.f32.mrf.mxu0
  %3014 = vmatprep.mubr.bf16.mxu0 0
  %3015 = vmatmul.mubr.bf16.gmra.mxu0 %v2863
  %v3016 = vpop.f32.mrf.mxu0
  %v3017 = vadd.f32 %v2832, %v3016
  %v3018 = vpop.f32.mrf.mxu0
  %v3019 = vpop.f32.mrf.mxu0
  %v3020 = vadd.f32 %v2832, %v3019
  %v3021 = vpop.f32.mrf.mxu0
  %3022 = vmatprep.mubr.bf16.mxu0 0
  %3023 = vmatmul.mubr.bf16.gmra.mxu0 %v2866
  %v3024 = vpop.f32.mrf.mxu0
  %v3025 = vadd.f32 %v2832, %v3024
  %v3026 = vpop.f32.mrf.mxu0
  %v3027 = vpop.f32.mrf.mxu0
  %v3028 = vadd.f32 %v2832, %v3027
  %v3029 = vpop.f32.mrf.mxu0
  %3030 = vmatprep.mubr.bf16.mxu0 0
  %3031 = vmatmul.mubr.bf16.gmra.mxu0 %v2869
  %v3032 = vpop.f32.mrf.mxu0
  %v3033 = vadd.f32 %v2832, %v3032
  %v3034 = vpop.f32.mrf.mxu0
  %v3035 = vpop.f32.mrf.mxu0
  %v3036 = vadd.f32 %v2832, %v3035
  %v3037 = vpop.f32.mrf.mxu0
  %3038 = vmatprep.mubr.bf16.mxu0 0
  %3039 = vmatmul.mubr.bf16.gmra.mxu0 %v2872
  %v3040 = vpop.f32.mrf.mxu0
  %v3041 = vadd.f32 %v2832, %v3040
  %v3042 = vpop.f32.mrf.mxu0
  %v3043 = vpop.f32.mrf.mxu0
  %v3044 = vadd.f32 %v2832, %v3043
  %v3045 = vpop.f32.mrf.mxu0
  %3046 = vmatprep.mubr.bf16.mxu0 0
  %3047 = vmatmul.mubr.bf16.gmra.mxu0 %v2875
  %v3048 = vpop.f32.mrf.mxu0
  %v3049 = vadd.f32 %v2832, %v3048
  %v3050 = vpop.f32.mrf.mxu0
  %v3051 = vpop.f32.mrf.mxu0
  %v3052 = vadd.f32 %v2832, %v3051
  %v3053 = vpop.f32.mrf.mxu0
  %3054 = vmatprep.mubr.bf16.mxu0 0
  %3055 = vmatmul.mubr.bf16.gmra.mxu0 %v2878
  %v3056 = vpop.f32.mrf.mxu0
  %v3057 = vadd.f32 %v2832, %v3056
  %v3058 = vpop.f32.mrf.mxu0
  %v3059 = vpop.f32.mrf.mxu0
  %v3060 = vadd.f32 %v2832, %v3059
  %v3061 = vpop.f32.mrf.mxu0
  %3062 = vmatprep.mubr.bf16.mxu0 0
  %3063 = vmatmul.mubr.bf16.gmra.mxu0 %v2881
  %v3064 = vpop.f32.mrf.mxu0
  %v3065 = vadd.f32 %v2832, %v3064
  %v3066 = vpop.f32.mrf.mxu0
  %v3067 = vpop.f32.mrf.mxu0
  %v3068 = vadd.f32 %v2832, %v3067
  %v3069 = vpop.f32.mrf.mxu0
  %3070 = vmatprep.mubr.bf16.mxu0 0
  %3071 = vmatmul.mubr.bf16.gmra.mxu0 %v2884
  %v3072 = vpop.f32.mrf.mxu0
  %v3073 = vadd.f32 %v2832, %v3072
  %v3074 = vpop.f32.mrf.mxu0
  %v3075 = vpop.f32.mrf.mxu0
  %v3076 = vadd.f32 %v2832, %v3075
  %v3077 = vpop.f32.mrf.mxu0
  %3078 = vmatprep.mubr.bf16.mxu0 0
  %3079 = vmatmul.mubr.bf16.gmra.mxu0 %v2887
  %v3080 = vpop.f32.mrf.mxu0
  %v3081 = vadd.f32 %v2832, %v3080
  %v3082 = vpop.f32.mrf.mxu0
  %v3083 = vpop.f32.mrf.mxu0
  %v3084 = vadd.f32 %v2832, %v3083
  %v3085 = vpop.f32.mrf.mxu0
  %3086 = vmatprep.mubr.bf16.mxu0 0
  %3087 = vmatmul.mubr.bf16.gmra.mxu0 %v2890
  %v3088 = vpop.f32.mrf.mxu0
  %v3089 = vadd.f32 %v2832, %v3088
  %v3090 = vpop.f32.mrf.mxu0
  %v3091 = vpop.f32.mrf.mxu0
  %v3092 = vadd.f32 %v2832, %v3091
  %v3093 = vpop.f32.mrf.mxu0
  %3094 = vmatprep.mubr.bf16.mxu0 0
  %3095 = vmatmul.mubr.bf16.gmra.mxu0 %v2893
  %v3096 = vpop.f32.mrf.mxu0
  %v3097 = vadd.f32 %v2832, %v3096
  %v3098 = vpop.f32.mrf.mxu0
  %v3099 = vpop.f32.mrf.mxu0
  %v3100 = vadd.f32 %v2832, %v3099
  %v3101 = vpop.f32.mrf.mxu0
  %3102 = vmatprep.mubr.bf16.mxu0 0
  %3103 = vmatmul.mubr.bf16.gmra.mxu0 %v2896
  %v3104 = vpop.f32.mrf.mxu0
  %v3105 = vadd.f32 %v2832, %v3104
  %v3106 = vpop.f32.mrf.mxu0
  %v3107 = vpop.f32.mrf.mxu0
  %v3108 = vadd.f32 %v2832, %v3107
  %v3109 = vpop.f32.mrf.mxu0
  %3110 = vmatprep.mubr.bf16.mxu0 0
  %3111 = vmatmul.mubr.bf16.gmra.mxu0 %v2899
  %v3112 = vpop.f32.mrf.mxu0
  %v3113 = vadd.f32 %v2832, %v3112
  %v3114 = vpop.f32.mrf.mxu0
  %v3115 = vpop.f32.mrf.mxu0
  %v3116 = vadd.f32 %v2832, %v3115
  %v3117 = vpop.f32.mrf.mxu0
  %3118 = vmatprep.mubr.bf16.mxu0 0
  %3119 = vmatmul.mubr.bf16.gmra.mxu0 %v2902
  %v3120 = vpop.f32.mrf.mxu0
  %v3121 = vadd.f32 %v2832, %v3120
  %v3122 = vpop.f32.mrf.mxu0
  %v3123 = vpop.f32.mrf.mxu0
  %v3124 = vadd.f32 %v2832, %v3123
  %v3125 = vpop.f32.mrf.mxu0
  %3126 = vmatprep.mubr.bf16.mxu0 0
  %3127 = vmatmul.mubr.bf16.gmra.mxu0 %v2905
  %v3128 = vpop.f32.mrf.mxu0
  %v3129 = vadd.f32 %v2832, %v3128
  %v3130 = vpop.f32.mrf.mxu0
  %v3131 = vpop.f32.mrf.mxu0
  %v3132 = vadd.f32 %v2832, %v3131
  %v3133 = vpop.f32.mrf.mxu0
  %3134 = vmatprep.mubr.bf16.mxu0 0
  %3135 = vmatmul.mubr.bf16.gmra.mxu0 %v2908
  %v3136 = vpop.f32.mrf.mxu0
  %v3137 = vadd.f32 %v2832, %v3136
  %v3138 = vpop.f32.mrf.mxu0
  %v3139 = vpop.f32.mrf.mxu0
  %v3140 = vadd.f32 %v2832, %v3139
  %v3141 = vpop.f32.mrf.mxu0
  %3142 = vmatprep.mubr.bf16.mxu0 0
  %3143 = vmatmul.mubr.bf16.gmra.mxu0 %v2911
  %v3144 = vpop.f32.mrf.mxu0
  %v3145 = vadd.f32 %v2832, %v3144
  %v3146 = vpop.f32.mrf.mxu0
  %v3147 = vpop.f32.mrf.mxu0
  %v3148 = vadd.f32 %v2832, %v3147
  %v3149 = vpop.f32.mrf.mxu0
  %3150 = vmatprep.mubr.bf16.mxu0 0
  %3151 = vmatmul.mubr.bf16.gmra.mxu0 %v2914
  %v3152 = vpop.f32.mrf.mxu0
  %v3153 = vadd.f32 %v2832, %v3152
  %v3154 = vpop.f32.mrf.mxu0
  %v3155 = vpop.f32.mrf.mxu0
  %v3156 = vadd.f32 %v2832, %v3155
  %v3157 = vpop.f32.mrf.mxu0
  %3158 = vmatprep.mubr.bf16.mxu0 0
  %3159 = vmatmul.mubr.bf16.gmra.mxu0 %v2917
  %v3160 = vpop.f32.mrf.mxu0
  %v3161 = vadd.f32 %v2832, %v3160
  %v3162 = vpop.f32.mrf.mxu0
  %v3163 = vpop.f32.mrf.mxu0
  %v3164 = vadd.f32 %v2832, %v3163
  %v3165 = vpop.f32.mrf.mxu0
  %3166 = vmatprep.mubr.bf16.mxu0 0
  %3167 = vmatmul.mubr.bf16.gmra.mxu0 %v2920
  %v3168 = vpop.f32.mrf.mxu0
  %v3169 = vadd.f32 %v2832, %v3168
  %v3170 = vpop.f32.mrf.mxu0
  %v3171 = vpop.f32.mrf.mxu0
  %v3172 = vadd.f32 %v2832, %v3171
  %v3173 = vpop.f32.mrf.mxu0
  %3174 = vmatprep.mubr.bf16.mxu0 0
  %3175 = vmatmul.mubr.bf16.gmra.mxu0 %v2923
  %v3176 = vpop.f32.mrf.mxu0
  %v3177 = vadd.f32 %v2832, %v3176
  %v3178 = vpop.f32.mrf.mxu0
  %v3179 = vpop.f32.mrf.mxu0
  %v3180 = vadd.f32 %v2832, %v3179
  %v3181 = vpop.f32.mrf.mxu0
  %3182 = vmatprep.mubr.bf16.mxu0 0
  %3183 = vmatmul.mubr.bf16.gmra.mxu0 %v2926
  %v3184 = vpop.f32.mrf.mxu0
  %v3185 = vadd.f32 %v2832, %v3184
  %v3186 = vpop.f32.mrf.mxu0
  %v3187 = vpop.f32.mrf.mxu0
  %v3188 = vadd.f32 %v2832, %v3187
  %v3189 = vpop.f32.mrf.mxu0
  %3190 = vmatprep.mubr.bf16.mxu0 0
  %3191 = vmatmul.mubr.bf16.gmra.mxu0 %v2929
  %v3192 = vpop.f32.mrf.mxu0
  %v3193 = vadd.f32 %v2832, %v3192
  %v3194 = vpop.f32.mrf.mxu0
  %v3195 = vpop.f32.mrf.mxu0
  %v3196 = vadd.f32 %v2832, %v3195
  %v3197 = vpop.f32.mrf.mxu0
  %3198 = vmatprep.mubr.bf16.mxu0 0
  %3199 = vmatmul.mubr.bf16.gmra.mxu0 %v2932
  %v3200 = vpop.f32.mrf.mxu0
  %v3201 = vadd.f32 %v2832, %v3200
  %v3202 = vpop.f32.mrf.mxu0
  %v3203 = vpop.f32.mrf.mxu0
  %v3204 = vadd.f32 %v2832, %v3203
  %v3205 = vpop.f32.mrf.mxu0
  %3206 = vmatprep.mubr.bf16.mxu0 0
  %3207 = vmatmul.mubr.bf16.gmra.mxu0 %v2935
  %v3208 = vpop.f32.mrf.mxu0
  %v3209 = vadd.f32 %v2832, %v3208
  %v3210 = vpop.f32.mrf.mxu0
  %v3211 = vpop.f32.mrf.mxu0
  %v3212 = vadd.f32 %v2832, %v3211
  %v3213 = vpop.f32.mrf.mxu0
  %3214 = vmatprep.mubr.bf16.mxu0 0
  %3215 = vmatmul.mubr.bf16.gmra.mxu0 %v2938
  %v3216 = vpop.f32.mrf.mxu0
  %v3217 = vadd.f32 %v2832, %v3216
  %v3218 = vpop.f32.mrf.mxu0
  %v3219 = vpop.f32.mrf.mxu0
  %v3220 = vadd.f32 %v2832, %v3219
  %v3221 = vpop.f32.mrf.mxu0
  %3222 = vmatprep.mubr.bf16.mxu0 0
  %3223 = vmatmul.mubr.bf16.gmra.mxu0 %v2941
  %v3224 = vpop.f32.mrf.mxu0
  %v3225 = vadd.f32 %v2832, %v3224
  %v3226 = vpop.f32.mrf.mxu0
  %v3227 = vpop.f32.mrf.mxu0
  %v3228 = vadd.f32 %v2832, %v3227
  %v3229 = vpop.f32.mrf.mxu0
  %3230 = vmatprep.mubr.bf16.mxu0 0
  %3231 = vmatmul.mubr.bf16.gmra.mxu0 %v2944
  %v3232 = vpop.f32.mrf.mxu0
  %v3233 = vadd.f32 %v2832, %v3232
  %v3234 = vpop.f32.mrf.mxu0
  %v3235 = vpop.f32.mrf.mxu0
  %v3236 = vadd.f32 %v2832, %v3235
  %v3237 = vpop.f32.mrf.mxu0
  %3238 = vdwg.mxu0
  %v3239 = vmax.f32 %v2985, 0.0
  %v3240 = vmax.f32 %v2988, 0.0
  %v3241 = vmax.f32 %v2993, 0.0
  %v3242 = vmax.f32 %v2996, 0.0
  %v3243 = vmax.f32 %v3001, 0.0
  %v3244 = vmax.f32 %v3004, 0.0
  %v3245 = vmax.f32 %v3009, 0.0
  %v3246 = vmax.f32 %v3012, 0.0
  %v3247 = vmax.f32 %v3017, 0.0
  %v3248 = vmax.f32 %v3020, 0.0
  %v3249 = vmax.f32 %v3025, 0.0
  %v3250 = vmax.f32 %v3028, 0.0
  %v3251 = vmax.f32 %v3033, 0.0
  %v3252 = vmax.f32 %v3036, 0.0
  %v3253 = vmax.f32 %v3041, 0.0
  %v3254 = vmax.f32 %v3044, 0.0
  %v3255 = vmax.f32 %v3049, 0.0
  %v3256 = vmax.f32 %v3052, 0.0
  %v3257 = vmax.f32 %v3057, 0.0
  %v3258 = vmax.f32 %v3060, 0.0
  %v3259 = vmax.f32 %v3065, 0.0
  %v3260 = vmax.f32 %v3068, 0.0
  %v3261 = vmax.f32 %v3073, 0.0
  %v3262 = vmax.f32 %v3076, 0.0
  %v3263 = vmax.f32 %v3081, 0.0
  %v3264 = vmax.f32 %v3084, 0.0
  %v3265 = vmax.f32 %v3089, 0.0
  %v3266 = vmax.f32 %v3092, 0.0
  %v3267 = vmax.f32 %v3097, 0.0
  %v3268 = vmax.f32 %v3100, 0.0
  %v3269 = vmax.f32 %v3105, 0.0
  %v3270 = vmax.f32 %v3108, 0.0
  %v3271 = vmax.f32 %v3113, 0.0
  %v3272 = vmax.f32 %v3116, 0.0
  %v3273 = vmax.f32 %v3121, 0.0
  %v3274 = vmax.f32 %v3124, 0.0
  %v3275 = vmax.f32 %v3129, 0.0
  %v3276 = vmax.f32 %v3132, 0.0
  %v3277 = vmax.f32 %v3137, 0.0
  %v3278 = vmax.f32 %v3140, 0.0
  %v3279 = vmax.f32 %v3145, 0.0
  %v3280 = vmax.f32 %v3148, 0.0
  %v3281 = vmax.f32 %v3153, 0.0
  %v3282 = vmax.f32 %v3156, 0.0
  %v3283 = vmax.f32 %v3161, 0.0
  %v3284 = vmax.f32 %v3164, 0.0
  %v3285 = vmax.f32 %v3169, 0.0
  %v3286 = vmax.f32 %v3172, 0.0
  %v3287 = vmax.f32 %v3177, 0.0
  %v3288 = vmax.f32 %v3180, 0.0
  %v3289 = vmax.f32 %v3185, 0.0
  %v3290 = vmax.f32 %v3188, 0.0
  %v3291 = vmax.f32 %v3193, 0.0
  %v3292 = vmax.f32 %v3196, 0.0
  %v3293 = vmax.f32 %v3201, 0.0
  %v3294 = vmax.f32 %v3204, 0.0
  %v3295 = vmax.f32 %v3209, 0.0
  %v3296 = vmax.f32 %v3212, 0.0
  %v3297 = vmax.f32 %v3217, 0.0
  %v3298 = vmax.f32 %v3220, 0.0
  %v3299 = vmax.f32 %v3225, 0.0
  %v3300 = vmax.f32 %v3228, 0.0
  %v3301 = vmax.f32 %v3233, 0.0
  %v3302 = vmax.f32 %v3236, 0.0
  %vm3303 = vcmask 130048
  %3304 = vst.msk [vmem:[#allocation3] sm:$0xff] %vm3303, 0.0
  %3305 = vst.msk [vmem:[#allocation3 + $0x8] sm:$0xff] %vm3303, 0.0
  %vm3306 = vcmask 123904
  %3307 = vst.msk [vmem:[#allocation3 + $0x10] sm:$0x3] %vm3306, 0.0
  %3308 = vst.msk [vmem:[#allocation3 + $0x18] sm:$0xff] %vm3303, 0.0
  %3309 = vst.msk [vmem:[#allocation3 + $0x20] sm:$0xff] %vm3303, 0.0
  %3310 = vst.msk [vmem:[#allocation3 + $0x28] sm:$0x3] %vm3306, 0.0
  %3311 = vst.msk [vmem:[#allocation3 + $0x30] sm:$0xff] %vm3303, 0.0
  %3312 = vst.msk [vmem:[#allocation3 + $0x38] sm:$0xff] %vm3303, 0.0
  %3313 = vst.msk [vmem:[#allocation3 + $0x40] sm:$0x3] %vm3306, 0.0
  %3314 = vst.msk [vmem:[#allocation3 + $0x48] sm:$0xff] %vm3303, 0.0
  %3315 = vst.msk [vmem:[#allocation3 + $0x50] sm:$0xff] %vm3303, 0.0
  %3316 = vst.msk [vmem:[#allocation3 + $0x58] sm:$0x3] %vm3306, 0.0
  %3317 = vst.msk [vmem:[#allocation3 + $0x60] sm:$0xff] %vm3303, 0.0
  %3318 = vst.msk [vmem:[#allocation3 + $0x68] sm:$0xff] %vm3303, 0.0
  %3319 = vst.msk [vmem:[#allocation3 + $0x70] sm:$0x3] %vm3306, 0.0
  %3320 = vst.msk [vmem:[#allocation3 + $0x78] sm:$0xff] %vm3303, 0.0
  %3321 = vst.msk [vmem:[#allocation3 + $0x80] sm:$0xff] %vm3303, 0.0
  %3322 = vst.msk [vmem:[#allocation3 + $0x88] sm:$0x3] %vm3306, 0.0
  %3323 = vst.msk [vmem:[#allocation3 + $0x90] sm:$0xff] %vm3303, 0.0
  %3324 = vst.msk [vmem:[#allocation3 + $0x98] sm:$0xff] %vm3303, 0.0
  %3325 = vst.msk [vmem:[#allocation3 + $0xa0] sm:$0x3] %vm3306, 0.0
  %3326 = vst.msk [vmem:[#allocation3 + $0xa8] sm:$0xff] %vm3303, 0.0
  %3327 = vst.msk [vmem:[#allocation3 + $0xb0] sm:$0xff] %vm3303, 0.0
  %3328 = vst.msk [vmem:[#allocation3 + $0xb8] sm:$0x3] %vm3306, 0.0
  %3329 = vst.msk [vmem:[#allocation3 + $0xc0] sm:$0xff] %vm3303, 0.0
  %3330 = vst.msk [vmem:[#allocation3 + $0xc8] sm:$0xff] %vm3303, 0.0
  %3331 = vst.msk [vmem:[#allocation3 + $0xd0] sm:$0x3] %vm3306, 0.0
  %3332 = vst.msk [vmem:[#allocation3 + $0xd8] sm:$0xff] %vm3303, 0.0
  %3333 = vst.msk [vmem:[#allocation3 + $0xe0] sm:$0xff] %vm3303, 0.0
  %3334 = vst.msk [vmem:[#allocation3 + $0xe8] sm:$0x3] %vm3306, 0.0
  %3335 = vst.msk [vmem:[#allocation3 + $0xf0] sm:$0xff] %vm3303, 0.0
  %3336 = vst.msk [vmem:[#allocation3 + $0xf8] sm:$0xff] %vm3303, 0.0
  %3337 = vst.msk [vmem:[#allocation3 + $0x100] sm:$0x3] %vm3306, 0.0
  %3338 = vst.msk [vmem:[#allocation3 + $0x108] sm:$0xff] %vm3303, 0.0
  %3339 = vst.msk [vmem:[#allocation3 + $0x110] sm:$0xff] %vm3303, 0.0
  %3340 = vst.msk [vmem:[#allocation3 + $0x118] sm:$0x3] %vm3306, 0.0
  %3341 = vst.msk [vmem:[#allocation3 + $0x120] sm:$0xff] %vm3303, 0.0
  %3342 = vst.msk [vmem:[#allocation3 + $0x128] sm:$0xff] %vm3303, 0.0
  %3343 = vst.msk [vmem:[#allocation3 + $0x130] sm:$0x3] %vm3306, 0.0
  %3344 = vst.msk [vmem:[#allocation3 + $0x138] sm:$0xff] %vm3303, 0.0
  %3345 = vst.msk [vmem:[#allocation3 + $0x140] sm:$0xff] %vm3303, 0.0
  %3346 = vst.msk [vmem:[#allocation3 + $0x148] sm:$0x3] %vm3306, 0.0
  %3347 = vst.msk [vmem:[#allocation3 + $0x150] sm:$0xff] %vm3303, 0.0
  %3348 = vst.msk [vmem:[#allocation3 + $0x158] sm:$0xff] %vm3303, 0.0
  %3349 = vst.msk [vmem:[#allocation3 + $0x160] sm:$0x3] %vm3306, 0.0
  %3350 = vst.msk [vmem:[#allocation3 + $0x168] sm:$0xff] %vm3303, 0.0
  %3351 = vst.msk [vmem:[#allocation3 + $0x170] sm:$0xff] %vm3303, 0.0
  %3352 = vst.msk [vmem:[#allocation3 + $0x178] sm:$0x3] %vm3306, 0.0
  %3353 = vst.msk [vmem:[#allocation3 + $0x180] sm:$0xff] %vm3303, 0.0
  %3354 = vst.msk [vmem:[#allocation3 + $0x188] sm:$0xff] %vm3303, 0.0
  %3355 = vst.msk [vmem:[#allocation3 + $0x190] sm:$0x3] %vm3306, 0.0
  %3356 = vst.msk [vmem:[#allocation3 + $0x198] sm:$0xff] %vm3303, 0.0
  %3357 = vst.msk [vmem:[#allocation3 + $0x1a0] sm:$0xff] %vm3303, 0.0
  %3358 = vst.msk [vmem:[#allocation3 + $0x1a8] sm:$0x3] %vm3306, 0.0
  %3359 = vst.msk [vmem:[#allocation3 + $0x1b0] sm:$0xff] %vm3303, 0.0
  %3360 = vst.msk [vmem:[#allocation3 + $0x1b8] sm:$0xff] %vm3303, 0.0
  %3361 = vst.msk [vmem:[#allocation3 + $0x1c0] sm:$0x3] %vm3306, 0.0
  %3362 = vst.msk [vmem:[#allocation3 + $0x1c8] sm:$0xff] %vm3303, 0.0
  %3363 = vst.msk [vmem:[#allocation3 + $0x1d0] sm:$0xff] %vm3303, 0.0
  %3364 = vst.msk [vmem:[#allocation3 + $0x1d8] sm:$0x3] %vm3306, 0.0
  %3365 = vst.msk [vmem:[#allocation3 + $0x1e0] sm:$0xff] %vm3303, 0.0
  %3366 = vst.msk [vmem:[#allocation3 + $0x1e8] sm:$0xff] %vm3303, 0.0
  %3367 = vst.msk [vmem:[#allocation3 + $0x1f0] sm:$0x3] %vm3306, 0.0
  %3368 = vst.msk [vmem:[#allocation3 + $0x1f8] sm:$0xff] %vm3303, 0.0
  %3369 = vst.msk [vmem:[#allocation3 + $0x200] sm:$0xff] %vm3303, 0.0
  %3370 = vst.msk [vmem:[#allocation3 + $0x208] sm:$0x3] %vm3306, 0.0
  %3371 = vst.msk [vmem:[#allocation3 + $0x210] sm:$0xff] %vm3303, 0.0
  %3372 = vst.msk [vmem:[#allocation3 + $0x218] sm:$0xff] %vm3303, 0.0
  %3373 = vst.msk [vmem:[#allocation3 + $0x220] sm:$0x3] %vm3306, 0.0
  %3374 = vst.msk [vmem:[#allocation3 + $0x228] sm:$0xff] %vm3303, 0.0
  %3375 = vst.msk [vmem:[#allocation3 + $0x230] sm:$0xff] %vm3303, 0.0
  %3376 = vst.msk [vmem:[#allocation3 + $0x238] sm:$0x3] %vm3306, 0.0
  %3377 = vst.msk [vmem:[#allocation3 + $0x240] sm:$0xff] %vm3303, 0.0
  %3378 = vst.msk [vmem:[#allocation3 + $0x248] sm:$0xff] %vm3303, 0.0
  %3379 = vst.msk [vmem:[#allocation3 + $0x250] sm:$0x3] %vm3306, 0.0
  %3380 = vst.msk [vmem:[#allocation3 + $0x258] sm:$0xff] %vm3303, 0.0
  %3381 = vst.msk [vmem:[#allocation3 + $0x260] sm:$0xff] %vm3303, 0.0
  %3382 = vst.msk [vmem:[#allocation3 + $0x268] sm:$0x3] %vm3306, 0.0
  %3383 = vst.msk [vmem:[#allocation3 + $0x270] sm:$0xff] %vm3303, 0.0
  %3384 = vst.msk [vmem:[#allocation3 + $0x278] sm:$0xff] %vm3303, 0.0
  %3385 = vst.msk [vmem:[#allocation3 + $0x280] sm:$0x3] %vm3306, 0.0
  %3386 = vst.msk [vmem:[#allocation3 + $0x288] sm:$0xff] %vm3303, 0.0
  %3387 = vst.msk [vmem:[#allocation3 + $0x290] sm:$0xff] %vm3303, 0.0
  %3388 = vst.msk [vmem:[#allocation3 + $0x298] sm:$0x3] %vm3306, 0.0
  %3389 = vst.msk [vmem:[#allocation3 + $0x2a0] sm:$0xff] %vm3303, 0.0
  %3390 = vst.msk [vmem:[#allocation3 + $0x2a8] sm:$0xff] %vm3303, 0.0
  %3391 = vst.msk [vmem:[#allocation3 + $0x2b0] sm:$0x3] %vm3306, 0.0
  %3392 = vst.msk [vmem:[#allocation3 + $0x2b8] sm:$0xff] %vm3303, 0.0
  %3393 = vst.msk [vmem:[#allocation3 + $0x2c0] sm:$0xff] %vm3303, 0.0
  %3394 = vst.msk [vmem:[#allocation3 + $0x2c8] sm:$0x3] %vm3306, 0.0
  %3395 = vst.msk [vmem:[#allocation3 + $0x2d0] sm:$0xff] %vm3303, 0.0
  %3396 = vst.msk [vmem:[#allocation3 + $0x2d8] sm:$0xff] %vm3303, 0.0
  %3397 = vst.msk [vmem:[#allocation3 + $0x2e0] sm:$0x3] %vm3306, 0.0
  %3398 = vst.msk [vmem:[#allocation3 + $0x2e8] sm:$0xff] %vm3303, 0.0
  %3399 = vst.msk [vmem:[#allocation3 + $0x2f0] sm:$0xff] %vm3303, 0.0
  %3400 = vst.msk [vmem:[#allocation3 + $0x2f8] sm:$0x3] %vm3306, 0.0
  %3401 = vst.msk [vmem:[#allocation3 + $0x300] sm:$0xff] %vm3303, 0.0
  %3402 = vst.msk [vmem:[#allocation3 + $0x308] sm:$0xff] %vm3303, 0.0
  %3403 = vst.msk [vmem:[#allocation3 + $0x310] sm:$0x3] %vm3306, 0.0
  %3404 = vst.msk [vmem:[#allocation3 + $0x318] sm:$0xff] %vm3303, 0.0
  %3405 = vst.msk [vmem:[#allocation3 + $0x320] sm:$0xff] %vm3303, 0.0
  %3406 = vst.msk [vmem:[#allocation3 + $0x328] sm:$0x3] %vm3306, 0.0
  %3407 = vst.msk [vmem:[#allocation3 + $0x330] sm:$0xff] %vm3303, 0.0
  %3408 = vst.msk [vmem:[#allocation3 + $0x338] sm:$0xff] %vm3303, 0.0
  %3409 = vst.msk [vmem:[#allocation3 + $0x340] sm:$0x3] %vm3306, 0.0
  %3410 = vst.msk [vmem:[#allocation3 + $0x348] sm:$0xff] %vm3303, 0.0
  %3411 = vst.msk [vmem:[#allocation3 + $0x350] sm:$0xff] %vm3303, 0.0
  %3412 = vst.msk [vmem:[#allocation3 + $0x358] sm:$0x3] %vm3306, 0.0
  %s3413 = scalar_lea.vmem [#allocation3], 24
  %3414 = vst.msk [vmem:[%s3413 + $0x1] sm:$0xff] %vm3303, %v3239
  %3415 = vst.msk [vmem:[%s3413 + $0x9] sm:$0xff] %vm3303, %v3240
  %3416 = vst.msk [vmem:[%s3413 + $0x19] sm:$0xff] %vm3303, %v3241
  %3417 = vst.msk [vmem:[%s3413 + $0x21] sm:$0xff] %vm3303, %v3242
  %3418 = vst.msk [vmem:[%s3413 + $0x31] sm:$0xff] %vm3303, %v3243
  %3419 = vst.msk [vmem:[%s3413 + $0x39] sm:$0xff] %vm3303, %v3244
  %3420 = vst.msk [vmem:[%s3413 + $0x49] sm:$0xff] %vm3303, %v3245
  %3421 = vst.msk [vmem:[%s3413 + $0x51] sm:$0xff] %vm3303, %v3246
  %3422 = vst.msk [vmem:[%s3413 + $0x61] sm:$0xff] %vm3303, %v3247
  %3423 = vst.msk [vmem:[%s3413 + $0x69] sm:$0xff] %vm3303, %v3248
  %3424 = vst.msk [vmem:[%s3413 + $0x79] sm:$0xff] %vm3303, %v3249
  %3425 = vst.msk [vmem:[%s3413 + $0x81] sm:$0xff] %vm3303, %v3250
  %3426 = vst.msk [vmem:[%s3413 + $0x91] sm:$0xff] %vm3303, %v3251
  %3427 = vst.msk [vmem:[%s3413 + $0x99] sm:$0xff] %vm3303, %v3252
  %3428 = vst.msk [vmem:[%s3413 + $0xa9] sm:$0xff] %vm3303, %v3253
  %3429 = vst.msk [vmem:[%s3413 + $0xb1] sm:$0xff] %vm3303, %v3254
  %3430 = vst.msk [vmem:[%s3413 + $0xc1] sm:$0xff] %vm3303, %v3255
  %3431 = vst.msk [vmem:[%s3413 + $0xc9] sm:$0xff] %vm3303, %v3256
  %3432 = vst.msk [vmem:[%s3413 + $0xd9] sm:$0xff] %vm3303, %v3257
  %3433 = vst.msk [vmem:[%s3413 + $0xe1] sm:$0xff] %vm3303, %v3258
  %3434 = vst.msk [vmem:[%s3413 + $0xf1] sm:$0xff] %vm3303, %v3259
  %3435 = vst.msk [vmem:[%s3413 + $0xf9] sm:$0xff] %vm3303, %v3260
  %3436 = vst.msk [vmem:[%s3413 + $0x109] sm:$0xff] %vm3303, %v3261
  %3437 = vst.msk [vmem:[%s3413 + $0x111] sm:$0xff] %vm3303, %v3262
  %3438 = vst.msk [vmem:[%s3413 + $0x121] sm:$0xff] %vm3303, %v3263
  %3439 = vst.msk [vmem:[%s3413 + $0x129] sm:$0xff] %vm3303, %v3264
  %3440 = vst.msk [vmem:[%s3413 + $0x139] sm:$0xff] %vm3303, %v3265
  %3441 = vst.msk [vmem:[%s3413 + $0x141] sm:$0xff] %vm3303, %v3266
  %3442 = vst.msk [vmem:[%s3413 + $0x151] sm:$0xff] %vm3303, %v3267
  %3443 = vst.msk [vmem:[%s3413 + $0x159] sm:$0xff] %vm3303, %v3268
  %3444 = vst.msk [vmem:[%s3413 + $0x169] sm:$0xff] %vm3303, %v3269
  %3445 = vst.msk [vmem:[%s3413 + $0x171] sm:$0xff] %vm3303, %v3270
  %3446 = vst.msk [vmem:[%s3413 + $0x1b1] sm:$0xff] %vm3303, %v3271
  %3447 = vst.msk [vmem:[%s3413 + $0x1b9] sm:$0xff] %vm3303, %v3272
  %3448 = vst.msk [vmem:[%s3413 + $0x1c9] sm:$0xff] %vm3303, %v3273
  %3449 = vst.msk [vmem:[%s3413 + $0x1d1] sm:$0xff] %vm3303, %v3274
  %3450 = vst.msk [vmem:[%s3413 + $0x1e1] sm:$0xff] %vm3303, %v3275
  %3451 = vst.msk [vmem:[%s3413 + $0x1e9] sm:$0xff] %vm3303, %v3276
  %3452 = vst.msk [vmem:[%s3413 + $0x1f9] sm:$0xff] %vm3303, %v3277
  %3453 = vst.msk [vmem:[%s3413 + $0x201] sm:$0xff] %vm3303, %v3278
  %3454 = vst.msk [vmem:[%s3413 + $0x211] sm:$0xff] %vm3303, %v3279
  %3455 = vst.msk [vmem:[%s3413 + $0x219] sm:$0xff] %vm3303, %v3280
  %3456 = vst.msk [vmem:[%s3413 + $0x229] sm:$0xff] %vm3303, %v3281
  %3457 = vst.msk [vmem:[%s3413 + $0x231] sm:$0xff] %vm3303, %v3282
  %3458 = vst.msk [vmem:[%s3413 + $0x241] sm:$0xff] %vm3303, %v3283
  %3459 = vst.msk [vmem:[%s3413 + $0x249] sm:$0xff] %vm3303, %v3284
  %3460 = vst.msk [vmem:[%s3413 + $0x259] sm:$0xff] %vm3303, %v3285
  %3461 = vst.msk [vmem:[%s3413 + $0x261] sm:$0xff] %vm3303, %v3286
  %3462 = vst.msk [vmem:[%s3413 + $0x271] sm:$0xff] %vm3303, %v3287
  %3463 = vst.msk [vmem:[%s3413 + $0x279] sm:$0xff] %vm3303, %v3288
  %3464 = vst.msk [vmem:[%s3413 + $0x289] sm:$0xff] %vm3303, %v3289
  %3465 = vst.msk [vmem:[%s3413 + $0x291] sm:$0xff] %vm3303, %v3290
  %3466 = vst.msk [vmem:[%s3413 + $0x2a1] sm:$0xff] %vm3303, %v3291
  %3467 = vst.msk [vmem:[%s3413 + $0x2a9] sm:$0xff] %vm3303, %v3292
  %3468 = vst.msk [vmem:[%s3413 + $0x2b9] sm:$0xff] %vm3303, %v3293
  %3469 = vst.msk [vmem:[%s3413 + $0x2c1] sm:$0xff] %vm3303, %v3294
  %3470 = vst.msk [vmem:[%s3413 + $0x2d1] sm:$0xff] %vm3303, %v3295
  %3471 = vst.msk [vmem:[%s3413 + $0x2d9] sm:$0xff] %vm3303, %v3296
  %3472 = vst.msk [vmem:[%s3413 + $0x2e9] sm:$0xff] %vm3303, %v3297
  %3473 = vst.msk [vmem:[%s3413 + $0x2f1] sm:$0xff] %vm3303, %v3298
  %3474 = vst.msk [vmem:[%s3413 + $0x301] sm:$0xff] %vm3303, %v3299
  %3475 = vst.msk [vmem:[%s3413 + $0x309] sm:$0xff] %vm3303, %v3300
  %3476 = vst.msk [vmem:[%s3413 + $0x319] sm:$0xff] %vm3303, %v3301
  %3477 = vst.msk [vmem:[%s3413 + $0x321] sm:$0xff] %vm3303, %v3302
  %v3478 = vld [vmem:[#allocation3] sm:$0xff]
  %v3479 = vld [vmem:[#allocation3 + $0x8] sm:$0xff]
  %v3480 = vld [vmem:[#allocation3 + $0x10] sm:$0x3]
  %v3481 = vld [vmem:[#allocation3 + $0x18] sm:$0xff]
  %v3482 = vld [vmem:[#allocation3 + $0x20] sm:$0xff]
  %v3483 = vld [vmem:[#allocation3 + $0x28] sm:$0x3]
  %v3484 = vld [vmem:[#allocation3 + $0x30] sm:$0xff]
  %v3485 = vld [vmem:[#allocation3 + $0x38] sm:$0xff]
  %v3486 = vld [vmem:[#allocation3 + $0x40] sm:$0x3]
  %v3487 = vld [vmem:[#allocation3 + $0x48] sm:$0xff]
  %v3488 = vld [vmem:[#allocation3 + $0x50] sm:$0xff]
  %v3489 = vld [vmem:[#allocation3 + $0x58] sm:$0x3]
  %v3490 = vld [vmem:[#allocation3 + $0x60] sm:$0xff]
  %v3491 = vld [vmem:[#allocation3 + $0x68] sm:$0xff]
  %v3492 = vld [vmem:[#allocation3 + $0x70] sm:$0x3]
  %v3493 = vld [vmem:[#allocation3 + $0x78] sm:$0xff]
  %v3494 = vld [vmem:[#allocation3 + $0x80] sm:$0xff]
  %v3495 = vld [vmem:[#allocation3 + $0x88] sm:$0x3]
  %v3496 = vld [vmem:[#allocation3 + $0x90] sm:$0xff]
  %v3497 = vld [vmem:[#allocation3 + $0x98] sm:$0xff]
  %v3498 = vld [vmem:[#allocation3 + $0xa0] sm:$0x3]
  %v3499 = vld [vmem:[#allocation3 + $0xa8] sm:$0xff]
  %v3500 = vld [vmem:[#allocation3 + $0xb0] sm:$0xff]
  %v3501 = vld [vmem:[#allocation3 + $0xb8] sm:$0x3]
  %v3502 = vld [vmem:[#allocation3 + $0xc0] sm:$0xff]
  %v3503 = vld [vmem:[#allocation3 + $0xc8] sm:$0xff]
  %v3504 = vld [vmem:[#allocation3 + $0xd0] sm:$0x3]
  %v3505 = vld [vmem:[#allocation3 + $0xd8] sm:$0xff]
  %v3506 = vld [vmem:[#allocation3 + $0xe0] sm:$0xff]
  %v3507 = vld [vmem:[#allocation3 + $0xe8] sm:$0x3]
  %v3508 = vld [vmem:[#allocation3 + $0xf0] sm:$0xff]
  %v3509 = vld [vmem:[#allocation3 + $0xf8] sm:$0xff]
  %v3510 = vld [vmem:[#allocation3 + $0x100] sm:$0x3]
  %v3511 = vld [vmem:[#allocation3 + $0x108] sm:$0xff]
  %v3512 = vld [vmem:[#allocation3 + $0x110] sm:$0xff]
  %v3513 = vld [vmem:[#allocation3 + $0x118] sm:$0x3]
  %v3514 = vld [vmem:[#allocation3 + $0x120] sm:$0xff]
  %v3515 = vld [vmem:[#allocation3 + $0x128] sm:$0xff]
  %v3516 = vld [vmem:[#allocation3 + $0x130] sm:$0x3]
  %v3517 = vld [vmem:[#allocation3 + $0x138] sm:$0xff]
  %v3518 = vld [vmem:[#allocation3 + $0x140] sm:$0xff]
  %v3519 = vld [vmem:[#allocation3 + $0x148] sm:$0x3]
  %v3520 = vld [vmem:[#allocation3 + $0x150] sm:$0xff]
  %v3521 = vld [vmem:[#allocation3 + $0x158] sm:$0xff]
  %v3522 = vld [vmem:[#allocation3 + $0x160] sm:$0x3]
  %v3523 = vld [vmem:[#allocation3 + $0x168] sm:$0xff]
  %v3524 = vld [vmem:[#allocation3 + $0x170] sm:$0xff]
  %v3525 = vld [vmem:[#allocation3 + $0x178] sm:$0x3]
  %v3526 = vld [vmem:[#allocation3 + $0x180] sm:$0xff]
  %v3527 = vld [vmem:[#allocation3 + $0x188] sm:$0xff]
  %v3528 = vld [vmem:[#allocation3 + $0x190] sm:$0x3]
  %v3529 = vld [vmem:[#allocation3 + $0x198] sm:$0xff]
  %v3530 = vld [vmem:[#allocation3 + $0x1a0] sm:$0xff]
  %v3531 = vld [vmem:[#allocation3 + $0x1a8] sm:$0x3]
  %v3532 = vld [vmem:[#allocation3 + $0x1b0] sm:$0xff]
  %v3533 = vld [vmem:[#allocation3 + $0x1b8] sm:$0xff]
  %v3534 = vld [vmem:[#allocation3 + $0x1c0] sm:$0x3]
  %v3535 = vld [vmem:[#allocation3 + $0x1c8] sm:$0xff]
  %v3536 = vld [vmem:[#allocation3 + $0x1d0] sm:$0xff]
  %v3537 = vld [vmem:[#allocation3 + $0x1d8] sm:$0x3]
  %v3538 = vld [vmem:[#allocation3 + $0x1e0] sm:$0xff]
  %v3539 = vld [vmem:[#allocation3 + $0x1e8] sm:$0xff]
  %v3540 = vld [vmem:[#allocation3 + $0x1f0] sm:$0x3]
  %v3541 = vld [vmem:[#allocation3 + $0x1f8] sm:$0xff]
  %v3542 = vld [vmem:[#allocation3 + $0x200] sm:$0xff]
  %v3543 = vld [vmem:[#allocation3 + $0x208] sm:$0x3]
  %v3544 = vld [vmem:[#allocation3 + $0x210] sm:$0xff]
  %v3545 = vld [vmem:[#allocation3 + $0x218] sm:$0xff]
  %v3546 = vld [vmem:[#allocation3 + $0x220] sm:$0x3]
  %v3547 = vld [vmem:[#allocation3 + $0x228] sm:$0xff]
  %v3548 = vld [vmem:[#allocation3 + $0x230] sm:$0xff]
  %v3549 = vld [vmem:[#allocation3 + $0x238] sm:$0x3]
  %v3550 = vld [vmem:[#allocation3 + $0x240] sm:$0xff]
  %v3551 = vld [vmem:[#allocation3 + $0x248] sm:$0xff]
  %v3552 = vld [vmem:[#allocation3 + $0x250] sm:$0x3]
  %v3553 = vld [vmem:[#allocation3 + $0x258] sm:$0xff]
  %v3554 = vld [vmem:[#allocation3 + $0x260] sm:$0xff]
  %v3555 = vld [vmem:[#allocation3 + $0x268] sm:$0x3]
  %v3556 = vld [vmem:[#allocation3 + $0x270] sm:$0xff]
  %v3557 = vld [vmem:[#allocation3 + $0x278] sm:$0xff]
  %v3558 = vld [vmem:[#allocation3 + $0x280] sm:$0x3]
  %v3559 = vld [vmem:[#allocation3 + $0x288] sm:$0xff]
  %v3560 = vld [vmem:[#allocation3 + $0x290] sm:$0xff]
  %v3561 = vld [vmem:[#allocation3 + $0x298] sm:$0x3]
  %v3562 = vld [vmem:[#allocation3 + $0x2a0] sm:$0xff]
  %v3563 = vld [vmem:[#allocation3 + $0x2a8] sm:$0xff]
  %v3564 = vld [vmem:[#allocation3 + $0x2b0] sm:$0x3]
  %v3565 = vld [vmem:[#allocation3 + $0x2b8] sm:$0xff]
  %v3566 = vld [vmem:[#allocation3 + $0x2c0] sm:$0xff]
  %v3567 = vld [vmem:[#allocation3 + $0x2c8] sm:$0x3]
  %v3568 = vld [vmem:[#allocation3 + $0x2d0] sm:$0xff]
  %v3569 = vld [vmem:[#allocation3 + $0x2d8] sm:$0xff]
  %v3570 = vld [vmem:[#allocation3 + $0x2e0] sm:$0x3]
  %v3571 = vld [vmem:[#allocation3 + $0x2e8] sm:$0xff]
  %v3572 = vld [vmem:[#allocation3 + $0x2f0] sm:$0xff]
  %v3573 = vld [vmem:[#allocation3 + $0x2f8] sm:$0x3]
  %v3574 = vld [vmem:[#allocation3 + $0x300] sm:$0xff]
  %v3575 = vld [vmem:[#allocation3 + $0x308] sm:$0xff]
  %v3576 = vld [vmem:[#allocation3 + $0x310] sm:$0x3]
  %v3577 = vld [vmem:[#allocation3 + $0x318] sm:$0xff]
  %v3578 = vld [vmem:[#allocation3 + $0x320] sm:$0xff]
  %v3579 = vld [vmem:[#allocation3 + $0x328] sm:$0x3]
  %v3580 = vld [vmem:[#allocation3 + $0x330] sm:$0xff]
  %v3581 = vld [vmem:[#allocation3 + $0x338] sm:$0xff]
  %v3582 = vld [vmem:[#allocation3 + $0x340] sm:$0x3]
  %v3583 = vld [vmem:[#allocation3 + $0x348] sm:$0xff]
  %v3584 = vld [vmem:[#allocation3 + $0x350] sm:$0xff]
  %v3585 = vld [vmem:[#allocation3 + $0x358] sm:$0x3]
  %3586 = vst.msk [vmem:[#allocation4] sm:$0xff] %vm3303, %v3478
  %3587 = vst.msk [vmem:[#allocation4 + $0x10] sm:$0xff] %vm3303, %v3479
  %3588 = vst.msk [vmem:[#allocation4 + $0x20] sm:$0xff] %vm3303, %v3481
  %3589 = vst.msk [vmem:[#allocation4 + $0x30] sm:$0xff] %vm3303, %v3482
  %3590 = vst.msk [vmem:[#allocation4 + $0x40] sm:$0xff] %vm3303, %v3484
  %3591 = vst.msk [vmem:[#allocation4 + $0x50] sm:$0xff] %vm3303, %v3485
  %3592 = vst.msk [vmem:[#allocation4 + $0x60] sm:$0xff] %vm3303, %v3487
  %3593 = vst.msk [vmem:[#allocation4 + $0x70] sm:$0xff] %vm3303, %v3488
  %3594 = vst.msk [vmem:[#allocation4 + $0x80] sm:$0xff] %vm3303, %v3490
  %3595 = vst.msk [vmem:[#allocation4 + $0x90] sm:$0xff] %vm3303, %v3491
  %3596 = vst.msk [vmem:[#allocation4 + $0xa0] sm:$0xff] %vm3303, %v3493
  %3597 = vst.msk [vmem:[#allocation4 + $0xb0] sm:$0xff] %vm3303, %v3494
  %3598 = vst.msk [vmem:[#allocation4 + $0xc0] sm:$0xff] %vm3303, %v3496
  %3599 = vst.msk [vmem:[#allocation4 + $0xd0] sm:$0xff] %vm3303, %v3497
  %3600 = vst.msk [vmem:[#allocation4 + $0xe0] sm:$0xff] %vm3303, %v3499
  %3601 = vst.msk [vmem:[#allocation4 + $0xf0] sm:$0xff] %vm3303, %v3500
  %3602 = vst.msk [vmem:[#allocation4 + $0x100] sm:$0xff] %vm3303, %v3502
  %3603 = vst.msk [vmem:[#allocation4 + $0x110] sm:$0xff] %vm3303, %v3503
  %3604 = vst.msk [vmem:[#allocation4 + $0x120] sm:$0xff] %vm3303, %v3505
  %3605 = vst.msk [vmem:[#allocation4 + $0x130] sm:$0xff] %vm3303, %v3506
  %3606 = vst.msk [vmem:[#allocation4 + $0x140] sm:$0xff] %vm3303, %v3508
  %3607 = vst.msk [vmem:[#allocation4 + $0x150] sm:$0xff] %vm3303, %v3509
  %3608 = vst.msk [vmem:[#allocation4 + $0x160] sm:$0xff] %vm3303, %v3511
  %3609 = vst.msk [vmem:[#allocation4 + $0x170] sm:$0xff] %vm3303, %v3512
  %3610 = vst.msk [vmem:[#allocation4 + $0x180] sm:$0xff] %vm3303, %v3514
  %3611 = vst.msk [vmem:[#allocation4 + $0x190] sm:$0xff] %vm3303, %v3515
  %3612 = vst.msk [vmem:[#allocation4 + $0x1a0] sm:$0xff] %vm3303, %v3517
  %3613 = vst.msk [vmem:[#allocation4 + $0x1b0] sm:$0xff] %vm3303, %v3518
  %3614 = vst.msk [vmem:[#allocation4 + $0x1c0] sm:$0xff] %vm3303, %v3520
  %3615 = vst.msk [vmem:[#allocation4 + $0x1d0] sm:$0xff] %vm3303, %v3521
  %3616 = vst.msk [vmem:[#allocation4 + $0x1e0] sm:$0xff] %vm3303, %v3523
  %3617 = vst.msk [vmem:[#allocation4 + $0x1f0] sm:$0xff] %vm3303, %v3524
  %3618 = vst.msk [vmem:[#allocation4 + $0x200] sm:$0xff] %vm3303, %v3532
  %3619 = vst.msk [vmem:[#allocation4 + $0x210] sm:$0xff] %vm3303, %v3533
  %3620 = vst.msk [vmem:[#allocation4 + $0x220] sm:$0xff] %vm3303, %v3535
  %3621 = vst.msk [vmem:[#allocation4 + $0x230] sm:$0xff] %vm3303, %v3536
  %3622 = vst.msk [vmem:[#allocation4 + $0x240] sm:$0xff] %vm3303, %v3538
  %3623 = vst.msk [vmem:[#allocation4 + $0x250] sm:$0xff] %vm3303, %v3539
  %3624 = vst.msk [vmem:[#allocation4 + $0x260] sm:$0xff] %vm3303, %v3541
  %3625 = vst.msk [vmem:[#allocation4 + $0x270] sm:$0xff] %vm3303, %v3542
  %3626 = vst.msk [vmem:[#allocation4 + $0x280] sm:$0xff] %vm3303, %v3544
  %3627 = vst.msk [vmem:[#allocation4 + $0x290] sm:$0xff] %vm3303, %v3545
  %3628 = vst.msk [vmem:[#allocation4 + $0x2a0] sm:$0xff] %vm3303, %v3547
  %3629 = vst.msk [vmem:[#allocation4 + $0x2b0] sm:$0xff] %vm3303, %v3548
  %3630 = vst.msk [vmem:[#allocation4 + $0x2c0] sm:$0xff] %vm3303, %v3550
  %3631 = vst.msk [vmem:[#allocation4 + $0x2d0] sm:$0xff] %vm3303, %v3551
  %3632 = vst.msk [vmem:[#allocation4 + $0x2e0] sm:$0xff] %vm3303, %v3553
  %3633 = vst.msk [vmem:[#allocation4 + $0x2f0] sm:$0xff] %vm3303, %v3554
  %3634 = vst.msk [vmem:[#allocation4 + $0x300] sm:$0xff] %vm3303, %v3556
  %3635 = vst.msk [vmem:[#allocation4 + $0x310] sm:$0xff] %vm3303, %v3557
  %3636 = vst.msk [vmem:[#allocation4 + $0x320] sm:$0xff] %vm3303, %v3559
  %3637 = vst.msk [vmem:[#allocation4 + $0x330] sm:$0xff] %vm3303, %v3560
  %3638 = vst.msk [vmem:[#allocation4 + $0x340] sm:$0xff] %vm3303, %v3562
  %3639 = vst.msk [vmem:[#allocation4 + $0x350] sm:$0xff] %vm3303, %v3563
  %3640 = vst.msk [vmem:[#allocation4 + $0x360] sm:$0xff] %vm3303, %v3565
  %3641 = vst.msk [vmem:[#allocation4 + $0x370] sm:$0xff] %vm3303, %v3566
  %3642 = vst.msk [vmem:[#allocation4 + $0x380] sm:$0xff] %vm3303, %v3568
  %3643 = vst.msk [vmem:[#allocation4 + $0x390] sm:$0xff] %vm3303, %v3569
  %3644 = vst.msk [vmem:[#allocation4 + $0x3a0] sm:$0xff] %vm3303, %v3571
  %3645 = vst.msk [vmem:[#allocation4 + $0x3b0] sm:$0xff] %vm3303, %v3572
  %3646 = vst.msk [vmem:[#allocation4 + $0x3c0] sm:$0xff] %vm3303, %v3574
  %3647 = vst.msk [vmem:[#allocation4 + $0x3d0] sm:$0xff] %vm3303, %v3575
  %3648 = vst.msk [vmem:[#allocation4 + $0x3e0] sm:$0xff] %vm3303, %v3577
  %3649 = vst.msk [vmem:[#allocation4 + $0x3f0] sm:$0xff] %vm3303, %v3578
  %v3746 = vrot.slane %v3478, 1
  %v3747 = vrot.slane %v3479, 1
  %v3748 = vsel %vm296, %v3746, %v3747
  %v3749 = vrot.slane %v3480, 1
  %v3750 = vsel %vm296, %v3747, %v3749
  %v3751 = vrot.slane %v3481, 1
  %v3752 = vrot.slane %v3482, 1
  %v3753 = vsel %vm296, %v3751, %v3752
  %v3754 = vrot.slane %v3483, 1
  %v3755 = vsel %vm296, %v3752, %v3754
  %v3756 = vrot.slane %v3484, 1
  %v3757 = vrot.slane %v3485, 1
  %v3758 = vsel %vm296, %v3756, %v3757
  %v3759 = vrot.slane %v3486, 1
  %v3760 = vsel %vm296, %v3757, %v3759
  %v3761 = vrot.slane %v3487, 1
  %v3762 = vrot.slane %v3488, 1
  %v3763 = vsel %vm296, %v3761, %v3762
  %v3764 = vrot.slane %v3489, 1
  %v3765 = vsel %vm296, %v3762, %v3764
  %v3766 = vrot.slane %v3490, 1
  %v3767 = vrot.slane %v3491, 1
  %v3768 = vsel %vm296, %v3766, %v3767
  %v3769 = vrot.slane %v3492, 1
  %v3770 = vsel %vm296, %v3767, %v3769
  %v3771 = vrot.slane %v3493, 1
  %v3772 = vrot.slane %v3494, 1
  %v3773 = vsel %vm296, %v3771, %v3772
  %v3774 = vrot.slane %v3495, 1
  %v3775 = vsel %vm296, %v3772, %v3774
  %v3776 = vrot.slane %v3496, 1
  %v3777 = vrot.slane %v3497, 1
  %v3778 = vsel %vm296, %v3776, %v3777
  %v3779 = vrot.slane %v3498, 1
  %v3780 = vsel %vm296, %v3777, %v3779
  %v3781 = vrot.slane %v3499, 1
  %v3782 = vrot.slane %v3500, 1
  %v3783 = vsel %vm296, %v3781, %v3782
  %v3784 = vrot.slane %v3501, 1
  %v3785 = vsel %vm296, %v3782, %v3784
  %v3786 = vrot.slane %v3502, 1
  %v3787 = vrot.slane %v3503, 1
  %v3788 = vsel %vm296, %v3786, %v3787
  %v3789 = vrot.slane %v3504, 1
  %v3790 = vsel %vm296, %v3787, %v3789
  %v3791 = vrot.slane %v3505, 1
  %v3792 = vrot.slane %v3506, 1
  %v3793 = vsel %vm296, %v3791, %v3792
  %v3794 = vrot.slane %v3507, 1
  %v3795 = vsel %vm296, %v3792, %v3794
  %v3796 = vrot.slane %v3508, 1
  %v3797 = vrot.slane %v3509, 1
  %v3798 = vsel %vm296, %v3796, %v3797
  %v3799 = vrot.slane %v3510, 1
  %v3800 = vsel %vm296, %v3797, %v3799
  %v3801 = vrot.slane %v3511, 1
  %v3802 = vrot.slane %v3512, 1
  %v3803 = vsel %vm296, %v3801, %v3802
  %v3804 = vrot.slane %v3513, 1
  %v3805 = vsel %vm296, %v3802, %v3804
  %v3806 = vrot.slane %v3514, 1
  %v3807 = vrot.slane %v3515, 1
  %v3808 = vsel %vm296, %v3806, %v3807
  %v3809 = vrot.slane %v3516, 1
  %v3810 = vsel %vm296, %v3807, %v3809
  %v3811 = vrot.slane %v3517, 1
  %v3812 = vrot.slane %v3518, 1
  %v3813 = vsel %vm296, %v3811, %v3812
  %v3814 = vrot.slane %v3519, 1
  %v3815 = vsel %vm296, %v3812, %v3814
  %v3816 = vrot.slane %v3520, 1
  %v3817 = vrot.slane %v3521, 1
  %v3818 = vsel %vm296, %v3816, %v3817
  %v3819 = vrot.slane %v3522, 1
  %v3820 = vsel %vm296, %v3817, %v3819
  %v3821 = vrot.slane %v3523, 1
  %v3822 = vrot.slane %v3524, 1
  %v3823 = vsel %vm296, %v3821, %v3822
  %v3824 = vrot.slane %v3525, 1
  %v3825 = vsel %vm296, %v3822, %v3824
  %v3826 = vrot.slane %v3532, 1
  %v3827 = vrot.slane %v3533, 1
  %v3828 = vsel %vm296, %v3826, %v3827
  %v3829 = vrot.slane %v3534, 1
  %v3830 = vsel %vm296, %v3827, %v3829
  %v3831 = vrot.slane %v3535, 1
  %v3832 = vrot.slane %v3536, 1
  %v3833 = vsel %vm296, %v3831, %v3832
  %v3834 = vrot.slane %v3537, 1
  %v3835 = vsel %vm296, %v3832, %v3834
  %v3836 = vrot.slane %v3538, 1
  %v3837 = vrot.slane %v3539, 1
  %v3838 = vsel %vm296, %v3836, %v3837
  %v3839 = vrot.slane %v3540, 1
  %v3840 = vsel %vm296, %v3837, %v3839
  %v3841 = vrot.slane %v3541, 1
  %v3842 = vrot.slane %v3542, 1
  %v3843 = vsel %vm296, %v3841, %v3842
  %v3844 = vrot.slane %v3543, 1
  %v3845 = vsel %vm296, %v3842, %v3844
  %v3846 = vrot.slane %v3544, 1
  %v3847 = vrot.slane %v3545, 1
  %v3848 = vsel %vm296, %v3846, %v3847
  %v3849 = vrot.slane %v3546, 1
  %v3850 = vsel %vm296, %v3847, %v3849
  %v3851 = vrot.slane %v3547, 1
  %v3852 = vrot.slane %v3548, 1
  %v3853 = vsel %vm296, %v3851, %v3852
  %v3854 = vrot.slane %v3549, 1
  %v3855 = vsel %vm296, %v3852, %v3854
  %v3856 = vrot.slane %v3550, 1
  %v3857 = vrot.slane %v3551, 1
  %v3858 = vsel %vm296, %v3856, %v3857
  %v3859 = vrot.slane %v3552, 1
  %v3860 = vsel %vm296, %v3857, %v3859
  %v3861 = vrot.slane %v3553, 1
  %v3862 = vrot.slane %v3554, 1
  %v3863 = vsel %vm296, %v3861, %v3862
  %v3864 = vrot.slane %v3555, 1
  %v3865 = vsel %vm296, %v3862, %v3864
  %v3866 = vrot.slane %v3556, 1
  %v3867 = vrot.slane %v3557, 1
  %v3868 = vsel %vm296, %v3866, %v3867
  %v3869 = vrot.slane %v3558, 1
  %v3870 = vsel %vm296, %v3867, %v3869
  %v3871 = vrot.slane %v3559, 1
  %v3872 = vrot.slane %v3560, 1
  %v3873 = vsel %vm296, %v3871, %v3872
  %v3874 = vrot.slane %v3561, 1
  %v3875 = vsel %vm296, %v3872, %v3874
  %v3876 = vrot.slane %v3562, 1
  %v3877 = vrot.slane %v3563, 1
  %v3878 = vsel %vm296, %v3876, %v3877
  %v3879 = vrot.slane %v3564, 1
  %v3880 = vsel %vm296, %v3877, %v3879
  %v3881 = vrot.slane %v3565, 1
  %v3882 = vrot.slane %v3566, 1
  %v3883 = vsel %vm296, %v3881, %v3882
  %v3884 = vrot.slane %v3567, 1
  %v3885 = vsel %vm296, %v3882, %v3884
  %v3886 = vrot.slane %v3568, 1
  %v3887 = vrot.slane %v3569, 1
  %v3888 = vsel %vm296, %v3886, %v3887
  %v3889 = vrot.slane %v3570, 1
  %v3890 = vsel %vm296, %v3887, %v3889
  %v3891 = vrot.slane %v3571, 1
  %v3892 = vrot.slane %v3572, 1
  %v3893 = vsel %vm296, %v3891, %v3892
  %v3894 = vrot.slane %v3573, 1
  %v3895 = vsel %vm296, %v3892, %v3894
  %v3896 = vrot.slane %v3574, 1
  %v3897 = vrot.slane %v3575, 1
  %v3898 = vsel %vm296, %v3896, %v3897
  %v3899 = vrot.slane %v3576, 1
  %v3900 = vsel %vm296, %v3897, %v3899
  %v3901 = vrot.slane %v3577, 1
  %v3902 = vrot.slane %v3578, 1
  %v3903 = vsel %vm296, %v3901, %v3902
  %v3904 = vrot.slane %v3579, 1
  %v3905 = vsel %vm296, %v3902, %v3904
  %3906 = vrot.lane.b32.xlu0 %v3748, 16
  %v3907 = vpop.permute.xlu0 %3906
  %3908 = vrot.lane.b32.xlu0 %v3750, 16
  %v3909 = vpop.permute.xlu0 %3908
  %3910 = vrot.lane.b32.xlu0 %v3753, 16
  %v3911 = vpop.permute.xlu0 %3910
  %3912 = vrot.lane.b32.xlu0 %v3755, 16
  %v3913 = vpop.permute.xlu0 %3912
  %3914 = vrot.lane.b32.xlu0 %v3758, 16
  %v3915 = vpop.permute.xlu0 %3914
  %3916 = vrot.lane.b32.xlu0 %v3760, 16
  %v3917 = vpop.permute.xlu0 %3916
  %3918 = vrot.lane.b32.xlu0 %v3763, 16
  %v3919 = vpop.permute.xlu0 %3918
  %3920 = vrot.lane.b32.xlu0 %v3765, 16
  %v3921 = vpop.permute.xlu0 %3920
  %3922 = vrot.lane.b32.xlu0 %v3768, 16
  %v3923 = vpop.permute.xlu0 %3922
  %3924 = vrot.lane.b32.xlu0 %v3770, 16
  %v3925 = vpop.permute.xlu0 %3924
  %3926 = vrot.lane.b32.xlu0 %v3773, 16
  %v3927 = vpop.permute.xlu0 %3926
  %3928 = vrot.lane.b32.xlu0 %v3775, 16
  %v3929 = vpop.permute.xlu0 %3928
  %3930 = vrot.lane.b32.xlu0 %v3778, 16
  %v3931 = vpop.permute.xlu0 %3930
  %3932 = vrot.lane.b32.xlu0 %v3780, 16
  %v3933 = vpop.permute.xlu0 %3932
  %3934 = vrot.lane.b32.xlu0 %v3783, 16
  %v3935 = vpop.permute.xlu0 %3934
  %3936 = vrot.lane.b32.xlu0 %v3785, 16
  %v3937 = vpop.permute.xlu0 %3936
  %3938 = vrot.lane.b32.xlu0 %v3788, 16
  %v3939 = vpop.permute.xlu0 %3938
  %3940 = vrot.lane.b32.xlu0 %v3790, 16
  %v3941 = vpop.permute.xlu0 %3940
  %3942 = vrot.lane.b32.xlu0 %v3793, 16
  %v3943 = vpop.permute.xlu0 %3942
  %3944 = vrot.lane.b32.xlu0 %v3795, 16
  %v3945 = vpop.permute.xlu0 %3944
  %3946 = vrot.lane.b32.xlu0 %v3798, 16
  %v3947 = vpop.permute.xlu0 %3946
  %3948 = vrot.lane.b32.xlu0 %v3800, 16
  %v3949 = vpop.permute.xlu0 %3948
  %3950 = vrot.lane.b32.xlu0 %v3803, 16
  %v3951 = vpop.permute.xlu0 %3950
  %3952 = vrot.lane.b32.xlu0 %v3805, 16
  %v3953 = vpop.permute.xlu0 %3952
  %3954 = vrot.lane.b32.xlu0 %v3808, 16
  %v3955 = vpop.permute.xlu0 %3954
  %3956 = vrot.lane.b32.xlu0 %v3810, 16
  %v3957 = vpop.permute.xlu0 %3956
  %3958 = vrot.lane.b32.xlu0 %v3813, 16
  %v3959 = vpop.permute.xlu0 %3958
  %3960 = vrot.lane.b32.xlu0 %v3815, 16
  %v3961 = vpop.permute.xlu0 %3960
  %3962 = vrot.lane.b32.xlu0 %v3818, 16
  %v3963 = vpop.permute.xlu0 %3962
  %3964 = vrot.lane.b32.xlu0 %v3820, 16
  %v3965 = vpop.permute.xlu0 %3964
  %3966 = vrot.lane.b32.xlu0 %v3823, 16
  %v3967 = vpop.permute.xlu0 %3966
  %3968 = vrot.lane.b32.xlu0 %v3825, 16
  %v3969 = vpop.permute.xlu0 %3968
  %3970 = vrot.lane.b32.xlu0 %v3828, 16
  %v3971 = vpop.permute.xlu0 %3970
  %3972 = vrot.lane.b32.xlu0 %v3830, 16
  %v3973 = vpop.permute.xlu0 %3972
  %3974 = vrot.lane.b32.xlu0 %v3833, 16
  %v3975 = vpop.permute.xlu0 %3974
  %3976 = vrot.lane.b32.xlu0 %v3835, 16
  %v3977 = vpop.permute.xlu0 %3976
  %3978 = vrot.lane.b32.xlu0 %v3838, 16
  %v3979 = vpop.permute.xlu0 %3978
  %3980 = vrot.lane.b32.xlu0 %v3840, 16
  %v3981 = vpop.permute.xlu0 %3980
  %3982 = vrot.lane.b32.xlu0 %v3843, 16
  %v3983 = vpop.permute.xlu0 %3982
  %3984 = vrot.lane.b32.xlu0 %v3845, 16
  %v3985 = vpop.permute.xlu0 %3984
  %3986 = vrot.lane.b32.xlu0 %v3848, 16
  %v3987 = vpop.permute.xlu0 %3986
  %3988 = vrot.lane.b32.xlu0 %v3850, 16
  %v3989 = vpop.permute.xlu0 %3988
  %3990 = vrot.lane.b32.xlu0 %v3853, 16
  %v3991 = vpop.permute.xlu0 %3990
  %3992 = vrot.lane.b32.xlu0 %v3855, 16
  %v3993 = vpop.permute.xlu0 %3992
  %3994 = vrot.lane.b32.xlu0 %v3858, 16
  %v3995 = vpop.permute.xlu0 %3994
  %3996 = vrot.lane.b32.xlu0 %v3860, 16
  %v3997 = vpop.permute.xlu0 %3996
  %3998 = vrot.lane.b32.xlu0 %v3863, 16
  %v3999 = vpop.permute.xlu0 %3998
  %4000 = vrot.lane.b32.xlu0 %v3865, 16
  %v4001 = vpop.permute.xlu0 %4000
  %4002 = vrot.lane.b32.xlu0 %v3868, 16
  %v4003 = vpop.permute.xlu0 %4002
  %4004 = vrot.lane.b32.xlu0 %v3870, 16
  %v4005 = vpop.permute.xlu0 %4004
  %4006 = vrot.lane.b32.xlu0 %v3873, 16
  %v4007 = vpop.permute.xlu0 %4006
  %4008 = vrot.lane.b32.xlu0 %v3875, 16
  %v4009 = vpop.permute.xlu0 %4008
  %4010 = vrot.lane.b32.xlu0 %v3878, 16
  %v4011 = vpop.permute.xlu0 %4010
  %4012 = vrot.lane.b32.xlu0 %v3880, 16
  %v4013 = vpop.permute.xlu0 %4012
  %4014 = vrot.lane.b32.xlu0 %v3883, 16
  %v4015 = vpop.permute.xlu0 %4014
  %4016 = vrot.lane.b32.xlu0 %v3885, 16
  %v4017 = vpop.permute.xlu0 %4016
  %4018 = vrot.lane.b32.xlu0 %v3888, 16
  %v4019 = vpop.permute.xlu0 %4018
  %4020 = vrot.lane.b32.xlu0 %v3890, 16
  %v4021 = vpop.permute.xlu0 %4020
  %4022 = vrot.lane.b32.xlu0 %v3893, 16
  %v4023 = vpop.permute.xlu0 %4022
  %4024 = vrot.lane.b32.xlu0 %v3895, 16
  %v4025 = vpop.permute.xlu0 %4024
  %4026 = vrot.lane.b32.xlu0 %v3898, 16
  %v4027 = vpop.permute.xlu0 %4026
  %4028 = vrot.lane.b32.xlu0 %v3900, 16
  %v4029 = vpop.permute.xlu0 %4028
  %4030 = vrot.lane.b32.xlu0 %v3903, 16
  %v4031 = vpop.permute.xlu0 %4030
  %4032 = vrot.lane.b32.xlu0 %v3905, 16
  %v4033 = vpop.permute.xlu0 %4032
  %vm4098 = vcmask 261248
  %4099 = vst.msk [vmem:[#allocation4] sm:$0xff] %vm4098, %v3907
  %4100 = vst.msk [vmem:[#allocation4 + $0x10] sm:$0xff] %vm4098, %v3909
  %4101 = vst.msk [vmem:[#allocation4 + $0x20] sm:$0xff] %vm4098, %v3911
  %4102 = vst.msk [vmem:[#allocation4 + $0x30] sm:$0xff] %vm4098, %v3913
  %4103 = vst.msk [vmem:[#allocation4 + $0x40] sm:$0xff] %vm4098, %v3915
  %4104 = vst.msk [vmem:[#allocation4 + $0x50] sm:$0xff] %vm4098, %v3917
  %4105 = vst.msk [vmem:[#allocation4 + $0x60] sm:$0xff] %vm4098, %v3919
  %4106 = vst.msk [vmem:[#allocation4 + $0x70] sm:$0xff] %vm4098, %v3921
  %4107 = vst.msk [vmem:[#allocation4 + $0x80] sm:$0xff] %vm4098, %v3923
  %4108 = vst.msk [vmem:[#allocation4 + $0x90] sm:$0xff] %vm4098, %v3925
  %4109 = vst.msk [vmem:[#allocation4 + $0xa0] sm:$0xff] %vm4098, %v3927
  %4110 = vst.msk [vmem:[#allocation4 + $0xb0] sm:$0xff] %vm4098, %v3929
  %4111 = vst.msk [vmem:[#allocation4 + $0xc0] sm:$0xff] %vm4098, %v3931
  %4112 = vst.msk [vmem:[#allocation4 + $0xd0] sm:$0xff] %vm4098, %v3933
  %4113 = vst.msk [vmem:[#allocation4 + $0xe0] sm:$0xff] %vm4098, %v3935
  %4114 = vst.msk [vmem:[#allocation4 + $0xf0] sm:$0xff] %vm4098, %v3937
  %4115 = vst.msk [vmem:[#allocation4 + $0x100] sm:$0xff] %vm4098, %v3939
  %4116 = vst.msk [vmem:[#allocation4 + $0x110] sm:$0xff] %vm4098, %v3941
  %4117 = vst.msk [vmem:[#allocation4 + $0x120] sm:$0xff] %vm4098, %v3943
  %4118 = vst.msk [vmem:[#allocation4 + $0x130] sm:$0xff] %vm4098, %v3945
  %4119 = vst.msk [vmem:[#allocation4 + $0x140] sm:$0xff] %vm4098, %v3947
  %4120 = vst.msk [vmem:[#allocation4 + $0x150] sm:$0xff] %vm4098, %v3949
  %4121 = vst.msk [vmem:[#allocation4 + $0x160] sm:$0xff] %vm4098, %v3951
  %4122 = vst.msk [vmem:[#allocation4 + $0x170] sm:$0xff] %vm4098, %v3953
  %4123 = vst.msk [vmem:[#allocation4 + $0x180] sm:$0xff] %vm4098, %v3955
  %4124 = vst.msk [vmem:[#allocation4 + $0x190] sm:$0xff] %vm4098, %v3957
  %4125 = vst.msk [vmem:[#allocation4 + $0x1a0] sm:$0xff] %vm4098, %v3959
  %4126 = vst.msk [vmem:[#allocation4 + $0x1b0] sm:$0xff] %vm4098, %v3961
  %4127 = vst.msk [vmem:[#allocation4 + $0x1c0] sm:$0xff] %vm4098, %v3963
  %4128 = vst.msk [vmem:[#allocation4 + $0x1d0] sm:$0xff] %vm4098, %v3965
  %4129 = vst.msk [vmem:[#allocation4 + $0x1e0] sm:$0xff] %vm4098, %v3967
  %4130 = vst.msk [vmem:[#allocation4 + $0x1f0] sm:$0xff] %vm4098, %v3969
  %4131 = vst.msk [vmem:[#allocation4 + $0x200] sm:$0xff] %vm4098, %v3971
  %4132 = vst.msk [vmem:[#allocation4 + $0x210] sm:$0xff] %vm4098, %v3973
  %4133 = vst.msk [vmem:[#allocation4 + $0x220] sm:$0xff] %vm4098, %v3975
  %4134 = vst.msk [vmem:[#allocation4 + $0x230] sm:$0xff] %vm4098, %v3977
  %4135 = vst.msk [vmem:[#allocation4 + $0x240] sm:$0xff] %vm4098, %v3979
  %4136 = vst.msk [vmem:[#allocation4 + $0x250] sm:$0xff] %vm4098, %v3981
  %4137 = vst.msk [vmem:[#allocation4 + $0x260] sm:$0xff] %vm4098, %v3983
  %4138 = vst.msk [vmem:[#allocation4 + $0x270] sm:$0xff] %vm4098, %v3985
  %4139 = vst.msk [vmem:[#allocation4 + $0x280] sm:$0xff] %vm4098, %v3987
  %4140 = vst.msk [vmem:[#allocation4 + $0x290] sm:$0xff] %vm4098, %v3989
  %4141 = vst.msk [vmem:[#allocation4 + $0x2a0] sm:$0xff] %vm4098, %v3991
  %4142 = vst.msk [vmem:[#allocation4 + $0x2b0] sm:$0xff] %vm4098, %v3993
  %4143 = vst.msk [vmem:[#allocation4 + $0x2c0] sm:$0xff] %vm4098, %v3995
  %4144 = vst.msk [vmem:[#allocation4 + $0x2d0] sm:$0xff] %vm4098, %v3997
  %4145 = vst.msk [vmem:[#allocation4 + $0x2e0] sm:$0xff] %vm4098, %v3999
  %4146 = vst.msk [vmem:[#allocation4 + $0x2f0] sm:$0xff] %vm4098, %v4001
  %4147 = vst.msk [vmem:[#allocation4 + $0x300] sm:$0xff] %vm4098, %v4003
  %4148 = vst.msk [vmem:[#allocation4 + $0x310] sm:$0xff] %vm4098, %v4005
  %4149 = vst.msk [vmem:[#allocation4 + $0x320] sm:$0xff] %vm4098, %v4007
  %4150 = vst.msk [vmem:[#allocation4 + $0x330] sm:$0xff] %vm4098, %v4009
  %4151 = vst.msk [vmem:[#allocation4 + $0x340] sm:$0xff] %vm4098, %v4011
  %4152 = vst.msk [vmem:[#allocation4 + $0x350] sm:$0xff] %vm4098, %v4013
  %4153 = vst.msk [vmem:[#allocation4 + $0x360] sm:$0xff] %vm4098, %v4015
  %4154 = vst.msk [vmem:[#allocation4 + $0x370] sm:$0xff] %vm4098, %v4017
  %4155 = vst.msk [vmem:[#allocation4 + $0x380] sm:$0xff] %vm4098, %v4019
  %4156 = vst.msk [vmem:[#allocation4 + $0x390] sm:$0xff] %vm4098, %v4021
  %4157 = vst.msk [vmem:[#allocation4 + $0x3a0] sm:$0xff] %vm4098, %v4023
  %4158 = vst.msk [vmem:[#allocation4 + $0x3b0] sm:$0xff] %vm4098, %v4025
  %4159 = vst.msk [vmem:[#allocation4 + $0x3c0] sm:$0xff] %vm4098, %v4027
  %4160 = vst.msk [vmem:[#allocation4 + $0x3d0] sm:$0xff] %vm4098, %v4029
  %4161 = vst.msk [vmem:[#allocation4 + $0x3e0] sm:$0xff] %vm4098, %v4031
  %4162 = vst.msk [vmem:[#allocation4 + $0x3f0] sm:$0xff] %vm4098, %v4033
  %v4163 = vrot.slane %v3478, 2
  %v4164 = vrot.slane %v3479, 2
  %v4165 = vsel %vm714, %v4163, %v4164
  %v4166 = vrot.slane %v3480, 2
  %v4167 = vsel %vm714, %v4164, %v4166
  %v4168 = vrot.slane %v3481, 2
  %v4169 = vrot.slane %v3482, 2
  %v4170 = vsel %vm714, %v4168, %v4169
  %v4171 = vrot.slane %v3483, 2
  %v4172 = vsel %vm714, %v4169, %v4171
  %v4173 = vrot.slane %v3484, 2
  %v4174 = vrot.slane %v3485, 2
  %v4175 = vsel %vm714, %v4173, %v4174
  %v4176 = vrot.slane %v3486, 2
  %v4177 = vsel %vm714, %v4174, %v4176
  %v4178 = vrot.slane %v3487, 2
  %v4179 = vrot.slane %v3488, 2
  %v4180 = vsel %vm714, %v4178, %v4179
  %v4181 = vrot.slane %v3489, 2
  %v4182 = vsel %vm714, %v4179, %v4181
  %v4183 = vrot.slane %v3490, 2
  %v4184 = vrot.slane %v3491, 2
  %v4185 = vsel %vm714, %v4183, %v4184
  %v4186 = vrot.slane %v3492, 2
  %v4187 = vsel %vm714, %v4184, %v4186
  %v4188 = vrot.slane %v3493, 2
  %v4189 = vrot.slane %v3494, 2
  %v4190 = vsel %vm714, %v4188, %v4189
  %v4191 = vrot.slane %v3495, 2
  %v4192 = vsel %vm714, %v4189, %v4191
  %v4193 = vrot.slane %v3496, 2
  %v4194 = vrot.slane %v3497, 2
  %v4195 = vsel %vm714, %v4193, %v4194
  %v4196 = vrot.slane %v3498, 2
  %v4197 = vsel %vm714, %v4194, %v4196
  %v4198 = vrot.slane %v3499, 2
  %v4199 = vrot.slane %v3500, 2
  %v4200 = vsel %vm714, %v4198, %v4199
  %v4201 = vrot.slane %v3501, 2
  %v4202 = vsel %vm714, %v4199, %v4201
  %v4203 = vrot.slane %v3502, 2
  %v4204 = vrot.slane %v3503, 2
  %v4205 = vsel %vm714, %v4203, %v4204
  %v4206 = vrot.slane %v3504, 2
  %v4207 = vsel %vm714, %v4204, %v4206
  %v4208 = vrot.slane %v3505, 2
  %v4209 = vrot.slane %v3506, 2
  %v4210 = vsel %vm714, %v4208, %v4209
  %v4211 = vrot.slane %v3507, 2
  %v4212 = vsel %vm714, %v4209, %v4211
  %v4213 = vrot.slane %v3508, 2
  %v4214 = vrot.slane %v3509, 2
  %v4215 = vsel %vm714, %v4213, %v4214
  %v4216 = vrot.slane %v3510, 2
  %v4217 = vsel %vm714, %v4214, %v4216
  %v4218 = vrot.slane %v3511, 2
  %v4219 = vrot.slane %v3512, 2
  %v4220 = vsel %vm714, %v4218, %v4219
  %v4221 = vrot.slane %v3513, 2
  %v4222 = vsel %vm714, %v4219, %v4221
  %v4223 = vrot.slane %v3514, 2
  %v4224 = vrot.slane %v3515, 2
  %v4225 = vsel %vm714, %v4223, %v4224
  %v4226 = vrot.slane %v3516, 2
  %v4227 = vsel %vm714, %v4224, %v4226
  %v4228 = vrot.slane %v3517, 2
  %v4229 = vrot.slane %v3518, 2
  %v4230 = vsel %vm714, %v4228, %v4229
  %v4231 = vrot.slane %v3519, 2
  %v4232 = vsel %vm714, %v4229, %v4231
  %v4233 = vrot.slane %v3520, 2
  %v4234 = vrot.slane %v3521, 2
  %v4235 = vsel %vm714, %v4233, %v4234
  %v4236 = vrot.slane %v3522, 2
  %v4237 = vsel %vm714, %v4234, %v4236
  %v4238 = vrot.slane %v3523, 2
  %v4239 = vrot.slane %v3524, 2
  %v4240 = vsel %vm714, %v4238, %v4239
  %v4241 = vrot.slane %v3525, 2
  %v4242 = vsel %vm714, %v4239, %v4241
  %v4243 = vrot.slane %v3532, 2
  %v4244 = vrot.slane %v3533, 2
  %v4245 = vsel %vm714, %v4243, %v4244
  %v4246 = vrot.slane %v3534, 2
  %v4247 = vsel %vm714, %v4244, %v4246
  %v4248 = vrot.slane %v3535, 2
  %v4249 = vrot.slane %v3536, 2
  %v4250 = vsel %vm714, %v4248, %v4249
  %v4251 = vrot.slane %v3537, 2
  %v4252 = vsel %vm714, %v4249, %v4251
  %v4253 = vrot.slane %v3538, 2
  %v4254 = vrot.slane %v3539, 2
  %v4255 = vsel %vm714, %v4253, %v4254
  %v4256 = vrot.slane %v3540, 2
  %v4257 = vsel %vm714, %v4254, %v4256
  %v4258 = vrot.slane %v3541, 2
  %v4259 = vrot.slane %v3542, 2
  %v4260 = vsel %vm714, %v4258, %v4259
  %v4261 = vrot.slane %v3543, 2
  %v4262 = vsel %vm714, %v4259, %v4261
  %v4263 = vrot.slane %v3544, 2
  %v4264 = vrot.slane %v3545, 2
  %v4265 = vsel %vm714, %v4263, %v4264
  %v4266 = vrot.slane %v3546, 2
  %v4267 = vsel %vm714, %v4264, %v4266
  %v4268 = vrot.slane %v3547, 2
  %v4269 = vrot.slane %v3548, 2
  %v4270 = vsel %vm714, %v4268, %v4269
  %v4271 = vrot.slane %v3549, 2
  %v4272 = vsel %vm714, %v4269, %v4271
  %v4273 = vrot.slane %v3550, 2
  %v4274 = vrot.slane %v3551, 2
  %v4275 = vsel %vm714, %v4273, %v4274
  %v4276 = vrot.slane %v3552, 2
  %v4277 = vsel %vm714, %v4274, %v4276
  %v4278 = vrot.slane %v3553, 2
  %v4279 = vrot.slane %v3554, 2
  %v4280 = vsel %vm714, %v4278, %v4279
  %v4281 = vrot.slane %v3555, 2
  %v4282 = vsel %vm714, %v4279, %v4281
  %v4283 = vrot.slane %v3556, 2
  %v4284 = vrot.slane %v3557, 2
  %v4285 = vsel %vm714, %v4283, %v4284
  %v4286 = vrot.slane %v3558, 2
  %v4287 = vsel %vm714, %v4284, %v4286
  %v4288 = vrot.slane %v3559, 2
  %v4289 = vrot.slane %v3560, 2
  %v4290 = vsel %vm714, %v4288, %v4289
  %v4291 = vrot.slane %v3561, 2
  %v4292 = vsel %vm714, %v4289, %v4291
  %v4293 = vrot.slane %v3562, 2
  %v4294 = vrot.slane %v3563, 2
  %v4295 = vsel %vm714, %v4293, %v4294
  %v4296 = vrot.slane %v3564, 2
  %v4297 = vsel %vm714, %v4294, %v4296
  %v4298 = vrot.slane %v3565, 2
  %v4299 = vrot.slane %v3566, 2
  %v4300 = vsel %vm714, %v4298, %v4299
  %v4301 = vrot.slane %v3567, 2
  %v4302 = vsel %vm714, %v4299, %v4301
  %v4303 = vrot.slane %v3568, 2
  %v4304 = vrot.slane %v3569, 2
  %v4305 = vsel %vm714, %v4303, %v4304
  %v4306 = vrot.slane %v3570, 2
  %v4307 = vsel %vm714, %v4304, %v4306
  %v4308 = vrot.slane %v3571, 2
  %v4309 = vrot.slane %v3572, 2
  %v4310 = vsel %vm714, %v4308, %v4309
  %v4311 = vrot.slane %v3573, 2
  %v4312 = vsel %vm714, %v4309, %v4311
  %v4313 = vrot.slane %v3574, 2
  %v4314 = vrot.slane %v3575, 2
  %v4315 = vsel %vm714, %v4313, %v4314
  %v4316 = vrot.slane %v3576, 2
  %v4317 = vsel %vm714, %v4314, %v4316
  %v4318 = vrot.slane %v3577, 2
  %v4319 = vrot.slane %v3578, 2
  %v4320 = vsel %vm714, %v4318, %v4319
  %v4321 = vrot.slane %v3579, 2
  %v4322 = vsel %vm714, %v4319, %v4321
  %4323 = vrot.lane.b32.xlu0 %v4165, 32
  %v4324 = vpop.permute.xlu0 %4323
  %4325 = vrot.lane.b32.xlu0 %v4167, 32
  %v4326 = vpop.permute.xlu0 %4325
  %4327 = vrot.lane.b32.xlu0 %v4170, 32
  %v4328 = vpop.permute.xlu0 %4327
  %4329 = vrot.lane.b32.xlu0 %v4172, 32
  %v4330 = vpop.permute.xlu0 %4329
  %4331 = vrot.lane.b32.xlu0 %v4175, 32
  %v4332 = vpop.permute.xlu0 %4331
  %4333 = vrot.lane.b32.xlu0 %v4177, 32
  %v4334 = vpop.permute.xlu0 %4333
  %4335 = vrot.lane.b32.xlu0 %v4180, 32
  %v4336 = vpop.permute.xlu0 %4335
  %4337 = vrot.lane.b32.xlu0 %v4182, 32
  %v4338 = vpop.permute.xlu0 %4337
  %4339 = vrot.lane.b32.xlu0 %v4185, 32
  %v4340 = vpop.permute.xlu0 %4339
  %4341 = vrot.lane.b32.xlu0 %v4187, 32
  %v4342 = vpop.permute.xlu0 %4341
  %4343 = vrot.lane.b32.xlu0 %v4190, 32
  %v4344 = vpop.permute.xlu0 %4343
  %4345 = vrot.lane.b32.xlu0 %v4192, 32
  %v4346 = vpop.permute.xlu0 %4345
  %4347 = vrot.lane.b32.xlu0 %v4195, 32
  %v4348 = vpop.permute.xlu0 %4347
  %4349 = vrot.lane.b32.xlu0 %v4197, 32
  %v4350 = vpop.permute.xlu0 %4349
  %4351 = vrot.lane.b32.xlu0 %v4200, 32
  %v4352 = vpop.permute.xlu0 %4351
  %4353 = vrot.lane.b32.xlu0 %v4202, 32
  %v4354 = vpop.permute.xlu0 %4353
  %4355 = vrot.lane.b32.xlu0 %v4205, 32
  %v4356 = vpop.permute.xlu0 %4355
  %4357 = vrot.lane.b32.xlu0 %v4207, 32
  %v4358 = vpop.permute.xlu0 %4357
  %4359 = vrot.lane.b32.xlu0 %v4210, 32
  %v4360 = vpop.permute.xlu0 %4359
  %4361 = vrot.lane.b32.xlu0 %v4212, 32
  %v4362 = vpop.permute.xlu0 %4361
  %4363 = vrot.lane.b32.xlu0 %v4215, 32
  %v4364 = vpop.permute.xlu0 %4363
  %4365 = vrot.lane.b32.xlu0 %v4217, 32
  %v4366 = vpop.permute.xlu0 %4365
  %4367 = vrot.lane.b32.xlu0 %v4220, 32
  %v4368 = vpop.permute.xlu0 %4367
  %4369 = vrot.lane.b32.xlu0 %v4222, 32
  %v4370 = vpop.permute.xlu0 %4369
  %4371 = vrot.lane.b32.xlu0 %v4225, 32
  %v4372 = vpop.permute.xlu0 %4371
  %4373 = vrot.lane.b32.xlu0 %v4227, 32
  %v4374 = vpop.permute.xlu0 %4373
  %4375 = vrot.lane.b32.xlu0 %v4230, 32
  %v4376 = vpop.permute.xlu0 %4375
  %4377 = vrot.lane.b32.xlu0 %v4232, 32
  %v4378 = vpop.permute.xlu0 %4377
  %4379 = vrot.lane.b32.xlu0 %v4235, 32
  %v4380 = vpop.permute.xlu0 %4379
  %4381 = vrot.lane.b32.xlu0 %v4237, 32
  %v4382 = vpop.permute.xlu0 %4381
  %4383 = vrot.lane.b32.xlu0 %v4240, 32
  %v4384 = vpop.permute.xlu0 %4383
  %4385 = vrot.lane.b32.xlu0 %v4242, 32
  %v4386 = vpop.permute.xlu0 %4385
  %4387 = vrot.lane.b32.xlu0 %v4245, 32
  %v4388 = vpop.permute.xlu0 %4387
  %4389 = vrot.lane.b32.xlu0 %v4247, 32
  %v4390 = vpop.permute.xlu0 %4389
  %4391 = vrot.lane.b32.xlu0 %v4250, 32
  %v4392 = vpop.permute.xlu0 %4391
  %4393 = vrot.lane.b32.xlu0 %v4252, 32
  %v4394 = vpop.permute.xlu0 %4393
  %4395 = vrot.lane.b32.xlu0 %v4255, 32
  %v4396 = vpop.permute.xlu0 %4395
  %4397 = vrot.lane.b32.xlu0 %v4257, 32
  %v4398 = vpop.permute.xlu0 %4397
  %4399 = vrot.lane.b32.xlu0 %v4260, 32
  %v4400 = vpop.permute.xlu0 %4399
  %4401 = vrot.lane.b32.xlu0 %v4262, 32
  %v4402 = vpop.permute.xlu0 %4401
  %4403 = vrot.lane.b32.xlu0 %v4265, 32
  %v4404 = vpop.permute.xlu0 %4403
  %4405 = vrot.lane.b32.xlu0 %v4267, 32
  %v4406 = vpop.permute.xlu0 %4405
  %4407 = vrot.lane.b32.xlu0 %v4270, 32
  %v4408 = vpop.permute.xlu0 %4407
  %4409 = vrot.lane.b32.xlu0 %v4272, 32
  %v4410 = vpop.permute.xlu0 %4409
  %4411 = vrot.lane.b32.xlu0 %v4275, 32
  %v4412 = vpop.permute.xlu0 %4411
  %4413 = vrot.lane.b32.xlu0 %v4277, 32
  %v4414 = vpop.permute.xlu0 %4413
  %4415 = vrot.lane.b32.xlu0 %v4280, 32
  %v4416 = vpop.permute.xlu0 %4415
  %4417 = vrot.lane.b32.xlu0 %v4282, 32
  %v4418 = vpop.permute.xlu0 %4417
  %4419 = vrot.lane.b32.xlu0 %v4285, 32
  %v4420 = vpop.permute.xlu0 %4419
  %4421 = vrot.lane.b32.xlu0 %v4287, 32
  %v4422 = vpop.permute.xlu0 %4421
  %4423 = vrot.lane.b32.xlu0 %v4290, 32
  %v4424 = vpop.permute.xlu0 %4423
  %4425 = vrot.lane.b32.xlu0 %v4292, 32
  %v4426 = vpop.permute.xlu0 %4425
  %4427 = vrot.lane.b32.xlu0 %v4295, 32
  %v4428 = vpop.permute.xlu0 %4427
  %4429 = vrot.lane.b32.xlu0 %v4297, 32
  %v4430 = vpop.permute.xlu0 %4429
  %4431 = vrot.lane.b32.xlu0 %v4300, 32
  %v4432 = vpop.permute.xlu0 %4431
  %4433 = vrot.lane.b32.xlu0 %v4302, 32
  %v4434 = vpop.permute.xlu0 %4433
  %4435 = vrot.lane.b32.xlu0 %v4305, 32
  %v4436 = vpop.permute.xlu0 %4435
  %4437 = vrot.lane.b32.xlu0 %v4307, 32
  %v4438 = vpop.permute.xlu0 %4437
  %4439 = vrot.lane.b32.xlu0 %v4310, 32
  %v4440 = vpop.permute.xlu0 %4439
  %4441 = vrot.lane.b32.xlu0 %v4312, 32
  %v4442 = vpop.permute.xlu0 %4441
  %4443 = vrot.lane.b32.xlu0 %v4315, 32
  %v4444 = vpop.permute.xlu0 %4443
  %4445 = vrot.lane.b32.xlu0 %v4317, 32
  %v4446 = vpop.permute.xlu0 %4445
  %4447 = vrot.lane.b32.xlu0 %v4320, 32
  %v4448 = vpop.permute.xlu0 %4447
  %4449 = vrot.lane.b32.xlu0 %v4322, 32
  %v4450 = vpop.permute.xlu0 %4449
  %vm4515 = vcmask 392448
  %4516 = vst.msk [vmem:[#allocation4] sm:$0xff] %vm4515, %v4324
  %4517 = vst.msk [vmem:[#allocation4 + $0x10] sm:$0xff] %vm4515, %v4326
  %4518 = vst.msk [vmem:[#allocation4 + $0x20] sm:$0xff] %vm4515, %v4328
  %4519 = vst.msk [vmem:[#allocation4 + $0x30] sm:$0xff] %vm4515, %v4330
  %4520 = vst.msk [vmem:[#allocation4 + $0x40] sm:$0xff] %vm4515, %v4332
  %4521 = vst.msk [vmem:[#allocation4 + $0x50] sm:$0xff] %vm4515, %v4334
  %4522 = vst.msk [vmem:[#allocation4 + $0x60] sm:$0xff] %vm4515, %v4336
  %4523 = vst.msk [vmem:[#allocation4 + $0x70] sm:$0xff] %vm4515, %v4338
  %4524 = vst.msk [vmem:[#allocation4 + $0x80] sm:$0xff] %vm4515, %v4340
  %4525 = vst.msk [vmem:[#allocation4 + $0x90] sm:$0xff] %vm4515, %v4342
  %4526 = vst.msk [vmem:[#allocation4 + $0xa0] sm:$0xff] %vm4515, %v4344
  %4527 = vst.msk [vmem:[#allocation4 + $0xb0] sm:$0xff] %vm4515, %v4346
  %4528 = vst.msk [vmem:[#allocation4 + $0xc0] sm:$0xff] %vm4515, %v4348
  %4529 = vst.msk [vmem:[#allocation4 + $0xd0] sm:$0xff] %vm4515, %v4350
  %4530 = vst.msk [vmem:[#allocation4 + $0xe0] sm:$0xff] %vm4515, %v4352
  %4531 = vst.msk [vmem:[#allocation4 + $0xf0] sm:$0xff] %vm4515, %v4354
  %4532 = vst.msk [vmem:[#allocation4 + $0x100] sm:$0xff] %vm4515, %v4356
  %4533 = vst.msk [vmem:[#allocation4 + $0x110] sm:$0xff] %vm4515, %v4358
  %4534 = vst.msk [vmem:[#allocation4 + $0x120] sm:$0xff] %vm4515, %v4360
  %4535 = vst.msk [vmem:[#allocation4 + $0x130] sm:$0xff] %vm4515, %v4362
  %4536 = vst.msk [vmem:[#allocation4 + $0x140] sm:$0xff] %vm4515, %v4364
  %4537 = vst.msk [vmem:[#allocation4 + $0x150] sm:$0xff] %vm4515, %v4366
  %4538 = vst.msk [vmem:[#allocation4 + $0x160] sm:$0xff] %vm4515, %v4368
  %4539 = vst.msk [vmem:[#allocation4 + $0x170] sm:$0xff] %vm4515, %v4370
  %4540 = vst.msk [vmem:[#allocation4 + $0x180] sm:$0xff] %vm4515, %v4372
  %4541 = vst.msk [vmem:[#allocation4 + $0x190] sm:$0xff] %vm4515, %v4374
  %4542 = vst.msk [vmem:[#allocation4 + $0x1a0] sm:$0xff] %vm4515, %v4376
  %4543 = vst.msk [vmem:[#allocation4 + $0x1b0] sm:$0xff] %vm4515, %v4378
  %4544 = vst.msk [vmem:[#allocation4 + $0x1c0] sm:$0xff] %vm4515, %v4380
  %4545 = vst.msk [vmem:[#allocation4 + $0x1d0] sm:$0xff] %vm4515, %v4382
  %4546 = vst.msk [vmem:[#allocation4 + $0x1e0] sm:$0xff] %vm4515, %v4384
  %4547 = vst.msk [vmem:[#allocation4 + $0x1f0] sm:$0xff] %vm4515, %v4386
  %4548 = vst.msk [vmem:[#allocation4 + $0x200] sm:$0xff] %vm4515, %v4388
  %4549 = vst.msk [vmem:[#allocation4 + $0x210] sm:$0xff] %vm4515, %v4390
  %4550 = vst.msk [vmem:[#allocation4 + $0x220] sm:$0xff] %vm4515, %v4392
  %4551 = vst.msk [vmem:[#allocation4 + $0x230] sm:$0xff] %vm4515, %v4394
  %4552 = vst.msk [vmem:[#allocation4 + $0x240] sm:$0xff] %vm4515, %v4396
  %4553 = vst.msk [vmem:[#allocation4 + $0x250] sm:$0xff] %vm4515, %v4398
  %4554 = vst.msk [vmem:[#allocation4 + $0x260] sm:$0xff] %vm4515, %v4400
  %4555 = vst.msk [vmem:[#allocation4 + $0x270] sm:$0xff] %vm4515, %v4402
  %4556 = vst.msk [vmem:[#allocation4 + $0x280] sm:$0xff] %vm4515, %v4404
  %4557 = vst.msk [vmem:[#allocation4 + $0x290] sm:$0xff] %vm4515, %v4406
  %4558 = vst.msk [vmem:[#allocation4 + $0x2a0] sm:$0xff] %vm4515, %v4408
  %4559 = vst.msk [vmem:[#allocation4 + $0x2b0] sm:$0xff] %vm4515, %v4410
  %4560 = vst.msk [vmem:[#allocation4 + $0x2c0] sm:$0xff] %vm4515, %v4412
  %4561 = vst.msk [vmem:[#allocation4 + $0x2d0] sm:$0xff] %vm4515, %v4414
  %4562 = vst.msk [vmem:[#allocation4 + $0x2e0] sm:$0xff] %vm4515, %v4416
  %4563 = vst.msk [vmem:[#allocation4 + $0x2f0] sm:$0xff] %vm4515, %v4418
  %4564 = vst.msk [vmem:[#allocation4 + $0x300] sm:$0xff] %vm4515, %v4420
  %4565 = vst.msk [vmem:[#allocation4 + $0x310] sm:$0xff] %vm4515, %v4422
  %4566 = vst.msk [vmem:[#allocation4 + $0x320] sm:$0xff] %vm4515, %v4424
  %4567 = vst.msk [vmem:[#allocation4 + $0x330] sm:$0xff] %vm4515, %v4426
  %4568 = vst.msk [vmem:[#allocation4 + $0x340] sm:$0xff] %vm4515, %v4428
  %4569 = vst.msk [vmem:[#allocation4 + $0x350] sm:$0xff] %vm4515, %v4430
  %4570 = vst.msk [vmem:[#allocation4 + $0x360] sm:$0xff] %vm4515, %v4432
  %4571 = vst.msk [vmem:[#allocation4 + $0x370] sm:$0xff] %vm4515, %v4434
  %4572 = vst.msk [vmem:[#allocation4 + $0x380] sm:$0xff] %vm4515, %v4436
  %4573 = vst.msk [vmem:[#allocation4 + $0x390] sm:$0xff] %vm4515, %v4438
  %4574 = vst.msk [vmem:[#allocation4 + $0x3a0] sm:$0xff] %vm4515, %v4440
  %4575 = vst.msk [vmem:[#allocation4 + $0x3b0] sm:$0xff] %vm4515, %v4442
  %4576 = vst.msk [vmem:[#allocation4 + $0x3c0] sm:$0xff] %vm4515, %v4444
  %4577 = vst.msk [vmem:[#allocation4 + $0x3d0] sm:$0xff] %vm4515, %v4446
  %4578 = vst.msk [vmem:[#allocation4 + $0x3e0] sm:$0xff] %vm4515, %v4448
  %4579 = vst.msk [vmem:[#allocation4 + $0x3f0] sm:$0xff] %vm4515, %v4450
  %4584 = vrot.lane.b32.xlu0 %v3481, 48
  %v4585 = vpop.permute.xlu0 %4584
  %4586 = vrot.lane.b32.xlu0 %v3482, 48
  %v4587 = vpop.permute.xlu0 %4586
  %4588 = vrot.lane.b32.xlu0 %v3484, 48
  %v4589 = vpop.permute.xlu0 %4588
  %4590 = vrot.lane.b32.xlu0 %v3485, 48
  %v4591 = vpop.permute.xlu0 %4590
  %4592 = vrot.lane.b32.xlu0 %v3487, 48
  %v4593 = vpop.permute.xlu0 %4592
  %4594 = vrot.lane.b32.xlu0 %v3488, 48
  %v4595 = vpop.permute.xlu0 %4594
  %4596 = vrot.lane.b32.xlu0 %v3490, 48
  %v4597 = vpop.permute.xlu0 %4596
  %4598 = vrot.lane.b32.xlu0 %v3491, 48
  %v4599 = vpop.permute.xlu0 %4598
  %4600 = vrot.lane.b32.xlu0 %v3493, 48
  %v4601 = vpop.permute.xlu0 %4600
  %4602 = vrot.lane.b32.xlu0 %v3494, 48
  %v4603 = vpop.permute.xlu0 %4602
  %4604 = vrot.lane.b32.xlu0 %v3496, 48
  %v4605 = vpop.permute.xlu0 %4604
  %4606 = vrot.lane.b32.xlu0 %v3497, 48
  %v4607 = vpop.permute.xlu0 %4606
  %4608 = vrot.lane.b32.xlu0 %v3499, 48
  %v4609 = vpop.permute.xlu0 %4608
  %4610 = vrot.lane.b32.xlu0 %v3500, 48
  %v4611 = vpop.permute.xlu0 %4610
  %4612 = vrot.lane.b32.xlu0 %v3502, 48
  %v4613 = vpop.permute.xlu0 %4612
  %4614 = vrot.lane.b32.xlu0 %v3503, 48
  %v4615 = vpop.permute.xlu0 %4614
  %4616 = vrot.lane.b32.xlu0 %v3505, 48
  %v4617 = vpop.permute.xlu0 %4616
  %4618 = vrot.lane.b32.xlu0 %v3506, 48
  %v4619 = vpop.permute.xlu0 %4618
  %4620 = vrot.lane.b32.xlu0 %v3508, 48
  %v4621 = vpop.permute.xlu0 %4620
  %4622 = vrot.lane.b32.xlu0 %v3509, 48
  %v4623 = vpop.permute.xlu0 %4622
  %4624 = vrot.lane.b32.xlu0 %v3511, 48
  %v4625 = vpop.permute.xlu0 %4624
  %4626 = vrot.lane.b32.xlu0 %v3512, 48
  %v4627 = vpop.permute.xlu0 %4626
  %4628 = vrot.lane.b32.xlu0 %v3514, 48
  %v4629 = vpop.permute.xlu0 %4628
  %4630 = vrot.lane.b32.xlu0 %v3515, 48
  %v4631 = vpop.permute.xlu0 %4630
  %4632 = vrot.lane.b32.xlu0 %v3517, 48
  %v4633 = vpop.permute.xlu0 %4632
  %4634 = vrot.lane.b32.xlu0 %v3518, 48
  %v4635 = vpop.permute.xlu0 %4634
  %4636 = vrot.lane.b32.xlu0 %v3520, 48
  %v4637 = vpop.permute.xlu0 %4636
  %4638 = vrot.lane.b32.xlu0 %v3521, 48
  %v4639 = vpop.permute.xlu0 %4638
  %4640 = vrot.lane.b32.xlu0 %v3523, 48
  %v4641 = vpop.permute.xlu0 %4640
  %4642 = vrot.lane.b32.xlu0 %v3524, 48
  %v4643 = vpop.permute.xlu0 %4642
  %4644 = vrot.lane.b32.xlu0 %v3526, 48
  %v4645 = vpop.permute.xlu0 %4644
  %4646 = vrot.lane.b32.xlu0 %v3527, 48
  %v4647 = vpop.permute.xlu0 %4646
  %4648 = vrot.lane.b32.xlu0 %v3535, 48
  %v4649 = vpop.permute.xlu0 %4648
  %4650 = vrot.lane.b32.xlu0 %v3536, 48
  %v4651 = vpop.permute.xlu0 %4650
  %4652 = vrot.lane.b32.xlu0 %v3538, 48
  %v4653 = vpop.permute.xlu0 %4652
  %4654 = vrot.lane.b32.xlu0 %v3539, 48
  %v4655 = vpop.permute.xlu0 %4654
  %4656 = vrot.lane.b32.xlu0 %v3541, 48
  %v4657 = vpop.permute.xlu0 %4656
  %4658 = vrot.lane.b32.xlu0 %v3542, 48
  %v4659 = vpop.permute.xlu0 %4658
  %4660 = vrot.lane.b32.xlu0 %v3544, 48
  %v4661 = vpop.permute.xlu0 %4660
  %4662 = vrot.lane.b32.xlu0 %v3545, 48
  %v4663 = vpop.permute.xlu0 %4662
  %4664 = vrot.lane.b32.xlu0 %v3547, 48
  %v4665 = vpop.permute.xlu0 %4664
  %4666 = vrot.lane.b32.xlu0 %v3548, 48
  %v4667 = vpop.permute.xlu0 %4666
  %4668 = vrot.lane.b32.xlu0 %v3550, 48
  %v4669 = vpop.permute.xlu0 %4668
  %4670 = vrot.lane.b32.xlu0 %v3551, 48
  %v4671 = vpop.permute.xlu0 %4670
  %4672 = vrot.lane.b32.xlu0 %v3553, 48
  %v4673 = vpop.permute.xlu0 %4672
  %4674 = vrot.lane.b32.xlu0 %v3554, 48
  %v4675 = vpop.permute.xlu0 %4674
  %4676 = vrot.lane.b32.xlu0 %v3556, 48
  %v4677 = vpop.permute.xlu0 %4676
  %4678 = vrot.lane.b32.xlu0 %v3557, 48
  %v4679 = vpop.permute.xlu0 %4678
  %4680 = vrot.lane.b32.xlu0 %v3559, 48
  %v4681 = vpop.permute.xlu0 %4680
  %4682 = vrot.lane.b32.xlu0 %v3560, 48
  %v4683 = vpop.permute.xlu0 %4682
  %4684 = vrot.lane.b32.xlu0 %v3562, 48
  %v4685 = vpop.permute.xlu0 %4684
  %4686 = vrot.lane.b32.xlu0 %v3563, 48
  %v4687 = vpop.permute.xlu0 %4686
  %4688 = vrot.lane.b32.xlu0 %v3565, 48
  %v4689 = vpop.permute.xlu0 %4688
  %4690 = vrot.lane.b32.xlu0 %v3566, 48
  %v4691 = vpop.permute.xlu0 %4690
  %4692 = vrot.lane.b32.xlu0 %v3568, 48
  %v4693 = vpop.permute.xlu0 %4692
  %4694 = vrot.lane.b32.xlu0 %v3569, 48
  %v4695 = vpop.permute.xlu0 %4694
  %4696 = vrot.lane.b32.xlu0 %v3571, 48
  %v4697 = vpop.permute.xlu0 %4696
  %4698 = vrot.lane.b32.xlu0 %v3572, 48
  %v4699 = vpop.permute.xlu0 %4698
  %4700 = vrot.lane.b32.xlu0 %v3574, 48
  %v4701 = vpop.permute.xlu0 %4700
  %4702 = vrot.lane.b32.xlu0 %v3575, 48
  %v4703 = vpop.permute.xlu0 %4702
  %4704 = vrot.lane.b32.xlu0 %v3577, 48
  %v4705 = vpop.permute.xlu0 %4704
  %4706 = vrot.lane.b32.xlu0 %v3578, 48
  %v4707 = vpop.permute.xlu0 %4706
  %4708 = vrot.lane.b32.xlu0 %v3580, 48
  %v4709 = vpop.permute.xlu0 %4708
  %4710 = vrot.lane.b32.xlu0 %v3581, 48
  %v4711 = vpop.permute.xlu0 %4710
  %vm4776 = vcmask 523648
  %4777 = vst.msk [vmem:[#allocation4] sm:$0xff] %vm4776, %v4585
  %4778 = vst.msk [vmem:[#allocation4 + $0x10] sm:$0xff] %vm4776, %v4587
  %4779 = vst.msk [vmem:[#allocation4 + $0x20] sm:$0xff] %vm4776, %v4589
  %4780 = vst.msk [vmem:[#allocation4 + $0x30] sm:$0xff] %vm4776, %v4591
  %4781 = vst.msk [vmem:[#allocation4 + $0x40] sm:$0xff] %vm4776, %v4593
  %4782 = vst.msk [vmem:[#allocation4 + $0x50] sm:$0xff] %vm4776, %v4595
  %4783 = vst.msk [vmem:[#allocation4 + $0x60] sm:$0xff] %vm4776, %v4597
  %4784 = vst.msk [vmem:[#allocation4 + $0x70] sm:$0xff] %vm4776, %v4599
  %4785 = vst.msk [vmem:[#allocation4 + $0x80] sm:$0xff] %vm4776, %v4601
  %4786 = vst.msk [vmem:[#allocation4 + $0x90] sm:$0xff] %vm4776, %v4603
  %4787 = vst.msk [vmem:[#allocation4 + $0xa0] sm:$0xff] %vm4776, %v4605
  %4788 = vst.msk [vmem:[#allocation4 + $0xb0] sm:$0xff] %vm4776, %v4607
  %4789 = vst.msk [vmem:[#allocation4 + $0xc0] sm:$0xff] %vm4776, %v4609
  %4790 = vst.msk [vmem:[#allocation4 + $0xd0] sm:$0xff] %vm4776, %v4611
  %4791 = vst.msk [vmem:[#allocation4 + $0xe0] sm:$0xff] %vm4776, %v4613
  %4792 = vst.msk [vmem:[#allocation4 + $0xf0] sm:$0xff] %vm4776, %v4615
  %4793 = vst.msk [vmem:[#allocation4 + $0x100] sm:$0xff] %vm4776, %v4617
  %4794 = vst.msk [vmem:[#allocation4 + $0x110] sm:$0xff] %vm4776, %v4619
  %4795 = vst.msk [vmem:[#allocation4 + $0x120] sm:$0xff] %vm4776, %v4621
  %4796 = vst.msk [vmem:[#allocation4 + $0x130] sm:$0xff] %vm4776, %v4623
  %4797 = vst.msk [vmem:[#allocation4 + $0x140] sm:$0xff] %vm4776, %v4625
  %4798 = vst.msk [vmem:[#allocation4 + $0x150] sm:$0xff] %vm4776, %v4627
  %4799 = vst.msk [vmem:[#allocation4 + $0x160] sm:$0xff] %vm4776, %v4629
  %4800 = vst.msk [vmem:[#allocation4 + $0x170] sm:$0xff] %vm4776, %v4631
  %4801 = vst.msk [vmem:[#allocation4 + $0x180] sm:$0xff] %vm4776, %v4633
  %4802 = vst.msk [vmem:[#allocation4 + $0x190] sm:$0xff] %vm4776, %v4635
  %4803 = vst.msk [vmem:[#allocation4 + $0x1a0] sm:$0xff] %vm4776, %v4637
  %4804 = vst.msk [vmem:[#allocation4 + $0x1b0] sm:$0xff] %vm4776, %v4639
  %4805 = vst.msk [vmem:[#allocation4 + $0x1c0] sm:$0xff] %vm4776, %v4641
  %4806 = vst.msk [vmem:[#allocation4 + $0x1d0] sm:$0xff] %vm4776, %v4643
  %4807 = vst.msk [vmem:[#allocation4 + $0x1e0] sm:$0xff] %vm4776, %v4645
  %4808 = vst.msk [vmem:[#allocation4 + $0x1f0] sm:$0xff] %vm4776, %v4647
  %4809 = vst.msk [vmem:[#allocation4 + $0x200] sm:$0xff] %vm4776, %v4649
  %4810 = vst.msk [vmem:[#allocation4 + $0x210] sm:$0xff] %vm4776, %v4651
  %4811 = vst.msk [vmem:[#allocation4 + $0x220] sm:$0xff] %vm4776, %v4653
  %4812 = vst.msk [vmem:[#allocation4 + $0x230] sm:$0xff] %vm4776, %v4655
  %4813 = vst.msk [vmem:[#allocation4 + $0x240] sm:$0xff] %vm4776, %v4657
  %4814 = vst.msk [vmem:[#allocation4 + $0x250] sm:$0xff] %vm4776, %v4659
  %4815 = vst.msk [vmem:[#allocation4 + $0x260] sm:$0xff] %vm4776, %v4661
  %4816 = vst.msk [vmem:[#allocation4 + $0x270] sm:$0xff] %vm4776, %v4663
  %4817 = vst.msk [vmem:[#allocation4 + $0x280] sm:$0xff] %vm4776, %v4665
  %4818 = vst.msk [vmem:[#allocation4 + $0x290] sm:$0xff] %vm4776, %v4667
  %4819 = vst.msk [vmem:[#allocation4 + $0x2a0] sm:$0xff] %vm4776, %v4669
  %4820 = vst.msk [vmem:[#allocation4 + $0x2b0] sm:$0xff] %vm4776, %v4671
  %4821 = vst.msk [vmem:[#allocation4 + $0x2c0] sm:$0xff] %vm4776, %v4673
  %4822 = vst.msk [vmem:[#allocation4 + $0x2d0] sm:$0xff] %vm4776, %v4675
  %4823 = vst.msk [vmem:[#allocation4 + $0x2e0] sm:$0xff] %vm4776, %v4677
  %4824 = vst.msk [vmem:[#allocation4 + $0x2f0] sm:$0xff] %vm4776, %v4679
  %4825 = vst.msk [vmem:[#allocation4 + $0x300] sm:$0xff] %vm4776, %v4681
  %4826 = vst.msk [vmem:[#allocation4 + $0x310] sm:$0xff] %vm4776, %v4683
  %4827 = vst.msk [vmem:[#allocation4 + $0x320] sm:$0xff] %vm4776, %v4685
  %4828 = vst.msk [vmem:[#allocation4 + $0x330] sm:$0xff] %vm4776, %v4687
  %4829 = vst.msk [vmem:[#allocation4 + $0x340] sm:$0xff] %vm4776, %v4689
  %4830 = vst.msk [vmem:[#allocation4 + $0x350] sm:$0xff] %vm4776, %v4691
  %4831 = vst.msk [vmem:[#allocation4 + $0x360] sm:$0xff] %vm4776, %v4693
  %4832 = vst.msk [vmem:[#allocation4 + $0x370] sm:$0xff] %vm4776, %v4695
  %4833 = vst.msk [vmem:[#allocation4 + $0x380] sm:$0xff] %vm4776, %v4697
  %4834 = vst.msk [vmem:[#allocation4 + $0x390] sm:$0xff] %vm4776, %v4699
  %4835 = vst.msk [vmem:[#allocation4 + $0x3a0] sm:$0xff] %vm4776, %v4701
  %4836 = vst.msk [vmem:[#allocation4 + $0x3b0] sm:$0xff] %vm4776, %v4703
  %4837 = vst.msk [vmem:[#allocation4 + $0x3c0] sm:$0xff] %vm4776, %v4705
  %4838 = vst.msk [vmem:[#allocation4 + $0x3d0] sm:$0xff] %vm4776, %v4707
  %4839 = vst.msk [vmem:[#allocation4 + $0x3e0] sm:$0xff] %vm4776, %v4709
  %4840 = vst.msk [vmem:[#allocation4 + $0x3f0] sm:$0xff] %vm4776, %v4711
  %v4843 = vrot.slane %v3526, 1
  %v4844 = vrot.slane %v3527, 1
  %v4845 = vsel %vm296, %v4843, %v4844
  %v4846 = vrot.slane %v3528, 1
  %v4847 = vsel %vm296, %v4844, %v4846
  %v4848 = vrot.slane %v3580, 1
  %v4849 = vrot.slane %v3581, 1
  %v4850 = vsel %vm296, %v4848, %v4849
  %v4851 = vrot.slane %v3582, 1
  %v4852 = vsel %vm296, %v4849, %v4851
  %4853 = vrot.lane.b32.xlu0 %v3753, 64
  %v4854 = vpop.permute.xlu0 %4853
  %4855 = vrot.lane.b32.xlu0 %v3755, 64
  %v4856 = vpop.permute.xlu0 %4855
  %4857 = vrot.lane.b32.xlu0 %v3758, 64
  %v4858 = vpop.permute.xlu0 %4857
  %4859 = vrot.lane.b32.xlu0 %v3760, 64
  %v4860 = vpop.permute.xlu0 %4859
  %4861 = vrot.lane.b32.xlu0 %v3763, 64
  %v4862 = vpop.permute.xlu0 %4861
  %4863 = vrot.lane.b32.xlu0 %v3765, 64
  %v4864 = vpop.permute.xlu0 %4863
  %4865 = vrot.lane.b32.xlu0 %v3768, 64
  %v4866 = vpop.permute.xlu0 %4865
  %4867 = vrot.lane.b32.xlu0 %v3770, 64
  %v4868 = vpop.permute.xlu0 %4867
  %4869 = vrot.lane.b32.xlu0 %v3773, 64
  %v4870 = vpop.permute.xlu0 %4869
  %4871 = vrot.lane.b32.xlu0 %v3775, 64
  %v4872 = vpop.permute.xlu0 %4871
  %4873 = vrot.lane.b32.xlu0 %v3778, 64
  %v4874 = vpop.permute.xlu0 %4873
  %4875 = vrot.lane.b32.xlu0 %v3780, 64
  %v4876 = vpop.permute.xlu0 %4875
  %4877 = vrot.lane.b32.xlu0 %v3783, 64
  %v4878 = vpop.permute.xlu0 %4877
  %4879 = vrot.lane.b32.xlu0 %v3785, 64
  %v4880 = vpop.permute.xlu0 %4879
  %4881 = vrot.lane.b32.xlu0 %v3788, 64
  %v4882 = vpop.permute.xlu0 %4881
  %4883 = vrot.lane.b32.xlu0 %v3790, 64
  %v4884 = vpop.permute.xlu0 %4883
  %4885 = vrot.lane.b32.xlu0 %v3793, 64
  %v4886 = vpop.permute.xlu0 %4885
  %4887 = vrot.lane.b32.xlu0 %v3795, 64
  %v4888 = vpop.permute.xlu0 %4887
  %4889 = vrot.lane.b32.xlu0 %v3798, 64
  %v4890 = vpop.permute.xlu0 %4889
  %4891 = vrot.lane.b32.xlu0 %v3800, 64
  %v4892 = vpop.permute.xlu0 %4891
  %4893 = vrot.lane.b32.xlu0 %v3803, 64
  %v4894 = vpop.permute.xlu0 %4893
  %4895 = vrot.lane.b32.xlu0 %v3805, 64
  %v4896 = vpop.permute.xlu0 %4895
  %4897 = vrot.lane.b32.xlu0 %v3808, 64
  %v4898 = vpop.permute.xlu0 %4897
  %4899 = vrot.lane.b32.xlu0 %v3810, 64
  %v4900 = vpop.permute.xlu0 %4899
  %4901 = vrot.lane.b32.xlu0 %v3813, 64
  %v4902 = vpop.permute.xlu0 %4901
  %4903 = vrot.lane.b32.xlu0 %v3815, 64
  %v4904 = vpop.permute.xlu0 %4903
  %4905 = vrot.lane.b32.xlu0 %v3818, 64
  %v4906 = vpop.permute.xlu0 %4905
  %4907 = vrot.lane.b32.xlu0 %v3820, 64
  %v4908 = vpop.permute.xlu0 %4907
  %4909 = vrot.lane.b32.xlu0 %v3823, 64
  %v4910 = vpop.permute.xlu0 %4909
  %4911 = vrot.lane.b32.xlu0 %v3825, 64
  %v4912 = vpop.permute.xlu0 %4911
  %4913 = vrot.lane.b32.xlu0 %v4845, 64
  %v4914 = vpop.permute.xlu0 %4913
  %4915 = vrot.lane.b32.xlu0 %v4847, 64
  %v4916 = vpop.permute.xlu0 %4915
  %4917 = vrot.lane.b32.xlu0 %v3833, 64
  %v4918 = vpop.permute.xlu0 %4917
  %4919 = vrot.lane.b32.xlu0 %v3835, 64
  %v4920 = vpop.permute.xlu0 %4919
  %4921 = vrot.lane.b32.xlu0 %v3838, 64
  %v4922 = vpop.permute.xlu0 %4921
  %4923 = vrot.lane.b32.xlu0 %v3840, 64
  %v4924 = vpop.permute.xlu0 %4923
  %4925 = vrot.lane.b32.xlu0 %v3843, 64
  %v4926 = vpop.permute.xlu0 %4925
  %4927 = vrot.lane.b32.xlu0 %v3845, 64
  %v4928 = vpop.permute.xlu0 %4927
  %4929 = vrot.lane.b32.xlu0 %v3848, 64
  %v4930 = vpop.permute.xlu0 %4929
  %4931 = vrot.lane.b32.xlu0 %v3850, 64
  %v4932 = vpop.permute.xlu0 %4931
  %4933 = vrot.lane.b32.xlu0 %v3853, 64
  %v4934 = vpop.permute.xlu0 %4933
  %4935 = vrot.lane.b32.xlu0 %v3855, 64
  %v4936 = vpop.permute.xlu0 %4935
  %4937 = vrot.lane.b32.xlu0 %v3858, 64
  %v4938 = vpop.permute.xlu0 %4937
  %4939 = vrot.lane.b32.xlu0 %v3860, 64
  %v4940 = vpop.permute.xlu0 %4939
  %4941 = vrot.lane.b32.xlu0 %v3863, 64
  %v4942 = vpop.permute.xlu0 %4941
  %4943 = vrot.lane.b32.xlu0 %v3865, 64
  %v4944 = vpop.permute.xlu0 %4943
  %4945 = vrot.lane.b32.xlu0 %v3868, 64
  %v4946 = vpop.permute.xlu0 %4945
  %4947 = vrot.lane.b32.xlu0 %v3870, 64
  %v4948 = vpop.permute.xlu0 %4947
  %4949 = vrot.lane.b32.xlu0 %v3873, 64
  %v4950 = vpop.permute.xlu0 %4949
  %4951 = vrot.lane.b32.xlu0 %v3875, 64
  %v4952 = vpop.permute.xlu0 %4951
  %4953 = vrot.lane.b32.xlu0 %v3878, 64
  %v4954 = vpop.permute.xlu0 %4953
  %4955 = vrot.lane.b32.xlu0 %v3880, 64
  %v4956 = vpop.permute.xlu0 %4955
  %4957 = vrot.lane.b32.xlu0 %v3883, 64
  %v4958 = vpop.permute.xlu0 %4957
  %4959 = vrot.lane.b32.xlu0 %v3885, 64
  %v4960 = vpop.permute.xlu0 %4959
  %4961 = vrot.lane.b32.xlu0 %v3888, 64
  %v4962 = vpop.permute.xlu0 %4961
  %4963 = vrot.lane.b32.xlu0 %v3890, 64
  %v4964 = vpop.permute.xlu0 %4963
  %4965 = vrot.lane.b32.xlu0 %v3893, 64
  %v4966 = vpop.permute.xlu0 %4965
  %4967 = vrot.lane.b32.xlu0 %v3895, 64
  %v4968 = vpop.permute.xlu0 %4967
  %4969 = vrot.lane.b32.xlu0 %v3898, 64
  %v4970 = vpop.permute.xlu0 %4969
  %4971 = vrot.lane.b32.xlu0 %v3900, 64
  %v4972 = vpop.permute.xlu0 %4971
  %4973 = vrot.lane.b32.xlu0 %v3903, 64
  %v4974 = vpop.permute.xlu0 %4973
  %4975 = vrot.lane.b32.xlu0 %v3905, 64
  %v4976 = vpop.permute.xlu0 %4975
  %4977 = vrot.lane.b32.xlu0 %v4850, 64
  %v4978 = vpop.permute.xlu0 %4977
  %4979 = vrot.lane.b32.xlu0 %v4852, 64
  %v4980 = vpop.permute.xlu0 %4979
  %vm5045 = vcmask 654848
  %5046 = vst.msk [vmem:[#allocation4] sm:$0xff] %vm5045, %v4854
  %5047 = vst.msk [vmem:[#allocation4 + $0x10] sm:$0xff] %vm5045, %v4856
  %5048 = vst.msk [vmem:[#allocation4 + $0x20] sm:$0xff] %vm5045, %v4858
  %5049 = vst.msk [vmem:[#allocation4 + $0x30] sm:$0xff] %vm5045, %v4860
  %5050 = vst.msk [vmem:[#allocation4 + $0x40] sm:$0xff] %vm5045, %v4862
  %5051 = vst.msk [vmem:[#allocation4 + $0x50] sm:$0xff] %vm5045, %v4864
  %5052 = vst.msk [vmem:[#allocation4 + $0x60] sm:$0xff] %vm5045, %v4866
  %5053 = vst.msk [vmem:[#allocation4 + $0x70] sm:$0xff] %vm5045, %v4868
  %5054 = vst.msk [vmem:[#allocation4 + $0x80] sm:$0xff] %vm5045, %v4870
  %5055 = vst.msk [vmem:[#allocation4 + $0x90] sm:$0xff] %vm5045, %v4872
  %5056 = vst.msk [vmem:[#allocation4 + $0xa0] sm:$0xff] %vm5045, %v4874
  %5057 = vst.msk [vmem:[#allocation4 + $0xb0] sm:$0xff] %vm5045, %v4876
  %5058 = vst.msk [vmem:[#allocation4 + $0xc0] sm:$0xff] %vm5045, %v4878
  %5059 = vst.msk [vmem:[#allocation4 + $0xd0] sm:$0xff] %vm5045, %v4880
  %5060 = vst.msk [vmem:[#allocation4 + $0xe0] sm:$0xff] %vm5045, %v4882
  %5061 = vst.msk [vmem:[#allocation4 + $0xf0] sm:$0xff] %vm5045, %v4884
  %5062 = vst.msk [vmem:[#allocation4 + $0x100] sm:$0xff] %vm5045, %v4886
  %5063 = vst.msk [vmem:[#allocation4 + $0x110] sm:$0xff] %vm5045, %v4888
  %5064 = vst.msk [vmem:[#allocation4 + $0x120] sm:$0xff] %vm5045, %v4890
  %5065 = vst.msk [vmem:[#allocation4 + $0x130] sm:$0xff] %vm5045, %v4892
  %5066 = vst.msk [vmem:[#allocation4 + $0x140] sm:$0xff] %vm5045, %v4894
  %5067 = vst.msk [vmem:[#allocation4 + $0x150] sm:$0xff] %vm5045, %v4896
  %5068 = vst.msk [vmem:[#allocation4 + $0x160] sm:$0xff] %vm5045, %v4898
  %5069 = vst.msk [vmem:[#allocation4 + $0x170] sm:$0xff] %vm5045, %v4900
  %5070 = vst.msk [vmem:[#allocation4 + $0x180] sm:$0xff] %vm5045, %v4902
  %5071 = vst.msk [vmem:[#allocation4 + $0x190] sm:$0xff] %vm5045, %v4904
  %5072 = vst.msk [vmem:[#allocation4 + $0x1a0] sm:$0xff] %vm5045, %v4906
  %5073 = vst.msk [vmem:[#allocation4 + $0x1b0] sm:$0xff] %vm5045, %v4908
  %5074 = vst.msk [vmem:[#allocation4 + $0x1c0] sm:$0xff] %vm5045, %v4910
  %5075 = vst.msk [vmem:[#allocation4 + $0x1d0] sm:$0xff] %vm5045, %v4912
  %5076 = vst.msk [vmem:[#allocation4 + $0x1e0] sm:$0xff] %vm5045, %v4914
  %5077 = vst.msk [vmem:[#allocation4 + $0x1f0] sm:$0xff] %vm5045, %v4916
  %5078 = vst.msk [vmem:[#allocation4 + $0x200] sm:$0xff] %vm5045, %v4918
  %5079 = vst.msk [vmem:[#allocation4 + $0x210] sm:$0xff] %vm5045, %v4920
  %5080 = vst.msk [vmem:[#allocation4 + $0x220] sm:$0xff] %vm5045, %v4922
  %5081 = vst.msk [vmem:[#allocation4 + $0x230] sm:$0xff] %vm5045, %v4924
  %5082 = vst.msk [vmem:[#allocation4 + $0x240] sm:$0xff] %vm5045, %v4926
  %5083 = vst.msk [vmem:[#allocation4 + $0x250] sm:$0xff] %vm5045, %v4928
  %5084 = vst.msk [vmem:[#allocation4 + $0x260] sm:$0xff] %vm5045, %v4930
  %5085 = vst.msk [vmem:[#allocation4 + $0x270] sm:$0xff] %vm5045, %v4932
  %5086 = vst.msk [vmem:[#allocation4 + $0x280] sm:$0xff] %vm5045, %v4934
  %5087 = vst.msk [vmem:[#allocation4 + $0x290] sm:$0xff] %vm5045, %v4936
  %5088 = vst.msk [vmem:[#allocation4 + $0x2a0] sm:$0xff] %vm5045, %v4938
  %5089 = vst.msk [vmem:[#allocation4 + $0x2b0] sm:$0xff] %vm5045, %v4940
  %5090 = vst.msk [vmem:[#allocation4 + $0x2c0] sm:$0xff] %vm5045, %v4942
  %5091 = vst.msk [vmem:[#allocation4 + $0x2d0] sm:$0xff] %vm5045, %v4944
  %5092 = vst.msk [vmem:[#allocation4 + $0x2e0] sm:$0xff] %vm5045, %v4946
  %5093 = vst.msk [vmem:[#allocation4 + $0x2f0] sm:$0xff] %vm5045, %v4948
  %5094 = vst.msk [vmem:[#allocation4 + $0x300] sm:$0xff] %vm5045, %v4950
  %5095 = vst.msk [vmem:[#allocation4 + $0x310] sm:$0xff] %vm5045, %v4952
  %5096 = vst.msk [vmem:[#allocation4 + $0x320] sm:$0xff] %vm5045, %v4954
  %5097 = vst.msk [vmem:[#allocation4 + $0x330] sm:$0xff] %vm5045, %v4956
  %5098 = vst.msk [vmem:[#allocation4 + $0x340] sm:$0xff] %vm5045, %v4958
  %5099 = vst.msk [vmem:[#allocation4 + $0x350] sm:$0xff] %vm5045, %v4960
  %5100 = vst.msk [vmem:[#allocation4 + $0x360] sm:$0xff] %vm5045, %v4962
  %5101 = vst.msk [vmem:[#allocation4 + $0x370] sm:$0xff] %vm5045, %v4964
  %5102 = vst.msk [vmem:[#allocation4 + $0x380] sm:$0xff] %vm5045, %v4966
  %5103 = vst.msk [vmem:[#allocation4 + $0x390] sm:$0xff] %vm5045, %v4968
  %5104 = vst.msk [vmem:[#allocation4 + $0x3a0] sm:$0xff] %vm5045, %v4970
  %5105 = vst.msk [vmem:[#allocation4 + $0x3b0] sm:$0xff] %vm5045, %v4972
  %5106 = vst.msk [vmem:[#allocation4 + $0x3c0] sm:$0xff] %vm5045, %v4974
  %5107 = vst.msk [vmem:[#allocation4 + $0x3d0] sm:$0xff] %vm5045, %v4976
  %5108 = vst.msk [vmem:[#allocation4 + $0x3e0] sm:$0xff] %vm5045, %v4978
  %5109 = vst.msk [vmem:[#allocation4 + $0x3f0] sm:$0xff] %vm5045, %v4980
  %v5110 = vrot.slane %v3526, 2
  %v5111 = vrot.slane %v3527, 2
  %v5112 = vsel %vm714, %v5110, %v5111
  %v5113 = vrot.slane %v3528, 2
  %v5114 = vsel %vm714, %v5111, %v5113
  %v5115 = vrot.slane %v3580, 2
  %v5116 = vrot.slane %v3581, 2
  %v5117 = vsel %vm714, %v5115, %v5116
  %v5118 = vrot.slane %v3582, 2
  %v5119 = vsel %vm714, %v5116, %v5118
  %5120 = vrot.lane.b32.xlu0 %v4170, 80
  %v5121 = vpop.permute.xlu0 %5120
  %5122 = vrot.lane.b32.xlu0 %v4172, 80
  %v5123 = vpop.permute.xlu0 %5122
  %5124 = vrot.lane.b32.xlu0 %v4175, 80
  %v5125 = vpop.permute.xlu0 %5124
  %5126 = vrot.lane.b32.xlu0 %v4177, 80
  %v5127 = vpop.permute.xlu0 %5126
  %5128 = vrot.lane.b32.xlu0 %v4180, 80
  %v5129 = vpop.permute.xlu0 %5128
  %5130 = vrot.lane.b32.xlu0 %v4182, 80
  %v5131 = vpop.permute.xlu0 %5130
  %5132 = vrot.lane.b32.xlu0 %v4185, 80
  %v5133 = vpop.permute.xlu0 %5132
  %5134 = vrot.lane.b32.xlu0 %v4187, 80
  %v5135 = vpop.permute.xlu0 %5134
  %5136 = vrot.lane.b32.xlu0 %v4190, 80
  %v5137 = vpop.permute.xlu0 %5136
  %5138 = vrot.lane.b32.xlu0 %v4192, 80
  %v5139 = vpop.permute.xlu0 %5138
  %5140 = vrot.lane.b32.xlu0 %v4195, 80
  %v5141 = vpop.permute.xlu0 %5140
  %5142 = vrot.lane.b32.xlu0 %v4197, 80
  %v5143 = vpop.permute.xlu0 %5142
  %5144 = vrot.lane.b32.xlu0 %v4200, 80
  %v5145 = vpop.permute.xlu0 %5144
  %5146 = vrot.lane.b32.xlu0 %v4202, 80
  %v5147 = vpop.permute.xlu0 %5146
  %5148 = vrot.lane.b32.xlu0 %v4205, 80
  %v5149 = vpop.permute.xlu0 %5148
  %5150 = vrot.lane.b32.xlu0 %v4207, 80
  %v5151 = vpop.permute.xlu0 %5150
  %5152 = vrot.lane.b32.xlu0 %v4210, 80
  %v5153 = vpop.permute.xlu0 %5152
  %5154 = vrot.lane.b32.xlu0 %v4212, 80
  %v5155 = vpop.permute.xlu0 %5154
  %5156 = vrot.lane.b32.xlu0 %v4215, 80
  %v5157 = vpop.permute.xlu0 %5156
  %5158 = vrot.lane.b32.xlu0 %v4217, 80
  %v5159 = vpop.permute.xlu0 %5158
  %5160 = vrot.lane.b32.xlu0 %v4220, 80
  %v5161 = vpop.permute.xlu0 %5160
  %5162 = vrot.lane.b32.xlu0 %v4222, 80
  %v5163 = vpop.permute.xlu0 %5162
  %5164 = vrot.lane.b32.xlu0 %v4225, 80
  %v5165 = vpop.permute.xlu0 %5164
  %5166 = vrot.lane.b32.xlu0 %v4227, 80
  %v5167 = vpop.permute.xlu0 %5166
  %5168 = vrot.lane.b32.xlu0 %v4230, 80
  %v5169 = vpop.permute.xlu0 %5168
  %5170 = vrot.lane.b32.xlu0 %v4232, 80
  %v5171 = vpop.permute.xlu0 %5170
  %5172 = vrot.lane.b32.xlu0 %v4235, 80
  %v5173 = vpop.permute.xlu0 %5172
  %5174 = vrot.lane.b32.xlu0 %v4237, 80
  %v5175 = vpop.permute.xlu0 %5174
  %5176 = vrot.lane.b32.xlu0 %v4240, 80
  %v5177 = vpop.permute.xlu0 %5176
  %5178 = vrot.lane.b32.xlu0 %v4242, 80
  %v5179 = vpop.permute.xlu0 %5178
  %5180 = vrot.lane.b32.xlu0 %v5112, 80
  %v5181 = vpop.permute.xlu0 %5180
  %5182 = vrot.lane.b32.xlu0 %v5114, 80
  %v5183 = vpop.permute.xlu0 %5182
  %5184 = vrot.lane.b32.xlu0 %v4250, 80
  %v5185 = vpop.permute.xlu0 %5184
  %5186 = vrot.lane.b32.xlu0 %v4252, 80
  %v5187 = vpop.permute.xlu0 %5186
  %5188 = vrot.lane.b32.xlu0 %v4255, 80
  %v5189 = vpop.permute.xlu0 %5188
  %5190 = vrot.lane.b32.xlu0 %v4257, 80
  %v5191 = vpop.permute.xlu0 %5190
  %5192 = vrot.lane.b32.xlu0 %v4260, 80
  %v5193 = vpop.permute.xlu0 %5192
  %5194 = vrot.lane.b32.xlu0 %v4262, 80
  %v5195 = vpop.permute.xlu0 %5194
  %5196 = vrot.lane.b32.xlu0 %v4265, 80
  %v5197 = vpop.permute.xlu0 %5196
  %5198 = vrot.lane.b32.xlu0 %v4267, 80
  %v5199 = vpop.permute.xlu0 %5198
  %5200 = vrot.lane.b32.xlu0 %v4270, 80
  %v5201 = vpop.permute.xlu0 %5200
  %5202 = vrot.lane.b32.xlu0 %v4272, 80
  %v5203 = vpop.permute.xlu0 %5202
  %5204 = vrot.lane.b32.xlu0 %v4275, 80
  %v5205 = vpop.permute.xlu0 %5204
  %5206 = vrot.lane.b32.xlu0 %v4277, 80
  %v5207 = vpop.permute.xlu0 %5206
  %5208 = vrot.lane.b32.xlu0 %v4280, 80
  %v5209 = vpop.permute.xlu0 %5208
  %5210 = vrot.lane.b32.xlu0 %v4282, 80
  %v5211 = vpop.permute.xlu0 %5210
  %5212 = vrot.lane.b32.xlu0 %v4285, 80
  %v5213 = vpop.permute.xlu0 %5212
  %5214 = vrot.lane.b32.xlu0 %v4287, 80
  %v5215 = vpop.permute.xlu0 %5214
  %5216 = vrot.lane.b32.xlu0 %v4290, 80
  %v5217 = vpop.permute.xlu0 %5216
  %5218 = vrot.lane.b32.xlu0 %v4292, 80
  %v5219 = vpop.permute.xlu0 %5218
  %5220 = vrot.lane.b32.xlu0 %v4295, 80
  %v5221 = vpop.permute.xlu0 %5220
  %5222 = vrot.lane.b32.xlu0 %v4297, 80
  %v5223 = vpop.permute.xlu0 %5222
  %5224 = vrot.lane.b32.xlu0 %v4300, 80
  %v5225 = vpop.permute.xlu0 %5224
  %5226 = vrot.lane.b32.xlu0 %v4302, 80
  %v5227 = vpop.permute.xlu0 %5226
  %5228 = vrot.lane.b32.xlu0 %v4305, 80
  %v5229 = vpop.permute.xlu0 %5228
  %5230 = vrot.lane.b32.xlu0 %v4307, 80
  %v5231 = vpop.permute.xlu0 %5230
  %5232 = vrot.lane.b32.xlu0 %v4310, 80
  %v5233 = vpop.permute.xlu0 %5232
  %5234 = vrot.lane.b32.xlu0 %v4312, 80
  %v5235 = vpop.permute.xlu0 %5234
  %5236 = vrot.lane.b32.xlu0 %v4315, 80
  %v5237 = vpop.permute.xlu0 %5236
  %5238 = vrot.lane.b32.xlu0 %v4317, 80
  %v5239 = vpop.permute.xlu0 %5238
  %5240 = vrot.lane.b32.xlu0 %v4320, 80
  %v5241 = vpop.permute.xlu0 %5240
  %5242 = vrot.lane.b32.xlu0 %v4322, 80
  %v5243 = vpop.permute.xlu0 %5242
  %5244 = vrot.lane.b32.xlu0 %v5117, 80
  %v5245 = vpop.permute.xlu0 %5244
  %5246 = vrot.lane.b32.xlu0 %v5119, 80
  %v5247 = vpop.permute.xlu0 %5246
  %vm5312 = vcmask 786048
  %5313 = vst.msk [vmem:[#allocation4] sm:$0xff] %vm5312, %v5121
  %5314 = vst.msk [vmem:[#allocation4 + $0x10] sm:$0xff] %vm5312, %v5123
  %5315 = vst.msk [vmem:[#allocation4 + $0x20] sm:$0xff] %vm5312, %v5125
  %5316 = vst.msk [vmem:[#allocation4 + $0x30] sm:$0xff] %vm5312, %v5127
  %5317 = vst.msk [vmem:[#allocation4 + $0x40] sm:$0xff] %vm5312, %v5129
  %5318 = vst.msk [vmem:[#allocation4 + $0x50] sm:$0xff] %vm5312, %v5131
  %5319 = vst.msk [vmem:[#allocation4 + $0x60] sm:$0xff] %vm5312, %v5133
  %5320 = vst.msk [vmem:[#allocation4 + $0x70] sm:$0xff] %vm5312, %v5135
  %5321 = vst.msk [vmem:[#allocation4 + $0x80] sm:$0xff] %vm5312, %v5137
  %5322 = vst.msk [vmem:[#allocation4 + $0x90] sm:$0xff] %vm5312, %v5139
  %5323 = vst.msk [vmem:[#allocation4 + $0xa0] sm:$0xff] %vm5312, %v5141
  %5324 = vst.msk [vmem:[#allocation4 + $0xb0] sm:$0xff] %vm5312, %v5143
  %5325 = vst.msk [vmem:[#allocation4 + $0xc0] sm:$0xff] %vm5312, %v5145
  %5326 = vst.msk [vmem:[#allocation4 + $0xd0] sm:$0xff] %vm5312, %v5147
  %5327 = vst.msk [vmem:[#allocation4 + $0xe0] sm:$0xff] %vm5312, %v5149
  %5328 = vst.msk [vmem:[#allocation4 + $0xf0] sm:$0xff] %vm5312, %v5151
  %5329 = vst.msk [vmem:[#allocation4 + $0x100] sm:$0xff] %vm5312, %v5153
  %5330 = vst.msk [vmem:[#allocation4 + $0x110] sm:$0xff] %vm5312, %v5155
  %5331 = vst.msk [vmem:[#allocation4 + $0x120] sm:$0xff] %vm5312, %v5157
  %5332 = vst.msk [vmem:[#allocation4 + $0x130] sm:$0xff] %vm5312, %v5159
  %5333 = vst.msk [vmem:[#allocation4 + $0x140] sm:$0xff] %vm5312, %v5161
  %5334 = vst.msk [vmem:[#allocation4 + $0x150] sm:$0xff] %vm5312, %v5163
  %5335 = vst.msk [vmem:[#allocation4 + $0x160] sm:$0xff] %vm5312, %v5165
  %5336 = vst.msk [vmem:[#allocation4 + $0x170] sm:$0xff] %vm5312, %v5167
  %5337 = vst.msk [vmem:[#allocation4 + $0x180] sm:$0xff] %vm5312, %v5169
  %5338 = vst.msk [vmem:[#allocation4 + $0x190] sm:$0xff] %vm5312, %v5171
  %5339 = vst.msk [vmem:[#allocation4 + $0x1a0] sm:$0xff] %vm5312, %v5173
  %5340 = vst.msk [vmem:[#allocation4 + $0x1b0] sm:$0xff] %vm5312, %v5175
  %5341 = vst.msk [vmem:[#allocation4 + $0x1c0] sm:$0xff] %vm5312, %v5177
  %5342 = vst.msk [vmem:[#allocation4 + $0x1d0] sm:$0xff] %vm5312, %v5179
  %5343 = vst.msk [vmem:[#allocation4 + $0x1e0] sm:$0xff] %vm5312, %v5181
  %5344 = vst.msk [vmem:[#allocation4 + $0x1f0] sm:$0xff] %vm5312, %v5183
  %5345 = vst.msk [vmem:[#allocation4 + $0x200] sm:$0xff] %vm5312, %v5185
  %5346 = vst.msk [vmem:[#allocation4 + $0x210] sm:$0xff] %vm5312, %v5187
  %5347 = vst.msk [vmem:[#allocation4 + $0x220] sm:$0xff] %vm5312, %v5189
  %5348 = vst.msk [vmem:[#allocation4 + $0x230] sm:$0xff] %vm5312, %v5191
  %5349 = vst.msk [vmem:[#allocation4 + $0x240] sm:$0xff] %vm5312, %v5193
  %5350 = vst.msk [vmem:[#allocation4 + $0x250] sm:$0xff] %vm5312, %v5195
  %5351 = vst.msk [vmem:[#allocation4 + $0x260] sm:$0xff] %vm5312, %v5197
  %5352 = vst.msk [vmem:[#allocation4 + $0x270] sm:$0xff] %vm5312, %v5199
  %5353 = vst.msk [vmem:[#allocation4 + $0x280] sm:$0xff] %vm5312, %v5201
  %5354 = vst.msk [vmem:[#allocation4 + $0x290] sm:$0xff] %vm5312, %v5203
  %5355 = vst.msk [vmem:[#allocation4 + $0x2a0] sm:$0xff] %vm5312, %v5205
  %5356 = vst.msk [vmem:[#allocation4 + $0x2b0] sm:$0xff] %vm5312, %v5207
  %5357 = vst.msk [vmem:[#allocation4 + $0x2c0] sm:$0xff] %vm5312, %v5209
  %5358 = vst.msk [vmem:[#allocation4 + $0x2d0] sm:$0xff] %vm5312, %v5211
  %5359 = vst.msk [vmem:[#allocation4 + $0x2e0] sm:$0xff] %vm5312, %v5213
  %5360 = vst.msk [vmem:[#allocation4 + $0x2f0] sm:$0xff] %vm5312, %v5215
  %5361 = vst.msk [vmem:[#allocation4 + $0x300] sm:$0xff] %vm5312, %v5217
  %5362 = vst.msk [vmem:[#allocation4 + $0x310] sm:$0xff] %vm5312, %v5219
  %5363 = vst.msk [vmem:[#allocation4 + $0x320] sm:$0xff] %vm5312, %v5221
  %5364 = vst.msk [vmem:[#allocation4 + $0x330] sm:$0xff] %vm5312, %v5223
  %5365 = vst.msk [vmem:[#allocation4 + $0x340] sm:$0xff] %vm5312, %v5225
  %5366 = vst.msk [vmem:[#allocation4 + $0x350] sm:$0xff] %vm5312, %v5227
  %5367 = vst.msk [vmem:[#allocation4 + $0x360] sm:$0xff] %vm5312, %v5229
  %5368 = vst.msk [vmem:[#allocation4 + $0x370] sm:$0xff] %vm5312, %v5231
  %5369 = vst.msk [vmem:[#allocation4 + $0x380] sm:$0xff] %vm5312, %v5233
  %5370 = vst.msk [vmem:[#allocation4 + $0x390] sm:$0xff] %vm5312, %v5235
  %5371 = vst.msk [vmem:[#allocation4 + $0x3a0] sm:$0xff] %vm5312, %v5237
  %5372 = vst.msk [vmem:[#allocation4 + $0x3b0] sm:$0xff] %vm5312, %v5239
  %5373 = vst.msk [vmem:[#allocation4 + $0x3c0] sm:$0xff] %vm5312, %v5241
  %5374 = vst.msk [vmem:[#allocation4 + $0x3d0] sm:$0xff] %vm5312, %v5243
  %5375 = vst.msk [vmem:[#allocation4 + $0x3e0] sm:$0xff] %vm5312, %v5245
  %5376 = vst.msk [vmem:[#allocation4 + $0x3f0] sm:$0xff] %vm5312, %v5247
  %5381 = vrot.lane.b32.xlu0 %v3484, 96
  %v5382 = vpop.permute.xlu0 %5381
  %5383 = vrot.lane.b32.xlu0 %v3485, 96
  %v5384 = vpop.permute.xlu0 %5383
  %5385 = vrot.lane.b32.xlu0 %v3487, 96
  %v5386 = vpop.permute.xlu0 %5385
  %5387 = vrot.lane.b32.xlu0 %v3488, 96
  %v5388 = vpop.permute.xlu0 %5387
  %5389 = vrot.lane.b32.xlu0 %v3490, 96
  %v5390 = vpop.permute.xlu0 %5389
  %5391 = vrot.lane.b32.xlu0 %v3491, 96
  %v5392 = vpop.permute.xlu0 %5391
  %5393 = vrot.lane.b32.xlu0 %v3493, 96
  %v5394 = vpop.permute.xlu0 %5393
  %5395 = vrot.lane.b32.xlu0 %v3494, 96
  %v5396 = vpop.permute.xlu0 %5395
  %5397 = vrot.lane.b32.xlu0 %v3496, 96
  %v5398 = vpop.permute.xlu0 %5397
  %5399 = vrot.lane.b32.xlu0 %v3497, 96
  %v5400 = vpop.permute.xlu0 %5399
  %5401 = vrot.lane.b32.xlu0 %v3499, 96
  %v5402 = vpop.permute.xlu0 %5401
  %5403 = vrot.lane.b32.xlu0 %v3500, 96
  %v5404 = vpop.permute.xlu0 %5403
  %5405 = vrot.lane.b32.xlu0 %v3502, 96
  %v5406 = vpop.permute.xlu0 %5405
  %5407 = vrot.lane.b32.xlu0 %v3503, 96
  %v5408 = vpop.permute.xlu0 %5407
  %5409 = vrot.lane.b32.xlu0 %v3505, 96
  %v5410 = vpop.permute.xlu0 %5409
  %5411 = vrot.lane.b32.xlu0 %v3506, 96
  %v5412 = vpop.permute.xlu0 %5411
  %5413 = vrot.lane.b32.xlu0 %v3508, 96
  %v5414 = vpop.permute.xlu0 %5413
  %5415 = vrot.lane.b32.xlu0 %v3509, 96
  %v5416 = vpop.permute.xlu0 %5415
  %5417 = vrot.lane.b32.xlu0 %v3511, 96
  %v5418 = vpop.permute.xlu0 %5417
  %5419 = vrot.lane.b32.xlu0 %v3512, 96
  %v5420 = vpop.permute.xlu0 %5419
  %5421 = vrot.lane.b32.xlu0 %v3514, 96
  %v5422 = vpop.permute.xlu0 %5421
  %5423 = vrot.lane.b32.xlu0 %v3515, 96
  %v5424 = vpop.permute.xlu0 %5423
  %5425 = vrot.lane.b32.xlu0 %v3517, 96
  %v5426 = vpop.permute.xlu0 %5425
  %5427 = vrot.lane.b32.xlu0 %v3518, 96
  %v5428 = vpop.permute.xlu0 %5427
  %5429 = vrot.lane.b32.xlu0 %v3520, 96
  %v5430 = vpop.permute.xlu0 %5429
  %5431 = vrot.lane.b32.xlu0 %v3521, 96
  %v5432 = vpop.permute.xlu0 %5431
  %5433 = vrot.lane.b32.xlu0 %v3523, 96
  %v5434 = vpop.permute.xlu0 %5433
  %5435 = vrot.lane.b32.xlu0 %v3524, 96
  %v5436 = vpop.permute.xlu0 %5435
  %5437 = vrot.lane.b32.xlu0 %v3526, 96
  %v5438 = vpop.permute.xlu0 %5437
  %5439 = vrot.lane.b32.xlu0 %v3527, 96
  %v5440 = vpop.permute.xlu0 %5439
  %5441 = vrot.lane.b32.xlu0 %v3529, 96
  %v5442 = vpop.permute.xlu0 %5441
  %5443 = vrot.lane.b32.xlu0 %v3530, 96
  %v5444 = vpop.permute.xlu0 %5443
  %5445 = vrot.lane.b32.xlu0 %v3538, 96
  %v5446 = vpop.permute.xlu0 %5445
  %5447 = vrot.lane.b32.xlu0 %v3539, 96
  %v5448 = vpop.permute.xlu0 %5447
  %5449 = vrot.lane.b32.xlu0 %v3541, 96
  %v5450 = vpop.permute.xlu0 %5449
  %5451 = vrot.lane.b32.xlu0 %v3542, 96
  %v5452 = vpop.permute.xlu0 %5451
  %5453 = vrot.lane.b32.xlu0 %v3544, 96
  %v5454 = vpop.permute.xlu0 %5453
  %5455 = vrot.lane.b32.xlu0 %v3545, 96
  %v5456 = vpop.permute.xlu0 %5455
  %5457 = vrot.lane.b32.xlu0 %v3547, 96
  %v5458 = vpop.permute.xlu0 %5457
  %5459 = vrot.lane.b32.xlu0 %v3548, 96
  %v5460 = vpop.permute.xlu0 %5459
  %5461 = vrot.lane.b32.xlu0 %v3550, 96
  %v5462 = vpop.permute.xlu0 %5461
  %5463 = vrot.lane.b32.xlu0 %v3551, 96
  %v5464 = vpop.permute.xlu0 %5463
  %5465 = vrot.lane.b32.xlu0 %v3553, 96
  %v5466 = vpop.permute.xlu0 %5465
  %5467 = vrot.lane.b32.xlu0 %v3554, 96
  %v5468 = vpop.permute.xlu0 %5467
  %5469 = vrot.lane.b32.xlu0 %v3556, 96
  %v5470 = vpop.permute.xlu0 %5469
  %5471 = vrot.lane.b32.xlu0 %v3557, 96
  %v5472 = vpop.permute.xlu0 %5471
  %5473 = vrot.lane.b32.xlu0 %v3559, 96
  %v5474 = vpop.permute.xlu0 %5473
  %5475 = vrot.lane.b32.xlu0 %v3560, 96
  %v5476 = vpop.permute.xlu0 %5475
  %5477 = vrot.lane.b32.xlu0 %v3562, 96
  %v5478 = vpop.permute.xlu0 %5477
  %5479 = vrot.lane.b32.xlu0 %v3563, 96
  %v5480 = vpop.permute.xlu0 %5479
  %5481 = vrot.lane.b32.xlu0 %v3565, 96
  %v5482 = vpop.permute.xlu0 %5481
  %5483 = vrot.lane.b32.xlu0 %v3566, 96
  %v5484 = vpop.permute.xlu0 %5483
  %5485 = vrot.lane.b32.xlu0 %v3568, 96
  %v5486 = vpop.permute.xlu0 %5485
  %5487 = vrot.lane.b32.xlu0 %v3569, 96
  %v5488 = vpop.permute.xlu0 %5487
  %5489 = vrot.lane.b32.xlu0 %v3571, 96
  %v5490 = vpop.permute.xlu0 %5489
  %5491 = vrot.lane.b32.xlu0 %v3572, 96
  %v5492 = vpop.permute.xlu0 %5491
  %5493 = vrot.lane.b32.xlu0 %v3574, 96
  %v5494 = vpop.permute.xlu0 %5493
  %5495 = vrot.lane.b32.xlu0 %v3575, 96
  %v5496 = vpop.permute.xlu0 %5495
  %5497 = vrot.lane.b32.xlu0 %v3577, 96
  %v5498 = vpop.permute.xlu0 %5497
  %5499 = vrot.lane.b32.xlu0 %v3578, 96
  %v5500 = vpop.permute.xlu0 %5499
  %5501 = vrot.lane.b32.xlu0 %v3580, 96
  %v5502 = vpop.permute.xlu0 %5501
  %5503 = vrot.lane.b32.xlu0 %v3581, 96
  %v5504 = vpop.permute.xlu0 %5503
  %5505 = vrot.lane.b32.xlu0 %v3583, 96
  %v5506 = vpop.permute.xlu0 %5505
  %5507 = vrot.lane.b32.xlu0 %v3584, 96
  %v5508 = vpop.permute.xlu0 %5507
  %vm5573 = vcmask 917248
  %5574 = vst.msk [vmem:[#allocation4] sm:$0xff] %vm5573, %v5382
  %5575 = vst.msk [vmem:[#allocation4 + $0x10] sm:$0xff] %vm5573, %v5384
  %5576 = vst.msk [vmem:[#allocation4 + $0x20] sm:$0xff] %vm5573, %v5386
  %5577 = vst.msk [vmem:[#allocation4 + $0x30] sm:$0xff] %vm5573, %v5388
  %5578 = vst.msk [vmem:[#allocation4 + $0x40] sm:$0xff] %vm5573, %v5390
  %5579 = vst.msk [vmem:[#allocation4 + $0x50] sm:$0xff] %vm5573, %v5392
  %5580 = vst.msk [vmem:[#allocation4 + $0x60] sm:$0xff] %vm5573, %v5394
  %5581 = vst.msk [vmem:[#allocation4 + $0x70] sm:$0xff] %vm5573, %v5396
  %5582 = vst.msk [vmem:[#allocation4 + $0x80] sm:$0xff] %vm5573, %v5398
  %5583 = vst.msk [vmem:[#allocation4 + $0x90] sm:$0xff] %vm5573, %v5400
  %5584 = vst.msk [vmem:[#allocation4 + $0xa0] sm:$0xff] %vm5573, %v5402
  %5585 = vst.msk [vmem:[#allocation4 + $0xb0] sm:$0xff] %vm5573, %v5404
  %5586 = vst.msk [vmem:[#allocation4 + $0xc0] sm:$0xff] %vm5573, %v5406
  %5587 = vst.msk [vmem:[#allocation4 + $0xd0] sm:$0xff] %vm5573, %v5408
  %5588 = vst.msk [vmem:[#allocation4 + $0xe0] sm:$0xff] %vm5573, %v5410
  %5589 = vst.msk [vmem:[#allocation4 + $0xf0] sm:$0xff] %vm5573, %v5412
  %5590 = vst.msk [vmem:[#allocation4 + $0x100] sm:$0xff] %vm5573, %v5414
  %5591 = vst.msk [vmem:[#allocation4 + $0x110] sm:$0xff] %vm5573, %v5416
  %5592 = vst.msk [vmem:[#allocation4 + $0x120] sm:$0xff] %vm5573, %v5418
  %5593 = vst.msk [vmem:[#allocation4 + $0x130] sm:$0xff] %vm5573, %v5420
  %5594 = vst.msk [vmem:[#allocation4 + $0x140] sm:$0xff] %vm5573, %v5422
  %5595 = vst.msk [vmem:[#allocation4 + $0x150] sm:$0xff] %vm5573, %v5424
  %5596 = vst.msk [vmem:[#allocation4 + $0x160] sm:$0xff] %vm5573, %v5426
  %5597 = vst.msk [vmem:[#allocation4 + $0x170] sm:$0xff] %vm5573, %v5428
  %5598 = vst.msk [vmem:[#allocation4 + $0x180] sm:$0xff] %vm5573, %v5430
  %5599 = vst.msk [vmem:[#allocation4 + $0x190] sm:$0xff] %vm5573, %v5432
  %5600 = vst.msk [vmem:[#allocation4 + $0x1a0] sm:$0xff] %vm5573, %v5434
  %5601 = vst.msk [vmem:[#allocation4 + $0x1b0] sm:$0xff] %vm5573, %v5436
  %5602 = vst.msk [vmem:[#allocation4 + $0x1c0] sm:$0xff] %vm5573, %v5438
  %5603 = vst.msk [vmem:[#allocation4 + $0x1d0] sm:$0xff] %vm5573, %v5440
  %5604 = vst.msk [vmem:[#allocation4 + $0x1e0] sm:$0xff] %vm5573, %v5442
  %5605 = vst.msk [vmem:[#allocation4 + $0x1f0] sm:$0xff] %vm5573, %v5444
  %5606 = vst.msk [vmem:[#allocation4 + $0x200] sm:$0xff] %vm5573, %v5446
  %5607 = vst.msk [vmem:[#allocation4 + $0x210] sm:$0xff] %vm5573, %v5448
  %5608 = vst.msk [vmem:[#allocation4 + $0x220] sm:$0xff] %vm5573, %v5450
  %5609 = vst.msk [vmem:[#allocation4 + $0x230] sm:$0xff] %vm5573, %v5452
  %5610 = vst.msk [vmem:[#allocation4 + $0x240] sm:$0xff] %vm5573, %v5454
  %5611 = vst.msk [vmem:[#allocation4 + $0x250] sm:$0xff] %vm5573, %v5456
  %5612 = vst.msk [vmem:[#allocation4 + $0x260] sm:$0xff] %vm5573, %v5458
  %5613 = vst.msk [vmem:[#allocation4 + $0x270] sm:$0xff] %vm5573, %v5460
  %5614 = vst.msk [vmem:[#allocation4 + $0x280] sm:$0xff] %vm5573, %v5462
  %5615 = vst.msk [vmem:[#allocation4 + $0x290] sm:$0xff] %vm5573, %v5464
  %5616 = vst.msk [vmem:[#allocation4 + $0x2a0] sm:$0xff] %vm5573, %v5466
  %5617 = vst.msk [vmem:[#allocation4 + $0x2b0] sm:$0xff] %vm5573, %v5468
  %5618 = vst.msk [vmem:[#allocation4 + $0x2c0] sm:$0xff] %vm5573, %v5470
  %5619 = vst.msk [vmem:[#allocation4 + $0x2d0] sm:$0xff] %vm5573, %v5472
  %5620 = vst.msk [vmem:[#allocation4 + $0x2e0] sm:$0xff] %vm5573, %v5474
  %5621 = vst.msk [vmem:[#allocation4 + $0x2f0] sm:$0xff] %vm5573, %v5476
  %5622 = vst.msk [vmem:[#allocation4 + $0x300] sm:$0xff] %vm5573, %v5478
  %5623 = vst.msk [vmem:[#allocation4 + $0x310] sm:$0xff] %vm5573, %v5480
  %5624 = vst.msk [vmem:[#allocation4 + $0x320] sm:$0xff] %vm5573, %v5482
  %5625 = vst.msk [vmem:[#allocation4 + $0x330] sm:$0xff] %vm5573, %v5484
  %5626 = vst.msk [vmem:[#allocation4 + $0x340] sm:$0xff] %vm5573, %v5486
  %5627 = vst.msk [vmem:[#allocation4 + $0x350] sm:$0xff] %vm5573, %v5488
  %5628 = vst.msk [vmem:[#allocation4 + $0x360] sm:$0xff] %vm5573, %v5490
  %5629 = vst.msk [vmem:[#allocation4 + $0x370] sm:$0xff] %vm5573, %v5492
  %5630 = vst.msk [vmem:[#allocation4 + $0x380] sm:$0xff] %vm5573, %v5494
  %5631 = vst.msk [vmem:[#allocation4 + $0x390] sm:$0xff] %vm5573, %v5496
  %5632 = vst.msk [vmem:[#allocation4 + $0x3a0] sm:$0xff] %vm5573, %v5498
  %5633 = vst.msk [vmem:[#allocation4 + $0x3b0] sm:$0xff] %vm5573, %v5500
  %5634 = vst.msk [vmem:[#allocation4 + $0x3c0] sm:$0xff] %vm5573, %v5502
  %5635 = vst.msk [vmem:[#allocation4 + $0x3d0] sm:$0xff] %vm5573, %v5504
  %5636 = vst.msk [vmem:[#allocation4 + $0x3e0] sm:$0xff] %vm5573, %v5506
  %5637 = vst.msk [vmem:[#allocation4 + $0x3f0] sm:$0xff] %vm5573, %v5508
  %v5640 = vrot.slane %v3529, 1
  %v5641 = vrot.slane %v3530, 1
  %v5642 = vsel %vm296, %v5640, %v5641
  %v5643 = vrot.slane %v3531, 1
  %v5644 = vsel %vm296, %v5641, %v5643
  %v5645 = vrot.slane %v3583, 1
  %v5646 = vrot.slane %v3584, 1
  %v5647 = vsel %vm296, %v5645, %v5646
  %v5648 = vrot.slane %v3585, 1
  %v5649 = vsel %vm296, %v5646, %v5648
  %5650 = vrot.lane.b32.xlu0 %v3758, 112
  %v5651 = vpop.permute.xlu0 %5650
  %5652 = vrot.lane.b32.xlu0 %v3760, 112
  %v5653 = vpop.permute.xlu0 %5652
  %5654 = vrot.lane.b32.xlu0 %v3763, 112
  %v5655 = vpop.permute.xlu0 %5654
  %5656 = vrot.lane.b32.xlu0 %v3765, 112
  %v5657 = vpop.permute.xlu0 %5656
  %5658 = vrot.lane.b32.xlu0 %v3768, 112
  %v5659 = vpop.permute.xlu0 %5658
  %5660 = vrot.lane.b32.xlu0 %v3770, 112
  %v5661 = vpop.permute.xlu0 %5660
  %5662 = vrot.lane.b32.xlu0 %v3773, 112
  %v5663 = vpop.permute.xlu0 %5662
  %5664 = vrot.lane.b32.xlu0 %v3775, 112
  %v5665 = vpop.permute.xlu0 %5664
  %5666 = vrot.lane.b32.xlu0 %v3778, 112
  %v5667 = vpop.permute.xlu0 %5666
  %5668 = vrot.lane.b32.xlu0 %v3780, 112
  %v5669 = vpop.permute.xlu0 %5668
  %5670 = vrot.lane.b32.xlu0 %v3783, 112
  %v5671 = vpop.permute.xlu0 %5670
  %5672 = vrot.lane.b32.xlu0 %v3785, 112
  %v5673 = vpop.permute.xlu0 %5672
  %5674 = vrot.lane.b32.xlu0 %v3788, 112
  %v5675 = vpop.permute.xlu0 %5674
  %5676 = vrot.lane.b32.xlu0 %v3790, 112
  %v5677 = vpop.permute.xlu0 %5676
  %5678 = vrot.lane.b32.xlu0 %v3793, 112
  %v5679 = vpop.permute.xlu0 %5678
  %5680 = vrot.lane.b32.xlu0 %v3795, 112
  %v5681 = vpop.permute.xlu0 %5680
  %5682 = vrot.lane.b32.xlu0 %v3798, 112
  %v5683 = vpop.permute.xlu0 %5682
  %5684 = vrot.lane.b32.xlu0 %v3800, 112
  %v5685 = vpop.permute.xlu0 %5684
  %5686 = vrot.lane.b32.xlu0 %v3803, 112
  %v5687 = vpop.permute.xlu0 %5686
  %5688 = vrot.lane.b32.xlu0 %v3805, 112
  %v5689 = vpop.permute.xlu0 %5688
  %5690 = vrot.lane.b32.xlu0 %v3808, 112
  %v5691 = vpop.permute.xlu0 %5690
  %5692 = vrot.lane.b32.xlu0 %v3810, 112
  %v5693 = vpop.permute.xlu0 %5692
  %5694 = vrot.lane.b32.xlu0 %v3813, 112
  %v5695 = vpop.permute.xlu0 %5694
  %5696 = vrot.lane.b32.xlu0 %v3815, 112
  %v5697 = vpop.permute.xlu0 %5696
  %5698 = vrot.lane.b32.xlu0 %v3818, 112
  %v5699 = vpop.permute.xlu0 %5698
  %5700 = vrot.lane.b32.xlu0 %v3820, 112
  %v5701 = vpop.permute.xlu0 %5700
  %5702 = vrot.lane.b32.xlu0 %v3823, 112
  %v5703 = vpop.permute.xlu0 %5702
  %5704 = vrot.lane.b32.xlu0 %v3825, 112
  %v5705 = vpop.permute.xlu0 %5704
  %5706 = vrot.lane.b32.xlu0 %v4845, 112
  %v5707 = vpop.permute.xlu0 %5706
  %5708 = vrot.lane.b32.xlu0 %v4847, 112
  %v5709 = vpop.permute.xlu0 %5708
  %5710 = vrot.lane.b32.xlu0 %v5642, 112
  %v5711 = vpop.permute.xlu0 %5710
  %5712 = vrot.lane.b32.xlu0 %v5644, 112
  %v5713 = vpop.permute.xlu0 %5712
  %5714 = vrot.lane.b32.xlu0 %v3838, 112
  %v5715 = vpop.permute.xlu0 %5714
  %5716 = vrot.lane.b32.xlu0 %v3840, 112
  %v5717 = vpop.permute.xlu0 %5716
  %5718 = vrot.lane.b32.xlu0 %v3843, 112
  %v5719 = vpop.permute.xlu0 %5718
  %5720 = vrot.lane.b32.xlu0 %v3845, 112
  %v5721 = vpop.permute.xlu0 %5720
  %5722 = vrot.lane.b32.xlu0 %v3848, 112
  %v5723 = vpop.permute.xlu0 %5722
  %5724 = vrot.lane.b32.xlu0 %v3850, 112
  %v5725 = vpop.permute.xlu0 %5724
  %5726 = vrot.lane.b32.xlu0 %v3853, 112
  %v5727 = vpop.permute.xlu0 %5726
  %5728 = vrot.lane.b32.xlu0 %v3855, 112
  %v5729 = vpop.permute.xlu0 %5728
  %5730 = vrot.lane.b32.xlu0 %v3858, 112
  %v5731 = vpop.permute.xlu0 %5730
  %5732 = vrot.lane.b32.xlu0 %v3860, 112
  %v5733 = vpop.permute.xlu0 %5732
  %5734 = vrot.lane.b32.xlu0 %v3863, 112
  %v5735 = vpop.permute.xlu0 %5734
  %5736 = vrot.lane.b32.xlu0 %v3865, 112
  %v5737 = vpop.permute.xlu0 %5736
  %5738 = vrot.lane.b32.xlu0 %v3868, 112
  %v5739 = vpop.permute.xlu0 %5738
  %5740 = vrot.lane.b32.xlu0 %v3870, 112
  %v5741 = vpop.permute.xlu0 %5740
  %5742 = vrot.lane.b32.xlu0 %v3873, 112
  %v5743 = vpop.permute.xlu0 %5742
  %5744 = vrot.lane.b32.xlu0 %v3875, 112
  %v5745 = vpop.permute.xlu0 %5744
  %5746 = vrot.lane.b32.xlu0 %v3878, 112
  %v5747 = vpop.permute.xlu0 %5746
  %5748 = vrot.lane.b32.xlu0 %v3880, 112
  %v5749 = vpop.permute.xlu0 %5748
  %5750 = vrot.lane.b32.xlu0 %v3883, 112
  %v5751 = vpop.permute.xlu0 %5750
  %5752 = vrot.lane.b32.xlu0 %v3885, 112
  %v5753 = vpop.permute.xlu0 %5752
  %5754 = vrot.lane.b32.xlu0 %v3888, 112
  %v5755 = vpop.permute.xlu0 %5754
  %5756 = vrot.lane.b32.xlu0 %v3890, 112
  %v5757 = vpop.permute.xlu0 %5756
  %5758 = vrot.lane.b32.xlu0 %v3893, 112
  %v5759 = vpop.permute.xlu0 %5758
  %5760 = vrot.lane.b32.xlu0 %v3895, 112
  %v5761 = vpop.permute.xlu0 %5760
  %5762 = vrot.lane.b32.xlu0 %v3898, 112
  %v5763 = vpop.permute.xlu0 %5762
  %5764 = vrot.lane.b32.xlu0 %v3900, 112
  %v5765 = vpop.permute.xlu0 %5764
  %5766 = vrot.lane.b32.xlu0 %v3903, 112
  %v5767 = vpop.permute.xlu0 %5766
  %5768 = vrot.lane.b32.xlu0 %v3905, 112
  %v5769 = vpop.permute.xlu0 %5768
  %5770 = vrot.lane.b32.xlu0 %v4850, 112
  %v5771 = vpop.permute.xlu0 %5770
  %5772 = vrot.lane.b32.xlu0 %v4852, 112
  %v5773 = vpop.permute.xlu0 %5772
  %5774 = vrot.lane.b32.xlu0 %v5647, 112
  %v5775 = vpop.permute.xlu0 %5774
  %5776 = vrot.lane.b32.xlu0 %v5649, 112
  %v5777 = vpop.permute.xlu0 %5776
  %vm5842 = vcmask 1048448
  %5843 = vst.msk [vmem:[#allocation4] sm:$0xff] %vm5842, %v5651
  %5844 = vst.msk [vmem:[#allocation4 + $0x10] sm:$0xff] %vm5842, %v5653
  %5845 = vst.msk [vmem:[#allocation4 + $0x20] sm:$0xff] %vm5842, %v5655
  %5846 = vst.msk [vmem:[#allocation4 + $0x30] sm:$0xff] %vm5842, %v5657
  %5847 = vst.msk [vmem:[#allocation4 + $0x40] sm:$0xff] %vm5842, %v5659
  %5848 = vst.msk [vmem:[#allocation4 + $0x50] sm:$0xff] %vm5842, %v5661
  %5849 = vst.msk [vmem:[#allocation4 + $0x60] sm:$0xff] %vm5842, %v5663
  %5850 = vst.msk [vmem:[#allocation4 + $0x70] sm:$0xff] %vm5842, %v5665
  %5851 = vst.msk [vmem:[#allocation4 + $0x80] sm:$0xff] %vm5842, %v5667
  %5852 = vst.msk [vmem:[#allocation4 + $0x90] sm:$0xff] %vm5842, %v5669
  %5853 = vst.msk [vmem:[#allocation4 + $0xa0] sm:$0xff] %vm5842, %v5671
  %5854 = vst.msk [vmem:[#allocation4 + $0xb0] sm:$0xff] %vm5842, %v5673
  %5855 = vst.msk [vmem:[#allocation4 + $0xc0] sm:$0xff] %vm5842, %v5675
  %5856 = vst.msk [vmem:[#allocation4 + $0xd0] sm:$0xff] %vm5842, %v5677
  %5857 = vst.msk [vmem:[#allocation4 + $0xe0] sm:$0xff] %vm5842, %v5679
  %5858 = vst.msk [vmem:[#allocation4 + $0xf0] sm:$0xff] %vm5842, %v5681
  %5859 = vst.msk [vmem:[#allocation4 + $0x100] sm:$0xff] %vm5842, %v5683
  %5860 = vst.msk [vmem:[#allocation4 + $0x110] sm:$0xff] %vm5842, %v5685
  %5861 = vst.msk [vmem:[#allocation4 + $0x120] sm:$0xff] %vm5842, %v5687
  %5862 = vst.msk [vmem:[#allocation4 + $0x130] sm:$0xff] %vm5842, %v5689
  %5863 = vst.msk [vmem:[#allocation4 + $0x140] sm:$0xff] %vm5842, %v5691
  %5864 = vst.msk [vmem:[#allocation4 + $0x150] sm:$0xff] %vm5842, %v5693
  %5865 = vst.msk [vmem:[#allocation4 + $0x160] sm:$0xff] %vm5842, %v5695
  %5866 = vst.msk [vmem:[#allocation4 + $0x170] sm:$0xff] %vm5842, %v5697
  %5867 = vst.msk [vmem:[#allocation4 + $0x180] sm:$0xff] %vm5842, %v5699
  %5868 = vst.msk [vmem:[#allocation4 + $0x190] sm:$0xff] %vm5842, %v5701
  %5869 = vst.msk [vmem:[#allocation4 + $0x1a0] sm:$0xff] %vm5842, %v5703
  %5870 = vst.msk [vmem:[#allocation4 + $0x1b0] sm:$0xff] %vm5842, %v5705
  %5871 = vst.msk [vmem:[#allocation4 + $0x1c0] sm:$0xff] %vm5842, %v5707
  %5872 = vst.msk [vmem:[#allocation4 + $0x1d0] sm:$0xff] %vm5842, %v5709
  %5873 = vst.msk [vmem:[#allocation4 + $0x1e0] sm:$0xff] %vm5842, %v5711
  %5874 = vst.msk [vmem:[#allocation4 + $0x1f0] sm:$0xff] %vm5842, %v5713
  %5875 = vst.msk [vmem:[#allocation4 + $0x200] sm:$0xff] %vm5842, %v5715
  %5876 = vst.msk [vmem:[#allocation4 + $0x210] sm:$0xff] %vm5842, %v5717
  %5877 = vst.msk [vmem:[#allocation4 + $0x220] sm:$0xff] %vm5842, %v5719
  %5878 = vst.msk [vmem:[#allocation4 + $0x230] sm:$0xff] %vm5842, %v5721
  %5879 = vst.msk [vmem:[#allocation4 + $0x240] sm:$0xff] %vm5842, %v5723
  %5880 = vst.msk [vmem:[#allocation4 + $0x250] sm:$0xff] %vm5842, %v5725
  %5881 = vst.msk [vmem:[#allocation4 + $0x260] sm:$0xff] %vm5842, %v5727
  %5882 = vst.msk [vmem:[#allocation4 + $0x270] sm:$0xff] %vm5842, %v5729
  %5883 = vst.msk [vmem:[#allocation4 + $0x280] sm:$0xff] %vm5842, %v5731
  %5884 = vst.msk [vmem:[#allocation4 + $0x290] sm:$0xff] %vm5842, %v5733
  %5885 = vst.msk [vmem:[#allocation4 + $0x2a0] sm:$0xff] %vm5842, %v5735
  %5886 = vst.msk [vmem:[#allocation4 + $0x2b0] sm:$0xff] %vm5842, %v5737
  %5887 = vst.msk [vmem:[#allocation4 + $0x2c0] sm:$0xff] %vm5842, %v5739
  %5888 = vst.msk [vmem:[#allocation4 + $0x2d0] sm:$0xff] %vm5842, %v5741
  %5889 = vst.msk [vmem:[#allocation4 + $0x2e0] sm:$0xff] %vm5842, %v5743
  %5890 = vst.msk [vmem:[#allocation4 + $0x2f0] sm:$0xff] %vm5842, %v5745
  %5891 = vst.msk [vmem:[#allocation4 + $0x300] sm:$0xff] %vm5842, %v5747
  %5892 = vst.msk [vmem:[#allocation4 + $0x310] sm:$0xff] %vm5842, %v5749
  %5893 = vst.msk [vmem:[#allocation4 + $0x320] sm:$0xff] %vm5842, %v5751
  %5894 = vst.msk [vmem:[#allocation4 + $0x330] sm:$0xff] %vm5842, %v5753
  %5895 = vst.msk [vmem:[#allocation4 + $0x340] sm:$0xff] %vm5842, %v5755
  %5896 = vst.msk [vmem:[#allocation4 + $0x350] sm:$0xff] %vm5842, %v5757
  %5897 = vst.msk [vmem:[#allocation4 + $0x360] sm:$0xff] %vm5842, %v5759
  %5898 = vst.msk [vmem:[#allocation4 + $0x370] sm:$0xff] %vm5842, %v5761
  %5899 = vst.msk [vmem:[#allocation4 + $0x380] sm:$0xff] %vm5842, %v5763
  %5900 = vst.msk [vmem:[#allocation4 + $0x390] sm:$0xff] %vm5842, %v5765
  %5901 = vst.msk [vmem:[#allocation4 + $0x3a0] sm:$0xff] %vm5842, %v5767
  %5902 = vst.msk [vmem:[#allocation4 + $0x3b0] sm:$0xff] %vm5842, %v5769
  %5903 = vst.msk [vmem:[#allocation4 + $0x3c0] sm:$0xff] %vm5842, %v5771
  %5904 = vst.msk [vmem:[#allocation4 + $0x3d0] sm:$0xff] %vm5842, %v5773
  %5905 = vst.msk [vmem:[#allocation4 + $0x3e0] sm:$0xff] %vm5842, %v5775
  %5906 = vst.msk [vmem:[#allocation4 + $0x3f0] sm:$0xff] %vm5842, %v5777
  %v5907 = vrot.slane %v3529, 2
  %v5908 = vrot.slane %v3530, 2
  %v5909 = vsel %vm714, %v5907, %v5908
  %v5910 = vrot.slane %v3531, 2
  %v5911 = vsel %vm714, %v5908, %v5910
  %v5912 = vrot.slane %v3583, 2
  %v5913 = vrot.slane %v3584, 2
  %v5914 = vsel %vm714, %v5912, %v5913
  %v5915 = vrot.slane %v3585, 2
  %v5916 = vsel %vm714, %v5913, %v5915
  %5981 = vst.msk [vmem:[#allocation4 + $0x8] sm:$0xff] %vm3303, %v4175
  %5982 = vst.msk [vmem:[#allocation4 + $0x18] sm:$0xff] %vm3303, %v4177
  %5983 = vst.msk [vmem:[#allocation4 + $0x28] sm:$0xff] %vm3303, %v4180
  %5984 = vst.msk [vmem:[#allocation4 + $0x38] sm:$0xff] %vm3303, %v4182
  %5985 = vst.msk [vmem:[#allocation4 + $0x48] sm:$0xff] %vm3303, %v4185
  %5986 = vst.msk [vmem:[#allocation4 + $0x58] sm:$0xff] %vm3303, %v4187
  %5987 = vst.msk [vmem:[#allocation4 + $0x68] sm:$0xff] %vm3303, %v4190
  %5988 = vst.msk [vmem:[#allocation4 + $0x78] sm:$0xff] %vm3303, %v4192
  %5989 = vst.msk [vmem:[#allocation4 + $0x88] sm:$0xff] %vm3303, %v4195
  %5990 = vst.msk [vmem:[#allocation4 + $0x98] sm:$0xff] %vm3303, %v4197
  %5991 = vst.msk [vmem:[#allocation4 + $0xa8] sm:$0xff] %vm3303, %v4200
  %5992 = vst.msk [vmem:[#allocation4 + $0xb8] sm:$0xff] %vm3303, %v4202
  %5993 = vst.msk [vmem:[#allocation4 + $0xc8] sm:$0xff] %vm3303, %v4205
  %5994 = vst.msk [vmem:[#allocation4 + $0xd8] sm:$0xff] %vm3303, %v4207
  %5995 = vst.msk [vmem:[#allocation4 + $0xe8] sm:$0xff] %vm3303, %v4210
  %5996 = vst.msk [vmem:[#allocation4 + $0xf8] sm:$0xff] %vm3303, %v4212
  %5997 = vst.msk [vmem:[#allocation4 + $0x108] sm:$0xff] %vm3303, %v4215
  %5998 = vst.msk [vmem:[#allocation4 + $0x118] sm:$0xff] %vm3303, %v4217
  %5999 = vst.msk [vmem:[#allocation4 + $0x128] sm:$0xff] %vm3303, %v4220
  %6000 = vst.msk [vmem:[#allocation4 + $0x138] sm:$0xff] %vm3303, %v4222
  %6001 = vst.msk [vmem:[#allocation4 + $0x148] sm:$0xff] %vm3303, %v4225
  %6002 = vst.msk [vmem:[#allocation4 + $0x158] sm:$0xff] %vm3303, %v4227
  %6003 = vst.msk [vmem:[#allocation4 + $0x168] sm:$0xff] %vm3303, %v4230
  %6004 = vst.msk [vmem:[#allocation4 + $0x178] sm:$0xff] %vm3303, %v4232
  %6005 = vst.msk [vmem:[#allocation4 + $0x188] sm:$0xff] %vm3303, %v4235
  %6006 = vst.msk [vmem:[#allocation4 + $0x198] sm:$0xff] %vm3303, %v4237
  %6007 = vst.msk [vmem:[#allocation4 + $0x1a8] sm:$0xff] %vm3303, %v4240
  %6008 = vst.msk [vmem:[#allocation4 + $0x1b8] sm:$0xff] %vm3303, %v4242
  %6009 = vst.msk [vmem:[#allocation4 + $0x1c8] sm:$0xff] %vm3303, %v5112
  %6010 = vst.msk [vmem:[#allocation4 + $0x1d8] sm:$0xff] %vm3303, %v5114
  %6011 = vst.msk [vmem:[#allocation4 + $0x1e8] sm:$0xff] %vm3303, %v5909
  %6012 = vst.msk [vmem:[#allocation4 + $0x1f8] sm:$0xff] %vm3303, %v5911
  %6013 = vst.msk [vmem:[#allocation4 + $0x208] sm:$0xff] %vm3303, %v4255
  %6014 = vst.msk [vmem:[#allocation4 + $0x218] sm:$0xff] %vm3303, %v4257
  %6015 = vst.msk [vmem:[#allocation4 + $0x228] sm:$0xff] %vm3303, %v4260
  %6016 = vst.msk [vmem:[#allocation4 + $0x238] sm:$0xff] %vm3303, %v4262
  %6017 = vst.msk [vmem:[#allocation4 + $0x248] sm:$0xff] %vm3303, %v4265
  %6018 = vst.msk [vmem:[#allocation4 + $0x258] sm:$0xff] %vm3303, %v4267
  %6019 = vst.msk [vmem:[#allocation4 + $0x268] sm:$0xff] %vm3303, %v4270
  %6020 = vst.msk [vmem:[#allocation4 + $0x278] sm:$0xff] %vm3303, %v4272
  %6021 = vst.msk [vmem:[#allocation4 + $0x288] sm:$0xff] %vm3303, %v4275
  %6022 = vst.msk [vmem:[#allocation4 + $0x298] sm:$0xff] %vm3303, %v4277
  %6023 = vst.msk [vmem:[#allocation4 + $0x2a8] sm:$0xff] %vm3303, %v4280
  %6024 = vst.msk [vmem:[#allocation4 + $0x2b8] sm:$0xff] %vm3303, %v4282
  %6025 = vst.msk [vmem:[#allocation4 + $0x2c8] sm:$0xff] %vm3303, %v4285
  %6026 = vst.msk [vmem:[#allocation4 + $0x2d8] sm:$0xff] %vm3303, %v4287
  %6027 = vst.msk [vmem:[#allocation4 + $0x2e8] sm:$0xff] %vm3303, %v4290
  %6028 = vst.msk [vmem:[#allocation4 + $0x2f8] sm:$0xff] %vm3303, %v4292
  %6029 = vst.msk [vmem:[#allocation4 + $0x308] sm:$0xff] %vm3303, %v4295
  %6030 = vst.msk [vmem:[#allocation4 + $0x318] sm:$0xff] %vm3303, %v4297
  %6031 = vst.msk [vmem:[#allocation4 + $0x328] sm:$0xff] %vm3303, %v4300
  %6032 = vst.msk [vmem:[#allocation4 + $0x338] sm:$0xff] %vm3303, %v4302
  %6033 = vst.msk [vmem:[#allocation4 + $0x348] sm:$0xff] %vm3303, %v4305
  %6034 = vst.msk [vmem:[#allocation4 + $0x358] sm:$0xff] %vm3303, %v4307
  %6035 = vst.msk [vmem:[#allocation4 + $0x368] sm:$0xff] %vm3303, %v4310
  %6036 = vst.msk [vmem:[#allocation4 + $0x378] sm:$0xff] %vm3303, %v4312
  %6037 = vst.msk [vmem:[#allocation4 + $0x388] sm:$0xff] %vm3303, %v4315
  %6038 = vst.msk [vmem:[#allocation4 + $0x398] sm:$0xff] %vm3303, %v4317
  %6039 = vst.msk [vmem:[#allocation4 + $0x3a8] sm:$0xff] %vm3303, %v4320
  %6040 = vst.msk [vmem:[#allocation4 + $0x3b8] sm:$0xff] %vm3303, %v4322
  %6041 = vst.msk [vmem:[#allocation4 + $0x3c8] sm:$0xff] %vm3303, %v5117
  %6042 = vst.msk [vmem:[#allocation4 + $0x3d8] sm:$0xff] %vm3303, %v5119
  %6043 = vst.msk [vmem:[#allocation4 + $0x3e8] sm:$0xff] %vm3303, %v5914
  %6044 = vst.msk [vmem:[#allocation4 + $0x3f8] sm:$0xff] %vm3303, %v5916
  %v6045 = vld [vmem:[#allocation4] sm:$0xff]
  %v6046 = vld [vmem:[#allocation4 + $0x8] sm:$0xff]
  %v6047 = vld [vmem:[#allocation4 + $0x10] sm:$0xff]
  %v6048 = vld [vmem:[#allocation4 + $0x18] sm:$0xff]
  %v6049 = vld [vmem:[#allocation4 + $0x20] sm:$0xff]
  %v6050 = vld [vmem:[#allocation4 + $0x28] sm:$0xff]
  %v6051 = vld [vmem:[#allocation4 + $0x30] sm:$0xff]
  %v6052 = vld [vmem:[#allocation4 + $0x38] sm:$0xff]
  %v6053 = vld [vmem:[#allocation4 + $0x40] sm:$0xff]
  %v6054 = vld [vmem:[#allocation4 + $0x48] sm:$0xff]
  %v6055 = vld [vmem:[#allocation4 + $0x50] sm:$0xff]
  %v6056 = vld [vmem:[#allocation4 + $0x58] sm:$0xff]
  %v6057 = vld [vmem:[#allocation4 + $0x60] sm:$0xff]
  %v6058 = vld [vmem:[#allocation4 + $0x68] sm:$0xff]
  %v6059 = vld [vmem:[#allocation4 + $0x70] sm:$0xff]
  %v6060 = vld [vmem:[#allocation4 + $0x78] sm:$0xff]
  %v6061 = vld [vmem:[#allocation4 + $0x80] sm:$0xff]
  %v6062 = vld [vmem:[#allocation4 + $0x88] sm:$0xff]
  %v6063 = vld [vmem:[#allocation4 + $0x90] sm:$0xff]
  %v6064 = vld [vmem:[#allocation4 + $0x98] sm:$0xff]
  %v6065 = vld [vmem:[#allocation4 + $0xa0] sm:$0xff]
  %v6066 = vld [vmem:[#allocation4 + $0xa8] sm:$0xff]
  %v6067 = vld [vmem:[#allocation4 + $0xb0] sm:$0xff]
  %v6068 = vld [vmem:[#allocation4 + $0xb8] sm:$0xff]
  %v6069 = vld [vmem:[#allocation4 + $0xc0] sm:$0xff]
  %v6070 = vld [vmem:[#allocation4 + $0xc8] sm:$0xff]
  %v6071 = vld [vmem:[#allocation4 + $0xd0] sm:$0xff]
  %v6072 = vld [vmem:[#allocation4 + $0xd8] sm:$0xff]
  %v6073 = vld [vmem:[#allocation4 + $0xe0] sm:$0xff]
  %v6074 = vld [vmem:[#allocation4 + $0xe8] sm:$0xff]
  %v6075 = vld [vmem:[#allocation4 + $0xf0] sm:$0xff]
  %v6076 = vld [vmem:[#allocation4 + $0xf8] sm:$0xff]
  %v6077 = vld [vmem:[#allocation4 + $0x100] sm:$0xff]
  %v6078 = vld [vmem:[#allocation4 + $0x108] sm:$0xff]
  %v6079 = vld [vmem:[#allocation4 + $0x110] sm:$0xff]
  %v6080 = vld [vmem:[#allocation4 + $0x118] sm:$0xff]
  %v6081 = vld [vmem:[#allocation4 + $0x120] sm:$0xff]
  %v6082 = vld [vmem:[#allocation4 + $0x128] sm:$0xff]
  %v6083 = vld [vmem:[#allocation4 + $0x130] sm:$0xff]
  %v6084 = vld [vmem:[#allocation4 + $0x138] sm:$0xff]
  %v6085 = vld [vmem:[#allocation4 + $0x140] sm:$0xff]
  %v6086 = vld [vmem:[#allocation4 + $0x148] sm:$0xff]
  %v6087 = vld [vmem:[#allocation4 + $0x150] sm:$0xff]
  %v6088 = vld [vmem:[#allocation4 + $0x158] sm:$0xff]
  %v6089 = vld [vmem:[#allocation4 + $0x160] sm:$0xff]
  %v6090 = vld [vmem:[#allocation4 + $0x168] sm:$0xff]
  %v6091 = vld [vmem:[#allocation4 + $0x170] sm:$0xff]
  %v6092 = vld [vmem:[#allocation4 + $0x178] sm:$0xff]
  %v6093 = vld [vmem:[#allocation4 + $0x180] sm:$0xff]
  %v6094 = vld [vmem:[#allocation4 + $0x188] sm:$0xff]
  %v6095 = vld [vmem:[#allocation4 + $0x190] sm:$0xff]
  %v6096 = vld [vmem:[#allocation4 + $0x198] sm:$0xff]
  %v6097 = vld [vmem:[#allocation4 + $0x1a0] sm:$0xff]
  %v6098 = vld [vmem:[#allocation4 + $0x1a8] sm:$0xff]
  %v6099 = vld [vmem:[#allocation4 + $0x1b0] sm:$0xff]
  %v6100 = vld [vmem:[#allocation4 + $0x1b8] sm:$0xff]
  %v6101 = vld [vmem:[#allocation4 + $0x1c0] sm:$0xff]
  %v6102 = vld [vmem:[#allocation4 + $0x1c8] sm:$0xff]
  %v6103 = vld [vmem:[#allocation4 + $0x1d0] sm:$0xff]
  %v6104 = vld [vmem:[#allocation4 + $0x1d8] sm:$0xff]
  %v6105 = vld [vmem:[#allocation4 + $0x1e0] sm:$0xff]
  %v6106 = vld [vmem:[#allocation4 + $0x1e8] sm:$0xff]
  %v6107 = vld [vmem:[#allocation4 + $0x1f0] sm:$0xff]
  %v6108 = vld [vmem:[#allocation4 + $0x1f8] sm:$0xff]
  %v6109 = vld [vmem:[#allocation4 + $0x200] sm:$0xff]
  %v6110 = vld [vmem:[#allocation4 + $0x208] sm:$0xff]
  %v6111 = vld [vmem:[#allocation4 + $0x210] sm:$0xff]
  %v6112 = vld [vmem:[#allocation4 + $0x218] sm:$0xff]
  %v6113 = vld [vmem:[#allocation4 + $0x220] sm:$0xff]
  %v6114 = vld [vmem:[#allocation4 + $0x228] sm:$0xff]
  %v6115 = vld [vmem:[#allocation4 + $0x230] sm:$0xff]
  %v6116 = vld [vmem:[#allocation4 + $0x238] sm:$0xff]
  %v6117 = vld [vmem:[#allocation4 + $0x240] sm:$0xff]
  %v6118 = vld [vmem:[#allocation4 + $0x248] sm:$0xff]
  %v6119 = vld [vmem:[#allocation4 + $0x250] sm:$0xff]
  %v6120 = vld [vmem:[#allocation4 + $0x258] sm:$0xff]
  %v6121 = vld [vmem:[#allocation4 + $0x260] sm:$0xff]
  %v6122 = vld [vmem:[#allocation4 + $0x268] sm:$0xff]
  %v6123 = vld [vmem:[#allocation4 + $0x270] sm:$0xff]
  %v6124 = vld [vmem:[#allocation4 + $0x278] sm:$0xff]
  %v6125 = vld [vmem:[#allocation4 + $0x280] sm:$0xff]
  %v6126 = vld [vmem:[#allocation4 + $0x288] sm:$0xff]
  %v6127 = vld [vmem:[#allocation4 + $0x290] sm:$0xff]
  %v6128 = vld [vmem:[#allocation4 + $0x298] sm:$0xff]
  %v6129 = vld [vmem:[#allocation4 + $0x2a0] sm:$0xff]
  %v6130 = vld [vmem:[#allocation4 + $0x2a8] sm:$0xff]
  %v6131 = vld [vmem:[#allocation4 + $0x2b0] sm:$0xff]
  %v6132 = vld [vmem:[#allocation4 + $0x2b8] sm:$0xff]
  %v6133 = vld [vmem:[#allocation4 + $0x2c0] sm:$0xff]
  %v6134 = vld [vmem:[#allocation4 + $0x2c8] sm:$0xff]
  %v6135 = vld [vmem:[#allocation4 + $0x2d0] sm:$0xff]
  %v6136 = vld [vmem:[#allocation4 + $0x2d8] sm:$0xff]
  %v6137 = vld [vmem:[#allocation4 + $0x2e0] sm:$0xff]
  %v6138 = vld [vmem:[#allocation4 + $0x2e8] sm:$0xff]
  %v6139 = vld [vmem:[#allocation4 + $0x2f0] sm:$0xff]
  %v6140 = vld [vmem:[#allocation4 + $0x2f8] sm:$0xff]
  %v6141 = vld [vmem:[#allocation4 + $0x300] sm:$0xff]
  %v6142 = vld [vmem:[#allocation4 + $0x308] sm:$0xff]
  %v6143 = vld [vmem:[#allocation4 + $0x310] sm:$0xff]
  %v6144 = vld [vmem:[#allocation4 + $0x318] sm:$0xff]
  %v6145 = vld [vmem:[#allocation4 + $0x320] sm:$0xff]
  %v6146 = vld [vmem:[#allocation4 + $0x328] sm:$0xff]
  %v6147 = vld [vmem:[#allocation4 + $0x330] sm:$0xff]
  %v6148 = vld [vmem:[#allocation4 + $0x338] sm:$0xff]
  %v6149 = vld [vmem:[#allocation4 + $0x340] sm:$0xff]
  %v6150 = vld [vmem:[#allocation4 + $0x348] sm:$0xff]
  %v6151 = vld [vmem:[#allocation4 + $0x350] sm:$0xff]
  %v6152 = vld [vmem:[#allocation4 + $0x358] sm:$0xff]
  %v6153 = vld [vmem:[#allocation4 + $0x360] sm:$0xff]
  %v6154 = vld [vmem:[#allocation4 + $0x368] sm:$0xff]
  %v6155 = vld [vmem:[#allocation4 + $0x370] sm:$0xff]
  %v6156 = vld [vmem:[#allocation4 + $0x378] sm:$0xff]
  %v6157 = vld [vmem:[#allocation4 + $0x380] sm:$0xff]
  %v6158 = vld [vmem:[#allocation4 + $0x388] sm:$0xff]
  %v6159 = vld [vmem:[#allocation4 + $0x390] sm:$0xff]
  %v6160 = vld [vmem:[#allocation4 + $0x398] sm:$0xff]
  %v6161 = vld [vmem:[#allocation4 + $0x3a0] sm:$0xff]
  %v6162 = vld [vmem:[#allocation4 + $0x3a8] sm:$0xff]
  %v6163 = vld [vmem:[#allocation4 + $0x3b0] sm:$0xff]
  %v6164 = vld [vmem:[#allocation4 + $0x3b8] sm:$0xff]
  %v6165 = vld [vmem:[#allocation4 + $0x3c0] sm:$0xff]
  %v6166 = vld [vmem:[#allocation4 + $0x3c8] sm:$0xff]
  %v6167 = vld [vmem:[#allocation4 + $0x3d0] sm:$0xff]
  %v6168 = vld [vmem:[#allocation4 + $0x3d8] sm:$0xff]
  %v6169 = vld [vmem:[#allocation4 + $0x3e0] sm:$0xff]
  %v6170 = vld [vmem:[#allocation4 + $0x3e8] sm:$0xff]
  %v6171 = vld [vmem:[#allocation4 + $0x3f0] sm:$0xff]
  %v6172 = vld [vmem:[#allocation4 + $0x3f8] sm:$0xff]
  %v6173 = vld [vmem:[%s3] sm:$0xf]
  %v6174 = vld [vmem:[%s3 + $0x4] sm:$0xf]
  %v6175 = vld [vmem:[%s3 + $0x8] sm:$0xf]
  %v6176 = vld [vmem:[%s3 + $0xc] sm:$0xf]
  %v6177 = vld [vmem:[%s3 + $0x10] sm:$0xf]
  %v6178 = vld [vmem:[%s3 + $0x14] sm:$0xf]
  %v6179 = vld [vmem:[%s3 + $0x18] sm:$0xf]
  %v6180 = vld [vmem:[%s3 + $0x1c] sm:$0xf]
  %v6181 = vld [vmem:[%s3 + $0x20] sm:$0xf]
  %v6182 = vld [vmem:[%s3 + $0x24] sm:$0xf]
  %v6183 = vld [vmem:[%s3 + $0x28] sm:$0xf]
  %v6184 = vld [vmem:[%s3 + $0x2c] sm:$0xf]
  %v6185 = vld [vmem:[%s3 + $0x30] sm:$0xf]
  %v6186 = vld [vmem:[%s3 + $0x34] sm:$0xf]
  %v6187 = vld [vmem:[%s3 + $0x38] sm:$0xf]
  %v6188 = vld [vmem:[%s3 + $0x3c] sm:$0xf]
  %v6189 = vld [vmem:[%s3 + $0x40] sm:$0xf]
  %v6190 = vld [vmem:[%s3 + $0x44] sm:$0xf]
  %v6191 = vpack.c.bf16 %v6047, %v6045
  %v6192 = vpack.c.bf16 %v6048, %v6046
  %v6193 = vpack.c.bf16 %v6051, %v6049
  %v6194 = vpack.c.bf16 %v6052, %v6050
  %v6195 = vpack.c.bf16 %v6055, %v6053
  %v6196 = vpack.c.bf16 %v6056, %v6054
  %v6197 = vpack.c.bf16 %v6059, %v6057
  %v6198 = vpack.c.bf16 %v6060, %v6058
  %v6199 = vpack.c.bf16 %v6063, %v6061
  %v6200 = vpack.c.bf16 %v6064, %v6062
  %v6201 = vpack.c.bf16 %v6067, %v6065
  %v6202 = vpack.c.bf16 %v6068, %v6066
  %v6203 = vpack.c.bf16 %v6071, %v6069
  %v6204 = vpack.c.bf16 %v6072, %v6070
  %v6205 = vpack.c.bf16 %v6075, %v6073
  %v6206 = vpack.c.bf16 %v6076, %v6074
  %v6207 = vpack.c.bf16 %v6079, %v6077
  %v6208 = vpack.c.bf16 %v6080, %v6078
  %v6209 = vpack.c.bf16 %v6083, %v6081
  %v6210 = vpack.c.bf16 %v6084, %v6082
  %v6211 = vpack.c.bf16 %v6087, %v6085
  %v6212 = vpack.c.bf16 %v6088, %v6086
  %v6213 = vpack.c.bf16 %v6091, %v6089
  %v6214 = vpack.c.bf16 %v6092, %v6090
  %v6215 = vpack.c.bf16 %v6095, %v6093
  %v6216 = vpack.c.bf16 %v6096, %v6094
  %v6217 = vpack.c.bf16 %v6099, %v6097
  %v6218 = vpack.c.bf16 %v6100, %v6098
  %v6219 = vpack.c.bf16 %v6103, %v6101
  %v6220 = vpack.c.bf16 %v6104, %v6102
  %v6221 = vpack.c.bf16 %v6107, %v6105
  %v6222 = vpack.c.bf16 %v6108, %v6106
  %v6223 = vpack.c.bf16 %v6111, %v6109
  %v6224 = vpack.c.bf16 %v6112, %v6110
  %v6225 = vpack.c.bf16 %v6115, %v6113
  %v6226 = vpack.c.bf16 %v6116, %v6114
  %v6227 = vpack.c.bf16 %v6119, %v6117
  %v6228 = vpack.c.bf16 %v6120, %v6118
  %v6229 = vpack.c.bf16 %v6123, %v6121
  %v6230 = vpack.c.bf16 %v6124, %v6122
  %v6231 = vpack.c.bf16 %v6127, %v6125
  %v6232 = vpack.c.bf16 %v6128, %v6126
  %v6233 = vpack.c.bf16 %v6131, %v6129
  %v6234 = vpack.c.bf16 %v6132, %v6130
  %v6235 = vpack.c.bf16 %v6135, %v6133
  %v6236 = vpack.c.bf16 %v6136, %v6134
  %v6237 = vpack.c.bf16 %v6139, %v6137
  %v6238 = vpack.c.bf16 %v6140, %v6138
  %v6239 = vpack.c.bf16 %v6143, %v6141
  %v6240 = vpack.c.bf16 %v6144, %v6142
  %v6241 = vpack.c.bf16 %v6147, %v6145
  %v6242 = vpack.c.bf16 %v6148, %v6146
  %v6243 = vpack.c.bf16 %v6151, %v6149
  %v6244 = vpack.c.bf16 %v6152, %v6150
  %v6245 = vpack.c.bf16 %v6155, %v6153
  %v6246 = vpack.c.bf16 %v6156, %v6154
  %v6247 = vpack.c.bf16 %v6159, %v6157
  %v6248 = vpack.c.bf16 %v6160, %v6158
  %v6249 = vpack.c.bf16 %v6163, %v6161
  %v6250 = vpack.c.bf16 %v6164, %v6162
  %v6251 = vpack.c.bf16 %v6167, %v6165
  %v6252 = vpack.c.bf16 %v6168, %v6166
  %v6253 = vpack.c.bf16 %v6171, %v6169
  %v6254 = vpack.c.bf16 %v6172, %v6170
  %v6255 = vld [vmem:[%s4] sm:$0x1]
  %v6257 = vlaneseq
  %v6258 = vshrl.u32 %v6257, 7
  %v6259 = vsub.s32 0, %v6258
  %v6260 = vrot.slane %v6255, %v6259
  %v6280 = vunpack.c.l.b16 %v6173
  %v6281 = vunpack.c.l.b16 %v6174
  %v6282 = vunpack.c.l.b16 %v6175
  %v6283 = vunpack.c.l.b16 %v6176
  %v6284 = vunpack.c.l.b16 %v6177
  %v6285 = vunpack.c.l.b16 %v6178
  %v6286 = vunpack.c.l.b16 %v6179
  %v6287 = vunpack.c.l.b16 %v6180
  %v6288 = vunpack.c.l.b16 %v6181
  %v6289 = vunpack.c.l.b16 %v6182
  %v6290 = vunpack.c.l.b16 %v6183
  %v6291 = vunpack.c.l.b16 %v6184
  %v6292 = vunpack.c.l.b16 %v6185
  %v6293 = vunpack.c.l.b16 %v6186
  %v6294 = vunpack.c.l.b16 %v6187
  %v6295 = vunpack.c.l.b16 %v6188
  %v6296 = vunpack.c.l.b16 %v6189
  %v6297 = vunpack.c.l.b16 %v6190
  %v6298 = vpack.c.b16 %v6281, %v6280
  %v6299 = vpack.c.b16 %v6283, %v6282
  %v6300 = vpack.c.b16 %v6285, %v6284
  %v6301 = vpack.c.b16 %v6287, %v6286
  %v6302 = vpack.c.b16 %v6289, %v6288
  %v6303 = vpack.c.b16 %v6291, %v6290
  %v6304 = vpack.c.b16 %v6293, %v6292
  %v6305 = vpack.c.b16 %v6295, %v6294
  %v6306 = vpack.c.b16 %v6297, %v6296
  %v6317 = vsel %vm3303, %v6192, 0
  %v6320 = vsel %vm3303, %v6194, 0
  %v6323 = vsel %vm3303, %v6196, 0
  %v6326 = vsel %vm3303, %v6198, 0
  %v6329 = vsel %vm3303, %v6200, 0
  %v6332 = vsel %vm3303, %v6202, 0
  %v6335 = vsel %vm3303, %v6204, 0
  %v6338 = vsel %vm3303, %v6206, 0
  %v6341 = vsel %vm3303, %v6208, 0
  %v6344 = vsel %vm3303, %v6210, 0
  %v6347 = vsel %vm3303, %v6212, 0
  %v6350 = vsel %vm3303, %v6214, 0
  %v6353 = vsel %vm3303, %v6216, 0
  %v6356 = vsel %vm3303, %v6218, 0
  %v6359 = vsel %vm3303, %v6220, 0
  %v6362 = vsel %vm3303, %v6222, 0
  %v6365 = vsel %vm3303, %v6224, 0
  %v6368 = vsel %vm3303, %v6226, 0
  %v6371 = vsel %vm3303, %v6228, 0
  %v6374 = vsel %vm3303, %v6230, 0
  %v6377 = vsel %vm3303, %v6232, 0
  %v6380 = vsel %vm3303, %v6234, 0
  %v6383 = vsel %vm3303, %v6236, 0
  %v6386 = vsel %vm3303, %v6238, 0
  %v6389 = vsel %vm3303, %v6240, 0
  %v6392 = vsel %vm3303, %v6242, 0
  %v6395 = vsel %vm3303, %v6244, 0
  %v6398 = vsel %vm3303, %v6246, 0
  %v6401 = vsel %vm3303, %v6248, 0
  %v6404 = vsel %vm3303, %v6250, 0
  %v6407 = vsel %vm3303, %v6252, 0
  %v6410 = vsel %vm3303, %v6254, 0
  %6412 = vmatprep.subr.bf16.mxu0 0
  %6413 = vmatpush1.bf16.msra.mxu0 %v6305
  %6414 = vmatprep.subr.bf16.mxu0 0
  %6415 = vmatpush1.bf16.msra.mxu0 %v6304
  %6416 = vmatprep.subr.bf16.mxu0 0
  %6417 = vmatpush1.bf16.msra.mxu0 %v6303
  %6418 = vmatprep.subr.bf16.mxu0 0
  %6419 = vmatpush1.bf16.msra.mxu0 %v6302
  %6420 = vmatprep.subr.bf16.mxu0 0
  %6421 = vmatpush1.bf16.msra.mxu0 %v6301
  %6422 = vmatprep.subr.bf16.mxu0 0
  %6423 = vmatpush1.bf16.msra.mxu0 %v6300
  %6424 = vmatprep.subr.bf16.mxu0 0
  %6425 = vmatpush1.bf16.msra.mxu0 %v6299
  %6426 = vmatprep.subr.bf16.mxu0 0
  %6427 = vmatpush1.bf16.msra.mxu0 %v6298
  %6428 = vmatprep.subr.bf16.mxu0 0
  %6429 = vmatpush2.bf16.msra.mxu0 0
  %6430 = vmatprep.subr.bf16.mxu0 0
  %6431 = vmatpush2.bf16.msra.mxu0 0
  %6432 = vmatprep.subr.bf16.mxu0 0
  %6433 = vmatpush2.bf16.msra.mxu0 0
  %6434 = vmatprep.subr.bf16.mxu0 0
  %6435 = vmatpush2.bf16.msra.mxu0 0
  %6436 = vmatprep.subr.bf16.mxu0 0
  %6437 = vmatpush2.bf16.msra.mxu0 0
  %6438 = vmatprep.subr.bf16.mxu0 0
  %6439 = vmatpush2.bf16.msra.mxu0 0
  %6440 = vmatprep.subr.bf16.mxu0 0
  %6441 = vmatpush2.bf16.msra.mxu0 0
  %6442 = vmatprep.subr.bf16.mxu0 0
  %6443 = vmatpush2.bf16.msra.mxu0 %v6306
  %6444 = vmatprep.mubr.bf16.mxu0 %v6317
  %6445 = vmatmul.mubr.bf16.gmra.mxu0 %v6191
  %v6446 = vpop.f32.mrf.mxu0
  %v6447 = vadd.f32 %v6260, %v6446
  %v6448 = vpop.f32.mrf.mxu0
  %v6449 = vpop.f32.mrf.mxu0
  %v6450 = vadd.f32 %v6260, %v6449
  %v6451 = vpop.f32.mrf.mxu0
  %6452 = vmatprep.mubr.bf16.mxu0 %v6320
  %6453 = vmatmul.mubr.bf16.gmra.mxu0 %v6193
  %v6454 = vpop.f32.mrf.mxu0
  %v6455 = vadd.f32 %v6260, %v6454
  %v6456 = vpop.f32.mrf.mxu0
  %v6457 = vpop.f32.mrf.mxu0
  %v6458 = vadd.f32 %v6260, %v6457
  %v6459 = vpop.f32.mrf.mxu0
  %6460 = vmatprep.mubr.bf16.mxu0 %v6323
  %6461 = vmatmul.mubr.bf16.gmra.mxu0 %v6195
  %v6462 = vpop.f32.mrf.mxu0
  %v6463 = vadd.f32 %v6260, %v6462
  %v6464 = vpop.f32.mrf.mxu0
  %v6465 = vpop.f32.mrf.mxu0
  %v6466 = vadd.f32 %v6260, %v6465
  %v6467 = vpop.f32.mrf.mxu0
  %6468 = vmatprep.mubr.bf16.mxu0 %v6326
  %6469 = vmatmul.mubr.bf16.gmra.mxu0 %v6197
  %v6470 = vpop.f32.mrf.mxu0
  %v6471 = vadd.f32 %v6260, %v6470
  %v6472 = vpop.f32.mrf.mxu0
  %v6473 = vpop.f32.mrf.mxu0
  %v6474 = vadd.f32 %v6260, %v6473
  %v6475 = vpop.f32.mrf.mxu0
  %6476 = vmatprep.mubr.bf16.mxu0 %v6329
  %6477 = vmatmul.mubr.bf16.gmra.mxu0 %v6199
  %v6478 = vpop.f32.mrf.mxu0
  %v6479 = vadd.f32 %v6260, %v6478
  %v6480 = vpop.f32.mrf.mxu0
  %v6481 = vpop.f32.mrf.mxu0
  %v6482 = vadd.f32 %v6260, %v6481
  %v6483 = vpop.f32.mrf.mxu0
  %6484 = vmatprep.mubr.bf16.mxu0 %v6332
  %6485 = vmatmul.mubr.bf16.gmra.mxu0 %v6201
  %v6486 = vpop.f32.mrf.mxu0
  %v6487 = vadd.f32 %v6260, %v6486
  %v6488 = vpop.f32.mrf.mxu0
  %v6489 = vpop.f32.mrf.mxu0
  %v6490 = vadd.f32 %v6260, %v6489
  %v6491 = vpop.f32.mrf.mxu0
  %6492 = vmatprep.mubr.bf16.mxu0 %v6335
  %6493 = vmatmul.mubr.bf16.gmra.mxu0 %v6203
  %v6494 = vpop.f32.mrf.mxu0
  %v6495 = vadd.f32 %v6260, %v6494
  %v6496 = vpop.f32.mrf.mxu0
  %v6497 = vpop.f32.mrf.mxu0
  %v6498 = vadd.f32 %v6260, %v6497
  %v6499 = vpop.f32.mrf.mxu0
  %6500 = vmatprep.mubr.bf16.mxu0 %v6338
  %6501 = vmatmul.mubr.bf16.gmra.mxu0 %v6205
  %v6502 = vpop.f32.mrf.mxu0
  %v6503 = vadd.f32 %v6260, %v6502
  %v6504 = vpop.f32.mrf.mxu0
  %v6505 = vpop.f32.mrf.mxu0
  %v6506 = vadd.f32 %v6260, %v6505
  %v6507 = vpop.f32.mrf.mxu0
  %6508 = vmatprep.mubr.bf16.mxu0 %v6341
  %6509 = vmatmul.mubr.bf16.gmra.mxu0 %v6207
  %v6510 = vpop.f32.mrf.mxu0
  %v6511 = vadd.f32 %v6260, %v6510
  %v6512 = vpop.f32.mrf.mxu0
  %v6513 = vpop.f32.mrf.mxu0
  %v6514 = vadd.f32 %v6260, %v6513
  %v6515 = vpop.f32.mrf.mxu0
  %6516 = vmatprep.mubr.bf16.mxu0 %v6344
  %6517 = vmatmul.mubr.bf16.gmra.mxu0 %v6209
  %v6518 = vpop.f32.mrf.mxu0
  %v6519 = vadd.f32 %v6260, %v6518
  %v6520 = vpop.f32.mrf.mxu0
  %v6521 = vpop.f32.mrf.mxu0
  %v6522 = vadd.f32 %v6260, %v6521
  %v6523 = vpop.f32.mrf.mxu0
  %6524 = vmatprep.mubr.bf16.mxu0 %v6347
  %6525 = vmatmul.mubr.bf16.gmra.mxu0 %v6211
  %v6526 = vpop.f32.mrf.mxu0
  %v6527 = vadd.f32 %v6260, %v6526
  %v6528 = vpop.f32.mrf.mxu0
  %v6529 = vpop.f32.mrf.mxu0
  %v6530 = vadd.f32 %v6260, %v6529
  %v6531 = vpop.f32.mrf.mxu0
  %6532 = vmatprep.mubr.bf16.mxu0 %v6350
  %6533 = vmatmul.mubr.bf16.gmra.mxu0 %v6213
  %v6534 = vpop.f32.mrf.mxu0
  %v6535 = vadd.f32 %v6260, %v6534
  %v6536 = vpop.f32.mrf.mxu0
  %v6537 = vpop.f32.mrf.mxu0
  %v6538 = vadd.f32 %v6260, %v6537
  %v6539 = vpop.f32.mrf.mxu0
  %6540 = vmatprep.mubr.bf16.mxu0 %v6353
  %6541 = vmatmul.mubr.bf16.gmra.mxu0 %v6215
  %v6542 = vpop.f32.mrf.mxu0
  %v6543 = vadd.f32 %v6260, %v6542
  %v6544 = vpop.f32.mrf.mxu0
  %v6545 = vpop.f32.mrf.mxu0
  %v6546 = vadd.f32 %v6260, %v6545
  %v6547 = vpop.f32.mrf.mxu0
  %6548 = vmatprep.mubr.bf16.mxu0 %v6356
  %6549 = vmatmul.mubr.bf16.gmra.mxu0 %v6217
  %v6550 = vpop.f32.mrf.mxu0
  %v6551 = vadd.f32 %v6260, %v6550
  %v6552 = vpop.f32.mrf.mxu0
  %v6553 = vpop.f32.mrf.mxu0
  %v6554 = vadd.f32 %v6260, %v6553
  %v6555 = vpop.f32.mrf.mxu0
  %6556 = vmatprep.mubr.bf16.mxu0 %v6359
  %6557 = vmatmul.mubr.bf16.gmra.mxu0 %v6219
  %v6558 = vpop.f32.mrf.mxu0
  %v6559 = vadd.f32 %v6260, %v6558
  %v6560 = vpop.f32.mrf.mxu0
  %v6561 = vpop.f32.mrf.mxu0
  %v6562 = vadd.f32 %v6260, %v6561
  %v6563 = vpop.f32.mrf.mxu0
  %6564 = vmatprep.mubr.bf16.mxu0 %v6362
  %6565 = vmatmul.mubr.bf16.gmra.mxu0 %v6221
  %v6566 = vpop.f32.mrf.mxu0
  %v6567 = vadd.f32 %v6260, %v6566
  %v6568 = vpop.f32.mrf.mxu0
  %v6569 = vpop.f32.mrf.mxu0
  %v6570 = vadd.f32 %v6260, %v6569
  %v6571 = vpop.f32.mrf.mxu0
  %6572 = vmatprep.mubr.bf16.mxu0 %v6365
  %6573 = vmatmul.mubr.bf16.gmra.mxu0 %v6223
  %v6574 = vpop.f32.mrf.mxu0
  %v6575 = vadd.f32 %v6260, %v6574
  %v6576 = vpop.f32.mrf.mxu0
  %v6577 = vpop.f32.mrf.mxu0
  %v6578 = vadd.f32 %v6260, %v6577
  %v6579 = vpop.f32.mrf.mxu0
  %6580 = vmatprep.mubr.bf16.mxu0 %v6368
  %6581 = vmatmul.mubr.bf16.gmra.mxu0 %v6225
  %v6582 = vpop.f32.mrf.mxu0
  %v6583 = vadd.f32 %v6260, %v6582
  %v6584 = vpop.f32.mrf.mxu0
  %v6585 = vpop.f32.mrf.mxu0
  %v6586 = vadd.f32 %v6260, %v6585
  %v6587 = vpop.f32.mrf.mxu0
  %6588 = vmatprep.mubr.bf16.mxu0 %v6371
  %6589 = vmatmul.mubr.bf16.gmra.mxu0 %v6227
  %v6590 = vpop.f32.mrf.mxu0
  %v6591 = vadd.f32 %v6260, %v6590
  %v6592 = vpop.f32.mrf.mxu0
  %v6593 = vpop.f32.mrf.mxu0
  %v6594 = vadd.f32 %v6260, %v6593
  %v6595 = vpop.f32.mrf.mxu0
  %6596 = vmatprep.mubr.bf16.mxu0 %v6374
  %6597 = vmatmul.mubr.bf16.gmra.mxu0 %v6229
  %v6598 = vpop.f32.mrf.mxu0
  %v6599 = vadd.f32 %v6260, %v6598
  %v6600 = vpop.f32.mrf.mxu0
  %v6601 = vpop.f32.mrf.mxu0
  %v6602 = vadd.f32 %v6260, %v6601
  %v6603 = vpop.f32.mrf.mxu0
  %6604 = vmatprep.mubr.bf16.mxu0 %v6377
  %6605 = vmatmul.mubr.bf16.gmra.mxu0 %v6231
  %v6606 = vpop.f32.mrf.mxu0
  %v6607 = vadd.f32 %v6260, %v6606
  %v6608 = vpop.f32.mrf.mxu0
  %v6609 = vpop.f32.mrf.mxu0
  %v6610 = vadd.f32 %v6260, %v6609
  %v6611 = vpop.f32.mrf.mxu0
  %6612 = vmatprep.mubr.bf16.mxu0 %v6380
  %6613 = vmatmul.mubr.bf16.gmra.mxu0 %v6233
  %v6614 = vpop.f32.mrf.mxu0
  %v6615 = vadd.f32 %v6260, %v6614
  %v6616 = vpop.f32.mrf.mxu0
  %v6617 = vpop.f32.mrf.mxu0
  %v6618 = vadd.f32 %v6260, %v6617
  %v6619 = vpop.f32.mrf.mxu0
  %6620 = vmatprep.mubr.bf16.mxu0 %v6383
  %6621 = vmatmul.mubr.bf16.gmra.mxu0 %v6235
  %v6622 = vpop.f32.mrf.mxu0
  %v6623 = vadd.f32 %v6260, %v6622
  %v6624 = vpop.f32.mrf.mxu0
  %v6625 = vpop.f32.mrf.mxu0
  %v6626 = vadd.f32 %v6260, %v6625
  %v6627 = vpop.f32.mrf.mxu0
  %6628 = vmatprep.mubr.bf16.mxu0 %v6386
  %6629 = vmatmul.mubr.bf16.gmra.mxu0 %v6237
  %v6630 = vpop.f32.mrf.mxu0
  %v6631 = vadd.f32 %v6260, %v6630
  %v6632 = vpop.f32.mrf.mxu0
  %v6633 = vpop.f32.mrf.mxu0
  %v6634 = vadd.f32 %v6260, %v6633
  %v6635 = vpop.f32.mrf.mxu0
  %6636 = vmatprep.mubr.bf16.mxu0 %v6389
  %6637 = vmatmul.mubr.bf16.gmra.mxu0 %v6239
  %v6638 = vpop.f32.mrf.mxu0
  %v6639 = vadd.f32 %v6260, %v6638
  %v6640 = vpop.f32.mrf.mxu0
  %v6641 = vpop.f32.mrf.mxu0
  %v6642 = vadd.f32 %v6260, %v6641
  %v6643 = vpop.f32.mrf.mxu0
  %6644 = vmatprep.mubr.bf16.mxu0 %v6392
  %6645 = vmatmul.mubr.bf16.gmra.mxu0 %v6241
  %v6646 = vpop.f32.mrf.mxu0
  %v6647 = vadd.f32 %v6260, %v6646
  %v6648 = vpop.f32.mrf.mxu0
  %v6649 = vpop.f32.mrf.mxu0
  %v6650 = vadd.f32 %v6260, %v6649
  %v6651 = vpop.f32.mrf.mxu0
  %6652 = vmatprep.mubr.bf16.mxu0 %v6395
  %6653 = vmatmul.mubr.bf16.gmra.mxu0 %v6243
  %v6654 = vpop.f32.mrf.mxu0
  %v6655 = vadd.f32 %v6260, %v6654
  %v6656 = vpop.f32.mrf.mxu0
  %v6657 = vpop.f32.mrf.mxu0
  %v6658 = vadd.f32 %v6260, %v6657
  %v6659 = vpop.f32.mrf.mxu0
  %6660 = vmatprep.mubr.bf16.mxu0 %v6398
  %6661 = vmatmul.mubr.bf16.gmra.mxu0 %v6245
  %v6662 = vpop.f32.mrf.mxu0
  %v6663 = vadd.f32 %v6260, %v6662
  %v6664 = vpop.f32.mrf.mxu0
  %v6665 = vpop.f32.mrf.mxu0
  %v6666 = vadd.f32 %v6260, %v6665
  %v6667 = vpop.f32.mrf.mxu0
  %6668 = vmatprep.mubr.bf16.mxu0 %v6401
  %6669 = vmatmul.mubr.bf16.gmra.mxu0 %v6247
  %v6670 = vpop.f32.mrf.mxu0
  %v6671 = vadd.f32 %v6260, %v6670
  %v6672 = vpop.f32.mrf.mxu0
  %v6673 = vpop.f32.mrf.mxu0
  %v6674 = vadd.f32 %v6260, %v6673
  %v6675 = vpop.f32.mrf.mxu0
  %6676 = vmatprep.mubr.bf16.mxu0 %v6404
  %6677 = vmatmul.mubr.bf16.gmra.mxu0 %v6249
  %v6678 = vpop.f32.mrf.mxu0
  %v6679 = vadd.f32 %v6260, %v6678
  %v6680 = vpop.f32.mrf.mxu0
  %v6681 = vpop.f32.mrf.mxu0
  %v6682 = vadd.f32 %v6260, %v6681
  %v6683 = vpop.f32.mrf.mxu0
  %6684 = vmatprep.mubr.bf16.mxu0 %v6407
  %6685 = vmatmul.mubr.bf16.gmra.mxu0 %v6251
  %v6686 = vpop.f32.mrf.mxu0
  %v6687 = vadd.f32 %v6260, %v6686
  %v6688 = vpop.f32.mrf.mxu0
  %v6689 = vpop.f32.mrf.mxu0
  %v6690 = vadd.f32 %v6260, %v6689
  %v6691 = vpop.f32.mrf.mxu0
  %6692 = vmatprep.mubr.bf16.mxu0 %v6410
  %6693 = vmatmul.mubr.bf16.gmra.mxu0 %v6253
  %v6694 = vpop.f32.mrf.mxu0
  %v6695 = vadd.f32 %v6260, %v6694
  %v6696 = vpop.f32.mrf.mxu0
  %v6697 = vpop.f32.mrf.mxu0
  %v6698 = vadd.f32 %v6260, %v6697
  %v6699 = vpop.f32.mrf.mxu0
  %6700 = vdwg.mxu0
  %v6701 = vmax.f32 %v6447, 0.0
  %v6702 = vmax.f32 %v6450, 0.0
  %v6703 = vmax.f32 %v6455, 0.0
  %v6704 = vmax.f32 %v6458, 0.0
  %v6705 = vmax.f32 %v6463, 0.0
  %v6706 = vmax.f32 %v6466, 0.0
  %v6707 = vmax.f32 %v6471, 0.0
  %v6708 = vmax.f32 %v6474, 0.0
  %v6709 = vmax.f32 %v6479, 0.0
  %v6710 = vmax.f32 %v6482, 0.0
  %v6711 = vmax.f32 %v6487, 0.0
  %v6712 = vmax.f32 %v6490, 0.0
  %v6713 = vmax.f32 %v6495, 0.0
  %v6714 = vmax.f32 %v6498, 0.0
  %v6715 = vmax.f32 %v6503, 0.0
  %v6716 = vmax.f32 %v6506, 0.0
  %v6717 = vmax.f32 %v6511, 0.0
  %v6718 = vmax.f32 %v6514, 0.0
  %v6719 = vmax.f32 %v6519, 0.0
  %v6720 = vmax.f32 %v6522, 0.0
  %v6721 = vmax.f32 %v6527, 0.0
  %v6722 = vmax.f32 %v6530, 0.0
  %v6723 = vmax.f32 %v6535, 0.0
  %v6724 = vmax.f32 %v6538, 0.0
  %v6725 = vmax.f32 %v6543, 0.0
  %v6726 = vmax.f32 %v6546, 0.0
  %v6727 = vmax.f32 %v6551, 0.0
  %v6728 = vmax.f32 %v6554, 0.0
  %v6729 = vmax.f32 %v6559, 0.0
  %v6730 = vmax.f32 %v6562, 0.0
  %v6731 = vmax.f32 %v6567, 0.0
  %v6732 = vmax.f32 %v6570, 0.0
  %v6733 = vmax.f32 %v6575, 0.0
  %v6734 = vmax.f32 %v6578, 0.0
  %v6735 = vmax.f32 %v6583, 0.0
  %v6736 = vmax.f32 %v6586, 0.0
  %v6737 = vmax.f32 %v6591, 0.0
  %v6738 = vmax.f32 %v6594, 0.0
  %v6739 = vmax.f32 %v6599, 0.0
  %v6740 = vmax.f32 %v6602, 0.0
  %v6741 = vmax.f32 %v6607, 0.0
  %v6742 = vmax.f32 %v6610, 0.0
  %v6743 = vmax.f32 %v6615, 0.0
  %v6744 = vmax.f32 %v6618, 0.0
  %v6745 = vmax.f32 %v6623, 0.0
  %v6746 = vmax.f32 %v6626, 0.0
  %v6747 = vmax.f32 %v6631, 0.0
  %v6748 = vmax.f32 %v6634, 0.0
  %v6749 = vmax.f32 %v6639, 0.0
  %v6750 = vmax.f32 %v6642, 0.0
  %v6751 = vmax.f32 %v6647, 0.0
  %v6752 = vmax.f32 %v6650, 0.0
  %v6753 = vmax.f32 %v6655, 0.0
  %v6754 = vmax.f32 %v6658, 0.0
  %v6755 = vmax.f32 %v6663, 0.0
  %v6756 = vmax.f32 %v6666, 0.0
  %v6757 = vmax.f32 %v6671, 0.0
  %v6758 = vmax.f32 %v6674, 0.0
  %v6759 = vmax.f32 %v6679, 0.0
  %v6760 = vmax.f32 %v6682, 0.0
  %v6761 = vmax.f32 %v6687, 0.0
  %v6762 = vmax.f32 %v6690, 0.0
  %v6763 = vmax.f32 %v6695, 0.0
  %v6764 = vmax.f32 %v6698, 0.0
  %vm6765 = vcmask 523264
  %v6766 = vsel %vm6765, %v6701, 0.0
  %v6767 = vsel %vm6765, %v6702, 0.0
  %v6768 = vadd.f32 %v6766, %v6767
  %v6769 = vsel %vm6765, %v6703, 0.0
  %v6770 = vadd.f32 %v6768, %v6769
  %v6771 = vsel %vm6765, %v6704, 0.0
  %v6772 = vadd.f32 %v6770, %v6771
  %v6773 = vsel %vm6765, %v6705, 0.0
  %v6774 = vadd.f32 %v6772, %v6773
  %v6775 = vsel %vm6765, %v6706, 0.0
  %v6776 = vadd.f32 %v6774, %v6775
  %v6777 = vsel %vm6765, %v6707, 0.0
  %v6778 = vadd.f32 %v6776, %v6777
  %v6779 = vsel %vm6765, %v6708, 0.0
  %v6780 = vadd.f32 %v6778, %v6779
  %v6781 = vsel %vm6765, %v6709, 0.0
  %v6782 = vadd.f32 %v6780, %v6781
  %v6783 = vsel %vm6765, %v6710, 0.0
  %v6784 = vadd.f32 %v6782, %v6783
  %v6785 = vsel %vm6765, %v6711, 0.0
  %v6786 = vadd.f32 %v6784, %v6785
  %v6787 = vsel %vm6765, %v6712, 0.0
  %v6788 = vadd.f32 %v6786, %v6787
  %v6789 = vsel %vm6765, %v6713, 0.0
  %v6790 = vadd.f32 %v6788, %v6789
  %v6791 = vsel %vm6765, %v6714, 0.0
  %v6792 = vadd.f32 %v6790, %v6791
  %v6793 = vsel %vm6765, %v6715, 0.0
  %v6794 = vadd.f32 %v6792, %v6793
  %v6795 = vsel %vm6765, %v6716, 0.0
  %v6796 = vadd.f32 %v6794, %v6795
  %v6797 = vsel %vm6765, %v6717, 0.0
  %v6798 = vadd.f32 %v6796, %v6797
  %v6799 = vsel %vm6765, %v6718, 0.0
  %v6800 = vadd.f32 %v6798, %v6799
  %v6801 = vsel %vm6765, %v6719, 0.0
  %v6802 = vadd.f32 %v6800, %v6801
  %v6803 = vsel %vm6765, %v6720, 0.0
  %v6804 = vadd.f32 %v6802, %v6803
  %v6805 = vsel %vm6765, %v6721, 0.0
  %v6806 = vadd.f32 %v6804, %v6805
  %v6807 = vsel %vm6765, %v6722, 0.0
  %v6808 = vadd.f32 %v6806, %v6807
  %v6809 = vsel %vm6765, %v6723, 0.0
  %v6810 = vadd.f32 %v6808, %v6809
  %v6811 = vsel %vm6765, %v6724, 0.0
  %v6812 = vadd.f32 %v6810, %v6811
  %v6813 = vsel %vm6765, %v6725, 0.0
  %v6814 = vadd.f32 %v6812, %v6813
  %v6815 = vsel %vm6765, %v6726, 0.0
  %v6816 = vadd.f32 %v6814, %v6815
  %v6817 = vsel %vm6765, %v6727, 0.0
  %v6818 = vadd.f32 %v6816, %v6817
  %v6819 = vsel %vm6765, %v6728, 0.0
  %v6820 = vadd.f32 %v6818, %v6819
  %v6821 = vsel %vm6765, %v6729, 0.0
  %v6822 = vadd.f32 %v6820, %v6821
  %v6823 = vsel %vm6765, %v6730, 0.0
  %v6824 = vadd.f32 %v6822, %v6823
  %v6825 = vsel %vm6765, %v6731, 0.0
  %v6826 = vadd.f32 %v6824, %v6825
  %v6827 = vsel %vm6765, %v6732, 0.0
  %v6828 = vadd.f32 %v6826, %v6827
  %v6829 = vrot.slane %v6828, 4
  %v6830 = vadd.f32 %v6828, %v6829
  %v6831 = vrot.slane %v6830, 2
  %v6832 = vadd.f32 %v6830, %v6831
  %v6833 = vrot.slane %v6832, 1
  %v6834 = vadd.f32 %v6832, %v6833
  %v6835 = vsel %vm6765, %v6733, 0.0
  %v6836 = vsel %vm6765, %v6734, 0.0
  %v6837 = vadd.f32 %v6835, %v6836
  %v6838 = vsel %vm6765, %v6735, 0.0
  %v6839 = vadd.f32 %v6837, %v6838
  %v6840 = vsel %vm6765, %v6736, 0.0
  %v6841 = vadd.f32 %v6839, %v6840
  %v6842 = vsel %vm6765, %v6737, 0.0
  %v6843 = vadd.f32 %v6841, %v6842
  %v6844 = vsel %vm6765, %v6738, 0.0
  %v6845 = vadd.f32 %v6843, %v6844
  %v6846 = vsel %vm6765, %v6739, 0.0
  %v6847 = vadd.f32 %v6845, %v6846
  %v6848 = vsel %vm6765, %v6740, 0.0
  %v6849 = vadd.f32 %v6847, %v6848
  %v6850 = vsel %vm6765, %v6741, 0.0
  %v6851 = vadd.f32 %v6849, %v6850
  %v6852 = vsel %vm6765, %v6742, 0.0
  %v6853 = vadd.f32 %v6851, %v6852
  %v6854 = vsel %vm6765, %v6743, 0.0
  %v6855 = vadd.f32 %v6853, %v6854
  %v6856 = vsel %vm6765, %v6744, 0.0
  %v6857 = vadd.f32 %v6855, %v6856
  %v6858 = vsel %vm6765, %v6745, 0.0
  %v6859 = vadd.f32 %v6857, %v6858
  %v6860 = vsel %vm6765, %v6746, 0.0
  %v6861 = vadd.f32 %v6859, %v6860
  %v6862 = vsel %vm6765, %v6747, 0.0
  %v6863 = vadd.f32 %v6861, %v6862
  %v6864 = vsel %vm6765, %v6748, 0.0
  %v6865 = vadd.f32 %v6863, %v6864
  %v6866 = vsel %vm6765, %v6749, 0.0
  %v6867 = vadd.f32 %v6865, %v6866
  %v6868 = vsel %vm6765, %v6750, 0.0
  %v6869 = vadd.f32 %v6867, %v6868
  %v6870 = vsel %vm6765, %v6751, 0.0
  %v6871 = vadd.f32 %v6869, %v6870
  %v6872 = vsel %vm6765, %v6752, 0.0
  %v6873 = vadd.f32 %v6871, %v6872
  %v6874 = vsel %vm6765, %v6753, 0.0
  %v6875 = vadd.f32 %v6873, %v6874
  %v6876 = vsel %vm6765, %v6754, 0.0
  %v6877 = vadd.f32 %v6875, %v6876
  %v6878 = vsel %vm6765, %v6755, 0.0
  %v6879 = vadd.f32 %v6877, %v6878
  %v6880 = vsel %vm6765, %v6756, 0.0
  %v6881 = vadd.f32 %v6879, %v6880
  %v6882 = vsel %vm6765, %v6757, 0.0
  %v6883 = vadd.f32 %v6881, %v6882
  %v6884 = vsel %vm6765, %v6758, 0.0
  %v6885 = vadd.f32 %v6883, %v6884
  %v6886 = vsel %vm6765, %v6759, 0.0
  %v6887 = vadd.f32 %v6885, %v6886
  %v6888 = vsel %vm6765, %v6760, 0.0
  %v6889 = vadd.f32 %v6887, %v6888
  %v6890 = vsel %vm6765, %v6761, 0.0
  %v6891 = vadd.f32 %v6889, %v6890
  %v6892 = vsel %vm6765, %v6762, 0.0
  %v6893 = vadd.f32 %v6891, %v6892
  %v6894 = vsel %vm6765, %v6763, 0.0
  %v6895 = vadd.f32 %v6893, %v6894
  %v6896 = vsel %vm6765, %v6764, 0.0
  %v6897 = vadd.f32 %v6895, %v6896
  %v6898 = vrot.slane %v6897, 4
  %v6899 = vadd.f32 %v6897, %v6898
  %v6900 = vrot.slane %v6899, 2
  %v6901 = vadd.f32 %v6899, %v6900
  %v6902 = vrot.slane %v6901, 1
  %v6903 = vadd.f32 %v6901, %v6902
  %v6904 = vrcp.pop 256.0
  %v6905 = vmul.f32 %v6834, %v6904
  %v6906 = vmul.f32 %v6903, %v6904
  %v6907 = vld [vmem:[%s5] sm:$0xff]
  %v6908 = vld [vmem:[%s5 + $0x8] sm:$0xff]
  %v6909 = vld [vmem:[%s5 + $0x10] sm:$0xff]
  %v6910 = vld [vmem:[%s5 + $0x18] sm:$0xff]
  %v6911 = vld [vmem:[%s5 + $0x20] sm:$0xff]
  %v6912 = vld [vmem:[%s5 + $0x28] sm:$0xff]
  %v6913 = vld [vmem:[%s5 + $0x30] sm:$0xff]
  %v6914 = vld [vmem:[%s5 + $0x38] sm:$0xff]
  %v6915 = vpack.c.bf16 %v6905, %v6905
  %v6916 = vpack.c.bf16 %v6906, %v6906
  %v6917 = vld [vmem:[%s6] sm:$0x3]
  %v6919 = vlaneseq
  %v6920 = vshrl.u32 %v6919, 7
  %v6921 = vsub.s32 0, %v6920
  %v6922 = vrot.slane %v6917, %v6921
  %v6923 = vlaneseq
  %v6924 = vshrl.u32 %v6923, 7
  %v6925 = vsub.s32 1, %v6924
  %v6926 = vrot.slane %v6917, %v6925
  %v6931 = vunpack.c.l.b16 %v6915
  %v6932 = vunpack.c.l.b16 %v6916
  %vm6933 = vcmask 1041409
  %v6934 = vsel %vm6933, %v6932, %v6931
  %v6935 = vpack.c.b16 %v6934, %v6934
  %v6944 = vunpack.c.l.b16 %v6907
  %v6945 = vunpack.c.h.b16 %v6907
  %v6946 = vunpack.c.l.b16 %v6908
  %v6947 = vunpack.c.h.b16 %v6908
  %v6948 = vunpack.c.l.b16 %v6909
  %v6949 = vunpack.c.h.b16 %v6909
  %v6950 = vunpack.c.l.b16 %v6910
  %v6951 = vunpack.c.h.b16 %v6910
  %v6952 = vunpack.c.l.b16 %v6911
  %v6953 = vunpack.c.h.b16 %v6911
  %v6954 = vunpack.c.l.b16 %v6912
  %v6955 = vunpack.c.h.b16 %v6912
  %v6956 = vunpack.c.l.b16 %v6913
  %v6957 = vunpack.c.h.b16 %v6913
  %v6958 = vunpack.c.l.b16 %v6914
  %v6959 = vunpack.c.h.b16 %v6914
  %v6960 = vpack.c.b16 %v6946, %v6944
  %v6961 = vpack.c.b16 %v6947, %v6945
  %v6962 = vpack.c.b16 %v6950, %v6948
  %v6963 = vpack.c.b16 %v6951, %v6949
  %v6964 = vpack.c.b16 %v6954, %v6952
  %v6965 = vpack.c.b16 %v6955, %v6953
  %v6966 = vpack.c.b16 %v6958, %v6956
  %v6967 = vpack.c.b16 %v6959, %v6957
  %v6977 = vsel %vm6765, %v6935, 0
  %6979 = vmatprep.subr.bf16.mxu0 0
  %6980 = vmatpush1.bf16.msra.mxu0 0
  %6981 = vmatprep.subr.bf16.mxu0 0
  %6982 = vmatpush1.bf16.msra.mxu0 0
  %6983 = vmatprep.subr.bf16.mxu0 0
  %6984 = vmatpush1.bf16.msra.mxu0 0
  %6985 = vmatprep.subr.bf16.mxu0 0
  %6986 = vmatpush1.bf16.msra.mxu0 0
  %6987 = vmatprep.subr.bf16.mxu0 %v6967
  %6988 = vmatpush1.bf16.msra.mxu0 %v6966
  %6989 = vmatprep.subr.bf16.mxu0 %v6965
  %6990 = vmatpush1.bf16.msra.mxu0 %v6964
  %6991 = vmatprep.subr.bf16.mxu0 %v6963
  %6992 = vmatpush1.bf16.msra.mxu0 %v6962
  %6993 = vmatprep.subr.bf16.mxu0 %v6961
  %6994 = vmatpush1.bf16.msra.mxu0 %v6960
  %6995 = vmatprep.subr.bf16.mxu0 0
  %6996 = vmatpush2.bf16.msra.mxu0 0
  %6997 = vmatprep.subr.bf16.mxu0 0
  %6998 = vmatpush2.bf16.msra.mxu0 0
  %6999 = vmatprep.subr.bf16.mxu0 0
  %7000 = vmatpush2.bf16.msra.mxu0 0
  %7001 = vmatprep.subr.bf16.mxu0 0
  %7002 = vmatpush2.bf16.msra.mxu0 0
  %7003 = vmatprep.subr.bf16.mxu0 0
  %7004 = vmatpush2.bf16.msra.mxu0 0
  %7005 = vmatprep.subr.bf16.mxu0 0
  %7006 = vmatpush2.bf16.msra.mxu0 0
  %7007 = vmatprep.subr.bf16.mxu0 0
  %7008 = vmatpush2.bf16.msra.mxu0 0
  %7009 = vmatprep.subr.bf16.mxu0 0
  %7010 = vmatpush2.bf16.msra.mxu0 0
  %7011 = vmatprep.mubr.bf16.mxu0 0
  %7012 = vmatmul.mubr.bf16.gmra.mxu0 %v6977
  %v7013 = vpop.f32.mrf.mxu0
  %v7014 = vadd.f32 %v6922, %v7013
  %v7015 = vpop.f32.mrf.mxu0
  %v7016 = vadd.f32 %v6926, %v7015
  %v7017 = vpop.f32.mrf.mxu0
  %v7018 = vpop.f32.mrf.mxu0
  %7019 = vdwg.mxu0
  %v7022 = vcombine.low %v7014, %v7016
  %v7024 = vunpack.c.l.s4 1983009808
  %v7025 = vunpack.c.0.s8 %v7024
  %v7026 = vlaneseq
  %v7027 = vshrl.u32 %v7026, 7
  %v7028 = vsub.s32 %v7025, %v7027
  %v7029 = vrot.slane %v7022, %v7028
  %7031 = vst [vmem:[%s7] sm:$0xf] %v7029
  // Predicated region
  $region30: #{multimodal_forward.4} parent=0 // pred_check
    _
  $region31: #{multimodal_forward.4} parent=0 // pred_check_branch
    %7033 = sbr.rel (0) target = $region33
  $region32: #{multimodal_forward.4} parent=0 // pred_region
    _
  $region33: #{multimodal_forward.4} parent=0 // pred_fallthru
    _
  // Predicated region
  $region34: #{multimodal_forward.4} parent=0 // pred_check
    _
  $region35: #{multimodal_forward.4} parent=0 // pred_check_branch
    %7035 = sbr.rel (0) target = $region37
  $region36: #{multimodal_forward.4} parent=0 // pred_region
    _
  $region37: #{multimodal_forward.4} parent=0 // pred_fallthru
    _

</llo_original>
